<compile_context>
chip_gen: v7x
topology: tpu7x:2x2x1
jax: 0.10.0
libtpu: 0.0.40
codegen_flags: <defaults>
</compile_context>

<pallas_src>
import functools

import jax
import jax.numpy as jnp
import numpy as np
from jax.experimental import pallas as pl
from jax.experimental.pallas import tpu as pltpu

BN_EPS = 1e-5
L0_TEMP = 2.0 / 3.0
L0_GAMMA = -0.1
L0_ZETA = 1.1
NUM_STAGES = 6


# ---------------------------------------------------------------------------
# Fused Pallas kernel: 6 x (conv3x3 + BN-bias + [residual] + ReLU + gate)
# ---------------------------------------------------------------------------
def _l0layer_kernel(x_ref, w_ref, b_ref, gm_ref, g1_ref, g2_ref, g3_ref,
                    out_ref, xpad_ref, patch_ref, *, B, H, W, C):
    """Whole L0Layer forward in one invocation.

    x_ref     : (B, H, W, C)        input activation (NHWC)
    w_ref     : (6, 9*C, C)         per-stage conv weights, BN scale folded in
    b_ref     : (6, 1, C)           per-stage BN bias
    g*_ref    : (B, C)              L0 gate masks (main, gate1, gate2, gate3)
    out_ref   : (B*H*W, C)          final activation, flattened
    xpad_ref  : VMEM (B, H+2, W+2, C)   halo'd activation scratch
    patch_ref : VMEM (B*H*W, 9*C)       im2col patch scratch
    """
    M = B * H * W

    # Zero the halo scratch once; the borders stay zero across all 6 stages.
    xpad_ref[...] = jnp.zeros_like(xpad_ref)

    # Hoist the per-batch -> per-row gate broadcasts out of the stage loop
    # (JAX does not CSE broadcast_in_dim).
    def gate_rows(g_ref):
        g = g_ref[...]                                            # (B, C)
        return jnp.broadcast_to(g[:, None, :], (B, H * W, C)).reshape(M, C)

    g_main = gate_rows(gm_ref)
    stage_gates = [gate_rows(g1_ref), g_main, gate_rows(g2_ref), g_main,
                   gate_rows(g3_ref), g_main]

    def stage(act, s, gate, residual):
        # act: (M, C) running activation (value; lives in vregs/VMEM).
        xpad_ref[:, 1:H + 1, 1:W + 1, :] = act.reshape(B, H, W, C)
        xp = xpad_ref[...]                                        # (B,H+2,W+2,C)
        for k in range(9):                                        # static taps
            kh, kw = k // 3, k % 3
            patch_ref[:, k * C:(k + 1) * C] = (
                xp[:, kh:kh + H, kw:kw + W, :].reshape(M, C))
        # One MXU matmul per stage: (M, 9C) x (9C, C); BN scale pre-folded.
        y = jnp.dot(patch_ref[...], w_ref[s],
                    preferred_element_type=jnp.float32)
        y = y + b_ref[s]                                          # BN bias
        if residual is not None:
            y = y + residual                                      # pre-ReLU
        y = jnp.maximum(y, 0.0)                                   # ReLU
        return y * gate                                           # L0 gate

    a0 = x_ref[...].reshape(M, C)
    a1 = stage(a0, 0, stage_gates[0], None)    # conv1/bn1/relu/gate1
    a2 = stage(a1, 1, stage_gates[1], a0)      # conv2/bn2/+id/relu/main
    a3 = stage(a2, 2, stage_gates[2], None)    # conv3/bn3/relu/gate2
    a4 = stage(a3, 3, stage_gates[3], a2)      # conv4/bn4/+id/relu/main
    a5 = stage(a4, 4, stage_gates[4], None)    # conv5/bn5/relu/gate3
    a6 = stage(a5, 5, stage_gates[5], a4)      # conv6/bn6/+id/relu/main
    out_ref[...] = a6.astype(out_ref.dtype)


def l0layer_forward(x_nchw, w_packed, b_packed, masks):
    """x_nchw: (B,C,H,W); w_packed: (6, 9C, C) scale-folded; b_packed: (6,1,C);
    masks: (main, gate1, gate2, gate3), each (B, C). Returns (B, C, H, W)."""
    main_mask, g1m, g2m, g3m = masks
    B, C, H, W = x_nchw.shape
    x = jnp.transpose(x_nchw, (0, 2, 3, 1))                       # NCHW -> NHWC

    kernel = functools.partial(_l0layer_kernel, B=B, H=H, W=W, C=C)
    out_flat = pl.pallas_call(
        kernel,
        out_shape=jax.ShapeDtypeStruct((B * H * W, C), jnp.float32),
        grid=(1,),
        in_specs=[
            pl.BlockSpec((B, H, W, C), lambda i: (0, 0, 0, 0)),
            pl.BlockSpec((NUM_STAGES, 9 * C, C), lambda i: (0, 0, 0)),
            pl.BlockSpec((NUM_STAGES, 1, C), lambda i: (0, 0, 0)),
            pl.BlockSpec((B, C), lambda i: (0, 0)),
            pl.BlockSpec((B, C), lambda i: (0, 0)),
            pl.BlockSpec((B, C), lambda i: (0, 0)),
            pl.BlockSpec((B, C), lambda i: (0, 0)),
        ],
        out_specs=pl.BlockSpec((B * H * W, C), lambda i: (0, 0)),
        scratch_shapes=[
            pltpu.VMEM((B, H + 2, W + 2, C), jnp.float32),  # halo'd activation
            pltpu.VMEM((B * H * W, 9 * C), jnp.float32),    # im2col patches
        ],
        compiler_params=pltpu.CompilerParams(
            dimension_semantics=("arbitrary",)),
    )(x, w_packed, b_packed, main_mask, g1m, g2m, g3m)

    return jnp.transpose(out_flat.reshape(B, H, W, C), (0, 3, 1, 2))


# ---------------------------------------------------------------------------
# L0 gate mask (mirrors L0GateLayer2d.mask) — tiny elementwise glue in JAX
# ---------------------------------------------------------------------------
def l0_mask(key, loc, batch_size, temp=L0_TEMP, gamma=L0_GAMMA, zeta=L0_ZETA):
    n = loc.shape[0]
    u = jax.random.uniform(key, (batch_size, n), jnp.float32,
                           minval=1e-6, maxval=1.0 - 1e-6)
    s = jax.nn.sigmoid((jnp.log(u) - jnp.log(1.0 - u) + loc) / temp)
    s = s * (zeta - gamma) + gamma
    return jnp.clip(s, 0.0, 1.0)       # hard_sigmoid


# ---------------------------------------------------------------------------
# Parameter construction (mirrors connect_middle_conv / connect_bn /
# L0GateLayer2d.__init__ shapes; no downsample branch).
# ---------------------------------------------------------------------------
def init_params(key, planes):
    half = planes // 2
    keys = iter(jax.random.split(key, 32))
    convs, bns = [], []
    for _ in range(NUM_STAGES):
        # two half-size convs from "layer1"/"layer2", block-diagonally merged
        w_a = 0.1 * jax.random.normal(next(keys), (half, half, 3, 3), jnp.float32)
        w_b = 0.1 * jax.random.normal(next(keys), (half, half, 3, 3), jnp.float32)
        w_full = jnp.zeros((planes, planes, 3, 3), jnp.float32)   # (Cout,Cin,kh,kw)
        w_full = w_full.at[:half, :half].set(w_a)
        w_full = w_full.at[half:, half:].set(w_b)
        # -> (kh, kw, Cin, Cout) -> (9, Cin, Cout)
        w9 = jnp.transpose(w_full, (2, 3, 1, 0)).reshape(9, planes, planes)
        convs.append(w9)

        gamma_bn = 0.5 + jax.random.uniform(next(keys), (planes,), jnp.float32)
        beta_bn = 0.1 * jax.random.normal(next(keys), (planes,), jnp.float32)
        running_mean = jnp.zeros((planes,), jnp.float32)
        running_var = jnp.ones((planes,), jnp.float32)
        scale = gamma_bn / jnp.sqrt(running_var + BN_EPS)
        bias = beta_bn - running_mean * scale
        bns.append((scale, bias))

    # loc ~ Normal(1, 0.01) for main_gate, gate1, gate2, gate3
    locs = [1.0 + 0.01 * jax.random.normal(next(keys), (planes,), jnp.float32)
            for _ in range(4)]
    return convs, bns, locs


def pack_params(convs, bns):
    """One-time constant fold: BN scale into conv weights; stack per stage."""
    w_list, b_list = [], []
    for w9, (scale, bias) in zip(convs, bns):
        cin, cout = w9.shape[1], w9.shape[2]
        w_fold = (w9 * scale[None, None, :]).reshape(9 * cin, cout)
        w_list.append(w_fold)
        b_list.append(bias.reshape(1, cout))
    return jnp.stack(w_list), jnp.stack(b_list)    # (6, 9C, C), (6, 1, C)


# ---------------------------------------------------------------------------
# Pure-JAX reference (lax.conv, unfolded BN) for correctness check
# ---------------------------------------------------------------------------
def ref_forward(x_nchw, convs, bns, masks):
    main_mask, g1m, g2m, g3m = masks
    B, C, H, W = x_nchw.shape
    x = jnp.transpose(x_nchw, (0, 2, 3, 1))

    def conv(h, w9):
        w = w9.reshape(3, 3, C, C)                   # HWIO
        return jax.lax.conv_general_dilated(
            h, w, (1, 1), ((1, 1), (1, 1)),
            dimension_numbers=('NHWC', 'HWIO', 'NHWC'))

    def stage(h, w9, sb, gate, identity):
        s, b = sb
        y = conv(h, w9) * s + b + identity
        y = jnp.maximum(y, 0.0)
        return y * gate[:, None, None, :]

    zero = jnp.zeros_like(x)
    h = stage(x, convs[0], bns[0], g1m, zero)
    h = stage(h, convs[1], bns[1], main_mask, x)
    identity = h
    h = stage(h, convs[2], bns[2], g2m, zero)
    h = stage(h, convs[3], bns[3], main_mask, identity)
    identity = h
    h = stage(h, convs[4], bns[4], g3m, zero)
    h = stage(h, convs[5], bns[5], main_mask, identity)
    return jnp.transpose(h, (0, 3, 1, 2))


if __name__ == "__main__":
    B, planes, H, W = 2, 16, 8, 8        # planes = 2 * layer1.conv1.out_channels

    key = jax.random.PRNGKey(0)
    k_param, k_x, k_mm, k_g1, k_g2, k_g3 = jax.random.split(key, 6)

    convs, bns, locs = init_params(k_param, planes)
    w_packed, b_packed = pack_params(convs, bns)
    x = jax.random.normal(k_x, (B, planes, H, W), jnp.float32)

    main_mask = l0_mask(k_mm, locs[0], B)
    g1 = l0_mask(k_g1, locs[1], B)
    g2 = l0_mask(k_g2, locs[2], B)
    g3 = l0_mask(k_g3, locs[3], B)
    masks = (main_mask, g1, g2, g3)

    out = jax.jit(l0layer_forward)(x, w_packed, b_packed, masks)
    out = jax.block_until_ready(out)

    ref = ref_forward(x, convs, bns, masks)
    np.testing.assert_allclose(np.asarray(out), np.asarray(ref),
                               rtol=2e-3, atol=2e-3)
    print("KERNEL_OK")
</pallas_src>

<mosaic_0001>
module attributes {stable_mosaic.version = 11 : i64} {
  func.func @_l0layer_kernel(%arg0: i32, %arg1: memref<2x8x8x16xf32, #tpu.memory_space<vmem>>, %arg2: memref<6x144x16xf32, #tpu.memory_space<vmem>>, %arg3: memref<6x1x16xf32, #tpu.memory_space<vmem>>, %arg4: memref<2x16xf32, #tpu.memory_space<vmem>>, %arg5: memref<2x16xf32, #tpu.memory_space<vmem>>, %arg6: memref<2x16xf32, #tpu.memory_space<vmem>>, %arg7: memref<2x16xf32, #tpu.memory_space<vmem>>, %arg8: memref<128x16xf32, #tpu.memory_space<vmem>>, %arg9: memref<2x10x10x16xf32, #tpu.memory_space<vmem>>, %arg10: memref<128x144xf32, #tpu.memory_space<vmem>>) attributes {dimension_semantics = [#tpu.dimension_semantics<arbitrary>], iteration_bounds = array<i64: 1>, scalar_prefetch = 0 : i64, scratch_operands = 2 : i64, tpu.core_type = #tpu.core_type<tc>, window_params = [{pipeline_mode = #tpu.pipeline_mode<synchronous>, transform_indices = @transform_0, window_bounds = array<i64: 2, 8, 8, 16>}, {pipeline_mode = #tpu.pipeline_mode<synchronous>, transform_indices = @transform_1, window_bounds = array<i64: 6, 144, 16>}, {pipeline_mode = #tpu.pipeline_mode<synchronous>, transform_indices = @transform_2, window_bounds = array<i64: 6, 1, 16>}, {pipeline_mode = #tpu.pipeline_mode<synchronous>, transform_indices = @transform_3, window_bounds = array<i64: 2, 16>}, {pipeline_mode = #tpu.pipeline_mode<synchronous>, transform_indices = @transform_4, window_bounds = array<i64: 2, 16>}, {pipeline_mode = #tpu.pipeline_mode<synchronous>, transform_indices = @transform_5, window_bounds = array<i64: 2, 16>}, {pipeline_mode = #tpu.pipeline_mode<synchronous>, transform_indices = @transform_6, window_bounds = array<i64: 2, 16>}, {pipeline_mode = #tpu.pipeline_mode<synchronous>, transform_indices = @transform_7, window_bounds = array<i64: 128, 16>}]} {
    %cst = arith.constant 0.000000e+00 : f32
    %0 = vector.broadcast %cst : f32 to vector<2x10x10x16xf32>
    %c0 = arith.constant 0 : index
    %c0_0 = arith.constant 0 : index
    %c0_1 = arith.constant 0 : index
    %c0_2 = arith.constant 0 : index
    %1 = vector.load %arg9[%c0, %c0_0, %c0_1, %c0_2] : memref<2x10x10x16xf32, #tpu.memory_space<vmem>>, vector<2x10x10x16xf32>
    tpu.vector_store %arg9[%c0, %c0_0, %c0_1, %c0_2], %0 {strides = array<i32>} : memref<2x10x10x16xf32, #tpu.memory_space<vmem>>, vector<2x10x10x16xf32>,
    %c0_3 = arith.constant 0 : index
    %c0_4 = arith.constant 0 : index
    %2 = vector.load %arg4[%c0_3, %c0_4] : memref<2x16xf32, #tpu.memory_space<vmem>>, vector<2x16xf32>
    %3 = vector.shape_cast %2 : vector<2x16xf32> to vector<2x1x16xf32>
    %4 = vector.shape_cast %3 : vector<2x1x16xf32> to vector<2x1x16xf32>
    %5 = vector.broadcast %4 : vector<2x1x16xf32> to vector<2x64x16xf32>
    %6 = vector.shape_cast %5 : vector<2x64x16xf32> to vector<128x16xf32>
    %c0_5 = arith.constant 0 : index
    %c0_6 = arith.constant 0 : index
    %7 = vector.load %arg5[%c0_5, %c0_6] : memref<2x16xf32, #tpu.memory_space<vmem>>, vector<2x16xf32>
    %8 = vector.shape_cast %7 : vector<2x16xf32> to vector<2x1x16xf32>
    %9 = vector.shape_cast %8 : vector<2x1x16xf32> to vector<2x1x16xf32>
    %10 = vector.broadcast %9 : vector<2x1x16xf32> to vector<2x64x16xf32>
    %11 = vector.shape_cast %10 : vector<2x64x16xf32> to vector<128x16xf32>
    %c0_7 = arith.constant 0 : index
    %c0_8 = arith.constant 0 : index
    %12 = vector.load %arg6[%c0_7, %c0_8] : memref<2x16xf32, #tpu.memory_space<vmem>>, vector<2x16xf32>
    %13 = vector.shape_cast %12 : vector<2x16xf32> to vector<2x1x16xf32>
    %14 = vector.shape_cast %13 : vector<2x1x16xf32> to vector<2x1x16xf32>
    %15 = vector.broadcast %14 : vector<2x1x16xf32> to vector<2x64x16xf32>
    %16 = vector.shape_cast %15 : vector<2x64x16xf32> to vector<128x16xf32>
    %c0_9 = arith.constant 0 : index
    %c0_10 = arith.constant 0 : index
    %17 = vector.load %arg7[%c0_9, %c0_10] : memref<2x16xf32, #tpu.memory_space<vmem>>, vector<2x16xf32>
    %18 = vector.shape_cast %17 : vector<2x16xf32> to vector<2x1x16xf32>
    %19 = vector.shape_cast %18 : vector<2x1x16xf32> to vector<2x1x16xf32>
    %20 = vector.broadcast %19 : vector<2x1x16xf32> to vector<2x64x16xf32>
    %21 = vector.shape_cast %20 : vector<2x64x16xf32> to vector<128x16xf32>
    %c0_11 = arith.constant 0 : index
    %c0_12 = arith.constant 0 : index
    %c0_13 = arith.constant 0 : index
    %c0_14 = arith.constant 0 : index
    %22 = vector.load %arg1[%c0_11, %c0_12, %c0_13, %c0_14] : memref<2x8x8x16xf32, #tpu.memory_space<vmem>>, vector<2x8x8x16xf32>
    %23 = vector.shape_cast %22 : vector<2x8x8x16xf32> to vector<128x16xf32>
    %24 = vector.shape_cast %23 : vector<128x16xf32> to vector<2x8x8x16xf32>
    %c0_15 = arith.constant 0 : index
    %c1 = arith.constant 1 : index
    %c1_16 = arith.constant 1 : index
    %c0_17 = arith.constant 0 : index
    %25 = vector.load %arg9[%c0_15, %c1, %c1_16, %c0_17] : memref<2x10x10x16xf32, #tpu.memory_space<vmem>>, vector<2x8x8x16xf32>
    tpu.vector_store %arg9[%c0_15, %c1, %c1_16, %c0_17], %24 {strides = array<i32>} : memref<2x10x10x16xf32, #tpu.memory_space<vmem>>, vector<2x8x8x16xf32>,
    %c0_18 = arith.constant 0 : index
    %c0_19 = arith.constant 0 : index
    %c0_20 = arith.constant 0 : index
    %c0_21 = arith.constant 0 : index
    %26 = vector.load %arg9[%c0_18, %c0_19, %c0_20, %c0_21] : memref<2x10x10x16xf32, #tpu.memory_space<vmem>>, vector<2x10x10x16xf32>
    %27 = vector.extract_strided_slice %26 {offsets = [0, 0, 0, 0], sizes = [2, 8, 8, 16], strides = [1, 1, 1, 1]} : vector<2x10x10x16xf32> to vector<2x8x8x16xf32>
    %28 = vector.shape_cast %27 : vector<2x8x8x16xf32> to vector<128x16xf32>
    %c0_22 = arith.constant 0 : index
    %c0_23 = arith.constant 0 : index
    %29 = vector.load %arg10[%c0_22, %c0_23] : memref<128x144xf32, #tpu.memory_space<vmem>>, vector<128x16xf32>
    tpu.vector_store %arg10[%c0_22, %c0_23], %28 {strides = array<i32>} : memref<128x144xf32, #tpu.memory_space<vmem>>, vector<128x16xf32>,
    %30 = vector.extract_strided_slice %26 {offsets = [0, 0, 1, 0], sizes = [2, 8, 8, 16], strides = [1, 1, 1, 1]} : vector<2x10x10x16xf32> to vector<2x8x8x16xf32>
    %31 = vector.shape_cast %30 : vector<2x8x8x16xf32> to vector<128x16xf32>
    %c0_24 = arith.constant 0 : index
    %c16 = arith.constant 16 : index
    %32 = vector.load %arg10[%c0_24, %c16] : memref<128x144xf32, #tpu.memory_space<vmem>>, vector<128x16xf32>
    tpu.vector_store %arg10[%c0_24, %c16], %31 {strides = array<i32>} : memref<128x144xf32, #tpu.memory_space<vmem>>, vector<128x16xf32>,
    %33 = vector.extract_strided_slice %26 {offsets = [0, 0, 2, 0], sizes = [2, 8, 8, 16], strides = [1, 1, 1, 1]} : vector<2x10x10x16xf32> to vector<2x8x8x16xf32>
    %34 = vector.shape_cast %33 : vector<2x8x8x16xf32> to vector<128x16xf32>
    %c0_25 = arith.constant 0 : index
    %c32 = arith.constant 32 : index
    %35 = vector.load %arg10[%c0_25, %c32] : memref<128x144xf32, #tpu.memory_space<vmem>>, vector<128x16xf32>
    tpu.vector_store %arg10[%c0_25, %c32], %34 {strides = array<i32>} : memref<128x144xf32, #tpu.memory_space<vmem>>, vector<128x16xf32>,
    %36 = vector.extract_strided_slice %26 {offsets = [0, 1, 0, 0], sizes = [2, 8, 8, 16], strides = [1, 1, 1, 1]} : vector<2x10x10x16xf32> to vector<2x8x8x16xf32>
    %37 = vector.shape_cast %36 : vector<2x8x8x16xf32> to vector<128x16xf32>
    %c0_26 = arith.constant 0 : index
    %c48 = arith.constant 48 : index
    %38 = vector.load %arg10[%c0_26, %c48] : memref<128x144xf32, #tpu.memory_space<vmem>>, vector<128x16xf32>
    tpu.vector_store %arg10[%c0_26, %c48], %37 {strides = array<i32>} : memref<128x144xf32, #tpu.memory_space<vmem>>, vector<128x16xf32>,
    %39 = vector.extract_strided_slice %26 {offsets = [0, 1, 1, 0], sizes = [2, 8, 8, 16], strides = [1, 1, 1, 1]} : vector<2x10x10x16xf32> to vector<2x8x8x16xf32>
    %40 = vector.shape_cast %39 : vector<2x8x8x16xf32> to vector<128x16xf32>
    %c0_27 = arith.constant 0 : index
    %c64 = arith.constant 64 : index
    %41 = vector.load %arg10[%c0_27, %c64] : memref<128x144xf32, #tpu.memory_space<vmem>>, vector<128x16xf32>
    tpu.vector_store %arg10[%c0_27, %c64], %40 {strides = array<i32>} : memref<128x144xf32, #tpu.memory_space<vmem>>, vector<128x16xf32>,
    %42 = vector.extract_strided_slice %26 {offsets = [0, 1, 2, 0], sizes = [2, 8, 8, 16], strides = [1, 1, 1, 1]} : vector<2x10x10x16xf32> to vector<2x8x8x16xf32>
    %43 = vector.shape_cast %42 : vector<2x8x8x16xf32> to vector<128x16xf32>
    %c0_28 = arith.constant 0 : index
    %c80 = arith.constant 80 : index
    %44 = vector.load %arg10[%c0_28, %c80] : memref<128x144xf32, #tpu.memory_space<vmem>>, vector<128x16xf32>
    tpu.vector_store %arg10[%c0_28, %c80], %43 {strides = array<i32>} : memref<128x144xf32, #tpu.memory_space<vmem>>, vector<128x16xf32>,
    %45 = vector.extract_strided_slice %26 {offsets = [0, 2, 0, 0], sizes = [2, 8, 8, 16], strides = [1, 1, 1, 1]} : vector<2x10x10x16xf32> to vector<2x8x8x16xf32>
    %46 = vector.shape_cast %45 : vector<2x8x8x16xf32> to vector<128x16xf32>
    %c0_29 = arith.constant 0 : index
    %c96 = arith.constant 96 : index
    %47 = vector.load %arg10[%c0_29, %c96] : memref<128x144xf32, #tpu.memory_space<vmem>>, vector<128x16xf32>
    tpu.vector_store %arg10[%c0_29, %c96], %46 {strides = array<i32>} : memref<128x144xf32, #tpu.memory_space<vmem>>, vector<128x16xf32>,
    %48 = vector.extract_strided_slice %26 {offsets = [0, 2, 1, 0], sizes = [2, 8, 8, 16], strides = [1, 1, 1, 1]} : vector<2x10x10x16xf32> to vector<2x8x8x16xf32>
    %49 = vector.shape_cast %48 : vector<2x8x8x16xf32> to vector<128x16xf32>
    %c0_30 = arith.constant 0 : index
    %c112 = arith.constant 112 : index
    %50 = vector.load %arg10[%c0_30, %c112] : memref<128x144xf32, #tpu.memory_space<vmem>>, vector<128x16xf32>
    tpu.vector_store %arg10[%c0_30, %c112], %49 {strides = array<i32>} : memref<128x144xf32, #tpu.memory_space<vmem>>, vector<128x16xf32>,
    %51 = vector.extract_strided_slice %26 {offsets = [0, 2, 2, 0], sizes = [2, 8, 8, 16], strides = [1, 1, 1, 1]} : vector<2x10x10x16xf32> to vector<2x8x8x16xf32>
    %52 = vector.shape_cast %51 : vector<2x8x8x16xf32> to vector<128x16xf32>
    %c0_31 = arith.constant 0 : index
    %c128 = arith.constant 128 : index
    %53 = vector.load %arg10[%c0_31, %c128] : memref<128x144xf32, #tpu.memory_space<vmem>>, vector<128x16xf32>
    tpu.vector_store %arg10[%c0_31, %c128], %52 {strides = array<i32>} : memref<128x144xf32, #tpu.memory_space<vmem>>, vector<128x16xf32>,
    %c0_32 = arith.constant 0 : index
    %c0_33 = arith.constant 0 : index
    %54 = vector.load %arg10[%c0_32, %c0_33] : memref<128x144xf32, #tpu.memory_space<vmem>>, vector<128x144xf32>
    %c0_34 = arith.constant 0 : index
    %c0_35 = arith.constant 0 : index
    %c0_36 = arith.constant 0 : index
    %55 = vector.load %arg2[%c0_34, %c0_35, %c0_36] : memref<6x144x16xf32, #tpu.memory_space<vmem>>, vector<1x144x16xf32>
    %56 = vector.shape_cast %55 : vector<1x144x16xf32> to vector<144x16xf32>
    %cst_37 = arith.constant dense<0.000000e+00> : vector<128x16xf32>
    %57 = tpu.matmul %54, %56, %cst_37 {dimension_numbers = #tpu.dot_dimension_numbers<[1], [0], [0], [1], [0, 0, 1, 1], [], []>} : vector<128x144xf32>, vector<144x16xf32>, vector<128x16xf32> -> vector<128x16xf32>
    %c0_38 = arith.constant 0 : index
    %c0_39 = arith.constant 0 : index
    %c0_40 = arith.constant 0 : index
    %58 = vector.load %arg3[%c0_38, %c0_39, %c0_40] : memref<6x1x16xf32, #tpu.memory_space<vmem>>, vector<1x1x16xf32>
    %59 = vector.shape_cast %58 : vector<1x1x16xf32> to vector<1x16xf32>
    %60 = vector.broadcast %59 : vector<1x16xf32> to vector<128x16xf32>
    %61 = arith.addf %57, %60 : vector<128x16xf32>
    %cst_41 = arith.constant 0.000000e+00 : f32
    %62 = vector.broadcast %cst_41 : f32 to vector<128x16xf32>
    %63 = arith.maximumf %61, %62 : vector<128x16xf32>
    %64 = arith.mulf %63, %11 : vector<128x16xf32>
    %65 = vector.shape_cast %64 : vector<128x16xf32> to vector<2x8x8x16xf32>
    %c0_42 = arith.constant 0 : index
    %c1_43 = arith.constant 1 : index
    %c1_44 = arith.constant 1 : index
    %c0_45 = arith.constant 0 : index
    %66 = vector.load %arg9[%c0_42, %c1_43, %c1_44, %c0_45] : memref<2x10x10x16xf32, #tpu.memory_space<vmem>>, vector<2x8x8x16xf32>
    tpu.vector_store %arg9[%c0_42, %c1_43, %c1_44, %c0_45], %65 {strides = array<i32>} : memref<2x10x10x16xf32, #tpu.memory_space<vmem>>, vector<2x8x8x16xf32>,
    %c0_46 = arith.constant 0 : index
    %c0_47 = arith.constant 0 : index
    %c0_48 = arith.constant 0 : index
    %c0_49 = arith.constant 0 : index
    %67 = vector.load %arg9[%c0_46, %c0_47, %c0_48, %c0_49] : memref<2x10x10x16xf32, #tpu.memory_space<vmem>>, vector<2x10x10x16xf32>
    %68 = vector.extract_strided_slice %67 {offsets = [0, 0, 0, 0], sizes = [2, 8, 8, 16], strides = [1, 1, 1, 1]} : vector<2x10x10x16xf32> to vector<2x8x8x16xf32>
    %69 = vector.shape_cast %68 : vector<2x8x8x16xf32> to vector<128x16xf32>
    %c0_50 = arith.constant 0 : index
    %c0_51 = arith.constant 0 : index
    %70 = vector.load %arg10[%c0_50, %c0_51] : memref<128x144xf32, #tpu.memory_space<vmem>>, vector<128x16xf32>
    tpu.vector_store %arg10[%c0_50, %c0_51], %69 {strides = array<i32>} : memref<128x144xf32, #tpu.memory_space<vmem>>, vector<128x16xf32>,
    %71 = vector.extract_strided_slice %67 {offsets = [0, 0, 1, 0], sizes = [2, 8, 8, 16], strides = [1, 1, 1, 1]} : vector<2x10x10x16xf32> to vector<2x8x8x16xf32>
    %72 = vector.shape_cast %71 : vector<2x8x8x16xf32> to vector<128x16xf32>
    %c0_52 = arith.constant 0 : index
    %c16_53 = arith.constant 16 : index
    %73 = vector.load %arg10[%c0_52, %c16_53] : memref<128x144xf32, #tpu.memory_space<vmem>>, vector<128x16xf32>
    tpu.vector_store %arg10[%c0_52, %c16_53], %72 {strides = array<i32>} : memref<128x144xf32, #tpu.memory_space<vmem>>, vector<128x16xf32>,
    %74 = vector.extract_strided_slice %67 {offsets = [0, 0, 2, 0], sizes = [2, 8, 8, 16], strides = [1, 1, 1, 1]} : vector<2x10x10x16xf32> to vector<2x8x8x16xf32>
    %75 = vector.shape_cast %74 : vector<2x8x8x16xf32> to vector<128x16xf32>
    %c0_54 = arith.constant 0 : index
    %c32_55 = arith.constant 32 : index
    %76 = vector.load %arg10[%c0_54, %c32_55] : memref<128x144xf32, #tpu.memory_space<vmem>>, vector<128x16xf32>
    tpu.vector_store %arg10[%c0_54, %c32_55], %75 {strides = array<i32>} : memref<128x144xf32, #tpu.memory_space<vmem>>, vector<128x16xf32>,
    %77 = vector.extract_strided_slice %67 {offsets = [0, 1, 0, 0], sizes = [2, 8, 8, 16], strides = [1, 1, 1, 1]} : vector<2x10x10x16xf32> to vector<2x8x8x16xf32>
    %78 = vector.shape_cast %77 : vector<2x8x8x16xf32> to vector<128x16xf32>
    %c0_56 = arith.constant 0 : index
    %c48_57 = arith.constant 48 : index
    %79 = vector.load %arg10[%c0_56, %c48_57] : memref<128x144xf32, #tpu.memory_space<vmem>>, vector<128x16xf32>
    tpu.vector_store %arg10[%c0_56, %c48_57], %78 {strides = array<i32>} : memref<128x144xf32, #tpu.memory_space<vmem>>, vector<128x16xf32>,
    %80 = vector.extract_strided_slice %67 {offsets = [0, 1, 1, 0], sizes = [2, 8, 8, 16], strides = [1, 1, 1, 1]} : vector<2x10x10x16xf32> to vector<2x8x8x16xf32>
    %81 = vector.shape_cast %80 : vector<2x8x8x16xf32> to vector<128x16xf32>
    %c0_58 = arith.constant 0 : index
    %c64_59 = arith.constant 64 : index
    %82 = vector.load %arg10[%c0_58, %c64_59] : memref<128x144xf32, #tpu.memory_space<vmem>>, vector<128x16xf32>
    tpu.vector_store %arg10[%c0_58, %c64_59], %81 {strides = array<i32>} : memref<128x144xf32, #tpu.memory_space<vmem>>, vector<128x16xf32>,
    %83 = vector.extract_strided_slice %67 {offsets = [0, 1, 2, 0], sizes = [2, 8, 8, 16], strides = [1, 1, 1, 1]} : vector<2x10x10x16xf32> to vector<2x8x8x16xf32>
    %84 = vector.shape_cast %83 : vector<2x8x8x16xf32> to vector<128x16xf32>
    %c0_60 = arith.constant 0 : index
    %c80_61 = arith.constant 80 : index
    %85 = vector.load %arg10[%c0_60, %c80_61] : memref<128x144xf32, #tpu.memory_space<vmem>>, vector<128x16xf32>
    tpu.vector_store %arg10[%c0_60, %c80_61], %84 {strides = array<i32>} : memref<128x144xf32, #tpu.memory_space<vmem>>, vector<128x16xf32>,
    %86 = vector.extract_strided_slice %67 {offsets = [0, 2, 0, 0], sizes = [2, 8, 8, 16], strides = [1, 1, 1, 1]} : vector<2x10x10x16xf32> to vector<2x8x8x16xf32>
    %87 = vector.shape_cast %86 : vector<2x8x8x16xf32> to vector<128x16xf32>
    %c0_62 = arith.constant 0 : index
    %c96_63 = arith.constant 96 : index
    %88 = vector.load %arg10[%c0_62, %c96_63] : memref<128x144xf32, #tpu.memory_space<vmem>>, vector<128x16xf32>
    tpu.vector_store %arg10[%c0_62, %c96_63], %87 {strides = array<i32>} : memref<128x144xf32, #tpu.memory_space<vmem>>, vector<128x16xf32>,
    %89 = vector.extract_strided_slice %67 {offsets = [0, 2, 1, 0], sizes = [2, 8, 8, 16], strides = [1, 1, 1, 1]} : vector<2x10x10x16xf32> to vector<2x8x8x16xf32>
    %90 = vector.shape_cast %89 : vector<2x8x8x16xf32> to vector<128x16xf32>
    %c0_64 = arith.constant 0 : index
    %c112_65 = arith.constant 112 : index
    %91 = vector.load %arg10[%c0_64, %c112_65] : memref<128x144xf32, #tpu.memory_space<vmem>>, vector<128x16xf32>
    tpu.vector_store %arg10[%c0_64, %c112_65], %90 {strides = array<i32>} : memref<128x144xf32, #tpu.memory_space<vmem>>, vector<128x16xf32>,
    %92 = vector.extract_strided_slice %67 {offsets = [0, 2, 2, 0], sizes = [2, 8, 8, 16], strides = [1, 1, 1, 1]} : vector<2x10x10x16xf32> to vector<2x8x8x16xf32>
    %93 = vector.shape_cast %92 : vector<2x8x8x16xf32> to vector<128x16xf32>
    %c0_66 = arith.constant 0 : index
    %c128_67 = arith.constant 128 : index
    %94 = vector.load %arg10[%c0_66, %c128_67] : memref<128x144xf32, #tpu.memory_space<vmem>>, vector<128x16xf32>
    tpu.vector_store %arg10[%c0_66, %c128_67], %93 {strides = array<i32>} : memref<128x144xf32, #tpu.memory_space<vmem>>, vector<128x16xf32>,
    %c0_68 = arith.constant 0 : index
    %c0_69 = arith.constant 0 : index
    %95 = vector.load %arg10[%c0_68, %c0_69] : memref<128x144xf32, #tpu.memory_space<vmem>>, vector<128x144xf32>
    %c1_70 = arith.constant 1 : index
    %c0_71 = arith.constant 0 : index
    %c0_72 = arith.constant 0 : index
    %96 = vector.load %arg2[%c1_70, %c0_71, %c0_72] : memref<6x144x16xf32, #tpu.memory_space<vmem>>, vector<1x144x16xf32>
    %97 = vector.shape_cast %96 : vector<1x144x16xf32> to vector<144x16xf32>
    %cst_73 = arith.constant dense<0.000000e+00> : vector<128x16xf32>
    %98 = tpu.matmul %95, %97, %cst_73 {dimension_numbers = #tpu.dot_dimension_numbers<[1], [0], [0], [1], [0, 0, 1, 1], [], []>} : vector<128x144xf32>, vector<144x16xf32>, vector<128x16xf32> -> vector<128x16xf32>
    %c1_74 = arith.constant 1 : index
    %c0_75 = arith.constant 0 : index
    %c0_76 = arith.constant 0 : index
    %99 = vector.load %arg3[%c1_74, %c0_75, %c0_76] : memref<6x1x16xf32, #tpu.memory_space<vmem>>, vector<1x1x16xf32>
    %100 = vector.shape_cast %99 : vector<1x1x16xf32> to vector<1x16xf32>
    %101 = vector.broadcast %100 : vector<1x16xf32> to vector<128x16xf32>
    %102 = arith.addf %98, %101 : vector<128x16xf32>
    %103 = arith.addf %102, %23 : vector<128x16xf32>
    %cst_77 = arith.constant 0.000000e+00 : f32
    %104 = vector.broadcast %cst_77 : f32 to vector<128x16xf32>
    %105 = arith.maximumf %103, %104 : vector<128x16xf32>
    %106 = arith.mulf %105, %6 : vector<128x16xf32>
    %107 = vector.shape_cast %106 : vector<128x16xf32> to vector<2x8x8x16xf32>
    %c0_78 = arith.constant 0 : index
    %c1_79 = arith.constant 1 : index
    %c1_80 = arith.constant 1 : index
    %c0_81 = arith.constant 0 : index
    %108 = vector.load %arg9[%c0_78, %c1_79, %c1_80, %c0_81] : memref<2x10x10x16xf32, #tpu.memory_space<vmem>>, vector<2x8x8x16xf32>
    tpu.vector_store %arg9[%c0_78, %c1_79, %c1_80, %c0_81], %107 {strides = array<i32>} : memref<2x10x10x16xf32, #tpu.memory_space<vmem>>, vector<2x8x8x16xf32>,
    %c0_82 = arith.constant 0 : index
    %c0_83 = arith.constant 0 : index
    %c0_84 = arith.constant 0 : index
    %c0_85 = arith.constant 0 : index
    %109 = vector.load %arg9[%c0_82, %c0_83, %c0_84, %c0_85] : memref<2x10x10x16xf32, #tpu.memory_space<vmem>>, vector<2x10x10x16xf32>
    %110 = vector.extract_strided_slice %109 {offsets = [0, 0, 0, 0], sizes = [2, 8, 8, 16], strides = [1, 1, 1, 1]} : vector<2x10x10x16xf32> to vector<2x8x8x16xf32>
    %111 = vector.shape_cast %110 : vector<2x8x8x16xf32> to vector<128x16xf32>
    %c0_86 = arith.constant 0 : index
    %c0_87 = arith.constant 0 : index
    %112 = vector.load %arg10[%c0_86, %c0_87] : memref<128x144xf32, #tpu.memory_space<vmem>>, vector<128x16xf32>
    tpu.vector_store %arg10[%c0_86, %c0_87], %111 {strides = array<i32>} : memref<128x144xf32, #tpu.memory_space<vmem>>, vector<128x16xf32>,
    %113 = vector.extract_strided_slice %109 {offsets = [0, 0, 1, 0], sizes = [2, 8, 8, 16], strides = [1, 1, 1, 1]} : vector<2x10x10x16xf32> to vector<2x8x8x16xf32>
    %114 = vector.shape_cast %113 : vector<2x8x8x16xf32> to vector<128x16xf32>
    %c0_88 = arith.constant 0 : index
    %c16_89 = arith.constant 16 : index
    %115 = vector.load %arg10[%c0_88, %c16_89] : memref<128x144xf32, #tpu.memory_space<vmem>>, vector<128x16xf32>
    tpu.vector_store %arg10[%c0_88, %c16_89], %114 {strides = array<i32>} : memref<128x144xf32, #tpu.memory_space<vmem>>, vector<128x16xf32>,
    %116 = vector.extract_strided_slice %109 {offsets = [0, 0, 2, 0], sizes = [2, 8, 8, 16], strides = [1, 1, 1, 1]} : vector<2x10x10x16xf32> to vector<2x8x8x16xf32>
    %117 = vector.shape_cast %116 : vector<2x8x8x16xf32> to vector<128x16xf32>
    %c0_90 = arith.constant 0 : index
    %c32_91 = arith.constant 32 : index
    %118 = vector.load %arg10[%c0_90, %c32_91] : memref<128x144xf32, #tpu.memory_space<vmem>>, vector<128x16xf32>
    tpu.vector_store %arg10[%c0_90, %c32_91], %117 {strides = array<i32>} : memref<128x144xf32, #tpu.memory_space<vmem>>, vector<128x16xf32>,
    %119 = vector.extract_strided_slice %109 {offsets = [0, 1, 0, 0], sizes = [2, 8, 8, 16], strides = [1, 1, 1, 1]} : vector<2x10x10x16xf32> to vector<2x8x8x16xf32>
    %120 = vector.shape_cast %119 : vector<2x8x8x16xf32> to vector<128x16xf32>
    %c0_92 = arith.constant 0 : index
    %c48_93 = arith.constant 48 : index
    %121 = vector.load %arg10[%c0_92, %c48_93] : memref<128x144xf32, #tpu.memory_space<vmem>>, vector<128x16xf32>
    tpu.vector_store %arg10[%c0_92, %c48_93], %120 {strides = array<i32>} : memref<128x144xf32, #tpu.memory_space<vmem>>, vector<128x16xf32>,
    %122 = vector.extract_strided_slice %109 {offsets = [0, 1, 1, 0], sizes = [2, 8, 8, 16], strides = [1, 1, 1, 1]} : vector<2x10x10x16xf32> to vector<2x8x8x16xf32>
    %123 = vector.shape_cast %122 : vector<2x8x8x16xf32> to vector<128x16xf32>
    %c0_94 = arith.constant 0 : index
    %c64_95 = arith.constant 64 : index
    %124 = vector.load %arg10[%c0_94, %c64_95] : memref<128x144xf32, #tpu.memory_space<vmem>>, vector<128x16xf32>
    tpu.vector_store %arg10[%c0_94, %c64_95], %123 {strides = array<i32>} : memref<128x144xf32, #tpu.memory_space<vmem>>, vector<128x16xf32>,
    %125 = vector.extract_strided_slice %109 {offsets = [0, 1, 2, 0], sizes = [2, 8, 8, 16], strides = [1, 1, 1, 1]} : vector<2x10x10x16xf32> to vector<2x8x8x16xf32>
    %126 = vector.shape_cast %125 : vector<2x8x8x16xf32> to vector<128x16xf32>
    %c0_96 = arith.constant 0 : index
    %c80_97 = arith.constant 80 : index
    %127 = vector.load %arg10[%c0_96, %c80_97] : memref<128x144xf32, #tpu.memory_space<vmem>>, vector<128x16xf32>
    tpu.vector_store %arg10[%c0_96, %c80_97], %126 {strides = array<i32>} : memref<128x144xf32, #tpu.memory_space<vmem>>, vector<128x16xf32>,
    %128 = vector.extract_strided_slice %109 {offsets = [0, 2, 0, 0], sizes = [2, 8, 8, 16], strides = [1, 1, 1, 1]} : vector<2x10x10x16xf32> to vector<2x8x8x16xf32>
    %129 = vector.shape_cast %128 : vector<2x8x8x16xf32> to vector<128x16xf32>
    %c0_98 = arith.constant 0 : index
    %c96_99 = arith.constant 96 : index
    %130 = vector.load %arg10[%c0_98, %c96_99] : memref<128x144xf32, #tpu.memory_space<vmem>>, vector<128x16xf32>
    tpu.vector_store %arg10[%c0_98, %c96_99], %129 {strides = array<i32>} : memref<128x144xf32, #tpu.memory_space<vmem>>, vector<128x16xf32>,
    %131 = vector.extract_strided_slice %109 {offsets = [0, 2, 1, 0], sizes = [2, 8, 8, 16], strides = [1, 1, 1, 1]} : vector<2x10x10x16xf32> to vector<2x8x8x16xf32>
    %132 = vector.shape_cast %131 : vector<2x8x8x16xf32> to vector<128x16xf32>
    %c0_100 = arith.constant 0 : index
    %c112_101 = arith.constant 112 : index
    %133 = vector.load %arg10[%c0_100, %c112_101] : memref<128x144xf32, #tpu.memory_space<vmem>>, vector<128x16xf32>
    tpu.vector_store %arg10[%c0_100, %c112_101], %132 {strides = array<i32>} : memref<128x144xf32, #tpu.memory_space<vmem>>, vector<128x16xf32>,
    %134 = vector.extract_strided_slice %109 {offsets = [0, 2, 2, 0], sizes = [2, 8, 8, 16], strides = [1, 1, 1, 1]} : vector<2x10x10x16xf32> to vector<2x8x8x16xf32>
    %135 = vector.shape_cast %134 : vector<2x8x8x16xf32> to vector<128x16xf32>
    %c0_102 = arith.constant 0 : index
    %c128_103 = arith.constant 128 : index
    %136 = vector.load %arg10[%c0_102, %c128_103] : memref<128x144xf32, #tpu.memory_space<vmem>>, vector<128x16xf32>
    tpu.vector_store %arg10[%c0_102, %c128_103], %135 {strides = array<i32>} : memref<128x144xf32, #tpu.memory_space<vmem>>, vector<128x16xf32>,
    %c0_104 = arith.constant 0 : index
    %c0_105 = arith.constant 0 : index
    %137 = vector.load %arg10[%c0_104, %c0_105] : memref<128x144xf32, #tpu.memory_space<vmem>>, vector<128x144xf32>
    %c2 = arith.constant 2 : index
    %c0_106 = arith.constant 0 : index
    %c0_107 = arith.constant 0 : index
    %138 = vector.load %arg2[%c2, %c0_106, %c0_107] : memref<6x144x16xf32, #tpu.memory_space<vmem>>, vector<1x144x16xf32>
    %139 = vector.shape_cast %138 : vector<1x144x16xf32> to vector<144x16xf32>
    %cst_108 = arith.constant dense<0.000000e+00> : vector<128x16xf32>
    %140 = tpu.matmul %137, %139, %cst_108 {dimension_numbers = #tpu.dot_dimension_numbers<[1], [0], [0], [1], [0, 0, 1, 1], [], []>} : vector<128x144xf32>, vector<144x16xf32>, vector<128x16xf32> -> vector<128x16xf32>
    %c2_109 = arith.constant 2 : index
    %c0_110 = arith.constant 0 : index
    %c0_111 = arith.constant 0 : index
    %141 = vector.load %arg3[%c2_109, %c0_110, %c0_111] : memref<6x1x16xf32, #tpu.memory_space<vmem>>, vector<1x1x16xf32>
    %142 = vector.shape_cast %141 : vector<1x1x16xf32> to vector<1x16xf32>
    %143 = vector.broadcast %142 : vector<1x16xf32> to vector<128x16xf32>
    %144 = arith.addf %140, %143 : vector<128x16xf32>
    %cst_112 = arith.constant 0.000000e+00 : f32
    %145 = vector.broadcast %cst_112 : f32 to vector<128x16xf32>
    %146 = arith.maximumf %144, %145 : vector<128x16xf32>
    %147 = arith.mulf %146, %16 : vector<128x16xf32>
    %148 = vector.shape_cast %147 : vector<128x16xf32> to vector<2x8x8x16xf32>
    %c0_113 = arith.constant 0 : index
    %c1_114 = arith.constant 1 : index
    %c1_115 = arith.constant 1 : index
    %c0_116 = arith.constant 0 : index
    %149 = vector.load %arg9[%c0_113, %c1_114, %c1_115, %c0_116] : memref<2x10x10x16xf32, #tpu.memory_space<vmem>>, vector<2x8x8x16xf32>
    tpu.vector_store %arg9[%c0_113, %c1_114, %c1_115, %c0_116], %148 {strides = array<i32>} : memref<2x10x10x16xf32, #tpu.memory_space<vmem>>, vector<2x8x8x16xf32>,
    %c0_117 = arith.constant 0 : index
    %c0_118 = arith.constant 0 : index
    %c0_119 = arith.constant 0 : index
    %c0_120 = arith.constant 0 : index
    %150 = vector.load %arg9[%c0_117, %c0_118, %c0_119, %c0_120] : memref<2x10x10x16xf32, #tpu.memory_space<vmem>>, vector<2x10x10x16xf32>
    %151 = vector.extract_strided_slice %150 {offsets = [0, 0, 0, 0], sizes = [2, 8, 8, 16], strides = [1, 1, 1, 1]} : vector<2x10x10x16xf32> to vector<2x8x8x16xf32>
    %152 = vector.shape_cast %151 : vector<2x8x8x16xf32> to vector<128x16xf32>
    %c0_121 = arith.constant 0 : index
    %c0_122 = arith.constant 0 : index
    %153 = vector.load %arg10[%c0_121, %c0_122] : memref<128x144xf32, #tpu.memory_space<vmem>>, vector<128x16xf32>
    tpu.vector_store %arg10[%c0_121, %c0_122], %152 {strides = array<i32>} : memref<128x144xf32, #tpu.memory_space<vmem>>, vector<128x16xf32>,
    %154 = vector.extract_strided_slice %150 {offsets = [0, 0, 1, 0], sizes = [2, 8, 8, 16], strides = [1, 1, 1, 1]} : vector<2x10x10x16xf32> to vector<2x8x8x16xf32>
    %155 = vector.shape_cast %154 : vector<2x8x8x16xf32> to vector<128x16xf32>
    %c0_123 = arith.constant 0 : index
    %c16_124 = arith.constant 16 : index
    %156 = vector.load %arg10[%c0_123, %c16_124] : memref<128x144xf32, #tpu.memory_space<vmem>>, vector<128x16xf32>
    tpu.vector_store %arg10[%c0_123, %c16_124], %155 {strides = array<i32>} : memref<128x144xf32, #tpu.memory_space<vmem>>, vector<128x16xf32>,
    %157 = vector.extract_strided_slice %150 {offsets = [0, 0, 2, 0], sizes = [2, 8, 8, 16], strides = [1, 1, 1, 1]} : vector<2x10x10x16xf32> to vector<2x8x8x16xf32>
    %158 = vector.shape_cast %157 : vector<2x8x8x16xf32> to vector<128x16xf32>
    %c0_125 = arith.constant 0 : index
    %c32_126 = arith.constant 32 : index
    %159 = vector.load %arg10[%c0_125, %c32_126] : memref<128x144xf32, #tpu.memory_space<vmem>>, vector<128x16xf32>
    tpu.vector_store %arg10[%c0_125, %c32_126], %158 {strides = array<i32>} : memref<128x144xf32, #tpu.memory_space<vmem>>, vector<128x16xf32>,
    %160 = vector.extract_strided_slice %150 {offsets = [0, 1, 0, 0], sizes = [2, 8, 8, 16], strides = [1, 1, 1, 1]} : vector<2x10x10x16xf32> to vector<2x8x8x16xf32>
    %161 = vector.shape_cast %160 : vector<2x8x8x16xf32> to vector<128x16xf32>
    %c0_127 = arith.constant 0 : index
    %c48_128 = arith.constant 48 : index
    %162 = vector.load %arg10[%c0_127, %c48_128] : memref<128x144xf32, #tpu.memory_space<vmem>>, vector<128x16xf32>
    tpu.vector_store %arg10[%c0_127, %c48_128], %161 {strides = array<i32>} : memref<128x144xf32, #tpu.memory_space<vmem>>, vector<128x16xf32>,
    %163 = vector.extract_strided_slice %150 {offsets = [0, 1, 1, 0], sizes = [2, 8, 8, 16], strides = [1, 1, 1, 1]} : vector<2x10x10x16xf32> to vector<2x8x8x16xf32>
    %164 = vector.shape_cast %163 : vector<2x8x8x16xf32> to vector<128x16xf32>
    %c0_129 = arith.constant 0 : index
    %c64_130 = arith.constant 64 : index
    %165 = vector.load %arg10[%c0_129, %c64_130] : memref<128x144xf32, #tpu.memory_space<vmem>>, vector<128x16xf32>
    tpu.vector_store %arg10[%c0_129, %c64_130], %164 {strides = array<i32>} : memref<128x144xf32, #tpu.memory_space<vmem>>, vector<128x16xf32>,
    %166 = vector.extract_strided_slice %150 {offsets = [0, 1, 2, 0], sizes = [2, 8, 8, 16], strides = [1, 1, 1, 1]} : vector<2x10x10x16xf32> to vector<2x8x8x16xf32>
    %167 = vector.shape_cast %166 : vector<2x8x8x16xf32> to vector<128x16xf32>
    %c0_131 = arith.constant 0 : index
    %c80_132 = arith.constant 80 : index
    %168 = vector.load %arg10[%c0_131, %c80_132] : memref<128x144xf32, #tpu.memory_space<vmem>>, vector<128x16xf32>
    tpu.vector_store %arg10[%c0_131, %c80_132], %167 {strides = array<i32>} : memref<128x144xf32, #tpu.memory_space<vmem>>, vector<128x16xf32>,
    %169 = vector.extract_strided_slice %150 {offsets = [0, 2, 0, 0], sizes = [2, 8, 8, 16], strides = [1, 1, 1, 1]} : vector<2x10x10x16xf32> to vector<2x8x8x16xf32>
    %170 = vector.shape_cast %169 : vector<2x8x8x16xf32> to vector<128x16xf32>
    %c0_133 = arith.constant 0 : index
    %c96_134 = arith.constant 96 : index
    %171 = vector.load %arg10[%c0_133, %c96_134] : memref<128x144xf32, #tpu.memory_space<vmem>>, vector<128x16xf32>
    tpu.vector_store %arg10[%c0_133, %c96_134], %170 {strides = array<i32>} : memref<128x144xf32, #tpu.memory_space<vmem>>, vector<128x16xf32>,
    %172 = vector.extract_strided_slice %150 {offsets = [0, 2, 1, 0], sizes = [2, 8, 8, 16], strides = [1, 1, 1, 1]} : vector<2x10x10x16xf32> to vector<2x8x8x16xf32>
    %173 = vector.shape_cast %172 : vector<2x8x8x16xf32> to vector<128x16xf32>
    %c0_135 = arith.constant 0 : index
    %c112_136 = arith.constant 112 : index
    %174 = vector.load %arg10[%c0_135, %c112_136] : memref<128x144xf32, #tpu.memory_space<vmem>>, vector<128x16xf32>
    tpu.vector_store %arg10[%c0_135, %c112_136], %173 {strides = array<i32>} : memref<128x144xf32, #tpu.memory_space<vmem>>, vector<128x16xf32>,
    %175 = vector.extract_strided_slice %150 {offsets = [0, 2, 2, 0], sizes = [2, 8, 8, 16], strides = [1, 1, 1, 1]} : vector<2x10x10x16xf32> to vector<2x8x8x16xf32>
    %176 = vector.shape_cast %175 : vector<2x8x8x16xf32> to vector<128x16xf32>
    %c0_137 = arith.constant 0 : index
    %c128_138 = arith.constant 128 : index
    %177 = vector.load %arg10[%c0_137, %c128_138] : memref<128x144xf32, #tpu.memory_space<vmem>>, vector<128x16xf32>
    tpu.vector_store %arg10[%c0_137, %c128_138], %176 {strides = array<i32>} : memref<128x144xf32, #tpu.memory_space<vmem>>, vector<128x16xf32>,
    %c0_139 = arith.constant 0 : index
    %c0_140 = arith.constant 0 : index
    %178 = vector.load %arg10[%c0_139, %c0_140] : memref<128x144xf32, #tpu.memory_space<vmem>>, vector<128x144xf32>
    %c3 = arith.constant 3 : index
    %c0_141 = arith.constant 0 : index
    %c0_142 = arith.constant 0 : index
    %179 = vector.load %arg2[%c3, %c0_141, %c0_142] : memref<6x144x16xf32, #tpu.memory_space<vmem>>, vector<1x144x16xf32>
    %180 = vector.shape_cast %179 : vector<1x144x16xf32> to vector<144x16xf32>
    %cst_143 = arith.constant dense<0.000000e+00> : vector<128x16xf32>
    %181 = tpu.matmul %178, %180, %cst_143 {dimension_numbers = #tpu.dot_dimension_numbers<[1], [0], [0], [1], [0, 0, 1, 1], [], []>} : vector<128x144xf32>, vector<144x16xf32>, vector<128x16xf32> -> vector<128x16xf32>
    %c3_144 = arith.constant 3 : index
    %c0_145 = arith.constant 0 : index
    %c0_146 = arith.constant 0 : index
    %182 = vector.load %arg3[%c3_144, %c0_145, %c0_146] : memref<6x1x16xf32, #tpu.memory_space<vmem>>, vector<1x1x16xf32>
    %183 = vector.shape_cast %182 : vector<1x1x16xf32> to vector<1x16xf32>
    %184 = vector.broadcast %183 : vector<1x16xf32> to vector<128x16xf32>
    %185 = arith.addf %181, %184 : vector<128x16xf32>
    %186 = arith.addf %185, %106 : vector<128x16xf32>
    %cst_147 = arith.constant 0.000000e+00 : f32
    %187 = vector.broadcast %cst_147 : f32 to vector<128x16xf32>
    %188 = arith.maximumf %186, %187 : vector<128x16xf32>
    %189 = arith.mulf %188, %6 : vector<128x16xf32>
    %190 = vector.shape_cast %189 : vector<128x16xf32> to vector<2x8x8x16xf32>
    %c0_148 = arith.constant 0 : index
    %c1_149 = arith.constant 1 : index
    %c1_150 = arith.constant 1 : index
    %c0_151 = arith.constant 0 : index
    %191 = vector.load %arg9[%c0_148, %c1_149, %c1_150, %c0_151] : memref<2x10x10x16xf32, #tpu.memory_space<vmem>>, vector<2x8x8x16xf32>
    tpu.vector_store %arg9[%c0_148, %c1_149, %c1_150, %c0_151], %190 {strides = array<i32>} : memref<2x10x10x16xf32, #tpu.memory_space<vmem>>, vector<2x8x8x16xf32>,
    %c0_152 = arith.constant 0 : index
    %c0_153 = arith.constant 0 : index
    %c0_154 = arith.constant 0 : index
    %c0_155 = arith.constant 0 : index
    %192 = vector.load %arg9[%c0_152, %c0_153, %c0_154, %c0_155] : memref<2x10x10x16xf32, #tpu.memory_space<vmem>>, vector<2x10x10x16xf32>
    %193 = vector.extract_strided_slice %192 {offsets = [0, 0, 0, 0], sizes = [2, 8, 8, 16], strides = [1, 1, 1, 1]} : vector<2x10x10x16xf32> to vector<2x8x8x16xf32>
    %194 = vector.shape_cast %193 : vector<2x8x8x16xf32> to vector<128x16xf32>
    %c0_156 = arith.constant 0 : index
    %c0_157 = arith.constant 0 : index
    %195 = vector.load %arg10[%c0_156, %c0_157] : memref<128x144xf32, #tpu.memory_space<vmem>>, vector<128x16xf32>
    tpu.vector_store %arg10[%c0_156, %c0_157], %194 {strides = array<i32>} : memref<128x144xf32, #tpu.memory_space<vmem>>, vector<128x16xf32>,
    %196 = vector.extract_strided_slice %192 {offsets = [0, 0, 1, 0], sizes = [2, 8, 8, 16], strides = [1, 1, 1, 1]} : vector<2x10x10x16xf32> to vector<2x8x8x16xf32>
    %197 = vector.shape_cast %196 : vector<2x8x8x16xf32> to vector<128x16xf32>
    %c0_158 = arith.constant 0 : index
    %c16_159 = arith.constant 16 : index
    %198 = vector.load %arg10[%c0_158, %c16_159] : memref<128x144xf32, #tpu.memory_space<vmem>>, vector<128x16xf32>
    tpu.vector_store %arg10[%c0_158, %c16_159], %197 {strides = array<i32>} : memref<128x144xf32, #tpu.memory_space<vmem>>, vector<128x16xf32>,
    %199 = vector.extract_strided_slice %192 {offsets = [0, 0, 2, 0], sizes = [2, 8, 8, 16], strides = [1, 1, 1, 1]} : vector<2x10x10x16xf32> to vector<2x8x8x16xf32>
    %200 = vector.shape_cast %199 : vector<2x8x8x16xf32> to vector<128x16xf32>
    %c0_160 = arith.constant 0 : index
    %c32_161 = arith.constant 32 : index
    %201 = vector.load %arg10[%c0_160, %c32_161] : memref<128x144xf32, #tpu.memory_space<vmem>>, vector<128x16xf32>
    tpu.vector_store %arg10[%c0_160, %c32_161], %200 {strides = array<i32>} : memref<128x144xf32, #tpu.memory_space<vmem>>, vector<128x16xf32>,
    %202 = vector.extract_strided_slice %192 {offsets = [0, 1, 0, 0], sizes = [2, 8, 8, 16], strides = [1, 1, 1, 1]} : vector<2x10x10x16xf32> to vector<2x8x8x16xf32>
    %203 = vector.shape_cast %202 : vector<2x8x8x16xf32> to vector<128x16xf32>
    %c0_162 = arith.constant 0 : index
    %c48_163 = arith.constant 48 : index
    %204 = vector.load %arg10[%c0_162, %c48_163] : memref<128x144xf32, #tpu.memory_space<vmem>>, vector<128x16xf32>
    tpu.vector_store %arg10[%c0_162, %c48_163], %203 {strides = array<i32>} : memref<128x144xf32, #tpu.memory_space<vmem>>, vector<128x16xf32>,
    %205 = vector.extract_strided_slice %192 {offsets = [0, 1, 1, 0], sizes = [2, 8, 8, 16], strides = [1, 1, 1, 1]} : vector<2x10x10x16xf32> to vector<2x8x8x16xf32>
    %206 = vector.shape_cast %205 : vector<2x8x8x16xf32> to vector<128x16xf32>
    %c0_164 = arith.constant 0 : index
    %c64_165 = arith.constant 64 : index
    %207 = vector.load %arg10[%c0_164, %c64_165] : memref<128x144xf32, #tpu.memory_space<vmem>>, vector<128x16xf32>
    tpu.vector_store %arg10[%c0_164, %c64_165], %206 {strides = array<i32>} : memref<128x144xf32, #tpu.memory_space<vmem>>, vector<128x16xf32>,
    %208 = vector.extract_strided_slice %192 {offsets = [0, 1, 2, 0], sizes = [2, 8, 8, 16], strides = [1, 1, 1, 1]} : vector<2x10x10x16xf32> to vector<2x8x8x16xf32>
    %209 = vector.shape_cast %208 : vector<2x8x8x16xf32> to vector<128x16xf32>
    %c0_166 = arith.constant 0 : index
    %c80_167 = arith.constant 80 : index
    %210 = vector.load %arg10[%c0_166, %c80_167] : memref<128x144xf32, #tpu.memory_space<vmem>>, vector<128x16xf32>
    tpu.vector_store %arg10[%c0_166, %c80_167], %209 {strides = array<i32>} : memref<128x144xf32, #tpu.memory_space<vmem>>, vector<128x16xf32>,
    %211 = vector.extract_strided_slice %192 {offsets = [0, 2, 0, 0], sizes = [2, 8, 8, 16], strides = [1, 1, 1, 1]} : vector<2x10x10x16xf32> to vector<2x8x8x16xf32>
    %212 = vector.shape_cast %211 : vector<2x8x8x16xf32> to vector<128x16xf32>
    %c0_168 = arith.constant 0 : index
    %c96_169 = arith.constant 96 : index
    %213 = vector.load %arg10[%c0_168, %c96_169] : memref<128x144xf32, #tpu.memory_space<vmem>>, vector<128x16xf32>
    tpu.vector_store %arg10[%c0_168, %c96_169], %212 {strides = array<i32>} : memref<128x144xf32, #tpu.memory_space<vmem>>, vector<128x16xf32>,
    %214 = vector.extract_strided_slice %192 {offsets = [0, 2, 1, 0], sizes = [2, 8, 8, 16], strides = [1, 1, 1, 1]} : vector<2x10x10x16xf32> to vector<2x8x8x16xf32>
    %215 = vector.shape_cast %214 : vector<2x8x8x16xf32> to vector<128x16xf32>
    %c0_170 = arith.constant 0 : index
    %c112_171 = arith.constant 112 : index
    %216 = vector.load %arg10[%c0_170, %c112_171] : memref<128x144xf32, #tpu.memory_space<vmem>>, vector<128x16xf32>
    tpu.vector_store %arg10[%c0_170, %c112_171], %215 {strides = array<i32>} : memref<128x144xf32, #tpu.memory_space<vmem>>, vector<128x16xf32>,
    %217 = vector.extract_strided_slice %192 {offsets = [0, 2, 2, 0], sizes = [2, 8, 8, 16], strides = [1, 1, 1, 1]} : vector<2x10x10x16xf32> to vector<2x8x8x16xf32>
    %218 = vector.shape_cast %217 : vector<2x8x8x16xf32> to vector<128x16xf32>
    %c0_172 = arith.constant 0 : index
    %c128_173 = arith.constant 128 : index
    %219 = vector.load %arg10[%c0_172, %c128_173] : memref<128x144xf32, #tpu.memory_space<vmem>>, vector<128x16xf32>
    tpu.vector_store %arg10[%c0_172, %c128_173], %218 {strides = array<i32>} : memref<128x144xf32, #tpu.memory_space<vmem>>, vector<128x16xf32>,
    %c0_174 = arith.constant 0 : index
    %c0_175 = arith.constant 0 : index
    %220 = vector.load %arg10[%c0_174, %c0_175] : memref<128x144xf32, #tpu.memory_space<vmem>>, vector<128x144xf32>
    %c4 = arith.constant 4 : index
    %c0_176 = arith.constant 0 : index
    %c0_177 = arith.constant 0 : index
    %221 = vector.load %arg2[%c4, %c0_176, %c0_177] : memref<6x144x16xf32, #tpu.memory_space<vmem>>, vector<1x144x16xf32>
    %222 = vector.shape_cast %221 : vector<1x144x16xf32> to vector<144x16xf32>
    %cst_178 = arith.constant dense<0.000000e+00> : vector<128x16xf32>
    %223 = tpu.matmul %220, %222, %cst_178 {dimension_numbers = #tpu.dot_dimension_numbers<[1], [0], [0], [1], [0, 0, 1, 1], [], []>} : vector<128x144xf32>, vector<144x16xf32>, vector<128x16xf32> -> vector<128x16xf32>
    %c4_179 = arith.constant 4 : index
    %c0_180 = arith.constant 0 : index
    %c0_181 = arith.constant 0 : index
    %224 = vector.load %arg3[%c4_179, %c0_180, %c0_181] : memref<6x1x16xf32, #tpu.memory_space<vmem>>, vector<1x1x16xf32>
    %225 = vector.shape_cast %224 : vector<1x1x16xf32> to vector<1x16xf32>
    %226 = vector.broadcast %225 : vector<1x16xf32> to vector<128x16xf32>
    %227 = arith.addf %223, %226 : vector<128x16xf32>
    %cst_182 = arith.constant 0.000000e+00 : f32
    %228 = vector.broadcast %cst_182 : f32 to vector<128x16xf32>
    %229 = arith.maximumf %227, %228 : vector<128x16xf32>
    %230 = arith.mulf %229, %21 : vector<128x16xf32>
    %231 = vector.shape_cast %230 : vector<128x16xf32> to vector<2x8x8x16xf32>
    %c0_183 = arith.constant 0 : index
    %c1_184 = arith.constant 1 : index
    %c1_185 = arith.constant 1 : index
    %c0_186 = arith.constant 0 : index
    %232 = vector.load %arg9[%c0_183, %c1_184, %c1_185, %c0_186] : memref<2x10x10x16xf32, #tpu.memory_space<vmem>>, vector<2x8x8x16xf32>
    tpu.vector_store %arg9[%c0_183, %c1_184, %c1_185, %c0_186], %231 {strides = array<i32>} : memref<2x10x10x16xf32, #tpu.memory_space<vmem>>, vector<2x8x8x16xf32>,
    %c0_187 = arith.constant 0 : index
    %c0_188 = arith.constant 0 : index
    %c0_189 = arith.constant 0 : index
    %c0_190 = arith.constant 0 : index
    %233 = vector.load %arg9[%c0_187, %c0_188, %c0_189, %c0_190] : memref<2x10x10x16xf32, #tpu.memory_space<vmem>>, vector<2x10x10x16xf32>
    %234 = vector.extract_strided_slice %233 {offsets = [0, 0, 0, 0], sizes = [2, 8, 8, 16], strides = [1, 1, 1, 1]} : vector<2x10x10x16xf32> to vector<2x8x8x16xf32>
    %235 = vector.shape_cast %234 : vector<2x8x8x16xf32> to vector<128x16xf32>
    %c0_191 = arith.constant 0 : index
    %c0_192 = arith.constant 0 : index
    %236 = vector.load %arg10[%c0_191, %c0_192] : memref<128x144xf32, #tpu.memory_space<vmem>>, vector<128x16xf32>
    tpu.vector_store %arg10[%c0_191, %c0_192], %235 {strides = array<i32>} : memref<128x144xf32, #tpu.memory_space<vmem>>, vector<128x16xf32>,
    %237 = vector.extract_strided_slice %233 {offsets = [0, 0, 1, 0], sizes = [2, 8, 8, 16], strides = [1, 1, 1, 1]} : vector<2x10x10x16xf32> to vector<2x8x8x16xf32>
    %238 = vector.shape_cast %237 : vector<2x8x8x16xf32> to vector<128x16xf32>
    %c0_193 = arith.constant 0 : index
    %c16_194 = arith.constant 16 : index
    %239 = vector.load %arg10[%c0_193, %c16_194] : memref<128x144xf32, #tpu.memory_space<vmem>>, vector<128x16xf32>
    tpu.vector_store %arg10[%c0_193, %c16_194], %238 {strides = array<i32>} : memref<128x144xf32, #tpu.memory_space<vmem>>, vector<128x16xf32>,
    %240 = vector.extract_strided_slice %233 {offsets = [0, 0, 2, 0], sizes = [2, 8, 8, 16], strides = [1, 1, 1, 1]} : vector<2x10x10x16xf32> to vector<2x8x8x16xf32>
    %241 = vector.shape_cast %240 : vector<2x8x8x16xf32> to vector<128x16xf32>
    %c0_195 = arith.constant 0 : index
    %c32_196 = arith.constant 32 : index
    %242 = vector.load %arg10[%c0_195, %c32_196] : memref<128x144xf32, #tpu.memory_space<vmem>>, vector<128x16xf32>
    tpu.vector_store %arg10[%c0_195, %c32_196], %241 {strides = array<i32>} : memref<128x144xf32, #tpu.memory_space<vmem>>, vector<128x16xf32>,
    %243 = vector.extract_strided_slice %233 {offsets = [0, 1, 0, 0], sizes = [2, 8, 8, 16], strides = [1, 1, 1, 1]} : vector<2x10x10x16xf32> to vector<2x8x8x16xf32>
    %244 = vector.shape_cast %243 : vector<2x8x8x16xf32> to vector<128x16xf32>
    %c0_197 = arith.constant 0 : index
    %c48_198 = arith.constant 48 : index
    %245 = vector.load %arg10[%c0_197, %c48_198] : memref<128x144xf32, #tpu.memory_space<vmem>>, vector<128x16xf32>
    tpu.vector_store %arg10[%c0_197, %c48_198], %244 {strides = array<i32>} : memref<128x144xf32, #tpu.memory_space<vmem>>, vector<128x16xf32>,
    %246 = vector.extract_strided_slice %233 {offsets = [0, 1, 1, 0], sizes = [2, 8, 8, 16], strides = [1, 1, 1, 1]} : vector<2x10x10x16xf32> to vector<2x8x8x16xf32>
    %247 = vector.shape_cast %246 : vector<2x8x8x16xf32> to vector<128x16xf32>
    %c0_199 = arith.constant 0 : index
    %c64_200 = arith.constant 64 : index
    %248 = vector.load %arg10[%c0_199, %c64_200] : memref<128x144xf32, #tpu.memory_space<vmem>>, vector<128x16xf32>
    tpu.vector_store %arg10[%c0_199, %c64_200], %247 {strides = array<i32>} : memref<128x144xf32, #tpu.memory_space<vmem>>, vector<128x16xf32>,
    %249 = vector.extract_strided_slice %233 {offsets = [0, 1, 2, 0], sizes = [2, 8, 8, 16], strides = [1, 1, 1, 1]} : vector<2x10x10x16xf32> to vector<2x8x8x16xf32>
    %250 = vector.shape_cast %249 : vector<2x8x8x16xf32> to vector<128x16xf32>
    %c0_201 = arith.constant 0 : index
    %c80_202 = arith.constant 80 : index
    %251 = vector.load %arg10[%c0_201, %c80_202] : memref<128x144xf32, #tpu.memory_space<vmem>>, vector<128x16xf32>
    tpu.vector_store %arg10[%c0_201, %c80_202], %250 {strides = array<i32>} : memref<128x144xf32, #tpu.memory_space<vmem>>, vector<128x16xf32>,
    %252 = vector.extract_strided_slice %233 {offsets = [0, 2, 0, 0], sizes = [2, 8, 8, 16], strides = [1, 1, 1, 1]} : vector<2x10x10x16xf32> to vector<2x8x8x16xf32>
    %253 = vector.shape_cast %252 : vector<2x8x8x16xf32> to vector<128x16xf32>
    %c0_203 = arith.constant 0 : index
    %c96_204 = arith.constant 96 : index
    %254 = vector.load %arg10[%c0_203, %c96_204] : memref<128x144xf32, #tpu.memory_space<vmem>>, vector<128x16xf32>
    tpu.vector_store %arg10[%c0_203, %c96_204], %253 {strides = array<i32>} : memref<128x144xf32, #tpu.memory_space<vmem>>, vector<128x16xf32>,
    %255 = vector.extract_strided_slice %233 {offsets = [0, 2, 1, 0], sizes = [2, 8, 8, 16], strides = [1, 1, 1, 1]} : vector<2x10x10x16xf32> to vector<2x8x8x16xf32>
    %256 = vector.shape_cast %255 : vector<2x8x8x16xf32> to vector<128x16xf32>
    %c0_205 = arith.constant 0 : index
    %c112_206 = arith.constant 112 : index
    %257 = vector.load %arg10[%c0_205, %c112_206] : memref<128x144xf32, #tpu.memory_space<vmem>>, vector<128x16xf32>
    tpu.vector_store %arg10[%c0_205, %c112_206], %256 {strides = array<i32>} : memref<128x144xf32, #tpu.memory_space<vmem>>, vector<128x16xf32>,
    %258 = vector.extract_strided_slice %233 {offsets = [0, 2, 2, 0], sizes = [2, 8, 8, 16], strides = [1, 1, 1, 1]} : vector<2x10x10x16xf32> to vector<2x8x8x16xf32>
    %259 = vector.shape_cast %258 : vector<2x8x8x16xf32> to vector<128x16xf32>
    %c0_207 = arith.constant 0 : index
    %c128_208 = arith.constant 128 : index
    %260 = vector.load %arg10[%c0_207, %c128_208] : memref<128x144xf32, #tpu.memory_space<vmem>>, vector<128x16xf32>
    tpu.vector_store %arg10[%c0_207, %c128_208], %259 {strides = array<i32>} : memref<128x144xf32, #tpu.memory_space<vmem>>, vector<128x16xf32>,
    %c0_209 = arith.constant 0 : index
    %c0_210 = arith.constant 0 : index
    %261 = vector.load %arg10[%c0_209, %c0_210] : memref<128x144xf32, #tpu.memory_space<vmem>>, vector<128x144xf32>
    %c5 = arith.constant 5 : index
    %c0_211 = arith.constant 0 : index
    %c0_212 = arith.constant 0 : index
    %262 = vector.load %arg2[%c5, %c0_211, %c0_212] : memref<6x144x16xf32, #tpu.memory_space<vmem>>, vector<1x144x16xf32>
    %263 = vector.shape_cast %262 : vector<1x144x16xf32> to vector<144x16xf32>
    %cst_213 = arith.constant dense<0.000000e+00> : vector<128x16xf32>
    %264 = tpu.matmul %261, %263, %cst_213 {dimension_numbers = #tpu.dot_dimension_numbers<[1], [0], [0], [1], [0, 0, 1, 1], [], []>} : vector<128x144xf32>, vector<144x16xf32>, vector<128x16xf32> -> vector<128x16xf32>
    %c5_214 = arith.constant 5 : index
    %c0_215 = arith.constant 0 : index
    %c0_216 = arith.constant 0 : index
    %265 = vector.load %arg3[%c5_214, %c0_215, %c0_216] : memref<6x1x16xf32, #tpu.memory_space<vmem>>, vector<1x1x16xf32>
    %266 = vector.shape_cast %265 : vector<1x1x16xf32> to vector<1x16xf32>
    %267 = vector.broadcast %266 : vector<1x16xf32> to vector<128x16xf32>
    %268 = arith.addf %264, %267 : vector<128x16xf32>
    %269 = arith.addf %268, %189 : vector<128x16xf32>
    %cst_217 = arith.constant 0.000000e+00 : f32
    %270 = vector.broadcast %cst_217 : f32 to vector<128x16xf32>
    %271 = arith.maximumf %269, %270 : vector<128x16xf32>
    %272 = arith.mulf %271, %6 : vector<128x16xf32>
    %c0_218 = arith.constant 0 : index
    %c0_219 = arith.constant 0 : index
    %273 = vector.load %arg8[%c0_218, %c0_219] : memref<128x16xf32, #tpu.memory_space<vmem>>, vector<128x16xf32>
    tpu.vector_store %arg8[%c0_218, %c0_219], %272 {strides = array<i32>} : memref<128x16xf32, #tpu.memory_space<vmem>>, vector<128x16xf32>,
    return
  }
  func.func @transform_0(%arg0: i32) -> (i32, i32, i32, i32) {
    %c0_i32 = arith.constant 0 : i32
    %c0_i32_0 = arith.constant 0 : i32
    %c0_i32_1 = arith.constant 0 : i32
    %c0_i32_2 = arith.constant 0 : i32
    %c0_i32_3 = arith.constant 0 : i32
    return %c0_i32, %c0_i32_0, %c0_i32_1, %c0_i32_2 : i32, i32, i32, i32
  }
  func.func @transform_1(%arg0: i32) -> (i32, i32, i32) {
    %c0_i32 = arith.constant 0 : i32
    %c0_i32_0 = arith.constant 0 : i32
    %c0_i32_1 = arith.constant 0 : i32
    %c0_i32_2 = arith.constant 0 : i32
    return %c0_i32, %c0_i32_0, %c0_i32_1 : i32, i32, i32
  }
  func.func @transform_2(%arg0: i32) -> (i32, i32, i32) {
    %c0_i32 = arith.constant 0 : i32
    %c0_i32_0 = arith.constant 0 : i32
    %c0_i32_1 = arith.constant 0 : i32
    %c0_i32_2 = arith.constant 0 : i32
    return %c0_i32, %c0_i32_0, %c0_i32_1 : i32, i32, i32
  }
  func.func @transform_3(%arg0: i32) -> (i32, i32) {
    %c0_i32 = arith.constant 0 : i32
    %c0_i32_0 = arith.constant 0 : i32
    %c0_i32_1 = arith.constant 0 : i32
    return %c0_i32, %c0_i32_0 : i32, i32
  }
  func.func @transform_4(%arg0: i32) -> (i32, i32) {
    %c0_i32 = arith.constant 0 : i32
    %c0_i32_0 = arith.constant 0 : i32
    %c0_i32_1 = arith.constant 0 : i32
    return %c0_i32, %c0_i32_0 : i32, i32
  }
  func.func @transform_5(%arg0: i32) -> (i32, i32) {
    %c0_i32 = arith.constant 0 : i32
    %c0_i32_0 = arith.constant 0 : i32
    %c0_i32_1 = arith.constant 0 : i32
    return %c0_i32, %c0_i32_0 : i32, i32
  }
  func.func @transform_6(%arg0: i32) -> (i32, i32) {
    %c0_i32 = arith.constant 0 : i32
    %c0_i32_0 = arith.constant 0 : i32
    %c0_i32_1 = arith.constant 0 : i32
    return %c0_i32, %c0_i32_0 : i32, i32
  }
  func.func @transform_7(%arg0: i32) -> (i32, i32) {
    %c0_i32 = arith.constant 0 : i32
    %c0_i32_0 = arith.constant 0 : i32
    %c0_i32_1 = arith.constant 0 : i32
    return %c0_i32, %c0_i32_0 : i32, i32
  }
}

</mosaic_0001>

<llo_original>
// kernel: l0layer_forward.1
$region0: #{l0layer_forward.1}
  #allocation0 [shape = 'u32[]', space=smem, size = 0x4, offset = 0x4, fixed_abs, tag = 'smem constant byte address 0x4 - core index']
  #allocation1 [shape = 'u32[144,128]{1,0:T(1,128)}', space=vmem, size = 0x12000, scoped, tag = 'internal scratch']
  #allocation2 [shape = 'f32[2,10,10,16]{3,2,1,0:T(8,128)}', space=vmem, size = 0x28000, scoped, tag = 'scratch operand']
  #allocation3 [shape = 'f32[128,144]{1,0:T(8,128)}', space=vmem, size = 0x20000, scoped, tag = 'scratch operand']
  %s0 = inlined_call_operand.vmem [shape: f32[2,8,8,16], index: 0, kind: input, shape index: {}]
  %s1 = inlined_call_operand.vmem [shape: f32[6,144,16], index: 1, kind: input, shape index: {}]
  %s2 = inlined_call_operand.vmem [shape: f32[6,1,16], index: 2, kind: input, shape index: {}]
  %s3 = inlined_call_operand.vmem [shape: f32[2,16], index: 3, kind: input, shape index: {}]
  %s4 = inlined_call_operand.vmem [shape: f32[2,16], index: 4, kind: input, shape index: {}]
  %s5 = inlined_call_operand.vmem [shape: f32[2,16], index: 5, kind: input, shape index: {}]
  %s6 = inlined_call_operand.vmem [shape: f32[2,16], index: 6, kind: input, shape index: {}]
  %s7 = inlined_call_operand.hbm [shape: f32[128,16], index: 7, kind: output, shape index: {}]
  %s8 = sld [smem:[#allocation0]]
  $region38: #{l0layer_forward.1} parent=0
    _
  %s10 = ssub.s32 1, %s8
  %s11 = scalar_select 0, %s10, %s8
  $region1: #{l0layer_forward.1} parent=0
    #allocation4 [shape = 'u8[65536]{0}', space=vmem, size = 0x10000, scoped, tag = 'output window, operand 0, single buffered']
    #allocation5 [shape = 's32[1]{0}', space=sflag, size = 0x4, scoped, tag = 'scoped memory for l0layer_forward.1']
    %12 = vsyncpa [#allocation5], 0
    // Predicated region
    $region2: #{l0layer_forward.1} parent=1 // pred_check
      _
    $region3: #{l0layer_forward.1} parent=1 // pred_check_branch
      %14 = sbr.rel (0) target = $region5
    $region4: #{l0layer_forward.1} parent=1 // pred_region
      _
    $region5: #{l0layer_forward.1} parent=1 // pred_fallthru
      _
    // Predicated region
    $region6: #{l0layer_forward.1} parent=1 // pred_check
      _
    $region7: #{l0layer_forward.1} parent=1 // pred_check_branch
      %16 = sbr.rel (0) target = $region9
    $region8: #{l0layer_forward.1} parent=1 // pred_region
      _
    $region9: #{l0layer_forward.1} parent=1 // pred_fallthru
      _
    // Predicated region
    $region10: #{l0layer_forward.1} parent=1 // pred_check
      _
    $region11: #{l0layer_forward.1} parent=1 // pred_check_branch
      %18 = sbr.rel (0) target = $region13
    $region12: #{l0layer_forward.1} parent=1 // pred_region
      _
    $region13: #{l0layer_forward.1} parent=1 // pred_fallthru
      _
    // Predicated region
    $region14: #{l0layer_forward.1} parent=1 // pred_check
      _
    $region15: #{l0layer_forward.1} parent=1 // pred_check_branch
      %20 = sbr.rel (0) target = $region17
    $region16: #{l0layer_forward.1} parent=1 // pred_region
      _
    $region17: #{l0layer_forward.1} parent=1 // pred_fallthru
      _
    // Predicated region
    $region18: #{l0layer_forward.1} parent=1 // pred_check
      _
    $region19: #{l0layer_forward.1} parent=1 // pred_check_branch
      %22 = sbr.rel (0) target = $region21
    $region20: #{l0layer_forward.1} parent=1 // pred_region
      _
    $region21: #{l0layer_forward.1} parent=1 // pred_fallthru
      _
    // Predicated region
    $region22: #{l0layer_forward.1} parent=1 // pred_check
      _
    $region23: #{l0layer_forward.1} parent=1 // pred_check_branch
      %24 = sbr.rel (0) target = $region25
    $region24: #{l0layer_forward.1} parent=1 // pred_region
      _
    $region25: #{l0layer_forward.1} parent=1 // pred_fallthru
      _
    // Predicated region
    $region26: #{l0layer_forward.1} parent=1 // pred_check
      _
    $region27: #{l0layer_forward.1} parent=1 // pred_check_branch
      %26 = sbr.rel (0) target = $region29
    $region28: #{l0layer_forward.1} parent=1 // pred_region
      _
    $region29: #{l0layer_forward.1} parent=1 // pred_fallthru
      _
    %vm27 = vcmask 130048
    %28 = vst.msk [vmem:[#allocation2] sm:$0xff] %vm27, 0.0
    %vm29 = vcmask 123904
    %30 = vst.msk [vmem:[#allocation2 + $0x8] sm:$0x3] %vm29, 0.0
    %31 = vst.msk [vmem:[#allocation2 + $0x10] sm:$0xff] %vm27, 0.0
    %32 = vst.msk [vmem:[#allocation2 + $0x18] sm:$0x3] %vm29, 0.0
    %33 = vst.msk [vmem:[#allocation2 + $0x20] sm:$0xff] %vm27, 0.0
    %34 = vst.msk [vmem:[#allocation2 + $0x28] sm:$0x3] %vm29, 0.0
    %35 = vst.msk [vmem:[#allocation2 + $0x30] sm:$0xff] %vm27, 0.0
    %36 = vst.msk [vmem:[#allocation2 + $0x38] sm:$0x3] %vm29, 0.0
    %37 = vst.msk [vmem:[#allocation2 + $0x40] sm:$0xff] %vm27, 0.0
    %38 = vst.msk [vmem:[#allocation2 + $0x48] sm:$0x3] %vm29, 0.0
    %39 = vst.msk [vmem:[#allocation2 + $0x50] sm:$0xff] %vm27, 0.0
    %40 = vst.msk [vmem:[#allocation2 + $0x58] sm:$0x3] %vm29, 0.0
    %41 = vst.msk [vmem:[#allocation2 + $0x60] sm:$0xff] %vm27, 0.0
    %42 = vst.msk [vmem:[#allocation2 + $0x68] sm:$0x3] %vm29, 0.0
    %43 = vst.msk [vmem:[#allocation2 + $0x70] sm:$0xff] %vm27, 0.0
    %44 = vst.msk [vmem:[#allocation2 + $0x78] sm:$0x3] %vm29, 0.0
    %45 = vst.msk [vmem:[#allocation2 + $0x80] sm:$0xff] %vm27, 0.0
    %46 = vst.msk [vmem:[#allocation2 + $0x88] sm:$0x3] %vm29, 0.0
    %47 = vst.msk [vmem:[#allocation2 + $0x90] sm:$0xff] %vm27, 0.0
    %48 = vst.msk [vmem:[#allocation2 + $0x98] sm:$0x3] %vm29, 0.0
    %49 = vst.msk [vmem:[#allocation2 + $0xa0] sm:$0xff] %vm27, 0.0
    %50 = vst.msk [vmem:[#allocation2 + $0xa8] sm:$0x3] %vm29, 0.0
    %51 = vst.msk [vmem:[#allocation2 + $0xb0] sm:$0xff] %vm27, 0.0
    %52 = vst.msk [vmem:[#allocation2 + $0xb8] sm:$0x3] %vm29, 0.0
    %53 = vst.msk [vmem:[#allocation2 + $0xc0] sm:$0xff] %vm27, 0.0
    %54 = vst.msk [vmem:[#allocation2 + $0xc8] sm:$0x3] %vm29, 0.0
    %55 = vst.msk [vmem:[#allocation2 + $0xd0] sm:$0xff] %vm27, 0.0
    %56 = vst.msk [vmem:[#allocation2 + $0xd8] sm:$0x3] %vm29, 0.0
    %57 = vst.msk [vmem:[#allocation2 + $0xe0] sm:$0xff] %vm27, 0.0
    %58 = vst.msk [vmem:[#allocation2 + $0xe8] sm:$0x3] %vm29, 0.0
    %59 = vst.msk [vmem:[#allocation2 + $0xf0] sm:$0xff] %vm27, 0.0
    %60 = vst.msk [vmem:[#allocation2 + $0xf8] sm:$0x3] %vm29, 0.0
    %61 = vst.msk [vmem:[#allocation2 + $0x100] sm:$0xff] %vm27, 0.0
    %62 = vst.msk [vmem:[#allocation2 + $0x108] sm:$0x3] %vm29, 0.0
    %63 = vst.msk [vmem:[#allocation2 + $0x110] sm:$0xff] %vm27, 0.0
    %64 = vst.msk [vmem:[#allocation2 + $0x118] sm:$0x3] %vm29, 0.0
    %65 = vst.msk [vmem:[#allocation2 + $0x120] sm:$0xff] %vm27, 0.0
    %66 = vst.msk [vmem:[#allocation2 + $0x128] sm:$0x3] %vm29, 0.0
    %67 = vst.msk [vmem:[#allocation2 + $0x130] sm:$0xff] %vm27, 0.0
    %68 = vst.msk [vmem:[#allocation2 + $0x138] sm:$0x3] %vm29, 0.0
    %v69 = vld [vmem:[%s3] sm:$0x3]
    %v72 = vunpack.c.l.s4 1966171168
    %v73 = vunpack.c.0.s8 %v72
    %v74 = vlaneseq
    %v75 = vshrl.u32 %v74, 7
    %v76 = vsub.s32 %v73, %v75
    %v77 = vrot.slane %v69, %v76
    %v78 = vcombine.high %v77, %v77
    %v80 = vunpack.c.l.s4 1966171168
    %v81 = vunpack.c.0.s8 %v80
    %v82 = vlaneseq
    %v83 = vshrl.u32 %v82, 7
    %v84 = vsub.s32 %v81, %v83
    %v85 = vrot.slane %v77, %v84
    %v87 = vunpack.c.l.s4 1966171168
    %v88 = vunpack.c.0.s8 %v87
    %v89 = vlaneseq
    %v90 = vshrl.u32 %v89, 7
    %v91 = vsub.s32 %v88, %v90
    %v92 = vrot.slane %v78, %v91
    %v93 = vlaneseq
    %v94 = vshrl.u32 %v93, 7
    %v95 = vsub.s32 0, %v94
    %v96 = vrot.slane %v85, %v95
    %v97 = vlaneseq
    %v98 = vshrl.u32 %v97, 7
    %v99 = vsub.s32 0, %v98
    %v100 = vrot.slane %v92, %v99
    %v103 = vld [vmem:[%s4] sm:$0x3]
    %v106 = vunpack.c.l.s4 1966171168
    %v107 = vunpack.c.0.s8 %v106
    %v108 = vlaneseq
    %v109 = vshrl.u32 %v108, 7
    %v110 = vsub.s32 %v107, %v109
    %v111 = vrot.slane %v103, %v110
    %v112 = vcombine.high %v111, %v111
    %v114 = vunpack.c.l.s4 1966171168
    %v115 = vunpack.c.0.s8 %v114
    %v116 = vlaneseq
    %v117 = vshrl.u32 %v116, 7
    %v118 = vsub.s32 %v115, %v117
    %v119 = vrot.slane %v111, %v118
    %v121 = vunpack.c.l.s4 1966171168
    %v122 = vunpack.c.0.s8 %v121
    %v123 = vlaneseq
    %v124 = vshrl.u32 %v123, 7
    %v125 = vsub.s32 %v122, %v124
    %v126 = vrot.slane %v112, %v125
    %v127 = vlaneseq
    %v128 = vshrl.u32 %v127, 7
    %v129 = vsub.s32 0, %v128
    %v130 = vrot.slane %v119, %v129
    %v131 = vlaneseq
    %v132 = vshrl.u32 %v131, 7
    %v133 = vsub.s32 0, %v132
    %v134 = vrot.slane %v126, %v133
    %v137 = vld [vmem:[%s5] sm:$0x3]
    %v140 = vunpack.c.l.s4 1966171168
    %v141 = vunpack.c.0.s8 %v140
    %v142 = vlaneseq
    %v143 = vshrl.u32 %v142, 7
    %v144 = vsub.s32 %v141, %v143
    %v145 = vrot.slane %v137, %v144
    %v146 = vcombine.high %v145, %v145
    %v148 = vunpack.c.l.s4 1966171168
    %v149 = vunpack.c.0.s8 %v148
    %v150 = vlaneseq
    %v151 = vshrl.u32 %v150, 7
    %v152 = vsub.s32 %v149, %v151
    %v153 = vrot.slane %v145, %v152
    %v155 = vunpack.c.l.s4 1966171168
    %v156 = vunpack.c.0.s8 %v155
    %v157 = vlaneseq
    %v158 = vshrl.u32 %v157, 7
    %v159 = vsub.s32 %v156, %v158
    %v160 = vrot.slane %v146, %v159
    %v161 = vlaneseq
    %v162 = vshrl.u32 %v161, 7
    %v163 = vsub.s32 0, %v162
    %v164 = vrot.slane %v153, %v163
    %v165 = vlaneseq
    %v166 = vshrl.u32 %v165, 7
    %v167 = vsub.s32 0, %v166
    %v168 = vrot.slane %v160, %v167
    %v171 = vld [vmem:[%s6] sm:$0x3]
    %v174 = vunpack.c.l.s4 1966171168
    %v175 = vunpack.c.0.s8 %v174
    %v176 = vlaneseq
    %v177 = vshrl.u32 %v176, 7
    %v178 = vsub.s32 %v175, %v177
    %v179 = vrot.slane %v171, %v178
    %v180 = vcombine.high %v179, %v179
    %v182 = vunpack.c.l.s4 1966171168
    %v183 = vunpack.c.0.s8 %v182
    %v184 = vlaneseq
    %v185 = vshrl.u32 %v184, 7
    %v186 = vsub.s32 %v183, %v185
    %v187 = vrot.slane %v179, %v186
    %v189 = vunpack.c.l.s4 1966171168
    %v190 = vunpack.c.0.s8 %v189
    %v191 = vlaneseq
    %v192 = vshrl.u32 %v191, 7
    %v193 = vsub.s32 %v190, %v192
    %v194 = vrot.slane %v180, %v193
    %v195 = vlaneseq
    %v196 = vshrl.u32 %v195, 7
    %v197 = vsub.s32 0, %v196
    %v198 = vrot.slane %v187, %v197
    %v199 = vlaneseq
    %v200 = vshrl.u32 %v199, 7
    %v201 = vsub.s32 0, %v200
    %v202 = vrot.slane %v194, %v201
    %v205 = vld [vmem:[%s0] sm:$0xff]
    %v206 = vld [vmem:[%s0 + $0x8] sm:$0xff]
    %v207 = vld [vmem:[%s0 + $0x10] sm:$0xff]
    %v208 = vld [vmem:[%s0 + $0x18] sm:$0xff]
    %v209 = vld [vmem:[%s0 + $0x20] sm:$0xff]
    %v210 = vld [vmem:[%s0 + $0x28] sm:$0xff]
    %v211 = vld [vmem:[%s0 + $0x30] sm:$0xff]
    %v212 = vld [vmem:[%s0 + $0x38] sm:$0xff]
    %v213 = vld [vmem:[%s0 + $0x40] sm:$0xff]
    %v214 = vld [vmem:[%s0 + $0x48] sm:$0xff]
    %v215 = vld [vmem:[%s0 + $0x50] sm:$0xff]
    %v216 = vld [vmem:[%s0 + $0x58] sm:$0xff]
    %v217 = vld [vmem:[%s0 + $0x60] sm:$0xff]
    %v218 = vld [vmem:[%s0 + $0x68] sm:$0xff]
    %v219 = vld [vmem:[%s0 + $0x70] sm:$0xff]
    %v220 = vld [vmem:[%s0 + $0x78] sm:$0xff]
    %s221 = scalar_lea.vmem [#allocation2], 16
    %222 = vst.msk [vmem:[%s221 + $0x1] sm:$0xff] %vm27, %v205
    %223 = vst.msk [vmem:[%s221 + $0x11] sm:$0xff] %vm27, %v206
    %224 = vst.msk [vmem:[%s221 + $0x21] sm:$0xff] %vm27, %v207
    %225 = vst.msk [vmem:[%s221 + $0x31] sm:$0xff] %vm27, %v208
    %226 = vst.msk [vmem:[%s221 + $0x41] sm:$0xff] %vm27, %v209
    %227 = vst.msk [vmem:[%s221 + $0x51] sm:$0xff] %vm27, %v210
    %228 = vst.msk [vmem:[%s221 + $0x61] sm:$0xff] %vm27, %v211
    %229 = vst.msk [vmem:[%s221 + $0x71] sm:$0xff] %vm27, %v212
    %230 = vst.msk [vmem:[%s221 + $0xa1] sm:$0xff] %vm27, %v213
    %231 = vst.msk [vmem:[%s221 + $0xb1] sm:$0xff] %vm27, %v214
    %232 = vst.msk [vmem:[%s221 + $0xc1] sm:$0xff] %vm27, %v215
    %233 = vst.msk [vmem:[%s221 + $0xd1] sm:$0xff] %vm27, %v216
    %234 = vst.msk [vmem:[%s221 + $0xe1] sm:$0xff] %vm27, %v217
    %235 = vst.msk [vmem:[%s221 + $0xf1] sm:$0xff] %vm27, %v218
    %236 = vst.msk [vmem:[%s221 + $0x101] sm:$0xff] %vm27, %v219
    %237 = vst.msk [vmem:[%s221 + $0x111] sm:$0xff] %vm27, %v220
    %v238 = vld [vmem:[#allocation2] sm:$0xff]
    %v239 = vld [vmem:[#allocation2 + $0x8] sm:$0x3]
    %v240 = vld [vmem:[#allocation2 + $0x10] sm:$0xff]
    %v241 = vld [vmem:[#allocation2 + $0x18] sm:$0x3]
    %v242 = vld [vmem:[#allocation2 + $0x20] sm:$0xff]
    %v243 = vld [vmem:[#allocation2 + $0x28] sm:$0x3]
    %v244 = vld [vmem:[#allocation2 + $0x30] sm:$0xff]
    %v245 = vld [vmem:[#allocation2 + $0x38] sm:$0x3]
    %v246 = vld [vmem:[#allocation2 + $0x40] sm:$0xff]
    %v247 = vld [vmem:[#allocation2 + $0x48] sm:$0x3]
    %v248 = vld [vmem:[#allocation2 + $0x50] sm:$0xff]
    %v249 = vld [vmem:[#allocation2 + $0x58] sm:$0x3]
    %v250 = vld [vmem:[#allocation2 + $0x60] sm:$0xff]
    %v251 = vld [vmem:[#allocation2 + $0x68] sm:$0x3]
    %v252 = vld [vmem:[#allocation2 + $0x70] sm:$0xff]
    %v253 = vld [vmem:[#allocation2 + $0x78] sm:$0x3]
    %v254 = vld [vmem:[#allocation2 + $0x80] sm:$0xff]
    %v255 = vld [vmem:[#allocation2 + $0x88] sm:$0x3]
    %v256 = vld [vmem:[#allocation2 + $0x90] sm:$0xff]
    %v257 = vld [vmem:[#allocation2 + $0x98] sm:$0x3]
    %v258 = vld [vmem:[#allocation2 + $0xa0] sm:$0xff]
    %v259 = vld [vmem:[#allocation2 + $0xa8] sm:$0x3]
    %v260 = vld [vmem:[#allocation2 + $0xb0] sm:$0xff]
    %v261 = vld [vmem:[#allocation2 + $0xb8] sm:$0x3]
    %v262 = vld [vmem:[#allocation2 + $0xc0] sm:$0xff]
    %v263 = vld [vmem:[#allocation2 + $0xc8] sm:$0x3]
    %v264 = vld [vmem:[#allocation2 + $0xd0] sm:$0xff]
    %v265 = vld [vmem:[#allocation2 + $0xd8] sm:$0x3]
    %v266 = vld [vmem:[#allocation2 + $0xe0] sm:$0xff]
    %v267 = vld [vmem:[#allocation2 + $0xe8] sm:$0x3]
    %v268 = vld [vmem:[#allocation2 + $0xf0] sm:$0xff]
    %v269 = vld [vmem:[#allocation2 + $0xf8] sm:$0x3]
    %v270 = vld [vmem:[#allocation2 + $0x100] sm:$0xff]
    %v271 = vld [vmem:[#allocation2 + $0x108] sm:$0x3]
    %v272 = vld [vmem:[#allocation2 + $0x110] sm:$0xff]
    %v273 = vld [vmem:[#allocation2 + $0x118] sm:$0x3]
    %v274 = vld [vmem:[#allocation2 + $0x120] sm:$0xff]
    %v275 = vld [vmem:[#allocation2 + $0x128] sm:$0x3]
    %v276 = vld [vmem:[#allocation2 + $0x130] sm:$0xff]
    %v277 = vld [vmem:[#allocation2 + $0x138] sm:$0x3]
    %278 = vst.msk [vmem:[#allocation3] sm:$0xff] %vm27, %v238
    %279 = vst.msk [vmem:[#allocation3 + $0x10] sm:$0xff] %vm27, %v240
    %280 = vst.msk [vmem:[#allocation3 + $0x20] sm:$0xff] %vm27, %v242
    %281 = vst.msk [vmem:[#allocation3 + $0x30] sm:$0xff] %vm27, %v244
    %282 = vst.msk [vmem:[#allocation3 + $0x40] sm:$0xff] %vm27, %v246
    %283 = vst.msk [vmem:[#allocation3 + $0x50] sm:$0xff] %vm27, %v248
    %284 = vst.msk [vmem:[#allocation3 + $0x60] sm:$0xff] %vm27, %v250
    %285 = vst.msk [vmem:[#allocation3 + $0x70] sm:$0xff] %vm27, %v252
    %286 = vst.msk [vmem:[#allocation3 + $0x80] sm:$0xff] %vm27, %v258
    %287 = vst.msk [vmem:[#allocation3 + $0x90] sm:$0xff] %vm27, %v260
    %288 = vst.msk [vmem:[#allocation3 + $0xa0] sm:$0xff] %vm27, %v262
    %289 = vst.msk [vmem:[#allocation3 + $0xb0] sm:$0xff] %vm27, %v264
    %290 = vst.msk [vmem:[#allocation3 + $0xc0] sm:$0xff] %vm27, %v266
    %291 = vst.msk [vmem:[#allocation3 + $0xd0] sm:$0xff] %vm27, %v268
    %292 = vst.msk [vmem:[#allocation3 + $0xe0] sm:$0xff] %vm27, %v270
    %293 = vst.msk [vmem:[#allocation3 + $0xf0] sm:$0xff] %vm27, %v272
    %vm326 = vcmask 1046528
    %v327 = vrot.slane %v238, 1
    %v328 = vrot.slane %v239, 1
    %v329 = vsel %vm326, %v327, %v328
    %v330 = vrot.slane %v240, 1
    %v331 = vrot.slane %v241, 1
    %v332 = vsel %vm326, %v330, %v331
    %v333 = vrot.slane %v242, 1
    %v334 = vrot.slane %v243, 1
    %v335 = vsel %vm326, %v333, %v334
    %v336 = vrot.slane %v244, 1
    %v337 = vrot.slane %v245, 1
    %v338 = vsel %vm326, %v336, %v337
    %v339 = vrot.slane %v246, 1
    %v340 = vrot.slane %v247, 1
    %v341 = vsel %vm326, %v339, %v340
    %v342 = vrot.slane %v248, 1
    %v343 = vrot.slane %v249, 1
    %v344 = vsel %vm326, %v342, %v343
    %v345 = vrot.slane %v250, 1
    %v346 = vrot.slane %v251, 1
    %v347 = vsel %vm326, %v345, %v346
    %v348 = vrot.slane %v252, 1
    %v349 = vrot.slane %v253, 1
    %v350 = vsel %vm326, %v348, %v349
    %v351 = vrot.slane %v258, 1
    %v352 = vrot.slane %v259, 1
    %v353 = vsel %vm326, %v351, %v352
    %v354 = vrot.slane %v260, 1
    %v355 = vrot.slane %v261, 1
    %v356 = vsel %vm326, %v354, %v355
    %v357 = vrot.slane %v262, 1
    %v358 = vrot.slane %v263, 1
    %v359 = vsel %vm326, %v357, %v358
    %v360 = vrot.slane %v264, 1
    %v361 = vrot.slane %v265, 1
    %v362 = vsel %vm326, %v360, %v361
    %v363 = vrot.slane %v266, 1
    %v364 = vrot.slane %v267, 1
    %v365 = vsel %vm326, %v363, %v364
    %v366 = vrot.slane %v268, 1
    %v367 = vrot.slane %v269, 1
    %v368 = vsel %vm326, %v366, %v367
    %v369 = vrot.slane %v270, 1
    %v370 = vrot.slane %v271, 1
    %v371 = vsel %vm326, %v369, %v370
    %v372 = vrot.slane %v272, 1
    %v373 = vrot.slane %v273, 1
    %v374 = vsel %vm326, %v372, %v373
    %375 = vrot.lane.b32.xlu0 %v329, 16
    %v376 = vpop.permute.xlu0 %375
    %377 = vrot.lane.b32.xlu0 %v332, 16
    %v378 = vpop.permute.xlu0 %377
    %379 = vrot.lane.b32.xlu0 %v335, 16
    %v380 = vpop.permute.xlu0 %379
    %381 = vrot.lane.b32.xlu0 %v338, 16
    %v382 = vpop.permute.xlu0 %381
    %383 = vrot.lane.b32.xlu0 %v341, 16
    %v384 = vpop.permute.xlu0 %383
    %385 = vrot.lane.b32.xlu0 %v344, 16
    %v386 = vpop.permute.xlu0 %385
    %387 = vrot.lane.b32.xlu0 %v347, 16
    %v388 = vpop.permute.xlu0 %387
    %389 = vrot.lane.b32.xlu0 %v350, 16
    %v390 = vpop.permute.xlu0 %389
    %391 = vrot.lane.b32.xlu0 %v353, 16
    %v392 = vpop.permute.xlu0 %391
    %393 = vrot.lane.b32.xlu0 %v356, 16
    %v394 = vpop.permute.xlu0 %393
    %395 = vrot.lane.b32.xlu0 %v359, 16
    %v396 = vpop.permute.xlu0 %395
    %397 = vrot.lane.b32.xlu0 %v362, 16
    %v398 = vpop.permute.xlu0 %397
    %399 = vrot.lane.b32.xlu0 %v365, 16
    %v400 = vpop.permute.xlu0 %399
    %401 = vrot.lane.b32.xlu0 %v368, 16
    %v402 = vpop.permute.xlu0 %401
    %403 = vrot.lane.b32.xlu0 %v371, 16
    %v404 = vpop.permute.xlu0 %403
    %405 = vrot.lane.b32.xlu0 %v374, 16
    %v406 = vpop.permute.xlu0 %405
    %vm423 = vcmask 261248
    %424 = vst.msk [vmem:[#allocation3] sm:$0xff] %vm423, %v376
    %425 = vst.msk [vmem:[#allocation3 + $0x10] sm:$0xff] %vm423, %v378
    %426 = vst.msk [vmem:[#allocation3 + $0x20] sm:$0xff] %vm423, %v380
    %427 = vst.msk [vmem:[#allocation3 + $0x30] sm:$0xff] %vm423, %v382
    %428 = vst.msk [vmem:[#allocation3 + $0x40] sm:$0xff] %vm423, %v384
    %429 = vst.msk [vmem:[#allocation3 + $0x50] sm:$0xff] %vm423, %v386
    %430 = vst.msk [vmem:[#allocation3 + $0x60] sm:$0xff] %vm423, %v388
    %431 = vst.msk [vmem:[#allocation3 + $0x70] sm:$0xff] %vm423, %v390
    %432 = vst.msk [vmem:[#allocation3 + $0x80] sm:$0xff] %vm423, %v392
    %433 = vst.msk [vmem:[#allocation3 + $0x90] sm:$0xff] %vm423, %v394
    %434 = vst.msk [vmem:[#allocation3 + $0xa0] sm:$0xff] %vm423, %v396
    %435 = vst.msk [vmem:[#allocation3 + $0xb0] sm:$0xff] %vm423, %v398
    %436 = vst.msk [vmem:[#allocation3 + $0xc0] sm:$0xff] %vm423, %v400
    %437 = vst.msk [vmem:[#allocation3 + $0xd0] sm:$0xff] %vm423, %v402
    %438 = vst.msk [vmem:[#allocation3 + $0xe0] sm:$0xff] %vm423, %v404
    %439 = vst.msk [vmem:[#allocation3 + $0xf0] sm:$0xff] %vm423, %v406
    %vm440 = vcmask 1045504
    %v441 = vrot.slane %v238, 2
    %v442 = vrot.slane %v239, 2
    %v443 = vsel %vm440, %v441, %v442
    %v444 = vrot.slane %v240, 2
    %v445 = vrot.slane %v241, 2
    %v446 = vsel %vm440, %v444, %v445
    %v447 = vrot.slane %v242, 2
    %v448 = vrot.slane %v243, 2
    %v449 = vsel %vm440, %v447, %v448
    %v450 = vrot.slane %v244, 2
    %v451 = vrot.slane %v245, 2
    %v452 = vsel %vm440, %v450, %v451
    %v453 = vrot.slane %v246, 2
    %v454 = vrot.slane %v247, 2
    %v455 = vsel %vm440, %v453, %v454
    %v456 = vrot.slane %v248, 2
    %v457 = vrot.slane %v249, 2
    %v458 = vsel %vm440, %v456, %v457
    %v459 = vrot.slane %v250, 2
    %v460 = vrot.slane %v251, 2
    %v461 = vsel %vm440, %v459, %v460
    %v462 = vrot.slane %v252, 2
    %v463 = vrot.slane %v253, 2
    %v464 = vsel %vm440, %v462, %v463
    %v465 = vrot.slane %v258, 2
    %v466 = vrot.slane %v259, 2
    %v467 = vsel %vm440, %v465, %v466
    %v468 = vrot.slane %v260, 2
    %v469 = vrot.slane %v261, 2
    %v470 = vsel %vm440, %v468, %v469
    %v471 = vrot.slane %v262, 2
    %v472 = vrot.slane %v263, 2
    %v473 = vsel %vm440, %v471, %v472
    %v474 = vrot.slane %v264, 2
    %v475 = vrot.slane %v265, 2
    %v476 = vsel %vm440, %v474, %v475
    %v477 = vrot.slane %v266, 2
    %v478 = vrot.slane %v267, 2
    %v479 = vsel %vm440, %v477, %v478
    %v480 = vrot.slane %v268, 2
    %v481 = vrot.slane %v269, 2
    %v482 = vsel %vm440, %v480, %v481
    %v483 = vrot.slane %v270, 2
    %v484 = vrot.slane %v271, 2
    %v485 = vsel %vm440, %v483, %v484
    %v486 = vrot.slane %v272, 2
    %v487 = vrot.slane %v273, 2
    %v488 = vsel %vm440, %v486, %v487
    %489 = vrot.lane.b32.xlu0 %v443, 32
    %v490 = vpop.permute.xlu0 %489
    %491 = vrot.lane.b32.xlu0 %v446, 32
    %v492 = vpop.permute.xlu0 %491
    %493 = vrot.lane.b32.xlu0 %v449, 32
    %v494 = vpop.permute.xlu0 %493
    %495 = vrot.lane.b32.xlu0 %v452, 32
    %v496 = vpop.permute.xlu0 %495
    %497 = vrot.lane.b32.xlu0 %v455, 32
    %v498 = vpop.permute.xlu0 %497
    %499 = vrot.lane.b32.xlu0 %v458, 32
    %v500 = vpop.permute.xlu0 %499
    %501 = vrot.lane.b32.xlu0 %v461, 32
    %v502 = vpop.permute.xlu0 %501
    %503 = vrot.lane.b32.xlu0 %v464, 32
    %v504 = vpop.permute.xlu0 %503
    %505 = vrot.lane.b32.xlu0 %v467, 32
    %v506 = vpop.permute.xlu0 %505
    %507 = vrot.lane.b32.xlu0 %v470, 32
    %v508 = vpop.permute.xlu0 %507
    %509 = vrot.lane.b32.xlu0 %v473, 32
    %v510 = vpop.permute.xlu0 %509
    %511 = vrot.lane.b32.xlu0 %v476, 32
    %v512 = vpop.permute.xlu0 %511
    %513 = vrot.lane.b32.xlu0 %v479, 32
    %v514 = vpop.permute.xlu0 %513
    %515 = vrot.lane.b32.xlu0 %v482, 32
    %v516 = vpop.permute.xlu0 %515
    %517 = vrot.lane.b32.xlu0 %v485, 32
    %v518 = vpop.permute.xlu0 %517
    %519 = vrot.lane.b32.xlu0 %v488, 32
    %v520 = vpop.permute.xlu0 %519
    %vm537 = vcmask 392448
    %538 = vst.msk [vmem:[#allocation3] sm:$0xff] %vm537, %v490
    %539 = vst.msk [vmem:[#allocation3 + $0x10] sm:$0xff] %vm537, %v492
    %540 = vst.msk [vmem:[#allocation3 + $0x20] sm:$0xff] %vm537, %v494
    %541 = vst.msk [vmem:[#allocation3 + $0x30] sm:$0xff] %vm537, %v496
    %542 = vst.msk [vmem:[#allocation3 + $0x40] sm:$0xff] %vm537, %v498
    %543 = vst.msk [vmem:[#allocation3 + $0x50] sm:$0xff] %vm537, %v500
    %544 = vst.msk [vmem:[#allocation3 + $0x60] sm:$0xff] %vm537, %v502
    %545 = vst.msk [vmem:[#allocation3 + $0x70] sm:$0xff] %vm537, %v504
    %546 = vst.msk [vmem:[#allocation3 + $0x80] sm:$0xff] %vm537, %v506
    %547 = vst.msk [vmem:[#allocation3 + $0x90] sm:$0xff] %vm537, %v508
    %548 = vst.msk [vmem:[#allocation3 + $0xa0] sm:$0xff] %vm537, %v510
    %549 = vst.msk [vmem:[#allocation3 + $0xb0] sm:$0xff] %vm537, %v512
    %550 = vst.msk [vmem:[#allocation3 + $0xc0] sm:$0xff] %vm537, %v514
    %551 = vst.msk [vmem:[#allocation3 + $0xd0] sm:$0xff] %vm537, %v516
    %552 = vst.msk [vmem:[#allocation3 + $0xe0] sm:$0xff] %vm537, %v518
    %553 = vst.msk [vmem:[#allocation3 + $0xf0] sm:$0xff] %vm537, %v520
    %556 = vrot.lane.b32.xlu0 %v240, 48
    %v557 = vpop.permute.xlu0 %556
    %558 = vrot.lane.b32.xlu0 %v242, 48
    %v559 = vpop.permute.xlu0 %558
    %560 = vrot.lane.b32.xlu0 %v244, 48
    %v561 = vpop.permute.xlu0 %560
    %562 = vrot.lane.b32.xlu0 %v246, 48
    %v563 = vpop.permute.xlu0 %562
    %564 = vrot.lane.b32.xlu0 %v248, 48
    %v565 = vpop.permute.xlu0 %564
    %566 = vrot.lane.b32.xlu0 %v250, 48
    %v567 = vpop.permute.xlu0 %566
    %568 = vrot.lane.b32.xlu0 %v252, 48
    %v569 = vpop.permute.xlu0 %568
    %570 = vrot.lane.b32.xlu0 %v254, 48
    %v571 = vpop.permute.xlu0 %570
    %572 = vrot.lane.b32.xlu0 %v260, 48
    %v573 = vpop.permute.xlu0 %572
    %574 = vrot.lane.b32.xlu0 %v262, 48
    %v575 = vpop.permute.xlu0 %574
    %576 = vrot.lane.b32.xlu0 %v264, 48
    %v577 = vpop.permute.xlu0 %576
    %578 = vrot.lane.b32.xlu0 %v266, 48
    %v579 = vpop.permute.xlu0 %578
    %580 = vrot.lane.b32.xlu0 %v268, 48
    %v581 = vpop.permute.xlu0 %580
    %582 = vrot.lane.b32.xlu0 %v270, 48
    %v583 = vpop.permute.xlu0 %582
    %584 = vrot.lane.b32.xlu0 %v272, 48
    %v585 = vpop.permute.xlu0 %584
    %586 = vrot.lane.b32.xlu0 %v274, 48
    %v587 = vpop.permute.xlu0 %586
    %vm604 = vcmask 523648
    %605 = vst.msk [vmem:[#allocation3] sm:$0xff] %vm604, %v557
    %606 = vst.msk [vmem:[#allocation3 + $0x10] sm:$0xff] %vm604, %v559
    %607 = vst.msk [vmem:[#allocation3 + $0x20] sm:$0xff] %vm604, %v561
    %608 = vst.msk [vmem:[#allocation3 + $0x30] sm:$0xff] %vm604, %v563
    %609 = vst.msk [vmem:[#allocation3 + $0x40] sm:$0xff] %vm604, %v565
    %610 = vst.msk [vmem:[#allocation3 + $0x50] sm:$0xff] %vm604, %v567
    %611 = vst.msk [vmem:[#allocation3 + $0x60] sm:$0xff] %vm604, %v569
    %612 = vst.msk [vmem:[#allocation3 + $0x70] sm:$0xff] %vm604, %v571
    %613 = vst.msk [vmem:[#allocation3 + $0x80] sm:$0xff] %vm604, %v573
    %614 = vst.msk [vmem:[#allocation3 + $0x90] sm:$0xff] %vm604, %v575
    %615 = vst.msk [vmem:[#allocation3 + $0xa0] sm:$0xff] %vm604, %v577
    %616 = vst.msk [vmem:[#allocation3 + $0xb0] sm:$0xff] %vm604, %v579
    %617 = vst.msk [vmem:[#allocation3 + $0xc0] sm:$0xff] %vm604, %v581
    %618 = vst.msk [vmem:[#allocation3 + $0xd0] sm:$0xff] %vm604, %v583
    %619 = vst.msk [vmem:[#allocation3 + $0xe0] sm:$0xff] %vm604, %v585
    %620 = vst.msk [vmem:[#allocation3 + $0xf0] sm:$0xff] %vm604, %v587
    %v623 = vrot.slane %v254, 1
    %v624 = vrot.slane %v255, 1
    %v625 = vsel %vm326, %v623, %v624
    %v626 = vrot.slane %v274, 1
    %v627 = vrot.slane %v275, 1
    %v628 = vsel %vm326, %v626, %v627
    %629 = vrot.lane.b32.xlu0 %v332, 64
    %v630 = vpop.permute.xlu0 %629
    %631 = vrot.lane.b32.xlu0 %v335, 64
    %v632 = vpop.permute.xlu0 %631
    %633 = vrot.lane.b32.xlu0 %v338, 64
    %v634 = vpop.permute.xlu0 %633
    %635 = vrot.lane.b32.xlu0 %v341, 64
    %v636 = vpop.permute.xlu0 %635
    %637 = vrot.lane.b32.xlu0 %v344, 64
    %v638 = vpop.permute.xlu0 %637
    %639 = vrot.lane.b32.xlu0 %v347, 64
    %v640 = vpop.permute.xlu0 %639
    %641 = vrot.lane.b32.xlu0 %v350, 64
    %v642 = vpop.permute.xlu0 %641
    %643 = vrot.lane.b32.xlu0 %v625, 64
    %v644 = vpop.permute.xlu0 %643
    %645 = vrot.lane.b32.xlu0 %v356, 64
    %v646 = vpop.permute.xlu0 %645
    %647 = vrot.lane.b32.xlu0 %v359, 64
    %v648 = vpop.permute.xlu0 %647
    %649 = vrot.lane.b32.xlu0 %v362, 64
    %v650 = vpop.permute.xlu0 %649
    %651 = vrot.lane.b32.xlu0 %v365, 64
    %v652 = vpop.permute.xlu0 %651
    %653 = vrot.lane.b32.xlu0 %v368, 64
    %v654 = vpop.permute.xlu0 %653
    %655 = vrot.lane.b32.xlu0 %v371, 64
    %v656 = vpop.permute.xlu0 %655
    %657 = vrot.lane.b32.xlu0 %v374, 64
    %v658 = vpop.permute.xlu0 %657
    %659 = vrot.lane.b32.xlu0 %v628, 64
    %v660 = vpop.permute.xlu0 %659
    %vm677 = vcmask 654848
    %678 = vst.msk [vmem:[#allocation3] sm:$0xff] %vm677, %v630
    %679 = vst.msk [vmem:[#allocation3 + $0x10] sm:$0xff] %vm677, %v632
    %680 = vst.msk [vmem:[#allocation3 + $0x20] sm:$0xff] %vm677, %v634
    %681 = vst.msk [vmem:[#allocation3 + $0x30] sm:$0xff] %vm677, %v636
    %682 = vst.msk [vmem:[#allocation3 + $0x40] sm:$0xff] %vm677, %v638
    %683 = vst.msk [vmem:[#allocation3 + $0x50] sm:$0xff] %vm677, %v640
    %684 = vst.msk [vmem:[#allocation3 + $0x60] sm:$0xff] %vm677, %v642
    %685 = vst.msk [vmem:[#allocation3 + $0x70] sm:$0xff] %vm677, %v644
    %686 = vst.msk [vmem:[#allocation3 + $0x80] sm:$0xff] %vm677, %v646
    %687 = vst.msk [vmem:[#allocation3 + $0x90] sm:$0xff] %vm677, %v648
    %688 = vst.msk [vmem:[#allocation3 + $0xa0] sm:$0xff] %vm677, %v650
    %689 = vst.msk [vmem:[#allocation3 + $0xb0] sm:$0xff] %vm677, %v652
    %690 = vst.msk [vmem:[#allocation3 + $0xc0] sm:$0xff] %vm677, %v654
    %691 = vst.msk [vmem:[#allocation3 + $0xd0] sm:$0xff] %vm677, %v656
    %692 = vst.msk [vmem:[#allocation3 + $0xe0] sm:$0xff] %vm677, %v658
    %693 = vst.msk [vmem:[#allocation3 + $0xf0] sm:$0xff] %vm677, %v660
    %v694 = vrot.slane %v254, 2
    %v695 = vrot.slane %v255, 2
    %v696 = vsel %vm440, %v694, %v695
    %v697 = vrot.slane %v274, 2
    %v698 = vrot.slane %v275, 2
    %v699 = vsel %vm440, %v697, %v698
    %700 = vrot.lane.b32.xlu0 %v446, 80
    %v701 = vpop.permute.xlu0 %700
    %702 = vrot.lane.b32.xlu0 %v449, 80
    %v703 = vpop.permute.xlu0 %702
    %704 = vrot.lane.b32.xlu0 %v452, 80
    %v705 = vpop.permute.xlu0 %704
    %706 = vrot.lane.b32.xlu0 %v455, 80
    %v707 = vpop.permute.xlu0 %706
    %708 = vrot.lane.b32.xlu0 %v458, 80
    %v709 = vpop.permute.xlu0 %708
    %710 = vrot.lane.b32.xlu0 %v461, 80
    %v711 = vpop.permute.xlu0 %710
    %712 = vrot.lane.b32.xlu0 %v464, 80
    %v713 = vpop.permute.xlu0 %712
    %714 = vrot.lane.b32.xlu0 %v696, 80
    %v715 = vpop.permute.xlu0 %714
    %716 = vrot.lane.b32.xlu0 %v470, 80
    %v717 = vpop.permute.xlu0 %716
    %718 = vrot.lane.b32.xlu0 %v473, 80
    %v719 = vpop.permute.xlu0 %718
    %720 = vrot.lane.b32.xlu0 %v476, 80
    %v721 = vpop.permute.xlu0 %720
    %722 = vrot.lane.b32.xlu0 %v479, 80
    %v723 = vpop.permute.xlu0 %722
    %724 = vrot.lane.b32.xlu0 %v482, 80
    %v725 = vpop.permute.xlu0 %724
    %726 = vrot.lane.b32.xlu0 %v485, 80
    %v727 = vpop.permute.xlu0 %726
    %728 = vrot.lane.b32.xlu0 %v488, 80
    %v729 = vpop.permute.xlu0 %728
    %730 = vrot.lane.b32.xlu0 %v699, 80
    %v731 = vpop.permute.xlu0 %730
    %vm748 = vcmask 786048
    %749 = vst.msk [vmem:[#allocation3] sm:$0xff] %vm748, %v701
    %750 = vst.msk [vmem:[#allocation3 + $0x10] sm:$0xff] %vm748, %v703
    %751 = vst.msk [vmem:[#allocation3 + $0x20] sm:$0xff] %vm748, %v705
    %752 = vst.msk [vmem:[#allocation3 + $0x30] sm:$0xff] %vm748, %v707
    %753 = vst.msk [vmem:[#allocation3 + $0x40] sm:$0xff] %vm748, %v709
    %754 = vst.msk [vmem:[#allocation3 + $0x50] sm:$0xff] %vm748, %v711
    %755 = vst.msk [vmem:[#allocation3 + $0x60] sm:$0xff] %vm748, %v713
    %756 = vst.msk [vmem:[#allocation3 + $0x70] sm:$0xff] %vm748, %v715
    %757 = vst.msk [vmem:[#allocation3 + $0x80] sm:$0xff] %vm748, %v717
    %758 = vst.msk [vmem:[#allocation3 + $0x90] sm:$0xff] %vm748, %v719
    %759 = vst.msk [vmem:[#allocation3 + $0xa0] sm:$0xff] %vm748, %v721
    %760 = vst.msk [vmem:[#allocation3 + $0xb0] sm:$0xff] %vm748, %v723
    %761 = vst.msk [vmem:[#allocation3 + $0xc0] sm:$0xff] %vm748, %v725
    %762 = vst.msk [vmem:[#allocation3 + $0xd0] sm:$0xff] %vm748, %v727
    %763 = vst.msk [vmem:[#allocation3 + $0xe0] sm:$0xff] %vm748, %v729
    %764 = vst.msk [vmem:[#allocation3 + $0xf0] sm:$0xff] %vm748, %v731
    %767 = vrot.lane.b32.xlu0 %v242, 96
    %v768 = vpop.permute.xlu0 %767
    %769 = vrot.lane.b32.xlu0 %v244, 96
    %v770 = vpop.permute.xlu0 %769
    %771 = vrot.lane.b32.xlu0 %v246, 96
    %v772 = vpop.permute.xlu0 %771
    %773 = vrot.lane.b32.xlu0 %v248, 96
    %v774 = vpop.permute.xlu0 %773
    %775 = vrot.lane.b32.xlu0 %v250, 96
    %v776 = vpop.permute.xlu0 %775
    %777 = vrot.lane.b32.xlu0 %v252, 96
    %v778 = vpop.permute.xlu0 %777
    %779 = vrot.lane.b32.xlu0 %v254, 96
    %v780 = vpop.permute.xlu0 %779
    %781 = vrot.lane.b32.xlu0 %v256, 96
    %v782 = vpop.permute.xlu0 %781
    %783 = vrot.lane.b32.xlu0 %v262, 96
    %v784 = vpop.permute.xlu0 %783
    %785 = vrot.lane.b32.xlu0 %v264, 96
    %v786 = vpop.permute.xlu0 %785
    %787 = vrot.lane.b32.xlu0 %v266, 96
    %v788 = vpop.permute.xlu0 %787
    %789 = vrot.lane.b32.xlu0 %v268, 96
    %v790 = vpop.permute.xlu0 %789
    %791 = vrot.lane.b32.xlu0 %v270, 96
    %v792 = vpop.permute.xlu0 %791
    %793 = vrot.lane.b32.xlu0 %v272, 96
    %v794 = vpop.permute.xlu0 %793
    %795 = vrot.lane.b32.xlu0 %v274, 96
    %v796 = vpop.permute.xlu0 %795
    %797 = vrot.lane.b32.xlu0 %v276, 96
    %v798 = vpop.permute.xlu0 %797
    %vm815 = vcmask 917248
    %816 = vst.msk [vmem:[#allocation3] sm:$0xff] %vm815, %v768
    %817 = vst.msk [vmem:[#allocation3 + $0x10] sm:$0xff] %vm815, %v770
    %818 = vst.msk [vmem:[#allocation3 + $0x20] sm:$0xff] %vm815, %v772
    %819 = vst.msk [vmem:[#allocation3 + $0x30] sm:$0xff] %vm815, %v774
    %820 = vst.msk [vmem:[#allocation3 + $0x40] sm:$0xff] %vm815, %v776
    %821 = vst.msk [vmem:[#allocation3 + $0x50] sm:$0xff] %vm815, %v778
    %822 = vst.msk [vmem:[#allocation3 + $0x60] sm:$0xff] %vm815, %v780
    %823 = vst.msk [vmem:[#allocation3 + $0x70] sm:$0xff] %vm815, %v782
    %824 = vst.msk [vmem:[#allocation3 + $0x80] sm:$0xff] %vm815, %v784
    %825 = vst.msk [vmem:[#allocation3 + $0x90] sm:$0xff] %vm815, %v786
    %826 = vst.msk [vmem:[#allocation3 + $0xa0] sm:$0xff] %vm815, %v788
    %827 = vst.msk [vmem:[#allocation3 + $0xb0] sm:$0xff] %vm815, %v790
    %828 = vst.msk [vmem:[#allocation3 + $0xc0] sm:$0xff] %vm815, %v792
    %829 = vst.msk [vmem:[#allocation3 + $0xd0] sm:$0xff] %vm815, %v794
    %830 = vst.msk [vmem:[#allocation3 + $0xe0] sm:$0xff] %vm815, %v796
    %831 = vst.msk [vmem:[#allocation3 + $0xf0] sm:$0xff] %vm815, %v798
    %v834 = vrot.slane %v256, 1
    %v835 = vrot.slane %v257, 1
    %v836 = vsel %vm326, %v834, %v835
    %v837 = vrot.slane %v276, 1
    %v838 = vrot.slane %v277, 1
    %v839 = vsel %vm326, %v837, %v838
    %840 = vrot.lane.b32.xlu0 %v335, 112
    %v841 = vpop.permute.xlu0 %840
    %842 = vrot.lane.b32.xlu0 %v338, 112
    %v843 = vpop.permute.xlu0 %842
    %844 = vrot.lane.b32.xlu0 %v341, 112
    %v845 = vpop.permute.xlu0 %844
    %846 = vrot.lane.b32.xlu0 %v344, 112
    %v847 = vpop.permute.xlu0 %846
    %848 = vrot.lane.b32.xlu0 %v347, 112
    %v849 = vpop.permute.xlu0 %848
    %850 = vrot.lane.b32.xlu0 %v350, 112
    %v851 = vpop.permute.xlu0 %850
    %852 = vrot.lane.b32.xlu0 %v625, 112
    %v853 = vpop.permute.xlu0 %852
    %854 = vrot.lane.b32.xlu0 %v836, 112
    %v855 = vpop.permute.xlu0 %854
    %856 = vrot.lane.b32.xlu0 %v359, 112
    %v857 = vpop.permute.xlu0 %856
    %858 = vrot.lane.b32.xlu0 %v362, 112
    %v859 = vpop.permute.xlu0 %858
    %860 = vrot.lane.b32.xlu0 %v365, 112
    %v861 = vpop.permute.xlu0 %860
    %862 = vrot.lane.b32.xlu0 %v368, 112
    %v863 = vpop.permute.xlu0 %862
    %864 = vrot.lane.b32.xlu0 %v371, 112
    %v865 = vpop.permute.xlu0 %864
    %866 = vrot.lane.b32.xlu0 %v374, 112
    %v867 = vpop.permute.xlu0 %866
    %868 = vrot.lane.b32.xlu0 %v628, 112
    %v869 = vpop.permute.xlu0 %868
    %870 = vrot.lane.b32.xlu0 %v839, 112
    %v871 = vpop.permute.xlu0 %870
    %vm888 = vcmask 1048448
    %889 = vst.msk [vmem:[#allocation3] sm:$0xff] %vm888, %v841
    %890 = vst.msk [vmem:[#allocation3 + $0x10] sm:$0xff] %vm888, %v843
    %891 = vst.msk [vmem:[#allocation3 + $0x20] sm:$0xff] %vm888, %v845
    %892 = vst.msk [vmem:[#allocation3 + $0x30] sm:$0xff] %vm888, %v847
    %893 = vst.msk [vmem:[#allocation3 + $0x40] sm:$0xff] %vm888, %v849
    %894 = vst.msk [vmem:[#allocation3 + $0x50] sm:$0xff] %vm888, %v851
    %895 = vst.msk [vmem:[#allocation3 + $0x60] sm:$0xff] %vm888, %v853
    %896 = vst.msk [vmem:[#allocation3 + $0x70] sm:$0xff] %vm888, %v855
    %897 = vst.msk [vmem:[#allocation3 + $0x80] sm:$0xff] %vm888, %v857
    %898 = vst.msk [vmem:[#allocation3 + $0x90] sm:$0xff] %vm888, %v859
    %899 = vst.msk [vmem:[#allocation3 + $0xa0] sm:$0xff] %vm888, %v861
    %900 = vst.msk [vmem:[#allocation3 + $0xb0] sm:$0xff] %vm888, %v863
    %901 = vst.msk [vmem:[#allocation3 + $0xc0] sm:$0xff] %vm888, %v865
    %902 = vst.msk [vmem:[#allocation3 + $0xd0] sm:$0xff] %vm888, %v867
    %903 = vst.msk [vmem:[#allocation3 + $0xe0] sm:$0xff] %vm888, %v869
    %904 = vst.msk [vmem:[#allocation3 + $0xf0] sm:$0xff] %vm888, %v871
    %v905 = vrot.slane %v256, 2
    %v906 = vrot.slane %v257, 2
    %v907 = vsel %vm440, %v905, %v906
    %v908 = vrot.slane %v276, 2
    %v909 = vrot.slane %v277, 2
    %v910 = vsel %vm440, %v908, %v909
    %927 = vst.msk [vmem:[#allocation3 + $0x8] sm:$0xff] %vm27, %v449
    %928 = vst.msk [vmem:[#allocation3 + $0x18] sm:$0xff] %vm27, %v452
    %929 = vst.msk [vmem:[#allocation3 + $0x28] sm:$0xff] %vm27, %v455
    %930 = vst.msk [vmem:[#allocation3 + $0x38] sm:$0xff] %vm27, %v458
    %931 = vst.msk [vmem:[#allocation3 + $0x48] sm:$0xff] %vm27, %v461
    %932 = vst.msk [vmem:[#allocation3 + $0x58] sm:$0xff] %vm27, %v464
    %933 = vst.msk [vmem:[#allocation3 + $0x68] sm:$0xff] %vm27, %v696
    %934 = vst.msk [vmem:[#allocation3 + $0x78] sm:$0xff] %vm27, %v907
    %935 = vst.msk [vmem:[#allocation3 + $0x88] sm:$0xff] %vm27, %v473
    %936 = vst.msk [vmem:[#allocation3 + $0x98] sm:$0xff] %vm27, %v476
    %937 = vst.msk [vmem:[#allocation3 + $0xa8] sm:$0xff] %vm27, %v479
    %938 = vst.msk [vmem:[#allocation3 + $0xb8] sm:$0xff] %vm27, %v482
    %939 = vst.msk [vmem:[#allocation3 + $0xc8] sm:$0xff] %vm27, %v485
    %940 = vst.msk [vmem:[#allocation3 + $0xd8] sm:$0xff] %vm27, %v488
    %941 = vst.msk [vmem:[#allocation3 + $0xe8] sm:$0xff] %vm27, %v699
    %942 = vst.msk [vmem:[#allocation3 + $0xf8] sm:$0xff] %vm27, %v910
    %v943 = vld [vmem:[#allocation3] sm:$0xff]
    %v944 = vld [vmem:[#allocation3 + $0x8] sm:$0xff]
    %v945 = vld [vmem:[#allocation3 + $0x10] sm:$0xff]
    %v946 = vld [vmem:[#allocation3 + $0x18] sm:$0xff]
    %v947 = vld [vmem:[#allocation3 + $0x20] sm:$0xff]
    %v948 = vld [vmem:[#allocation3 + $0x28] sm:$0xff]
    %v949 = vld [vmem:[#allocation3 + $0x30] sm:$0xff]
    %v950 = vld [vmem:[#allocation3 + $0x38] sm:$0xff]
    %v951 = vld [vmem:[#allocation3 + $0x40] sm:$0xff]
    %v952 = vld [vmem:[#allocation3 + $0x48] sm:$0xff]
    %v953 = vld [vmem:[#allocation3 + $0x50] sm:$0xff]
    %v954 = vld [vmem:[#allocation3 + $0x58] sm:$0xff]
    %v955 = vld [vmem:[#allocation3 + $0x60] sm:$0xff]
    %v956 = vld [vmem:[#allocation3 + $0x68] sm:$0xff]
    %v957 = vld [vmem:[#allocation3 + $0x70] sm:$0xff]
    %v958 = vld [vmem:[#allocation3 + $0x78] sm:$0xff]
    %v959 = vld [vmem:[#allocation3 + $0x80] sm:$0xff]
    %v960 = vld [vmem:[#allocation3 + $0x88] sm:$0xff]
    %v961 = vld [vmem:[#allocation3 + $0x90] sm:$0xff]
    %v962 = vld [vmem:[#allocation3 + $0x98] sm:$0xff]
    %v963 = vld [vmem:[#allocation3 + $0xa0] sm:$0xff]
    %v964 = vld [vmem:[#allocation3 + $0xa8] sm:$0xff]
    %v965 = vld [vmem:[#allocation3 + $0xb0] sm:$0xff]
    %v966 = vld [vmem:[#allocation3 + $0xb8] sm:$0xff]
    %v967 = vld [vmem:[#allocation3 + $0xc0] sm:$0xff]
    %v968 = vld [vmem:[#allocation3 + $0xc8] sm:$0xff]
    %v969 = vld [vmem:[#allocation3 + $0xd0] sm:$0xff]
    %v970 = vld [vmem:[#allocation3 + $0xd8] sm:$0xff]
    %v971 = vld [vmem:[#allocation3 + $0xe0] sm:$0xff]
    %v972 = vld [vmem:[#allocation3 + $0xe8] sm:$0xff]
    %v973 = vld [vmem:[#allocation3 + $0xf0] sm:$0xff]
    %v974 = vld [vmem:[#allocation3 + $0xf8] sm:$0xff]
    %v975 = vld [vmem:[%s1] sm:$0xff]
    %v976 = vld [vmem:[%s1 + $0x8] sm:$0xff]
    %v977 = vld [vmem:[%s1 + $0x10] sm:$0xff]
    %v978 = vld [vmem:[%s1 + $0x18] sm:$0xff]
    %v979 = vld [vmem:[%s1 + $0x20] sm:$0xff]
    %v980 = vld [vmem:[%s1 + $0x28] sm:$0xff]
    %v981 = vld [vmem:[%s1 + $0x30] sm:$0xff]
    %v982 = vld [vmem:[%s1 + $0x38] sm:$0xff]
    %v983 = vld [vmem:[%s1 + $0x40] sm:$0xff]
    %v984 = vld [vmem:[%s1 + $0x48] sm:$0xff]
    %v985 = vld [vmem:[%s1 + $0x50] sm:$0xff]
    %v986 = vld [vmem:[%s1 + $0x58] sm:$0xff]
    %v987 = vld [vmem:[%s1 + $0x60] sm:$0xff]
    %v988 = vld [vmem:[%s1 + $0x68] sm:$0xff]
    %v989 = vld [vmem:[%s1 + $0x70] sm:$0xff]
    %v990 = vld [vmem:[%s1 + $0x78] sm:$0xff]
    %v991 = vld [vmem:[%s1 + $0x80] sm:$0xff]
    %v992 = vld [vmem:[%s1 + $0x88] sm:$0xff]
    %v993 = vld [vmem:[%s2] sm:$0x1]
    %v995 = vlaneseq
    %v996 = vshrl.u32 %v995, 7
    %v997 = vsub.s32 0, %v996
    %v998 = vrot.slane %v993, %v997
    %v1001 = vsel %vm27, %v944, 0
    %v1004 = vsel %vm27, %v946, 0
    %v1007 = vsel %vm27, %v948, 0
    %v1010 = vsel %vm27, %v950, 0
    %v1013 = vsel %vm27, %v952, 0
    %v1016 = vsel %vm27, %v954, 0
    %v1019 = vsel %vm27, %v956, 0
    %v1022 = vsel %vm27, %v958, 0
    %v1025 = vsel %vm27, %v960, 0
    %v1028 = vsel %vm27, %v962, 0
    %v1031 = vsel %vm27, %v964, 0
    %v1034 = vsel %vm27, %v966, 0
    %v1037 = vsel %vm27, %v968, 0
    %v1040 = vsel %vm27, %v970, 0
    %v1043 = vsel %vm27, %v972, 0
    %v1046 = vsel %vm27, %v974, 0
    %1048 = vmatprep.subr.mxu0 0.0
    %1049 = vmatpush1.msra.mxu0 %v975
    %1050 = vmatprep.subr.mxu0 0.0
    %1051 = vmatpush1.msra.mxu0 %v976
    %1052 = vmatprep.subr.mxu0 0.0
    %1053 = vmatpush1.msra.mxu0 %v977
    %1054 = vmatprep.subr.mxu0 0.0
    %1055 = vmatpush1.msra.mxu0 %v978
    %1056 = vmatprep.subr.mxu0 0.0
    %1057 = vmatpush1.msra.mxu0 %v979
    %1058 = vmatprep.subr.mxu0 0.0
    %1059 = vmatpush1.msra.mxu0 %v980
    %1060 = vmatprep.subr.mxu0 0.0
    %1061 = vmatpush1.msra.mxu0 %v981
    %1062 = vmatprep.subr.mxu0 0.0
    %1063 = vmatpush1.msra.mxu0 %v982
    %1064 = vmatprep.subr.mxu0 0.0
    %1065 = vmatpush1.msra.mxu0 %v983
    %1066 = vmatprep.subr.mxu0 0.0
    %1067 = vmatpush1.msra.mxu0 %v984
    %1068 = vmatprep.subr.mxu0 0.0
    %1069 = vmatpush1.msra.mxu0 %v985
    %1070 = vmatprep.subr.mxu0 0.0
    %1071 = vmatpush1.msra.mxu0 %v986
    %1072 = vmatprep.subr.mxu0 0.0
    %1073 = vmatpush1.msra.mxu0 %v987
    %1074 = vmatprep.subr.mxu0 0.0
    %1075 = vmatpush1.msra.mxu0 %v988
    %1076 = vmatprep.subr.mxu0 0.0
    %1077 = vmatpush1.msra.mxu0 %v989
    %1078 = vmatprep.subr.mxu0 0.0
    %1079 = vmatpush1.msra.mxu0 %v990
    %1080 = vmatprep.subr.mxu0 0.0
    %1081 = vmatpush1.msra.mxu0 %v991
    %1082 = vmatprep.subr.mxu0 0.0
    %1083 = vmatpush1.msra.mxu0 %v992
    %1084 = vmatprep.subr.mxu0 0.0
    %1085 = vmatpush1.msra.mxu0 0.0
    %1086 = vmatprep.subr.mxu0 0.0
    %1087 = vmatpush1.msra.mxu0 0.0
    %1088 = vmatprep.subr.mxu0 0.0
    %1089 = vmatpush1.msra.mxu0 0.0
    %1090 = vmatprep.subr.mxu0 0.0
    %1091 = vmatpush1.msra.mxu0 0.0
    %1092 = vmatprep.subr.mxu0 0.0
    %1093 = vmatpush1.msra.mxu0 0.0
    %1094 = vmatprep.subr.mxu0 0.0
    %1095 = vmatpush1.msra.mxu0 0.0
    %1096 = vmatprep.subr.mxu0 0.0
    %1097 = vmatpush1.msra.mxu0 0.0
    %1098 = vmatprep.subr.mxu0 0.0
    %1099 = vmatpush1.msra.mxu0 0.0
    %1100 = vmatprep.subr.mxu0 0.0
    %1101 = vmatpush1.msra.mxu0 0.0
    %1102 = vmatprep.subr.mxu0 0.0
    %1103 = vmatpush1.msra.mxu0 0.0
    %1104 = vmatprep.subr.mxu0 0.0
    %1105 = vmatpush1.msra.mxu0 0.0
    %1106 = vmatprep.subr.mxu0 0.0
    %1107 = vmatpush1.msra.mxu0 0.0
    %1108 = vmatprep.subr.mxu0 0.0
    %1109 = vmatpush1.msra.mxu0 0.0
    %1110 = vmatprep.subr.mxu0 0.0
    %1111 = vmatpush1.msra.mxu0 0.0
    %1112 = vmatprep.mubr.f32.mxu0 %v1001
    %1113 = vmatmul.mubr.f32.gmra.mrb[0].mxu0 %v943
    %v1114 = vpop.f32.mrb[0].mxu0
    %v1115 = vadd.f32 %v998, %v1114
    %v1116 = vpop.f32.mrb[0].mxu0
    %1117 = vmatprep.mubr.f32.mxu0 %v1004
    %1118 = vmatmul.mubr.f32.gmra.mrb[0].mxu0 %v945
    %v1119 = vpop.f32.mrb[0].mxu0
    %v1120 = vadd.f32 %v998, %v1119
    %v1121 = vpop.f32.mrb[0].mxu0
    %1122 = vmatprep.mubr.f32.mxu0 %v1007
    %1123 = vmatmul.mubr.f32.gmra.mrb[0].mxu0 %v947
    %v1124 = vpop.f32.mrb[0].mxu0
    %v1125 = vadd.f32 %v998, %v1124
    %v1126 = vpop.f32.mrb[0].mxu0
    %1127 = vmatprep.mubr.f32.mxu0 %v1010
    %1128 = vmatmul.mubr.f32.gmra.mrb[0].mxu0 %v949
    %v1129 = vpop.f32.mrb[0].mxu0
    %v1130 = vadd.f32 %v998, %v1129
    %v1131 = vpop.f32.mrb[0].mxu0
    %1132 = vmatprep.mubr.f32.mxu0 %v1013
    %1133 = vmatmul.mubr.f32.gmra.mrb[0].mxu0 %v951
    %v1134 = vpop.f32.mrb[0].mxu0
    %v1135 = vadd.f32 %v998, %v1134
    %v1136 = vpop.f32.mrb[0].mxu0
    %1137 = vmatprep.mubr.f32.mxu0 %v1016
    %1138 = vmatmul.mubr.f32.gmra.mrb[0].mxu0 %v953
    %v1139 = vpop.f32.mrb[0].mxu0
    %v1140 = vadd.f32 %v998, %v1139
    %v1141 = vpop.f32.mrb[0].mxu0
    %1142 = vmatprep.mubr.f32.mxu0 %v1019
    %1143 = vmatmul.mubr.f32.gmra.mrb[0].mxu0 %v955
    %v1144 = vpop.f32.mrb[0].mxu0
    %v1145 = vadd.f32 %v998, %v1144
    %v1146 = vpop.f32.mrb[0].mxu0
    %1147 = vmatprep.mubr.f32.mxu0 %v1022
    %1148 = vmatmul.mubr.f32.gmra.mrb[0].mxu0 %v957
    %v1149 = vpop.f32.mrb[0].mxu0
    %v1150 = vadd.f32 %v998, %v1149
    %v1151 = vpop.f32.mrb[0].mxu0
    %1152 = vmatprep.mubr.f32.mxu0 %v1025
    %1153 = vmatmul.mubr.f32.gmra.mrb[0].mxu0 %v959
    %v1154 = vpop.f32.mrb[0].mxu0
    %v1155 = vadd.f32 %v998, %v1154
    %v1156 = vpop.f32.mrb[0].mxu0
    %1157 = vmatprep.mubr.f32.mxu0 %v1028
    %1158 = vmatmul.mubr.f32.gmra.mrb[0].mxu0 %v961
    %v1159 = vpop.f32.mrb[0].mxu0
    %v1160 = vadd.f32 %v998, %v1159
    %v1161 = vpop.f32.mrb[0].mxu0
    %1162 = vmatprep.mubr.f32.mxu0 %v1031
    %1163 = vmatmul.mubr.f32.gmra.mrb[0].mxu0 %v963
    %v1164 = vpop.f32.mrb[0].mxu0
    %v1165 = vadd.f32 %v998, %v1164
    %v1166 = vpop.f32.mrb[0].mxu0
    %1167 = vmatprep.mubr.f32.mxu0 %v1034
    %1168 = vmatmul.mubr.f32.gmra.mrb[0].mxu0 %v965
    %v1169 = vpop.f32.mrb[0].mxu0
    %v1170 = vadd.f32 %v998, %v1169
    %v1171 = vpop.f32.mrb[0].mxu0
    %1172 = vmatprep.mubr.f32.mxu0 %v1037
    %1173 = vmatmul.mubr.f32.gmra.mrb[0].mxu0 %v967
    %v1174 = vpop.f32.mrb[0].mxu0
    %v1175 = vadd.f32 %v998, %v1174
    %v1176 = vpop.f32.mrb[0].mxu0
    %1177 = vmatprep.mubr.f32.mxu0 %v1040
    %1178 = vmatmul.mubr.f32.gmra.mrb[0].mxu0 %v969
    %v1179 = vpop.f32.mrb[0].mxu0
    %v1180 = vadd.f32 %v998, %v1179
    %v1181 = vpop.f32.mrb[0].mxu0
    %1182 = vmatprep.mubr.f32.mxu0 %v1043
    %1183 = vmatmul.mubr.f32.gmra.mrb[0].mxu0 %v971
    %v1184 = vpop.f32.mrb[0].mxu0
    %v1185 = vadd.f32 %v998, %v1184
    %v1186 = vpop.f32.mrb[0].mxu0
    %1187 = vmatprep.mubr.f32.mxu0 %v1046
    %1188 = vmatmul.mubr.f32.gmra.mrb[0].mxu0 %v973
    %v1189 = vpop.f32.mrb[0].mxu0
    %v1190 = vadd.f32 %v998, %v1189
    %v1191 = vpop.f32.mrb[0].mxu0
    %1192 = vdwg.mxu0
    %v1193 = vmax.f32 %v1115, 0.0
    %v1194 = vmax.f32 %v1120, 0.0
    %v1195 = vmax.f32 %v1125, 0.0
    %v1196 = vmax.f32 %v1130, 0.0
    %v1197 = vmax.f32 %v1135, 0.0
    %v1198 = vmax.f32 %v1140, 0.0
    %v1199 = vmax.f32 %v1145, 0.0
    %v1200 = vmax.f32 %v1150, 0.0
    %v1201 = vmax.f32 %v1155, 0.0
    %v1202 = vmax.f32 %v1160, 0.0
    %v1203 = vmax.f32 %v1165, 0.0
    %v1204 = vmax.f32 %v1170, 0.0
    %v1205 = vmax.f32 %v1175, 0.0
    %v1206 = vmax.f32 %v1180, 0.0
    %v1207 = vmax.f32 %v1185, 0.0
    %v1208 = vmax.f32 %v1190, 0.0
    %v1209 = vmul.f32 %v1193, %v130
    %v1210 = vmul.f32 %v1194, %v130
    %v1211 = vmul.f32 %v1195, %v130
    %v1212 = vmul.f32 %v1196, %v130
    %v1213 = vmul.f32 %v1197, %v130
    %v1214 = vmul.f32 %v1198, %v130
    %v1215 = vmul.f32 %v1199, %v130
    %v1216 = vmul.f32 %v1200, %v130
    %v1217 = vmul.f32 %v1201, %v134
    %v1218 = vmul.f32 %v1202, %v134
    %v1219 = vmul.f32 %v1203, %v134
    %v1220 = vmul.f32 %v1204, %v134
    %v1221 = vmul.f32 %v1205, %v134
    %v1222 = vmul.f32 %v1206, %v134
    %v1223 = vmul.f32 %v1207, %v134
    %v1224 = vmul.f32 %v1208, %v134
    %1225 = vst.msk [vmem:[%s221 + $0x1] sm:$0xff] %vm27, %v1209
    %1226 = vst.msk [vmem:[%s221 + $0x11] sm:$0xff] %vm27, %v1210
    %1227 = vst.msk [vmem:[%s221 + $0x21] sm:$0xff] %vm27, %v1211
    %1228 = vst.msk [vmem:[%s221 + $0x31] sm:$0xff] %vm27, %v1212
    %1229 = vst.msk [vmem:[%s221 + $0x41] sm:$0xff] %vm27, %v1213
    %1230 = vst.msk [vmem:[%s221 + $0x51] sm:$0xff] %vm27, %v1214
    %1231 = vst.msk [vmem:[%s221 + $0x61] sm:$0xff] %vm27, %v1215
    %1232 = vst.msk [vmem:[%s221 + $0x71] sm:$0xff] %vm27, %v1216
    %1233 = vst.msk [vmem:[%s221 + $0xa1] sm:$0xff] %vm27, %v1217
    %1234 = vst.msk [vmem:[%s221 + $0xb1] sm:$0xff] %vm27, %v1218
    %1235 = vst.msk [vmem:[%s221 + $0xc1] sm:$0xff] %vm27, %v1219
    %1236 = vst.msk [vmem:[%s221 + $0xd1] sm:$0xff] %vm27, %v1220
    %1237 = vst.msk [vmem:[%s221 + $0xe1] sm:$0xff] %vm27, %v1221
    %1238 = vst.msk [vmem:[%s221 + $0xf1] sm:$0xff] %vm27, %v1222
    %1239 = vst.msk [vmem:[%s221 + $0x101] sm:$0xff] %vm27, %v1223
    %1240 = vst.msk [vmem:[%s221 + $0x111] sm:$0xff] %vm27, %v1224
    %v1241 = vld [vmem:[#allocation2] sm:$0xff]
    %v1242 = vld [vmem:[#allocation2 + $0x8] sm:$0x3]
    %v1243 = vld [vmem:[#allocation2 + $0x10] sm:$0xff]
    %v1244 = vld [vmem:[#allocation2 + $0x18] sm:$0x3]
    %v1245 = vld [vmem:[#allocation2 + $0x20] sm:$0xff]
    %v1246 = vld [vmem:[#allocation2 + $0x28] sm:$0x3]
    %v1247 = vld [vmem:[#allocation2 + $0x30] sm:$0xff]
    %v1248 = vld [vmem:[#allocation2 + $0x38] sm:$0x3]
    %v1249 = vld [vmem:[#allocation2 + $0x40] sm:$0xff]
    %v1250 = vld [vmem:[#allocation2 + $0x48] sm:$0x3]
    %v1251 = vld [vmem:[#allocation2 + $0x50] sm:$0xff]
    %v1252 = vld [vmem:[#allocation2 + $0x58] sm:$0x3]
    %v1253 = vld [vmem:[#allocation2 + $0x60] sm:$0xff]
    %v1254 = vld [vmem:[#allocation2 + $0x68] sm:$0x3]
    %v1255 = vld [vmem:[#allocation2 + $0x70] sm:$0xff]
    %v1256 = vld [vmem:[#allocation2 + $0x78] sm:$0x3]
    %v1257 = vld [vmem:[#allocation2 + $0x80] sm:$0xff]
    %v1258 = vld [vmem:[#allocation2 + $0x88] sm:$0x3]
    %v1259 = vld [vmem:[#allocation2 + $0x90] sm:$0xff]
    %v1260 = vld [vmem:[#allocation2 + $0x98] sm:$0x3]
    %v1261 = vld [vmem:[#allocation2 + $0xa0] sm:$0xff]
    %v1262 = vld [vmem:[#allocation2 + $0xa8] sm:$0x3]
    %v1263 = vld [vmem:[#allocation2 + $0xb0] sm:$0xff]
    %v1264 = vld [vmem:[#allocation2 + $0xb8] sm:$0x3]
    %v1265 = vld [vmem:[#allocation2 + $0xc0] sm:$0xff]
    %v1266 = vld [vmem:[#allocation2 + $0xc8] sm:$0x3]
    %v1267 = vld [vmem:[#allocation2 + $0xd0] sm:$0xff]
    %v1268 = vld [vmem:[#allocation2 + $0xd8] sm:$0x3]
    %v1269 = vld [vmem:[#allocation2 + $0xe0] sm:$0xff]
    %v1270 = vld [vmem:[#allocation2 + $0xe8] sm:$0x3]
    %v1271 = vld [vmem:[#allocation2 + $0xf0] sm:$0xff]
    %v1272 = vld [vmem:[#allocation2 + $0xf8] sm:$0x3]
    %v1273 = vld [vmem:[#allocation2 + $0x100] sm:$0xff]
    %v1274 = vld [vmem:[#allocation2 + $0x108] sm:$0x3]
    %v1275 = vld [vmem:[#allocation2 + $0x110] sm:$0xff]
    %v1276 = vld [vmem:[#allocation2 + $0x118] sm:$0x3]
    %v1277 = vld [vmem:[#allocation2 + $0x120] sm:$0xff]
    %v1278 = vld [vmem:[#allocation2 + $0x128] sm:$0x3]
    %v1279 = vld [vmem:[#allocation2 + $0x130] sm:$0xff]
    %v1280 = vld [vmem:[#allocation2 + $0x138] sm:$0x3]
    %1281 = vst.msk [vmem:[#allocation3] sm:$0xff] %vm27, %v1241
    %1282 = vst.msk [vmem:[#allocation3 + $0x10] sm:$0xff] %vm27, %v1243
    %1283 = vst.msk [vmem:[#allocation3 + $0x20] sm:$0xff] %vm27, %v1245
    %1284 = vst.msk [vmem:[#allocation3 + $0x30] sm:$0xff] %vm27, %v1247
    %1285 = vst.msk [vmem:[#allocation3 + $0x40] sm:$0xff] %vm27, %v1249
    %1286 = vst.msk [vmem:[#allocation3 + $0x50] sm:$0xff] %vm27, %v1251
    %1287 = vst.msk [vmem:[#allocation3 + $0x60] sm:$0xff] %vm27, %v1253
    %1288 = vst.msk [vmem:[#allocation3 + $0x70] sm:$0xff] %vm27, %v1255
    %1289 = vst.msk [vmem:[#allocation3 + $0x80] sm:$0xff] %vm27, %v1261
    %1290 = vst.msk [vmem:[#allocation3 + $0x90] sm:$0xff] %vm27, %v1263
    %1291 = vst.msk [vmem:[#allocation3 + $0xa0] sm:$0xff] %vm27, %v1265
    %1292 = vst.msk [vmem:[#allocation3 + $0xb0] sm:$0xff] %vm27, %v1267
    %1293 = vst.msk [vmem:[#allocation3 + $0xc0] sm:$0xff] %vm27, %v1269
    %1294 = vst.msk [vmem:[#allocation3 + $0xd0] sm:$0xff] %vm27, %v1271
    %1295 = vst.msk [vmem:[#allocation3 + $0xe0] sm:$0xff] %vm27, %v1273
    %1296 = vst.msk [vmem:[#allocation3 + $0xf0] sm:$0xff] %vm27, %v1275
    %v1329 = vrot.slane %v1241, 1
    %v1330 = vrot.slane %v1242, 1
    %v1331 = vsel %vm326, %v1329, %v1330
    %v1332 = vrot.slane %v1243, 1
    %v1333 = vrot.slane %v1244, 1
    %v1334 = vsel %vm326, %v1332, %v1333
    %v1335 = vrot.slane %v1245, 1
    %v1336 = vrot.slane %v1246, 1
    %v1337 = vsel %vm326, %v1335, %v1336
    %v1338 = vrot.slane %v1247, 1
    %v1339 = vrot.slane %v1248, 1
    %v1340 = vsel %vm326, %v1338, %v1339
    %v1341 = vrot.slane %v1249, 1
    %v1342 = vrot.slane %v1250, 1
    %v1343 = vsel %vm326, %v1341, %v1342
    %v1344 = vrot.slane %v1251, 1
    %v1345 = vrot.slane %v1252, 1
    %v1346 = vsel %vm326, %v1344, %v1345
    %v1347 = vrot.slane %v1253, 1
    %v1348 = vrot.slane %v1254, 1
    %v1349 = vsel %vm326, %v1347, %v1348
    %v1350 = vrot.slane %v1255, 1
    %v1351 = vrot.slane %v1256, 1
    %v1352 = vsel %vm326, %v1350, %v1351
    %v1353 = vrot.slane %v1261, 1
    %v1354 = vrot.slane %v1262, 1
    %v1355 = vsel %vm326, %v1353, %v1354
    %v1356 = vrot.slane %v1263, 1
    %v1357 = vrot.slane %v1264, 1
    %v1358 = vsel %vm326, %v1356, %v1357
    %v1359 = vrot.slane %v1265, 1
    %v1360 = vrot.slane %v1266, 1
    %v1361 = vsel %vm326, %v1359, %v1360
    %v1362 = vrot.slane %v1267, 1
    %v1363 = vrot.slane %v1268, 1
    %v1364 = vsel %vm326, %v1362, %v1363
    %v1365 = vrot.slane %v1269, 1
    %v1366 = vrot.slane %v1270, 1
    %v1367 = vsel %vm326, %v1365, %v1366
    %v1368 = vrot.slane %v1271, 1
    %v1369 = vrot.slane %v1272, 1
    %v1370 = vsel %vm326, %v1368, %v1369
    %v1371 = vrot.slane %v1273, 1
    %v1372 = vrot.slane %v1274, 1
    %v1373 = vsel %vm326, %v1371, %v1372
    %v1374 = vrot.slane %v1275, 1
    %v1375 = vrot.slane %v1276, 1
    %v1376 = vsel %vm326, %v1374, %v1375
    %1377 = vrot.lane.b32.xlu0 %v1331, 16
    %v1378 = vpop.permute.xlu0 %1377
    %1379 = vrot.lane.b32.xlu0 %v1334, 16
    %v1380 = vpop.permute.xlu0 %1379
    %1381 = vrot.lane.b32.xlu0 %v1337, 16
    %v1382 = vpop.permute.xlu0 %1381
    %1383 = vrot.lane.b32.xlu0 %v1340, 16
    %v1384 = vpop.permute.xlu0 %1383
    %1385 = vrot.lane.b32.xlu0 %v1343, 16
    %v1386 = vpop.permute.xlu0 %1385
    %1387 = vrot.lane.b32.xlu0 %v1346, 16
    %v1388 = vpop.permute.xlu0 %1387
    %1389 = vrot.lane.b32.xlu0 %v1349, 16
    %v1390 = vpop.permute.xlu0 %1389
    %1391 = vrot.lane.b32.xlu0 %v1352, 16
    %v1392 = vpop.permute.xlu0 %1391
    %1393 = vrot.lane.b32.xlu0 %v1355, 16
    %v1394 = vpop.permute.xlu0 %1393
    %1395 = vrot.lane.b32.xlu0 %v1358, 16
    %v1396 = vpop.permute.xlu0 %1395
    %1397 = vrot.lane.b32.xlu0 %v1361, 16
    %v1398 = vpop.permute.xlu0 %1397
    %1399 = vrot.lane.b32.xlu0 %v1364, 16
    %v1400 = vpop.permute.xlu0 %1399
    %1401 = vrot.lane.b32.xlu0 %v1367, 16
    %v1402 = vpop.permute.xlu0 %1401
    %1403 = vrot.lane.b32.xlu0 %v1370, 16
    %v1404 = vpop.permute.xlu0 %1403
    %1405 = vrot.lane.b32.xlu0 %v1373, 16
    %v1406 = vpop.permute.xlu0 %1405
    %1407 = vrot.lane.b32.xlu0 %v1376, 16
    %v1408 = vpop.permute.xlu0 %1407
    %1425 = vst.msk [vmem:[#allocation3] sm:$0xff] %vm423, %v1378
    %1426 = vst.msk [vmem:[#allocation3 + $0x10] sm:$0xff] %vm423, %v1380
    %1427 = vst.msk [vmem:[#allocation3 + $0x20] sm:$0xff] %vm423, %v1382
    %1428 = vst.msk [vmem:[#allocation3 + $0x30] sm:$0xff] %vm423, %v1384
    %1429 = vst.msk [vmem:[#allocation3 + $0x40] sm:$0xff] %vm423, %v1386
    %1430 = vst.msk [vmem:[#allocation3 + $0x50] sm:$0xff] %vm423, %v1388
    %1431 = vst.msk [vmem:[#allocation3 + $0x60] sm:$0xff] %vm423, %v1390
    %1432 = vst.msk [vmem:[#allocation3 + $0x70] sm:$0xff] %vm423, %v1392
    %1433 = vst.msk [vmem:[#allocation3 + $0x80] sm:$0xff] %vm423, %v1394
    %1434 = vst.msk [vmem:[#allocation3 + $0x90] sm:$0xff] %vm423, %v1396
    %1435 = vst.msk [vmem:[#allocation3 + $0xa0] sm:$0xff] %vm423, %v1398
    %1436 = vst.msk [vmem:[#allocation3 + $0xb0] sm:$0xff] %vm423, %v1400
    %1437 = vst.msk [vmem:[#allocation3 + $0xc0] sm:$0xff] %vm423, %v1402
    %1438 = vst.msk [vmem:[#allocation3 + $0xd0] sm:$0xff] %vm423, %v1404
    %1439 = vst.msk [vmem:[#allocation3 + $0xe0] sm:$0xff] %vm423, %v1406
    %1440 = vst.msk [vmem:[#allocation3 + $0xf0] sm:$0xff] %vm423, %v1408
    %v1441 = vrot.slane %v1241, 2
    %v1442 = vrot.slane %v1242, 2
    %v1443 = vsel %vm440, %v1441, %v1442
    %v1444 = vrot.slane %v1243, 2
    %v1445 = vrot.slane %v1244, 2
    %v1446 = vsel %vm440, %v1444, %v1445
    %v1447 = vrot.slane %v1245, 2
    %v1448 = vrot.slane %v1246, 2
    %v1449 = vsel %vm440, %v1447, %v1448
    %v1450 = vrot.slane %v1247, 2
    %v1451 = vrot.slane %v1248, 2
    %v1452 = vsel %vm440, %v1450, %v1451
    %v1453 = vrot.slane %v1249, 2
    %v1454 = vrot.slane %v1250, 2
    %v1455 = vsel %vm440, %v1453, %v1454
    %v1456 = vrot.slane %v1251, 2
    %v1457 = vrot.slane %v1252, 2
    %v1458 = vsel %vm440, %v1456, %v1457
    %v1459 = vrot.slane %v1253, 2
    %v1460 = vrot.slane %v1254, 2
    %v1461 = vsel %vm440, %v1459, %v1460
    %v1462 = vrot.slane %v1255, 2
    %v1463 = vrot.slane %v1256, 2
    %v1464 = vsel %vm440, %v1462, %v1463
    %v1465 = vrot.slane %v1261, 2
    %v1466 = vrot.slane %v1262, 2
    %v1467 = vsel %vm440, %v1465, %v1466
    %v1468 = vrot.slane %v1263, 2
    %v1469 = vrot.slane %v1264, 2
    %v1470 = vsel %vm440, %v1468, %v1469
    %v1471 = vrot.slane %v1265, 2
    %v1472 = vrot.slane %v1266, 2
    %v1473 = vsel %vm440, %v1471, %v1472
    %v1474 = vrot.slane %v1267, 2
    %v1475 = vrot.slane %v1268, 2
    %v1476 = vsel %vm440, %v1474, %v1475
    %v1477 = vrot.slane %v1269, 2
    %v1478 = vrot.slane %v1270, 2
    %v1479 = vsel %vm440, %v1477, %v1478
    %v1480 = vrot.slane %v1271, 2
    %v1481 = vrot.slane %v1272, 2
    %v1482 = vsel %vm440, %v1480, %v1481
    %v1483 = vrot.slane %v1273, 2
    %v1484 = vrot.slane %v1274, 2
    %v1485 = vsel %vm440, %v1483, %v1484
    %v1486 = vrot.slane %v1275, 2
    %v1487 = vrot.slane %v1276, 2
    %v1488 = vsel %vm440, %v1486, %v1487
    %1489 = vrot.lane.b32.xlu0 %v1443, 32
    %v1490 = vpop.permute.xlu0 %1489
    %1491 = vrot.lane.b32.xlu0 %v1446, 32
    %v1492 = vpop.permute.xlu0 %1491
    %1493 = vrot.lane.b32.xlu0 %v1449, 32
    %v1494 = vpop.permute.xlu0 %1493
    %1495 = vrot.lane.b32.xlu0 %v1452, 32
    %v1496 = vpop.permute.xlu0 %1495
    %1497 = vrot.lane.b32.xlu0 %v1455, 32
    %v1498 = vpop.permute.xlu0 %1497
    %1499 = vrot.lane.b32.xlu0 %v1458, 32
    %v1500 = vpop.permute.xlu0 %1499
    %1501 = vrot.lane.b32.xlu0 %v1461, 32
    %v1502 = vpop.permute.xlu0 %1501
    %1503 = vrot.lane.b32.xlu0 %v1464, 32
    %v1504 = vpop.permute.xlu0 %1503
    %1505 = vrot.lane.b32.xlu0 %v1467, 32
    %v1506 = vpop.permute.xlu0 %1505
    %1507 = vrot.lane.b32.xlu0 %v1470, 32
    %v1508 = vpop.permute.xlu0 %1507
    %1509 = vrot.lane.b32.xlu0 %v1473, 32
    %v1510 = vpop.permute.xlu0 %1509
    %1511 = vrot.lane.b32.xlu0 %v1476, 32
    %v1512 = vpop.permute.xlu0 %1511
    %1513 = vrot.lane.b32.xlu0 %v1479, 32
    %v1514 = vpop.permute.xlu0 %1513
    %1515 = vrot.lane.b32.xlu0 %v1482, 32
    %v1516 = vpop.permute.xlu0 %1515
    %1517 = vrot.lane.b32.xlu0 %v1485, 32
    %v1518 = vpop.permute.xlu0 %1517
    %1519 = vrot.lane.b32.xlu0 %v1488, 32
    %v1520 = vpop.permute.xlu0 %1519
    %1537 = vst.msk [vmem:[#allocation3] sm:$0xff] %vm537, %v1490
    %1538 = vst.msk [vmem:[#allocation3 + $0x10] sm:$0xff] %vm537, %v1492
    %1539 = vst.msk [vmem:[#allocation3 + $0x20] sm:$0xff] %vm537, %v1494
    %1540 = vst.msk [vmem:[#allocation3 + $0x30] sm:$0xff] %vm537, %v1496
    %1541 = vst.msk [vmem:[#allocation3 + $0x40] sm:$0xff] %vm537, %v1498
    %1542 = vst.msk [vmem:[#allocation3 + $0x50] sm:$0xff] %vm537, %v1500
    %1543 = vst.msk [vmem:[#allocation3 + $0x60] sm:$0xff] %vm537, %v1502
    %1544 = vst.msk [vmem:[#allocation3 + $0x70] sm:$0xff] %vm537, %v1504
    %1545 = vst.msk [vmem:[#allocation3 + $0x80] sm:$0xff] %vm537, %v1506
    %1546 = vst.msk [vmem:[#allocation3 + $0x90] sm:$0xff] %vm537, %v1508
    %1547 = vst.msk [vmem:[#allocation3 + $0xa0] sm:$0xff] %vm537, %v1510
    %1548 = vst.msk [vmem:[#allocation3 + $0xb0] sm:$0xff] %vm537, %v1512
    %1549 = vst.msk [vmem:[#allocation3 + $0xc0] sm:$0xff] %vm537, %v1514
    %1550 = vst.msk [vmem:[#allocation3 + $0xd0] sm:$0xff] %vm537, %v1516
    %1551 = vst.msk [vmem:[#allocation3 + $0xe0] sm:$0xff] %vm537, %v1518
    %1552 = vst.msk [vmem:[#allocation3 + $0xf0] sm:$0xff] %vm537, %v1520
    %1555 = vrot.lane.b32.xlu0 %v1243, 48
    %v1556 = vpop.permute.xlu0 %1555
    %1557 = vrot.lane.b32.xlu0 %v1245, 48
    %v1558 = vpop.permute.xlu0 %1557
    %1559 = vrot.lane.b32.xlu0 %v1247, 48
    %v1560 = vpop.permute.xlu0 %1559
    %1561 = vrot.lane.b32.xlu0 %v1249, 48
    %v1562 = vpop.permute.xlu0 %1561
    %1563 = vrot.lane.b32.xlu0 %v1251, 48
    %v1564 = vpop.permute.xlu0 %1563
    %1565 = vrot.lane.b32.xlu0 %v1253, 48
    %v1566 = vpop.permute.xlu0 %1565
    %1567 = vrot.lane.b32.xlu0 %v1255, 48
    %v1568 = vpop.permute.xlu0 %1567
    %1569 = vrot.lane.b32.xlu0 %v1257, 48
    %v1570 = vpop.permute.xlu0 %1569
    %1571 = vrot.lane.b32.xlu0 %v1263, 48
    %v1572 = vpop.permute.xlu0 %1571
    %1573 = vrot.lane.b32.xlu0 %v1265, 48
    %v1574 = vpop.permute.xlu0 %1573
    %1575 = vrot.lane.b32.xlu0 %v1267, 48
    %v1576 = vpop.permute.xlu0 %1575
    %1577 = vrot.lane.b32.xlu0 %v1269, 48
    %v1578 = vpop.permute.xlu0 %1577
    %1579 = vrot.lane.b32.xlu0 %v1271, 48
    %v1580 = vpop.permute.xlu0 %1579
    %1581 = vrot.lane.b32.xlu0 %v1273, 48
    %v1582 = vpop.permute.xlu0 %1581
    %1583 = vrot.lane.b32.xlu0 %v1275, 48
    %v1584 = vpop.permute.xlu0 %1583
    %1585 = vrot.lane.b32.xlu0 %v1277, 48
    %v1586 = vpop.permute.xlu0 %1585
    %1603 = vst.msk [vmem:[#allocation3] sm:$0xff] %vm604, %v1556
    %1604 = vst.msk [vmem:[#allocation3 + $0x10] sm:$0xff] %vm604, %v1558
    %1605 = vst.msk [vmem:[#allocation3 + $0x20] sm:$0xff] %vm604, %v1560
    %1606 = vst.msk [vmem:[#allocation3 + $0x30] sm:$0xff] %vm604, %v1562
    %1607 = vst.msk [vmem:[#allocation3 + $0x40] sm:$0xff] %vm604, %v1564
    %1608 = vst.msk [vmem:[#allocation3 + $0x50] sm:$0xff] %vm604, %v1566
    %1609 = vst.msk [vmem:[#allocation3 + $0x60] sm:$0xff] %vm604, %v1568
    %1610 = vst.msk [vmem:[#allocation3 + $0x70] sm:$0xff] %vm604, %v1570
    %1611 = vst.msk [vmem:[#allocation3 + $0x80] sm:$0xff] %vm604, %v1572
    %1612 = vst.msk [vmem:[#allocation3 + $0x90] sm:$0xff] %vm604, %v1574
    %1613 = vst.msk [vmem:[#allocation3 + $0xa0] sm:$0xff] %vm604, %v1576
    %1614 = vst.msk [vmem:[#allocation3 + $0xb0] sm:$0xff] %vm604, %v1578
    %1615 = vst.msk [vmem:[#allocation3 + $0xc0] sm:$0xff] %vm604, %v1580
    %1616 = vst.msk [vmem:[#allocation3 + $0xd0] sm:$0xff] %vm604, %v1582
    %1617 = vst.msk [vmem:[#allocation3 + $0xe0] sm:$0xff] %vm604, %v1584
    %1618 = vst.msk [vmem:[#allocation3 + $0xf0] sm:$0xff] %vm604, %v1586
    %v1621 = vrot.slane %v1257, 1
    %v1622 = vrot.slane %v1258, 1
    %v1623 = vsel %vm326, %v1621, %v1622
    %v1624 = vrot.slane %v1277, 1
    %v1625 = vrot.slane %v1278, 1
    %v1626 = vsel %vm326, %v1624, %v1625
    %1627 = vrot.lane.b32.xlu0 %v1334, 64
    %v1628 = vpop.permute.xlu0 %1627
    %1629 = vrot.lane.b32.xlu0 %v1337, 64
    %v1630 = vpop.permute.xlu0 %1629
    %1631 = vrot.lane.b32.xlu0 %v1340, 64
    %v1632 = vpop.permute.xlu0 %1631
    %1633 = vrot.lane.b32.xlu0 %v1343, 64
    %v1634 = vpop.permute.xlu0 %1633
    %1635 = vrot.lane.b32.xlu0 %v1346, 64
    %v1636 = vpop.permute.xlu0 %1635
    %1637 = vrot.lane.b32.xlu0 %v1349, 64
    %v1638 = vpop.permute.xlu0 %1637
    %1639 = vrot.lane.b32.xlu0 %v1352, 64
    %v1640 = vpop.permute.xlu0 %1639
    %1641 = vrot.lane.b32.xlu0 %v1623, 64
    %v1642 = vpop.permute.xlu0 %1641
    %1643 = vrot.lane.b32.xlu0 %v1358, 64
    %v1644 = vpop.permute.xlu0 %1643
    %1645 = vrot.lane.b32.xlu0 %v1361, 64
    %v1646 = vpop.permute.xlu0 %1645
    %1647 = vrot.lane.b32.xlu0 %v1364, 64
    %v1648 = vpop.permute.xlu0 %1647
    %1649 = vrot.lane.b32.xlu0 %v1367, 64
    %v1650 = vpop.permute.xlu0 %1649
    %1651 = vrot.lane.b32.xlu0 %v1370, 64
    %v1652 = vpop.permute.xlu0 %1651
    %1653 = vrot.lane.b32.xlu0 %v1373, 64
    %v1654 = vpop.permute.xlu0 %1653
    %1655 = vrot.lane.b32.xlu0 %v1376, 64
    %v1656 = vpop.permute.xlu0 %1655
    %1657 = vrot.lane.b32.xlu0 %v1626, 64
    %v1658 = vpop.permute.xlu0 %1657
    %1675 = vst.msk [vmem:[#allocation3] sm:$0xff] %vm677, %v1628
    %1676 = vst.msk [vmem:[#allocation3 + $0x10] sm:$0xff] %vm677, %v1630
    %1677 = vst.msk [vmem:[#allocation3 + $0x20] sm:$0xff] %vm677, %v1632
    %1678 = vst.msk [vmem:[#allocation3 + $0x30] sm:$0xff] %vm677, %v1634
    %1679 = vst.msk [vmem:[#allocation3 + $0x40] sm:$0xff] %vm677, %v1636
    %1680 = vst.msk [vmem:[#allocation3 + $0x50] sm:$0xff] %vm677, %v1638
    %1681 = vst.msk [vmem:[#allocation3 + $0x60] sm:$0xff] %vm677, %v1640
    %1682 = vst.msk [vmem:[#allocation3 + $0x70] sm:$0xff] %vm677, %v1642
    %1683 = vst.msk [vmem:[#allocation3 + $0x80] sm:$0xff] %vm677, %v1644
    %1684 = vst.msk [vmem:[#allocation3 + $0x90] sm:$0xff] %vm677, %v1646
    %1685 = vst.msk [vmem:[#allocation3 + $0xa0] sm:$0xff] %vm677, %v1648
    %1686 = vst.msk [vmem:[#allocation3 + $0xb0] sm:$0xff] %vm677, %v1650
    %1687 = vst.msk [vmem:[#allocation3 + $0xc0] sm:$0xff] %vm677, %v1652
    %1688 = vst.msk [vmem:[#allocation3 + $0xd0] sm:$0xff] %vm677, %v1654
    %1689 = vst.msk [vmem:[#allocation3 + $0xe0] sm:$0xff] %vm677, %v1656
    %1690 = vst.msk [vmem:[#allocation3 + $0xf0] sm:$0xff] %vm677, %v1658
    %v1691 = vrot.slane %v1257, 2
    %v1692 = vrot.slane %v1258, 2
    %v1693 = vsel %vm440, %v1691, %v1692
    %v1694 = vrot.slane %v1277, 2
    %v1695 = vrot.slane %v1278, 2
    %v1696 = vsel %vm440, %v1694, %v1695
    %1697 = vrot.lane.b32.xlu0 %v1446, 80
    %v1698 = vpop.permute.xlu0 %1697
    %1699 = vrot.lane.b32.xlu0 %v1449, 80
    %v1700 = vpop.permute.xlu0 %1699
    %1701 = vrot.lane.b32.xlu0 %v1452, 80
    %v1702 = vpop.permute.xlu0 %1701
    %1703 = vrot.lane.b32.xlu0 %v1455, 80
    %v1704 = vpop.permute.xlu0 %1703
    %1705 = vrot.lane.b32.xlu0 %v1458, 80
    %v1706 = vpop.permute.xlu0 %1705
    %1707 = vrot.lane.b32.xlu0 %v1461, 80
    %v1708 = vpop.permute.xlu0 %1707
    %1709 = vrot.lane.b32.xlu0 %v1464, 80
    %v1710 = vpop.permute.xlu0 %1709
    %1711 = vrot.lane.b32.xlu0 %v1693, 80
    %v1712 = vpop.permute.xlu0 %1711
    %1713 = vrot.lane.b32.xlu0 %v1470, 80
    %v1714 = vpop.permute.xlu0 %1713
    %1715 = vrot.lane.b32.xlu0 %v1473, 80
    %v1716 = vpop.permute.xlu0 %1715
    %1717 = vrot.lane.b32.xlu0 %v1476, 80
    %v1718 = vpop.permute.xlu0 %1717
    %1719 = vrot.lane.b32.xlu0 %v1479, 80
    %v1720 = vpop.permute.xlu0 %1719
    %1721 = vrot.lane.b32.xlu0 %v1482, 80
    %v1722 = vpop.permute.xlu0 %1721
    %1723 = vrot.lane.b32.xlu0 %v1485, 80
    %v1724 = vpop.permute.xlu0 %1723
    %1725 = vrot.lane.b32.xlu0 %v1488, 80
    %v1726 = vpop.permute.xlu0 %1725
    %1727 = vrot.lane.b32.xlu0 %v1696, 80
    %v1728 = vpop.permute.xlu0 %1727
    %1745 = vst.msk [vmem:[#allocation3] sm:$0xff] %vm748, %v1698
    %1746 = vst.msk [vmem:[#allocation3 + $0x10] sm:$0xff] %vm748, %v1700
    %1747 = vst.msk [vmem:[#allocation3 + $0x20] sm:$0xff] %vm748, %v1702
    %1748 = vst.msk [vmem:[#allocation3 + $0x30] sm:$0xff] %vm748, %v1704
    %1749 = vst.msk [vmem:[#allocation3 + $0x40] sm:$0xff] %vm748, %v1706
    %1750 = vst.msk [vmem:[#allocation3 + $0x50] sm:$0xff] %vm748, %v1708
    %1751 = vst.msk [vmem:[#allocation3 + $0x60] sm:$0xff] %vm748, %v1710
    %1752 = vst.msk [vmem:[#allocation3 + $0x70] sm:$0xff] %vm748, %v1712
    %1753 = vst.msk [vmem:[#allocation3 + $0x80] sm:$0xff] %vm748, %v1714
    %1754 = vst.msk [vmem:[#allocation3 + $0x90] sm:$0xff] %vm748, %v1716
    %1755 = vst.msk [vmem:[#allocation3 + $0xa0] sm:$0xff] %vm748, %v1718
    %1756 = vst.msk [vmem:[#allocation3 + $0xb0] sm:$0xff] %vm748, %v1720
    %1757 = vst.msk [vmem:[#allocation3 + $0xc0] sm:$0xff] %vm748, %v1722
    %1758 = vst.msk [vmem:[#allocation3 + $0xd0] sm:$0xff] %vm748, %v1724
    %1759 = vst.msk [vmem:[#allocation3 + $0xe0] sm:$0xff] %vm748, %v1726
    %1760 = vst.msk [vmem:[#allocation3 + $0xf0] sm:$0xff] %vm748, %v1728
    %1763 = vrot.lane.b32.xlu0 %v1245, 96
    %v1764 = vpop.permute.xlu0 %1763
    %1765 = vrot.lane.b32.xlu0 %v1247, 96
    %v1766 = vpop.permute.xlu0 %1765
    %1767 = vrot.lane.b32.xlu0 %v1249, 96
    %v1768 = vpop.permute.xlu0 %1767
    %1769 = vrot.lane.b32.xlu0 %v1251, 96
    %v1770 = vpop.permute.xlu0 %1769
    %1771 = vrot.lane.b32.xlu0 %v1253, 96
    %v1772 = vpop.permute.xlu0 %1771
    %1773 = vrot.lane.b32.xlu0 %v1255, 96
    %v1774 = vpop.permute.xlu0 %1773
    %1775 = vrot.lane.b32.xlu0 %v1257, 96
    %v1776 = vpop.permute.xlu0 %1775
    %1777 = vrot.lane.b32.xlu0 %v1259, 96
    %v1778 = vpop.permute.xlu0 %1777
    %1779 = vrot.lane.b32.xlu0 %v1265, 96
    %v1780 = vpop.permute.xlu0 %1779
    %1781 = vrot.lane.b32.xlu0 %v1267, 96
    %v1782 = vpop.permute.xlu0 %1781
    %1783 = vrot.lane.b32.xlu0 %v1269, 96
    %v1784 = vpop.permute.xlu0 %1783
    %1785 = vrot.lane.b32.xlu0 %v1271, 96
    %v1786 = vpop.permute.xlu0 %1785
    %1787 = vrot.lane.b32.xlu0 %v1273, 96
    %v1788 = vpop.permute.xlu0 %1787
    %1789 = vrot.lane.b32.xlu0 %v1275, 96
    %v1790 = vpop.permute.xlu0 %1789
    %1791 = vrot.lane.b32.xlu0 %v1277, 96
    %v1792 = vpop.permute.xlu0 %1791
    %1793 = vrot.lane.b32.xlu0 %v1279, 96
    %v1794 = vpop.permute.xlu0 %1793
    %1811 = vst.msk [vmem:[#allocation3] sm:$0xff] %vm815, %v1764
    %1812 = vst.msk [vmem:[#allocation3 + $0x10] sm:$0xff] %vm815, %v1766
    %1813 = vst.msk [vmem:[#allocation3 + $0x20] sm:$0xff] %vm815, %v1768
    %1814 = vst.msk [vmem:[#allocation3 + $0x30] sm:$0xff] %vm815, %v1770
    %1815 = vst.msk [vmem:[#allocation3 + $0x40] sm:$0xff] %vm815, %v1772
    %1816 = vst.msk [vmem:[#allocation3 + $0x50] sm:$0xff] %vm815, %v1774
    %1817 = vst.msk [vmem:[#allocation3 + $0x60] sm:$0xff] %vm815, %v1776
    %1818 = vst.msk [vmem:[#allocation3 + $0x70] sm:$0xff] %vm815, %v1778
    %1819 = vst.msk [vmem:[#allocation3 + $0x80] sm:$0xff] %vm815, %v1780
    %1820 = vst.msk [vmem:[#allocation3 + $0x90] sm:$0xff] %vm815, %v1782
    %1821 = vst.msk [vmem:[#allocation3 + $0xa0] sm:$0xff] %vm815, %v1784
    %1822 = vst.msk [vmem:[#allocation3 + $0xb0] sm:$0xff] %vm815, %v1786
    %1823 = vst.msk [vmem:[#allocation3 + $0xc0] sm:$0xff] %vm815, %v1788
    %1824 = vst.msk [vmem:[#allocation3 + $0xd0] sm:$0xff] %vm815, %v1790
    %1825 = vst.msk [vmem:[#allocation3 + $0xe0] sm:$0xff] %vm815, %v1792
    %1826 = vst.msk [vmem:[#allocation3 + $0xf0] sm:$0xff] %vm815, %v1794
    %v1829 = vrot.slane %v1259, 1
    %v1830 = vrot.slane %v1260, 1
    %v1831 = vsel %vm326, %v1829, %v1830
    %v1832 = vrot.slane %v1279, 1
    %v1833 = vrot.slane %v1280, 1
    %v1834 = vsel %vm326, %v1832, %v1833
    %1835 = vrot.lane.b32.xlu0 %v1337, 112
    %v1836 = vpop.permute.xlu0 %1835
    %1837 = vrot.lane.b32.xlu0 %v1340, 112
    %v1838 = vpop.permute.xlu0 %1837
    %1839 = vrot.lane.b32.xlu0 %v1343, 112
    %v1840 = vpop.permute.xlu0 %1839
    %1841 = vrot.lane.b32.xlu0 %v1346, 112
    %v1842 = vpop.permute.xlu0 %1841
    %1843 = vrot.lane.b32.xlu0 %v1349, 112
    %v1844 = vpop.permute.xlu0 %1843
    %1845 = vrot.lane.b32.xlu0 %v1352, 112
    %v1846 = vpop.permute.xlu0 %1845
    %1847 = vrot.lane.b32.xlu0 %v1623, 112
    %v1848 = vpop.permute.xlu0 %1847
    %1849 = vrot.lane.b32.xlu0 %v1831, 112
    %v1850 = vpop.permute.xlu0 %1849
    %1851 = vrot.lane.b32.xlu0 %v1361, 112
    %v1852 = vpop.permute.xlu0 %1851
    %1853 = vrot.lane.b32.xlu0 %v1364, 112
    %v1854 = vpop.permute.xlu0 %1853
    %1855 = vrot.lane.b32.xlu0 %v1367, 112
    %v1856 = vpop.permute.xlu0 %1855
    %1857 = vrot.lane.b32.xlu0 %v1370, 112
    %v1858 = vpop.permute.xlu0 %1857
    %1859 = vrot.lane.b32.xlu0 %v1373, 112
    %v1860 = vpop.permute.xlu0 %1859
    %1861 = vrot.lane.b32.xlu0 %v1376, 112
    %v1862 = vpop.permute.xlu0 %1861
    %1863 = vrot.lane.b32.xlu0 %v1626, 112
    %v1864 = vpop.permute.xlu0 %1863
    %1865 = vrot.lane.b32.xlu0 %v1834, 112
    %v1866 = vpop.permute.xlu0 %1865
    %1883 = vst.msk [vmem:[#allocation3] sm:$0xff] %vm888, %v1836
    %1884 = vst.msk [vmem:[#allocation3 + $0x10] sm:$0xff] %vm888, %v1838
    %1885 = vst.msk [vmem:[#allocation3 + $0x20] sm:$0xff] %vm888, %v1840
    %1886 = vst.msk [vmem:[#allocation3 + $0x30] sm:$0xff] %vm888, %v1842
    %1887 = vst.msk [vmem:[#allocation3 + $0x40] sm:$0xff] %vm888, %v1844
    %1888 = vst.msk [vmem:[#allocation3 + $0x50] sm:$0xff] %vm888, %v1846
    %1889 = vst.msk [vmem:[#allocation3 + $0x60] sm:$0xff] %vm888, %v1848
    %1890 = vst.msk [vmem:[#allocation3 + $0x70] sm:$0xff] %vm888, %v1850
    %1891 = vst.msk [vmem:[#allocation3 + $0x80] sm:$0xff] %vm888, %v1852
    %1892 = vst.msk [vmem:[#allocation3 + $0x90] sm:$0xff] %vm888, %v1854
    %1893 = vst.msk [vmem:[#allocation3 + $0xa0] sm:$0xff] %vm888, %v1856
    %1894 = vst.msk [vmem:[#allocation3 + $0xb0] sm:$0xff] %vm888, %v1858
    %1895 = vst.msk [vmem:[#allocation3 + $0xc0] sm:$0xff] %vm888, %v1860
    %1896 = vst.msk [vmem:[#allocation3 + $0xd0] sm:$0xff] %vm888, %v1862
    %1897 = vst.msk [vmem:[#allocation3 + $0xe0] sm:$0xff] %vm888, %v1864
    %1898 = vst.msk [vmem:[#allocation3 + $0xf0] sm:$0xff] %vm888, %v1866
    %v1899 = vrot.slane %v1259, 2
    %v1900 = vrot.slane %v1260, 2
    %v1901 = vsel %vm440, %v1899, %v1900
    %v1902 = vrot.slane %v1279, 2
    %v1903 = vrot.slane %v1280, 2
    %v1904 = vsel %vm440, %v1902, %v1903
    %1921 = vst.msk [vmem:[#allocation3 + $0x8] sm:$0xff] %vm27, %v1449
    %1922 = vst.msk [vmem:[#allocation3 + $0x18] sm:$0xff] %vm27, %v1452
    %1923 = vst.msk [vmem:[#allocation3 + $0x28] sm:$0xff] %vm27, %v1455
    %1924 = vst.msk [vmem:[#allocation3 + $0x38] sm:$0xff] %vm27, %v1458
    %1925 = vst.msk [vmem:[#allocation3 + $0x48] sm:$0xff] %vm27, %v1461
    %1926 = vst.msk [vmem:[#allocation3 + $0x58] sm:$0xff] %vm27, %v1464
    %1927 = vst.msk [vmem:[#allocation3 + $0x68] sm:$0xff] %vm27, %v1693
    %1928 = vst.msk [vmem:[#allocation3 + $0x78] sm:$0xff] %vm27, %v1901
    %1929 = vst.msk [vmem:[#allocation3 + $0x88] sm:$0xff] %vm27, %v1473
    %1930 = vst.msk [vmem:[#allocation3 + $0x98] sm:$0xff] %vm27, %v1476
    %1931 = vst.msk [vmem:[#allocation3 + $0xa8] sm:$0xff] %vm27, %v1479
    %1932 = vst.msk [vmem:[#allocation3 + $0xb8] sm:$0xff] %vm27, %v1482
    %1933 = vst.msk [vmem:[#allocation3 + $0xc8] sm:$0xff] %vm27, %v1485
    %1934 = vst.msk [vmem:[#allocation3 + $0xd8] sm:$0xff] %vm27, %v1488
    %1935 = vst.msk [vmem:[#allocation3 + $0xe8] sm:$0xff] %vm27, %v1696
    %1936 = vst.msk [vmem:[#allocation3 + $0xf8] sm:$0xff] %vm27, %v1904
    %v1937 = vld [vmem:[#allocation3] sm:$0xff]
    %v1938 = vld [vmem:[#allocation3 + $0x8] sm:$0xff]
    %v1939 = vld [vmem:[#allocation3 + $0x10] sm:$0xff]
    %v1940 = vld [vmem:[#allocation3 + $0x18] sm:$0xff]
    %v1941 = vld [vmem:[#allocation3 + $0x20] sm:$0xff]
    %v1942 = vld [vmem:[#allocation3 + $0x28] sm:$0xff]
    %v1943 = vld [vmem:[#allocation3 + $0x30] sm:$0xff]
    %v1944 = vld [vmem:[#allocation3 + $0x38] sm:$0xff]
    %v1945 = vld [vmem:[#allocation3 + $0x40] sm:$0xff]
    %v1946 = vld [vmem:[#allocation3 + $0x48] sm:$0xff]
    %v1947 = vld [vmem:[#allocation3 + $0x50] sm:$0xff]
    %v1948 = vld [vmem:[#allocation3 + $0x58] sm:$0xff]
    %v1949 = vld [vmem:[#allocation3 + $0x60] sm:$0xff]
    %v1950 = vld [vmem:[#allocation3 + $0x68] sm:$0xff]
    %v1951 = vld [vmem:[#allocation3 + $0x70] sm:$0xff]
    %v1952 = vld [vmem:[#allocation3 + $0x78] sm:$0xff]
    %v1953 = vld [vmem:[#allocation3 + $0x80] sm:$0xff]
    %v1954 = vld [vmem:[#allocation3 + $0x88] sm:$0xff]
    %v1955 = vld [vmem:[#allocation3 + $0x90] sm:$0xff]
    %v1956 = vld [vmem:[#allocation3 + $0x98] sm:$0xff]
    %v1957 = vld [vmem:[#allocation3 + $0xa0] sm:$0xff]
    %v1958 = vld [vmem:[#allocation3 + $0xa8] sm:$0xff]
    %v1959 = vld [vmem:[#allocation3 + $0xb0] sm:$0xff]
    %v1960 = vld [vmem:[#allocation3 + $0xb8] sm:$0xff]
    %v1961 = vld [vmem:[#allocation3 + $0xc0] sm:$0xff]
    %v1962 = vld [vmem:[#allocation3 + $0xc8] sm:$0xff]
    %v1963 = vld [vmem:[#allocation3 + $0xd0] sm:$0xff]
    %v1964 = vld [vmem:[#allocation3 + $0xd8] sm:$0xff]
    %v1965 = vld [vmem:[#allocation3 + $0xe0] sm:$0xff]
    %v1966 = vld [vmem:[#allocation3 + $0xe8] sm:$0xff]
    %v1967 = vld [vmem:[#allocation3 + $0xf0] sm:$0xff]
    %v1968 = vld [vmem:[#allocation3 + $0xf8] sm:$0xff]
    %s1969 = scalar_lea.vmem %s1, 144
    %v1970 = vld [vmem:[%s1969] sm:$0xff]
    %v1971 = vld [vmem:[%s1969 + $0x8] sm:$0xff]
    %v1972 = vld [vmem:[%s1969 + $0x10] sm:$0xff]
    %v1973 = vld [vmem:[%s1969 + $0x18] sm:$0xff]
    %v1974 = vld [vmem:[%s1969 + $0x20] sm:$0xff]
    %v1975 = vld [vmem:[%s1969 + $0x28] sm:$0xff]
    %v1976 = vld [vmem:[%s1969 + $0x30] sm:$0xff]
    %v1977 = vld [vmem:[%s1969 + $0x38] sm:$0xff]
    %v1978 = vld [vmem:[%s1969 + $0x40] sm:$0xff]
    %v1979 = vld [vmem:[%s1969 + $0x48] sm:$0xff]
    %v1980 = vld [vmem:[%s1969 + $0x50] sm:$0xff]
    %v1981 = vld [vmem:[%s1969 + $0x58] sm:$0xff]
    %v1982 = vld [vmem:[%s1969 + $0x60] sm:$0xff]
    %v1983 = vld [vmem:[%s1969 + $0x68] sm:$0xff]
    %v1984 = vld [vmem:[%s1969 + $0x70] sm:$0xff]
    %v1985 = vld [vmem:[%s1969 + $0x78] sm:$0xff]
    %v1986 = vld [vmem:[%s1969 + $0x80] sm:$0xff]
    %v1987 = vld [vmem:[%s1969 + $0x88] sm:$0xff]
    %s1988 = scalar_lea.vmem %s2, 1
    %v1989 = vld [vmem:[%s1988] sm:$0x1]
    %v1991 = vlaneseq
    %v1992 = vshrl.u32 %v1991, 7
    %v1993 = vsub.s32 0, %v1992
    %v1994 = vrot.slane %v1989, %v1993
    %v1997 = vsel %vm27, %v1938, 0
    %v2000 = vsel %vm27, %v1940, 0
    %v2003 = vsel %vm27, %v1942, 0
    %v2006 = vsel %vm27, %v1944, 0
    %v2009 = vsel %vm27, %v1946, 0
    %v2012 = vsel %vm27, %v1948, 0
    %v2015 = vsel %vm27, %v1950, 0
    %v2018 = vsel %vm27, %v1952, 0
    %v2021 = vsel %vm27, %v1954, 0
    %v2024 = vsel %vm27, %v1956, 0
    %v2027 = vsel %vm27, %v1958, 0
    %v2030 = vsel %vm27, %v1960, 0
    %v2033 = vsel %vm27, %v1962, 0
    %v2036 = vsel %vm27, %v1964, 0
    %v2039 = vsel %vm27, %v1966, 0
    %v2042 = vsel %vm27, %v1968, 0
    %2044 = vmatprep.subr.mxu0 0.0
    %2045 = vmatpush1.msra.mxu0 %v1970
    %2046 = vmatprep.subr.mxu0 0.0
    %2047 = vmatpush1.msra.mxu0 %v1971
    %2048 = vmatprep.subr.mxu0 0.0
    %2049 = vmatpush1.msra.mxu0 %v1972
    %2050 = vmatprep.subr.mxu0 0.0
    %2051 = vmatpush1.msra.mxu0 %v1973
    %2052 = vmatprep.subr.mxu0 0.0
    %2053 = vmatpush1.msra.mxu0 %v1974
    %2054 = vmatprep.subr.mxu0 0.0
    %2055 = vmatpush1.msra.mxu0 %v1975
    %2056 = vmatprep.subr.mxu0 0.0
    %2057 = vmatpush1.msra.mxu0 %v1976
    %2058 = vmatprep.subr.mxu0 0.0
    %2059 = vmatpush1.msra.mxu0 %v1977
    %2060 = vmatprep.subr.mxu0 0.0
    %2061 = vmatpush1.msra.mxu0 %v1978
    %2062 = vmatprep.subr.mxu0 0.0
    %2063 = vmatpush1.msra.mxu0 %v1979
    %2064 = vmatprep.subr.mxu0 0.0
    %2065 = vmatpush1.msra.mxu0 %v1980
    %2066 = vmatprep.subr.mxu0 0.0
    %2067 = vmatpush1.msra.mxu0 %v1981
    %2068 = vmatprep.subr.mxu0 0.0
    %2069 = vmatpush1.msra.mxu0 %v1982
    %2070 = vmatprep.subr.mxu0 0.0
    %2071 = vmatpush1.msra.mxu0 %v1983
    %2072 = vmatprep.subr.mxu0 0.0
    %2073 = vmatpush1.msra.mxu0 %v1984
    %2074 = vmatprep.subr.mxu0 0.0
    %2075 = vmatpush1.msra.mxu0 %v1985
    %2076 = vmatprep.subr.mxu0 0.0
    %2077 = vmatpush1.msra.mxu0 %v1986
    %2078 = vmatprep.subr.mxu0 0.0
    %2079 = vmatpush1.msra.mxu0 %v1987
    %2080 = vmatprep.subr.mxu0 0.0
    %2081 = vmatpush1.msra.mxu0 0.0
    %2082 = vmatprep.subr.mxu0 0.0
    %2083 = vmatpush1.msra.mxu0 0.0
    %2084 = vmatprep.subr.mxu0 0.0
    %2085 = vmatpush1.msra.mxu0 0.0
    %2086 = vmatprep.subr.mxu0 0.0
    %2087 = vmatpush1.msra.mxu0 0.0
    %2088 = vmatprep.subr.mxu0 0.0
    %2089 = vmatpush1.msra.mxu0 0.0
    %2090 = vmatprep.subr.mxu0 0.0
    %2091 = vmatpush1.msra.mxu0 0.0
    %2092 = vmatprep.subr.mxu0 0.0
    %2093 = vmatpush1.msra.mxu0 0.0
    %2094 = vmatprep.subr.mxu0 0.0
    %2095 = vmatpush1.msra.mxu0 0.0
    %2096 = vmatprep.subr.mxu0 0.0
    %2097 = vmatpush1.msra.mxu0 0.0
    %2098 = vmatprep.subr.mxu0 0.0
    %2099 = vmatpush1.msra.mxu0 0.0
    %2100 = vmatprep.subr.mxu0 0.0
    %2101 = vmatpush1.msra.mxu0 0.0
    %2102 = vmatprep.subr.mxu0 0.0
    %2103 = vmatpush1.msra.mxu0 0.0
    %2104 = vmatprep.subr.mxu0 0.0
    %2105 = vmatpush1.msra.mxu0 0.0
    %2106 = vmatprep.subr.mxu0 0.0
    %2107 = vmatpush1.msra.mxu0 0.0
    %2108 = vmatprep.mubr.f32.mxu0 %v1997
    %2109 = vmatmul.mubr.f32.gmra.mrb[0].mxu0 %v1937
    %v2110 = vpop.f32.mrb[0].mxu0
    %v2111 = vadd.f32 %v1994, %v2110
    %v2112 = vpop.f32.mrb[0].mxu0
    %2113 = vmatprep.mubr.f32.mxu0 %v2000
    %2114 = vmatmul.mubr.f32.gmra.mrb[0].mxu0 %v1939
    %v2115 = vpop.f32.mrb[0].mxu0
    %v2116 = vadd.f32 %v1994, %v2115
    %v2117 = vpop.f32.mrb[0].mxu0
    %2118 = vmatprep.mubr.f32.mxu0 %v2003
    %2119 = vmatmul.mubr.f32.gmra.mrb[0].mxu0 %v1941
    %v2120 = vpop.f32.mrb[0].mxu0
    %v2121 = vadd.f32 %v1994, %v2120
    %v2122 = vpop.f32.mrb[0].mxu0
    %2123 = vmatprep.mubr.f32.mxu0 %v2006
    %2124 = vmatmul.mubr.f32.gmra.mrb[0].mxu0 %v1943
    %v2125 = vpop.f32.mrb[0].mxu0
    %v2126 = vadd.f32 %v1994, %v2125
    %v2127 = vpop.f32.mrb[0].mxu0
    %2128 = vmatprep.mubr.f32.mxu0 %v2009
    %2129 = vmatmul.mubr.f32.gmra.mrb[0].mxu0 %v1945
    %v2130 = vpop.f32.mrb[0].mxu0
    %v2131 = vadd.f32 %v1994, %v2130
    %v2132 = vpop.f32.mrb[0].mxu0
    %2133 = vmatprep.mubr.f32.mxu0 %v2012
    %2134 = vmatmul.mubr.f32.gmra.mrb[0].mxu0 %v1947
    %v2135 = vpop.f32.mrb[0].mxu0
    %v2136 = vadd.f32 %v1994, %v2135
    %v2137 = vpop.f32.mrb[0].mxu0
    %2138 = vmatprep.mubr.f32.mxu0 %v2015
    %2139 = vmatmul.mubr.f32.gmra.mrb[0].mxu0 %v1949
    %v2140 = vpop.f32.mrb[0].mxu0
    %v2141 = vadd.f32 %v1994, %v2140
    %v2142 = vpop.f32.mrb[0].mxu0
    %2143 = vmatprep.mubr.f32.mxu0 %v2018
    %2144 = vmatmul.mubr.f32.gmra.mrb[0].mxu0 %v1951
    %v2145 = vpop.f32.mrb[0].mxu0
    %v2146 = vadd.f32 %v1994, %v2145
    %v2147 = vpop.f32.mrb[0].mxu0
    %2148 = vmatprep.mubr.f32.mxu0 %v2021
    %2149 = vmatmul.mubr.f32.gmra.mrb[0].mxu0 %v1953
    %v2150 = vpop.f32.mrb[0].mxu0
    %v2151 = vadd.f32 %v1994, %v2150
    %v2152 = vpop.f32.mrb[0].mxu0
    %2153 = vmatprep.mubr.f32.mxu0 %v2024
    %2154 = vmatmul.mubr.f32.gmra.mrb[0].mxu0 %v1955
    %v2155 = vpop.f32.mrb[0].mxu0
    %v2156 = vadd.f32 %v1994, %v2155
    %v2157 = vpop.f32.mrb[0].mxu0
    %2158 = vmatprep.mubr.f32.mxu0 %v2027
    %2159 = vmatmul.mubr.f32.gmra.mrb[0].mxu0 %v1957
    %v2160 = vpop.f32.mrb[0].mxu0
    %v2161 = vadd.f32 %v1994, %v2160
    %v2162 = vpop.f32.mrb[0].mxu0
    %2163 = vmatprep.mubr.f32.mxu0 %v2030
    %2164 = vmatmul.mubr.f32.gmra.mrb[0].mxu0 %v1959
    %v2165 = vpop.f32.mrb[0].mxu0
    %v2166 = vadd.f32 %v1994, %v2165
    %v2167 = vpop.f32.mrb[0].mxu0
    %2168 = vmatprep.mubr.f32.mxu0 %v2033
    %2169 = vmatmul.mubr.f32.gmra.mrb[0].mxu0 %v1961
    %v2170 = vpop.f32.mrb[0].mxu0
    %v2171 = vadd.f32 %v1994, %v2170
    %v2172 = vpop.f32.mrb[0].mxu0
    %2173 = vmatprep.mubr.f32.mxu0 %v2036
    %2174 = vmatmul.mubr.f32.gmra.mrb[0].mxu0 %v1963
    %v2175 = vpop.f32.mrb[0].mxu0
    %v2176 = vadd.f32 %v1994, %v2175
    %v2177 = vpop.f32.mrb[0].mxu0
    %2178 = vmatprep.mubr.f32.mxu0 %v2039
    %2179 = vmatmul.mubr.f32.gmra.mrb[0].mxu0 %v1965
    %v2180 = vpop.f32.mrb[0].mxu0
    %v2181 = vadd.f32 %v1994, %v2180
    %v2182 = vpop.f32.mrb[0].mxu0
    %2183 = vmatprep.mubr.f32.mxu0 %v2042
    %2184 = vmatmul.mubr.f32.gmra.mrb[0].mxu0 %v1967
    %v2185 = vpop.f32.mrb[0].mxu0
    %v2186 = vadd.f32 %v1994, %v2185
    %v2187 = vpop.f32.mrb[0].mxu0
    %2188 = vdwg.mxu0
    %v2189 = vadd.f32 %v2111, %v205
    %v2190 = vadd.f32 %v2116, %v206
    %v2191 = vadd.f32 %v2121, %v207
    %v2192 = vadd.f32 %v2126, %v208
    %v2193 = vadd.f32 %v2131, %v209
    %v2194 = vadd.f32 %v2136, %v210
    %v2195 = vadd.f32 %v2141, %v211
    %v2196 = vadd.f32 %v2146, %v212
    %v2197 = vadd.f32 %v2151, %v213
    %v2198 = vadd.f32 %v2156, %v214
    %v2199 = vadd.f32 %v2161, %v215
    %v2200 = vadd.f32 %v2166, %v216
    %v2201 = vadd.f32 %v2171, %v217
    %v2202 = vadd.f32 %v2176, %v218
    %v2203 = vadd.f32 %v2181, %v219
    %v2204 = vadd.f32 %v2186, %v220
    %v2205 = vmax.f32 %v2189, 0.0
    %v2206 = vmax.f32 %v2190, 0.0
    %v2207 = vmax.f32 %v2191, 0.0
    %v2208 = vmax.f32 %v2192, 0.0
    %v2209 = vmax.f32 %v2193, 0.0
    %v2210 = vmax.f32 %v2194, 0.0
    %v2211 = vmax.f32 %v2195, 0.0
    %v2212 = vmax.f32 %v2196, 0.0
    %v2213 = vmax.f32 %v2197, 0.0
    %v2214 = vmax.f32 %v2198, 0.0
    %v2215 = vmax.f32 %v2199, 0.0
    %v2216 = vmax.f32 %v2200, 0.0
    %v2217 = vmax.f32 %v2201, 0.0
    %v2218 = vmax.f32 %v2202, 0.0
    %v2219 = vmax.f32 %v2203, 0.0
    %v2220 = vmax.f32 %v2204, 0.0
    %v2221 = vmul.f32 %v2205, %v96
    %v2222 = vmul.f32 %v2206, %v96
    %v2223 = vmul.f32 %v2207, %v96
    %v2224 = vmul.f32 %v2208, %v96
    %v2225 = vmul.f32 %v2209, %v96
    %v2226 = vmul.f32 %v2210, %v96
    %v2227 = vmul.f32 %v2211, %v96
    %v2228 = vmul.f32 %v2212, %v96
    %v2229 = vmul.f32 %v2213, %v100
    %v2230 = vmul.f32 %v2214, %v100
    %v2231 = vmul.f32 %v2215, %v100
    %v2232 = vmul.f32 %v2216, %v100
    %v2233 = vmul.f32 %v2217, %v100
    %v2234 = vmul.f32 %v2218, %v100
    %v2235 = vmul.f32 %v2219, %v100
    %v2236 = vmul.f32 %v2220, %v100
    %2237 = vst.msk [vmem:[%s221 + $0x1] sm:$0xff] %vm27, %v2221
    %2238 = vst.msk [vmem:[%s221 + $0x11] sm:$0xff] %vm27, %v2222
    %2239 = vst.msk [vmem:[%s221 + $0x21] sm:$0xff] %vm27, %v2223
    %2240 = vst.msk [vmem:[%s221 + $0x31] sm:$0xff] %vm27, %v2224
    %2241 = vst.msk [vmem:[%s221 + $0x41] sm:$0xff] %vm27, %v2225
    %2242 = vst.msk [vmem:[%s221 + $0x51] sm:$0xff] %vm27, %v2226
    %2243 = vst.msk [vmem:[%s221 + $0x61] sm:$0xff] %vm27, %v2227
    %2244 = vst.msk [vmem:[%s221 + $0x71] sm:$0xff] %vm27, %v2228
    %2245 = vst.msk [vmem:[%s221 + $0xa1] sm:$0xff] %vm27, %v2229
    %2246 = vst.msk [vmem:[%s221 + $0xb1] sm:$0xff] %vm27, %v2230
    %2247 = vst.msk [vmem:[%s221 + $0xc1] sm:$0xff] %vm27, %v2231
    %2248 = vst.msk [vmem:[%s221 + $0xd1] sm:$0xff] %vm27, %v2232
    %2249 = vst.msk [vmem:[%s221 + $0xe1] sm:$0xff] %vm27, %v2233
    %2250 = vst.msk [vmem:[%s221 + $0xf1] sm:$0xff] %vm27, %v2234
    %2251 = vst.msk [vmem:[%s221 + $0x101] sm:$0xff] %vm27, %v2235
    %2252 = vst.msk [vmem:[%s221 + $0x111] sm:$0xff] %vm27, %v2236
    %v2253 = vld [vmem:[#allocation2] sm:$0xff]
    %v2254 = vld [vmem:[#allocation2 + $0x8] sm:$0x3]
    %v2255 = vld [vmem:[#allocation2 + $0x10] sm:$0xff]
    %v2256 = vld [vmem:[#allocation2 + $0x18] sm:$0x3]
    %v2257 = vld [vmem:[#allocation2 + $0x20] sm:$0xff]
    %v2258 = vld [vmem:[#allocation2 + $0x28] sm:$0x3]
    %v2259 = vld [vmem:[#allocation2 + $0x30] sm:$0xff]
    %v2260 = vld [vmem:[#allocation2 + $0x38] sm:$0x3]
    %v2261 = vld [vmem:[#allocation2 + $0x40] sm:$0xff]
    %v2262 = vld [vmem:[#allocation2 + $0x48] sm:$0x3]
    %v2263 = vld [vmem:[#allocation2 + $0x50] sm:$0xff]
    %v2264 = vld [vmem:[#allocation2 + $0x58] sm:$0x3]
    %v2265 = vld [vmem:[#allocation2 + $0x60] sm:$0xff]
    %v2266 = vld [vmem:[#allocation2 + $0x68] sm:$0x3]
    %v2267 = vld [vmem:[#allocation2 + $0x70] sm:$0xff]
    %v2268 = vld [vmem:[#allocation2 + $0x78] sm:$0x3]
    %v2269 = vld [vmem:[#allocation2 + $0x80] sm:$0xff]
    %v2270 = vld [vmem:[#allocation2 + $0x88] sm:$0x3]
    %v2271 = vld [vmem:[#allocation2 + $0x90] sm:$0xff]
    %v2272 = vld [vmem:[#allocation2 + $0x98] sm:$0x3]
    %v2273 = vld [vmem:[#allocation2 + $0xa0] sm:$0xff]
    %v2274 = vld [vmem:[#allocation2 + $0xa8] sm:$0x3]
    %v2275 = vld [vmem:[#allocation2 + $0xb0] sm:$0xff]
    %v2276 = vld [vmem:[#allocation2 + $0xb8] sm:$0x3]
    %v2277 = vld [vmem:[#allocation2 + $0xc0] sm:$0xff]
    %v2278 = vld [vmem:[#allocation2 + $0xc8] sm:$0x3]
    %v2279 = vld [vmem:[#allocation2 + $0xd0] sm:$0xff]
    %v2280 = vld [vmem:[#allocation2 + $0xd8] sm:$0x3]
    %v2281 = vld [vmem:[#allocation2 + $0xe0] sm:$0xff]
    %v2282 = vld [vmem:[#allocation2 + $0xe8] sm:$0x3]
    %v2283 = vld [vmem:[#allocation2 + $0xf0] sm:$0xff]
    %v2284 = vld [vmem:[#allocation2 + $0xf8] sm:$0x3]
    %v2285 = vld [vmem:[#allocation2 + $0x100] sm:$0xff]
    %v2286 = vld [vmem:[#allocation2 + $0x108] sm:$0x3]
    %v2287 = vld [vmem:[#allocation2 + $0x110] sm:$0xff]
    %v2288 = vld [vmem:[#allocation2 + $0x118] sm:$0x3]
    %v2289 = vld [vmem:[#allocation2 + $0x120] sm:$0xff]
    %v2290 = vld [vmem:[#allocation2 + $0x128] sm:$0x3]
    %v2291 = vld [vmem:[#allocation2 + $0x130] sm:$0xff]
    %v2292 = vld [vmem:[#allocation2 + $0x138] sm:$0x3]
    %2293 = vst.msk [vmem:[#allocation3] sm:$0xff] %vm27, %v2253
    %2294 = vst.msk [vmem:[#allocation3 + $0x10] sm:$0xff] %vm27, %v2255
    %2295 = vst.msk [vmem:[#allocation3 + $0x20] sm:$0xff] %vm27, %v2257
    %2296 = vst.msk [vmem:[#allocation3 + $0x30] sm:$0xff] %vm27, %v2259
    %2297 = vst.msk [vmem:[#allocation3 + $0x40] sm:$0xff] %vm27, %v2261
    %2298 = vst.msk [vmem:[#allocation3 + $0x50] sm:$0xff] %vm27, %v2263
    %2299 = vst.msk [vmem:[#allocation3 + $0x60] sm:$0xff] %vm27, %v2265
    %2300 = vst.msk [vmem:[#allocation3 + $0x70] sm:$0xff] %vm27, %v2267
    %2301 = vst.msk [vmem:[#allocation3 + $0x80] sm:$0xff] %vm27, %v2273
    %2302 = vst.msk [vmem:[#allocation3 + $0x90] sm:$0xff] %vm27, %v2275
    %2303 = vst.msk [vmem:[#allocation3 + $0xa0] sm:$0xff] %vm27, %v2277
    %2304 = vst.msk [vmem:[#allocation3 + $0xb0] sm:$0xff] %vm27, %v2279
    %2305 = vst.msk [vmem:[#allocation3 + $0xc0] sm:$0xff] %vm27, %v2281
    %2306 = vst.msk [vmem:[#allocation3 + $0xd0] sm:$0xff] %vm27, %v2283
    %2307 = vst.msk [vmem:[#allocation3 + $0xe0] sm:$0xff] %vm27, %v2285
    %2308 = vst.msk [vmem:[#allocation3 + $0xf0] sm:$0xff] %vm27, %v2287
    %v2341 = vrot.slane %v2253, 1
    %v2342 = vrot.slane %v2254, 1
    %v2343 = vsel %vm326, %v2341, %v2342
    %v2344 = vrot.slane %v2255, 1
    %v2345 = vrot.slane %v2256, 1
    %v2346 = vsel %vm326, %v2344, %v2345
    %v2347 = vrot.slane %v2257, 1
    %v2348 = vrot.slane %v2258, 1
    %v2349 = vsel %vm326, %v2347, %v2348
    %v2350 = vrot.slane %v2259, 1
    %v2351 = vrot.slane %v2260, 1
    %v2352 = vsel %vm326, %v2350, %v2351
    %v2353 = vrot.slane %v2261, 1
    %v2354 = vrot.slane %v2262, 1
    %v2355 = vsel %vm326, %v2353, %v2354
    %v2356 = vrot.slane %v2263, 1
    %v2357 = vrot.slane %v2264, 1
    %v2358 = vsel %vm326, %v2356, %v2357
    %v2359 = vrot.slane %v2265, 1
    %v2360 = vrot.slane %v2266, 1
    %v2361 = vsel %vm326, %v2359, %v2360
    %v2362 = vrot.slane %v2267, 1
    %v2363 = vrot.slane %v2268, 1
    %v2364 = vsel %vm326, %v2362, %v2363
    %v2365 = vrot.slane %v2273, 1
    %v2366 = vrot.slane %v2274, 1
    %v2367 = vsel %vm326, %v2365, %v2366
    %v2368 = vrot.slane %v2275, 1
    %v2369 = vrot.slane %v2276, 1
    %v2370 = vsel %vm326, %v2368, %v2369
    %v2371 = vrot.slane %v2277, 1
    %v2372 = vrot.slane %v2278, 1
    %v2373 = vsel %vm326, %v2371, %v2372
    %v2374 = vrot.slane %v2279, 1
    %v2375 = vrot.slane %v2280, 1
    %v2376 = vsel %vm326, %v2374, %v2375
    %v2377 = vrot.slane %v2281, 1
    %v2378 = vrot.slane %v2282, 1
    %v2379 = vsel %vm326, %v2377, %v2378
    %v2380 = vrot.slane %v2283, 1
    %v2381 = vrot.slane %v2284, 1
    %v2382 = vsel %vm326, %v2380, %v2381
    %v2383 = vrot.slane %v2285, 1
    %v2384 = vrot.slane %v2286, 1
    %v2385 = vsel %vm326, %v2383, %v2384
    %v2386 = vrot.slane %v2287, 1
    %v2387 = vrot.slane %v2288, 1
    %v2388 = vsel %vm326, %v2386, %v2387
    %2389 = vrot.lane.b32.xlu0 %v2343, 16
    %v2390 = vpop.permute.xlu0 %2389
    %2391 = vrot.lane.b32.xlu0 %v2346, 16
    %v2392 = vpop.permute.xlu0 %2391
    %2393 = vrot.lane.b32.xlu0 %v2349, 16
    %v2394 = vpop.permute.xlu0 %2393
    %2395 = vrot.lane.b32.xlu0 %v2352, 16
    %v2396 = vpop.permute.xlu0 %2395
    %2397 = vrot.lane.b32.xlu0 %v2355, 16
    %v2398 = vpop.permute.xlu0 %2397
    %2399 = vrot.lane.b32.xlu0 %v2358, 16
    %v2400 = vpop.permute.xlu0 %2399
    %2401 = vrot.lane.b32.xlu0 %v2361, 16
    %v2402 = vpop.permute.xlu0 %2401
    %2403 = vrot.lane.b32.xlu0 %v2364, 16
    %v2404 = vpop.permute.xlu0 %2403
    %2405 = vrot.lane.b32.xlu0 %v2367, 16
    %v2406 = vpop.permute.xlu0 %2405
    %2407 = vrot.lane.b32.xlu0 %v2370, 16
    %v2408 = vpop.permute.xlu0 %2407
    %2409 = vrot.lane.b32.xlu0 %v2373, 16
    %v2410 = vpop.permute.xlu0 %2409
    %2411 = vrot.lane.b32.xlu0 %v2376, 16
    %v2412 = vpop.permute.xlu0 %2411
    %2413 = vrot.lane.b32.xlu0 %v2379, 16
    %v2414 = vpop.permute.xlu0 %2413
    %2415 = vrot.lane.b32.xlu0 %v2382, 16
    %v2416 = vpop.permute.xlu0 %2415
    %2417 = vrot.lane.b32.xlu0 %v2385, 16
    %v2418 = vpop.permute.xlu0 %2417
    %2419 = vrot.lane.b32.xlu0 %v2388, 16
    %v2420 = vpop.permute.xlu0 %2419
    %2437 = vst.msk [vmem:[#allocation3] sm:$0xff] %vm423, %v2390
    %2438 = vst.msk [vmem:[#allocation3 + $0x10] sm:$0xff] %vm423, %v2392
    %2439 = vst.msk [vmem:[#allocation3 + $0x20] sm:$0xff] %vm423, %v2394
    %2440 = vst.msk [vmem:[#allocation3 + $0x30] sm:$0xff] %vm423, %v2396
    %2441 = vst.msk [vmem:[#allocation3 + $0x40] sm:$0xff] %vm423, %v2398
    %2442 = vst.msk [vmem:[#allocation3 + $0x50] sm:$0xff] %vm423, %v2400
    %2443 = vst.msk [vmem:[#allocation3 + $0x60] sm:$0xff] %vm423, %v2402
    %2444 = vst.msk [vmem:[#allocation3 + $0x70] sm:$0xff] %vm423, %v2404
    %2445 = vst.msk [vmem:[#allocation3 + $0x80] sm:$0xff] %vm423, %v2406
    %2446 = vst.msk [vmem:[#allocation3 + $0x90] sm:$0xff] %vm423, %v2408
    %2447 = vst.msk [vmem:[#allocation3 + $0xa0] sm:$0xff] %vm423, %v2410
    %2448 = vst.msk [vmem:[#allocation3 + $0xb0] sm:$0xff] %vm423, %v2412
    %2449 = vst.msk [vmem:[#allocation3 + $0xc0] sm:$0xff] %vm423, %v2414
    %2450 = vst.msk [vmem:[#allocation3 + $0xd0] sm:$0xff] %vm423, %v2416
    %2451 = vst.msk [vmem:[#allocation3 + $0xe0] sm:$0xff] %vm423, %v2418
    %2452 = vst.msk [vmem:[#allocation3 + $0xf0] sm:$0xff] %vm423, %v2420
    %v2453 = vrot.slane %v2253, 2
    %v2454 = vrot.slane %v2254, 2
    %v2455 = vsel %vm440, %v2453, %v2454
    %v2456 = vrot.slane %v2255, 2
    %v2457 = vrot.slane %v2256, 2
    %v2458 = vsel %vm440, %v2456, %v2457
    %v2459 = vrot.slane %v2257, 2
    %v2460 = vrot.slane %v2258, 2
    %v2461 = vsel %vm440, %v2459, %v2460
    %v2462 = vrot.slane %v2259, 2
    %v2463 = vrot.slane %v2260, 2
    %v2464 = vsel %vm440, %v2462, %v2463
    %v2465 = vrot.slane %v2261, 2
    %v2466 = vrot.slane %v2262, 2
    %v2467 = vsel %vm440, %v2465, %v2466
    %v2468 = vrot.slane %v2263, 2
    %v2469 = vrot.slane %v2264, 2
    %v2470 = vsel %vm440, %v2468, %v2469
    %v2471 = vrot.slane %v2265, 2
    %v2472 = vrot.slane %v2266, 2
    %v2473 = vsel %vm440, %v2471, %v2472
    %v2474 = vrot.slane %v2267, 2
    %v2475 = vrot.slane %v2268, 2
    %v2476 = vsel %vm440, %v2474, %v2475
    %v2477 = vrot.slane %v2273, 2
    %v2478 = vrot.slane %v2274, 2
    %v2479 = vsel %vm440, %v2477, %v2478
    %v2480 = vrot.slane %v2275, 2
    %v2481 = vrot.slane %v2276, 2
    %v2482 = vsel %vm440, %v2480, %v2481
    %v2483 = vrot.slane %v2277, 2
    %v2484 = vrot.slane %v2278, 2
    %v2485 = vsel %vm440, %v2483, %v2484
    %v2486 = vrot.slane %v2279, 2
    %v2487 = vrot.slane %v2280, 2
    %v2488 = vsel %vm440, %v2486, %v2487
    %v2489 = vrot.slane %v2281, 2
    %v2490 = vrot.slane %v2282, 2
    %v2491 = vsel %vm440, %v2489, %v2490
    %v2492 = vrot.slane %v2283, 2
    %v2493 = vrot.slane %v2284, 2
    %v2494 = vsel %vm440, %v2492, %v2493
    %v2495 = vrot.slane %v2285, 2
    %v2496 = vrot.slane %v2286, 2
    %v2497 = vsel %vm440, %v2495, %v2496
    %v2498 = vrot.slane %v2287, 2
    %v2499 = vrot.slane %v2288, 2
    %v2500 = vsel %vm440, %v2498, %v2499
    %2501 = vrot.lane.b32.xlu0 %v2455, 32
    %v2502 = vpop.permute.xlu0 %2501
    %2503 = vrot.lane.b32.xlu0 %v2458, 32
    %v2504 = vpop.permute.xlu0 %2503
    %2505 = vrot.lane.b32.xlu0 %v2461, 32
    %v2506 = vpop.permute.xlu0 %2505
    %2507 = vrot.lane.b32.xlu0 %v2464, 32
    %v2508 = vpop.permute.xlu0 %2507
    %2509 = vrot.lane.b32.xlu0 %v2467, 32
    %v2510 = vpop.permute.xlu0 %2509
    %2511 = vrot.lane.b32.xlu0 %v2470, 32
    %v2512 = vpop.permute.xlu0 %2511
    %2513 = vrot.lane.b32.xlu0 %v2473, 32
    %v2514 = vpop.permute.xlu0 %2513
    %2515 = vrot.lane.b32.xlu0 %v2476, 32
    %v2516 = vpop.permute.xlu0 %2515
    %2517 = vrot.lane.b32.xlu0 %v2479, 32
    %v2518 = vpop.permute.xlu0 %2517
    %2519 = vrot.lane.b32.xlu0 %v2482, 32
    %v2520 = vpop.permute.xlu0 %2519
    %2521 = vrot.lane.b32.xlu0 %v2485, 32
    %v2522 = vpop.permute.xlu0 %2521
    %2523 = vrot.lane.b32.xlu0 %v2488, 32
    %v2524 = vpop.permute.xlu0 %2523
    %2525 = vrot.lane.b32.xlu0 %v2491, 32
    %v2526 = vpop.permute.xlu0 %2525
    %2527 = vrot.lane.b32.xlu0 %v2494, 32
    %v2528 = vpop.permute.xlu0 %2527
    %2529 = vrot.lane.b32.xlu0 %v2497, 32
    %v2530 = vpop.permute.xlu0 %2529
    %2531 = vrot.lane.b32.xlu0 %v2500, 32
    %v2532 = vpop.permute.xlu0 %2531
    %2549 = vst.msk [vmem:[#allocation3] sm:$0xff] %vm537, %v2502
    %2550 = vst.msk [vmem:[#allocation3 + $0x10] sm:$0xff] %vm537, %v2504
    %2551 = vst.msk [vmem:[#allocation3 + $0x20] sm:$0xff] %vm537, %v2506
    %2552 = vst.msk [vmem:[#allocation3 + $0x30] sm:$0xff] %vm537, %v2508
    %2553 = vst.msk [vmem:[#allocation3 + $0x40] sm:$0xff] %vm537, %v2510
    %2554 = vst.msk [vmem:[#allocation3 + $0x50] sm:$0xff] %vm537, %v2512
    %2555 = vst.msk [vmem:[#allocation3 + $0x60] sm:$0xff] %vm537, %v2514
    %2556 = vst.msk [vmem:[#allocation3 + $0x70] sm:$0xff] %vm537, %v2516
    %2557 = vst.msk [vmem:[#allocation3 + $0x80] sm:$0xff] %vm537, %v2518
    %2558 = vst.msk [vmem:[#allocation3 + $0x90] sm:$0xff] %vm537, %v2520
    %2559 = vst.msk [vmem:[#allocation3 + $0xa0] sm:$0xff] %vm537, %v2522
    %2560 = vst.msk [vmem:[#allocation3 + $0xb0] sm:$0xff] %vm537, %v2524
    %2561 = vst.msk [vmem:[#allocation3 + $0xc0] sm:$0xff] %vm537, %v2526
    %2562 = vst.msk [vmem:[#allocation3 + $0xd0] sm:$0xff] %vm537, %v2528
    %2563 = vst.msk [vmem:[#allocation3 + $0xe0] sm:$0xff] %vm537, %v2530
    %2564 = vst.msk [vmem:[#allocation3 + $0xf0] sm:$0xff] %vm537, %v2532
    %2567 = vrot.lane.b32.xlu0 %v2255, 48
    %v2568 = vpop.permute.xlu0 %2567
    %2569 = vrot.lane.b32.xlu0 %v2257, 48
    %v2570 = vpop.permute.xlu0 %2569
    %2571 = vrot.lane.b32.xlu0 %v2259, 48
    %v2572 = vpop.permute.xlu0 %2571
    %2573 = vrot.lane.b32.xlu0 %v2261, 48
    %v2574 = vpop.permute.xlu0 %2573
    %2575 = vrot.lane.b32.xlu0 %v2263, 48
    %v2576 = vpop.permute.xlu0 %2575
    %2577 = vrot.lane.b32.xlu0 %v2265, 48
    %v2578 = vpop.permute.xlu0 %2577
    %2579 = vrot.lane.b32.xlu0 %v2267, 48
    %v2580 = vpop.permute.xlu0 %2579
    %2581 = vrot.lane.b32.xlu0 %v2269, 48
    %v2582 = vpop.permute.xlu0 %2581
    %2583 = vrot.lane.b32.xlu0 %v2275, 48
    %v2584 = vpop.permute.xlu0 %2583
    %2585 = vrot.lane.b32.xlu0 %v2277, 48
    %v2586 = vpop.permute.xlu0 %2585
    %2587 = vrot.lane.b32.xlu0 %v2279, 48
    %v2588 = vpop.permute.xlu0 %2587
    %2589 = vrot.lane.b32.xlu0 %v2281, 48
    %v2590 = vpop.permute.xlu0 %2589
    %2591 = vrot.lane.b32.xlu0 %v2283, 48
    %v2592 = vpop.permute.xlu0 %2591
    %2593 = vrot.lane.b32.xlu0 %v2285, 48
    %v2594 = vpop.permute.xlu0 %2593
    %2595 = vrot.lane.b32.xlu0 %v2287, 48
    %v2596 = vpop.permute.xlu0 %2595
    %2597 = vrot.lane.b32.xlu0 %v2289, 48
    %v2598 = vpop.permute.xlu0 %2597
    %2615 = vst.msk [vmem:[#allocation3] sm:$0xff] %vm604, %v2568
    %2616 = vst.msk [vmem:[#allocation3 + $0x10] sm:$0xff] %vm604, %v2570
    %2617 = vst.msk [vmem:[#allocation3 + $0x20] sm:$0xff] %vm604, %v2572
    %2618 = vst.msk [vmem:[#allocation3 + $0x30] sm:$0xff] %vm604, %v2574
    %2619 = vst.msk [vmem:[#allocation3 + $0x40] sm:$0xff] %vm604, %v2576
    %2620 = vst.msk [vmem:[#allocation3 + $0x50] sm:$0xff] %vm604, %v2578
    %2621 = vst.msk [vmem:[#allocation3 + $0x60] sm:$0xff] %vm604, %v2580
    %2622 = vst.msk [vmem:[#allocation3 + $0x70] sm:$0xff] %vm604, %v2582
    %2623 = vst.msk [vmem:[#allocation3 + $0x80] sm:$0xff] %vm604, %v2584
    %2624 = vst.msk [vmem:[#allocation3 + $0x90] sm:$0xff] %vm604, %v2586
    %2625 = vst.msk [vmem:[#allocation3 + $0xa0] sm:$0xff] %vm604, %v2588
    %2626 = vst.msk [vmem:[#allocation3 + $0xb0] sm:$0xff] %vm604, %v2590
    %2627 = vst.msk [vmem:[#allocation3 + $0xc0] sm:$0xff] %vm604, %v2592
    %2628 = vst.msk [vmem:[#allocation3 + $0xd0] sm:$0xff] %vm604, %v2594
    %2629 = vst.msk [vmem:[#allocation3 + $0xe0] sm:$0xff] %vm604, %v2596
    %2630 = vst.msk [vmem:[#allocation3 + $0xf0] sm:$0xff] %vm604, %v2598
    %v2633 = vrot.slane %v2269, 1
    %v2634 = vrot.slane %v2270, 1
    %v2635 = vsel %vm326, %v2633, %v2634
    %v2636 = vrot.slane %v2289, 1
    %v2637 = vrot.slane %v2290, 1
    %v2638 = vsel %vm326, %v2636, %v2637
    %2639 = vrot.lane.b32.xlu0 %v2346, 64
    %v2640 = vpop.permute.xlu0 %2639
    %2641 = vrot.lane.b32.xlu0 %v2349, 64
    %v2642 = vpop.permute.xlu0 %2641
    %2643 = vrot.lane.b32.xlu0 %v2352, 64
    %v2644 = vpop.permute.xlu0 %2643
    %2645 = vrot.lane.b32.xlu0 %v2355, 64
    %v2646 = vpop.permute.xlu0 %2645
    %2647 = vrot.lane.b32.xlu0 %v2358, 64
    %v2648 = vpop.permute.xlu0 %2647
    %2649 = vrot.lane.b32.xlu0 %v2361, 64
    %v2650 = vpop.permute.xlu0 %2649
    %2651 = vrot.lane.b32.xlu0 %v2364, 64
    %v2652 = vpop.permute.xlu0 %2651
    %2653 = vrot.lane.b32.xlu0 %v2635, 64
    %v2654 = vpop.permute.xlu0 %2653
    %2655 = vrot.lane.b32.xlu0 %v2370, 64
    %v2656 = vpop.permute.xlu0 %2655
    %2657 = vrot.lane.b32.xlu0 %v2373, 64
    %v2658 = vpop.permute.xlu0 %2657
    %2659 = vrot.lane.b32.xlu0 %v2376, 64
    %v2660 = vpop.permute.xlu0 %2659
    %2661 = vrot.lane.b32.xlu0 %v2379, 64
    %v2662 = vpop.permute.xlu0 %2661
    %2663 = vrot.lane.b32.xlu0 %v2382, 64
    %v2664 = vpop.permute.xlu0 %2663
    %2665 = vrot.lane.b32.xlu0 %v2385, 64
    %v2666 = vpop.permute.xlu0 %2665
    %2667 = vrot.lane.b32.xlu0 %v2388, 64
    %v2668 = vpop.permute.xlu0 %2667
    %2669 = vrot.lane.b32.xlu0 %v2638, 64
    %v2670 = vpop.permute.xlu0 %2669
    %2687 = vst.msk [vmem:[#allocation3] sm:$0xff] %vm677, %v2640
    %2688 = vst.msk [vmem:[#allocation3 + $0x10] sm:$0xff] %vm677, %v2642
    %2689 = vst.msk [vmem:[#allocation3 + $0x20] sm:$0xff] %vm677, %v2644
    %2690 = vst.msk [vmem:[#allocation3 + $0x30] sm:$0xff] %vm677, %v2646
    %2691 = vst.msk [vmem:[#allocation3 + $0x40] sm:$0xff] %vm677, %v2648
    %2692 = vst.msk [vmem:[#allocation3 + $0x50] sm:$0xff] %vm677, %v2650
    %2693 = vst.msk [vmem:[#allocation3 + $0x60] sm:$0xff] %vm677, %v2652
    %2694 = vst.msk [vmem:[#allocation3 + $0x70] sm:$0xff] %vm677, %v2654
    %2695 = vst.msk [vmem:[#allocation3 + $0x80] sm:$0xff] %vm677, %v2656
    %2696 = vst.msk [vmem:[#allocation3 + $0x90] sm:$0xff] %vm677, %v2658
    %2697 = vst.msk [vmem:[#allocation3 + $0xa0] sm:$0xff] %vm677, %v2660
    %2698 = vst.msk [vmem:[#allocation3 + $0xb0] sm:$0xff] %vm677, %v2662
    %2699 = vst.msk [vmem:[#allocation3 + $0xc0] sm:$0xff] %vm677, %v2664
    %2700 = vst.msk [vmem:[#allocation3 + $0xd0] sm:$0xff] %vm677, %v2666
    %2701 = vst.msk [vmem:[#allocation3 + $0xe0] sm:$0xff] %vm677, %v2668
    %2702 = vst.msk [vmem:[#allocation3 + $0xf0] sm:$0xff] %vm677, %v2670
    %v2703 = vrot.slane %v2269, 2
    %v2704 = vrot.slane %v2270, 2
    %v2705 = vsel %vm440, %v2703, %v2704
    %v2706 = vrot.slane %v2289, 2
    %v2707 = vrot.slane %v2290, 2
    %v2708 = vsel %vm440, %v2706, %v2707
    %2709 = vrot.lane.b32.xlu0 %v2458, 80
    %v2710 = vpop.permute.xlu0 %2709
    %2711 = vrot.lane.b32.xlu0 %v2461, 80
    %v2712 = vpop.permute.xlu0 %2711
    %2713 = vrot.lane.b32.xlu0 %v2464, 80
    %v2714 = vpop.permute.xlu0 %2713
    %2715 = vrot.lane.b32.xlu0 %v2467, 80
    %v2716 = vpop.permute.xlu0 %2715
    %2717 = vrot.lane.b32.xlu0 %v2470, 80
    %v2718 = vpop.permute.xlu0 %2717
    %2719 = vrot.lane.b32.xlu0 %v2473, 80
    %v2720 = vpop.permute.xlu0 %2719
    %2721 = vrot.lane.b32.xlu0 %v2476, 80
    %v2722 = vpop.permute.xlu0 %2721
    %2723 = vrot.lane.b32.xlu0 %v2705, 80
    %v2724 = vpop.permute.xlu0 %2723
    %2725 = vrot.lane.b32.xlu0 %v2482, 80
    %v2726 = vpop.permute.xlu0 %2725
    %2727 = vrot.lane.b32.xlu0 %v2485, 80
    %v2728 = vpop.permute.xlu0 %2727
    %2729 = vrot.lane.b32.xlu0 %v2488, 80
    %v2730 = vpop.permute.xlu0 %2729
    %2731 = vrot.lane.b32.xlu0 %v2491, 80
    %v2732 = vpop.permute.xlu0 %2731
    %2733 = vrot.lane.b32.xlu0 %v2494, 80
    %v2734 = vpop.permute.xlu0 %2733
    %2735 = vrot.lane.b32.xlu0 %v2497, 80
    %v2736 = vpop.permute.xlu0 %2735
    %2737 = vrot.lane.b32.xlu0 %v2500, 80
    %v2738 = vpop.permute.xlu0 %2737
    %2739 = vrot.lane.b32.xlu0 %v2708, 80
    %v2740 = vpop.permute.xlu0 %2739
    %2757 = vst.msk [vmem:[#allocation3] sm:$0xff] %vm748, %v2710
    %2758 = vst.msk [vmem:[#allocation3 + $0x10] sm:$0xff] %vm748, %v2712
    %2759 = vst.msk [vmem:[#allocation3 + $0x20] sm:$0xff] %vm748, %v2714
    %2760 = vst.msk [vmem:[#allocation3 + $0x30] sm:$0xff] %vm748, %v2716
    %2761 = vst.msk [vmem:[#allocation3 + $0x40] sm:$0xff] %vm748, %v2718
    %2762 = vst.msk [vmem:[#allocation3 + $0x50] sm:$0xff] %vm748, %v2720
    %2763 = vst.msk [vmem:[#allocation3 + $0x60] sm:$0xff] %vm748, %v2722
    %2764 = vst.msk [vmem:[#allocation3 + $0x70] sm:$0xff] %vm748, %v2724
    %2765 = vst.msk [vmem:[#allocation3 + $0x80] sm:$0xff] %vm748, %v2726
    %2766 = vst.msk [vmem:[#allocation3 + $0x90] sm:$0xff] %vm748, %v2728
    %2767 = vst.msk [vmem:[#allocation3 + $0xa0] sm:$0xff] %vm748, %v2730
    %2768 = vst.msk [vmem:[#allocation3 + $0xb0] sm:$0xff] %vm748, %v2732
    %2769 = vst.msk [vmem:[#allocation3 + $0xc0] sm:$0xff] %vm748, %v2734
    %2770 = vst.msk [vmem:[#allocation3 + $0xd0] sm:$0xff] %vm748, %v2736
    %2771 = vst.msk [vmem:[#allocation3 + $0xe0] sm:$0xff] %vm748, %v2738
    %2772 = vst.msk [vmem:[#allocation3 + $0xf0] sm:$0xff] %vm748, %v2740
    %2775 = vrot.lane.b32.xlu0 %v2257, 96
    %v2776 = vpop.permute.xlu0 %2775
    %2777 = vrot.lane.b32.xlu0 %v2259, 96
    %v2778 = vpop.permute.xlu0 %2777
    %2779 = vrot.lane.b32.xlu0 %v2261, 96
    %v2780 = vpop.permute.xlu0 %2779
    %2781 = vrot.lane.b32.xlu0 %v2263, 96
    %v2782 = vpop.permute.xlu0 %2781
    %2783 = vrot.lane.b32.xlu0 %v2265, 96
    %v2784 = vpop.permute.xlu0 %2783
    %2785 = vrot.lane.b32.xlu0 %v2267, 96
    %v2786 = vpop.permute.xlu0 %2785
    %2787 = vrot.lane.b32.xlu0 %v2269, 96
    %v2788 = vpop.permute.xlu0 %2787
    %2789 = vrot.lane.b32.xlu0 %v2271, 96
    %v2790 = vpop.permute.xlu0 %2789
    %2791 = vrot.lane.b32.xlu0 %v2277, 96
    %v2792 = vpop.permute.xlu0 %2791
    %2793 = vrot.lane.b32.xlu0 %v2279, 96
    %v2794 = vpop.permute.xlu0 %2793
    %2795 = vrot.lane.b32.xlu0 %v2281, 96
    %v2796 = vpop.permute.xlu0 %2795
    %2797 = vrot.lane.b32.xlu0 %v2283, 96
    %v2798 = vpop.permute.xlu0 %2797
    %2799 = vrot.lane.b32.xlu0 %v2285, 96
    %v2800 = vpop.permute.xlu0 %2799
    %2801 = vrot.lane.b32.xlu0 %v2287, 96
    %v2802 = vpop.permute.xlu0 %2801
    %2803 = vrot.lane.b32.xlu0 %v2289, 96
    %v2804 = vpop.permute.xlu0 %2803
    %2805 = vrot.lane.b32.xlu0 %v2291, 96
    %v2806 = vpop.permute.xlu0 %2805
    %2823 = vst.msk [vmem:[#allocation3] sm:$0xff] %vm815, %v2776
    %2824 = vst.msk [vmem:[#allocation3 + $0x10] sm:$0xff] %vm815, %v2778
    %2825 = vst.msk [vmem:[#allocation3 + $0x20] sm:$0xff] %vm815, %v2780
    %2826 = vst.msk [vmem:[#allocation3 + $0x30] sm:$0xff] %vm815, %v2782
    %2827 = vst.msk [vmem:[#allocation3 + $0x40] sm:$0xff] %vm815, %v2784
    %2828 = vst.msk [vmem:[#allocation3 + $0x50] sm:$0xff] %vm815, %v2786
    %2829 = vst.msk [vmem:[#allocation3 + $0x60] sm:$0xff] %vm815, %v2788
    %2830 = vst.msk [vmem:[#allocation3 + $0x70] sm:$0xff] %vm815, %v2790
    %2831 = vst.msk [vmem:[#allocation3 + $0x80] sm:$0xff] %vm815, %v2792
    %2832 = vst.msk [vmem:[#allocation3 + $0x90] sm:$0xff] %vm815, %v2794
    %2833 = vst.msk [vmem:[#allocation3 + $0xa0] sm:$0xff] %vm815, %v2796
    %2834 = vst.msk [vmem:[#allocation3 + $0xb0] sm:$0xff] %vm815, %v2798
    %2835 = vst.msk [vmem:[#allocation3 + $0xc0] sm:$0xff] %vm815, %v2800
    %2836 = vst.msk [vmem:[#allocation3 + $0xd0] sm:$0xff] %vm815, %v2802
    %2837 = vst.msk [vmem:[#allocation3 + $0xe0] sm:$0xff] %vm815, %v2804
    %2838 = vst.msk [vmem:[#allocation3 + $0xf0] sm:$0xff] %vm815, %v2806
    %v2841 = vrot.slane %v2271, 1
    %v2842 = vrot.slane %v2272, 1
    %v2843 = vsel %vm326, %v2841, %v2842
    %v2844 = vrot.slane %v2291, 1
    %v2845 = vrot.slane %v2292, 1
    %v2846 = vsel %vm326, %v2844, %v2845
    %2847 = vrot.lane.b32.xlu0 %v2349, 112
    %v2848 = vpop.permute.xlu0 %2847
    %2849 = vrot.lane.b32.xlu0 %v2352, 112
    %v2850 = vpop.permute.xlu0 %2849
    %2851 = vrot.lane.b32.xlu0 %v2355, 112
    %v2852 = vpop.permute.xlu0 %2851
    %2853 = vrot.lane.b32.xlu0 %v2358, 112
    %v2854 = vpop.permute.xlu0 %2853
    %2855 = vrot.lane.b32.xlu0 %v2361, 112
    %v2856 = vpop.permute.xlu0 %2855
    %2857 = vrot.lane.b32.xlu0 %v2364, 112
    %v2858 = vpop.permute.xlu0 %2857
    %2859 = vrot.lane.b32.xlu0 %v2635, 112
    %v2860 = vpop.permute.xlu0 %2859
    %2861 = vrot.lane.b32.xlu0 %v2843, 112
    %v2862 = vpop.permute.xlu0 %2861
    %2863 = vrot.lane.b32.xlu0 %v2373, 112
    %v2864 = vpop.permute.xlu0 %2863
    %2865 = vrot.lane.b32.xlu0 %v2376, 112
    %v2866 = vpop.permute.xlu0 %2865
    %2867 = vrot.lane.b32.xlu0 %v2379, 112
    %v2868 = vpop.permute.xlu0 %2867
    %2869 = vrot.lane.b32.xlu0 %v2382, 112
    %v2870 = vpop.permute.xlu0 %2869
    %2871 = vrot.lane.b32.xlu0 %v2385, 112
    %v2872 = vpop.permute.xlu0 %2871
    %2873 = vrot.lane.b32.xlu0 %v2388, 112
    %v2874 = vpop.permute.xlu0 %2873
    %2875 = vrot.lane.b32.xlu0 %v2638, 112
    %v2876 = vpop.permute.xlu0 %2875
    %2877 = vrot.lane.b32.xlu0 %v2846, 112
    %v2878 = vpop.permute.xlu0 %2877
    %2895 = vst.msk [vmem:[#allocation3] sm:$0xff] %vm888, %v2848
    %2896 = vst.msk [vmem:[#allocation3 + $0x10] sm:$0xff] %vm888, %v2850
    %2897 = vst.msk [vmem:[#allocation3 + $0x20] sm:$0xff] %vm888, %v2852
    %2898 = vst.msk [vmem:[#allocation3 + $0x30] sm:$0xff] %vm888, %v2854
    %2899 = vst.msk [vmem:[#allocation3 + $0x40] sm:$0xff] %vm888, %v2856
    %2900 = vst.msk [vmem:[#allocation3 + $0x50] sm:$0xff] %vm888, %v2858
    %2901 = vst.msk [vmem:[#allocation3 + $0x60] sm:$0xff] %vm888, %v2860
    %2902 = vst.msk [vmem:[#allocation3 + $0x70] sm:$0xff] %vm888, %v2862
    %2903 = vst.msk [vmem:[#allocation3 + $0x80] sm:$0xff] %vm888, %v2864
    %2904 = vst.msk [vmem:[#allocation3 + $0x90] sm:$0xff] %vm888, %v2866
    %2905 = vst.msk [vmem:[#allocation3 + $0xa0] sm:$0xff] %vm888, %v2868
    %2906 = vst.msk [vmem:[#allocation3 + $0xb0] sm:$0xff] %vm888, %v2870
    %2907 = vst.msk [vmem:[#allocation3 + $0xc0] sm:$0xff] %vm888, %v2872
    %2908 = vst.msk [vmem:[#allocation3 + $0xd0] sm:$0xff] %vm888, %v2874
    %2909 = vst.msk [vmem:[#allocation3 + $0xe0] sm:$0xff] %vm888, %v2876
    %2910 = vst.msk [vmem:[#allocation3 + $0xf0] sm:$0xff] %vm888, %v2878
    %v2911 = vrot.slane %v2271, 2
    %v2912 = vrot.slane %v2272, 2
    %v2913 = vsel %vm440, %v2911, %v2912
    %v2914 = vrot.slane %v2291, 2
    %v2915 = vrot.slane %v2292, 2
    %v2916 = vsel %vm440, %v2914, %v2915
    %2933 = vst.msk [vmem:[#allocation3 + $0x8] sm:$0xff] %vm27, %v2461
    %2934 = vst.msk [vmem:[#allocation3 + $0x18] sm:$0xff] %vm27, %v2464
    %2935 = vst.msk [vmem:[#allocation3 + $0x28] sm:$0xff] %vm27, %v2467
    %2936 = vst.msk [vmem:[#allocation3 + $0x38] sm:$0xff] %vm27, %v2470
    %2937 = vst.msk [vmem:[#allocation3 + $0x48] sm:$0xff] %vm27, %v2473
    %2938 = vst.msk [vmem:[#allocation3 + $0x58] sm:$0xff] %vm27, %v2476
    %2939 = vst.msk [vmem:[#allocation3 + $0x68] sm:$0xff] %vm27, %v2705
    %2940 = vst.msk [vmem:[#allocation3 + $0x78] sm:$0xff] %vm27, %v2913
    %2941 = vst.msk [vmem:[#allocation3 + $0x88] sm:$0xff] %vm27, %v2485
    %2942 = vst.msk [vmem:[#allocation3 + $0x98] sm:$0xff] %vm27, %v2488
    %2943 = vst.msk [vmem:[#allocation3 + $0xa8] sm:$0xff] %vm27, %v2491
    %2944 = vst.msk [vmem:[#allocation3 + $0xb8] sm:$0xff] %vm27, %v2494
    %2945 = vst.msk [vmem:[#allocation3 + $0xc8] sm:$0xff] %vm27, %v2497
    %2946 = vst.msk [vmem:[#allocation3 + $0xd8] sm:$0xff] %vm27, %v2500
    %2947 = vst.msk [vmem:[#allocation3 + $0xe8] sm:$0xff] %vm27, %v2708
    %2948 = vst.msk [vmem:[#allocation3 + $0xf8] sm:$0xff] %vm27, %v2916
    %v2949 = vld [vmem:[#allocation3] sm:$0xff]
    %v2950 = vld [vmem:[#allocation3 + $0x8] sm:$0xff]
    %v2951 = vld [vmem:[#allocation3 + $0x10] sm:$0xff]
    %v2952 = vld [vmem:[#allocation3 + $0x18] sm:$0xff]
    %v2953 = vld [vmem:[#allocation3 + $0x20] sm:$0xff]
    %v2954 = vld [vmem:[#allocation3 + $0x28] sm:$0xff]
    %v2955 = vld [vmem:[#allocation3 + $0x30] sm:$0xff]
    %v2956 = vld [vmem:[#allocation3 + $0x38] sm:$0xff]
    %v2957 = vld [vmem:[#allocation3 + $0x40] sm:$0xff]
    %v2958 = vld [vmem:[#allocation3 + $0x48] sm:$0xff]
    %v2959 = vld [vmem:[#allocation3 + $0x50] sm:$0xff]
    %v2960 = vld [vmem:[#allocation3 + $0x58] sm:$0xff]
    %v2961 = vld [vmem:[#allocation3 + $0x60] sm:$0xff]
    %v2962 = vld [vmem:[#allocation3 + $0x68] sm:$0xff]
    %v2963 = vld [vmem:[#allocation3 + $0x70] sm:$0xff]
    %v2964 = vld [vmem:[#allocation3 + $0x78] sm:$0xff]
    %v2965 = vld [vmem:[#allocation3 + $0x80] sm:$0xff]
    %v2966 = vld [vmem:[#allocation3 + $0x88] sm:$0xff]
    %v2967 = vld [vmem:[#allocation3 + $0x90] sm:$0xff]
    %v2968 = vld [vmem:[#allocation3 + $0x98] sm:$0xff]
    %v2969 = vld [vmem:[#allocation3 + $0xa0] sm:$0xff]
    %v2970 = vld [vmem:[#allocation3 + $0xa8] sm:$0xff]
    %v2971 = vld [vmem:[#allocation3 + $0xb0] sm:$0xff]
    %v2972 = vld [vmem:[#allocation3 + $0xb8] sm:$0xff]
    %v2973 = vld [vmem:[#allocation3 + $0xc0] sm:$0xff]
    %v2974 = vld [vmem:[#allocation3 + $0xc8] sm:$0xff]
    %v2975 = vld [vmem:[#allocation3 + $0xd0] sm:$0xff]
    %v2976 = vld [vmem:[#allocation3 + $0xd8] sm:$0xff]
    %v2977 = vld [vmem:[#allocation3 + $0xe0] sm:$0xff]
    %v2978 = vld [vmem:[#allocation3 + $0xe8] sm:$0xff]
    %v2979 = vld [vmem:[#allocation3 + $0xf0] sm:$0xff]
    %v2980 = vld [vmem:[#allocation3 + $0xf8] sm:$0xff]
    %s2981 = scalar_lea.vmem %s1, 288
    %v2982 = vld [vmem:[%s2981] sm:$0xff]
    %v2983 = vld [vmem:[%s2981 + $0x8] sm:$0xff]
    %v2984 = vld [vmem:[%s2981 + $0x10] sm:$0xff]
    %v2985 = vld [vmem:[%s2981 + $0x18] sm:$0xff]
    %v2986 = vld [vmem:[%s2981 + $0x20] sm:$0xff]
    %v2987 = vld [vmem:[%s2981 + $0x28] sm:$0xff]
    %v2988 = vld [vmem:[%s2981 + $0x30] sm:$0xff]
    %v2989 = vld [vmem:[%s2981 + $0x38] sm:$0xff]
    %v2990 = vld [vmem:[%s2981 + $0x40] sm:$0xff]
    %v2991 = vld [vmem:[%s2981 + $0x48] sm:$0xff]
    %v2992 = vld [vmem:[%s2981 + $0x50] sm:$0xff]
    %v2993 = vld [vmem:[%s2981 + $0x58] sm:$0xff]
    %v2994 = vld [vmem:[%s2981 + $0x60] sm:$0xff]
    %v2995 = vld [vmem:[%s2981 + $0x68] sm:$0xff]
    %v2996 = vld [vmem:[%s2981 + $0x70] sm:$0xff]
    %v2997 = vld [vmem:[%s2981 + $0x78] sm:$0xff]
    %v2998 = vld [vmem:[%s2981 + $0x80] sm:$0xff]
    %v2999 = vld [vmem:[%s2981 + $0x88] sm:$0xff]
    %s3000 = scalar_lea.vmem %s2, 2
    %v3001 = vld [vmem:[%s3000] sm:$0x1]
    %v3003 = vlaneseq
    %v3004 = vshrl.u32 %v3003, 7
    %v3005 = vsub.s32 0, %v3004
    %v3006 = vrot.slane %v3001, %v3005
    %v3009 = vsel %vm27, %v2950, 0
    %v3012 = vsel %vm27, %v2952, 0
    %v3015 = vsel %vm27, %v2954, 0
    %v3018 = vsel %vm27, %v2956, 0
    %v3021 = vsel %vm27, %v2958, 0
    %v3024 = vsel %vm27, %v2960, 0
    %v3027 = vsel %vm27, %v2962, 0
    %v3030 = vsel %vm27, %v2964, 0
    %v3033 = vsel %vm27, %v2966, 0
    %v3036 = vsel %vm27, %v2968, 0
    %v3039 = vsel %vm27, %v2970, 0
    %v3042 = vsel %vm27, %v2972, 0
    %v3045 = vsel %vm27, %v2974, 0
    %v3048 = vsel %vm27, %v2976, 0
    %v3051 = vsel %vm27, %v2978, 0
    %v3054 = vsel %vm27, %v2980, 0
    %3056 = vmatprep.subr.mxu0 0.0
    %3057 = vmatpush1.msra.mxu0 %v2982
    %3058 = vmatprep.subr.mxu0 0.0
    %3059 = vmatpush1.msra.mxu0 %v2983
    %3060 = vmatprep.subr.mxu0 0.0
    %3061 = vmatpush1.msra.mxu0 %v2984
    %3062 = vmatprep.subr.mxu0 0.0
    %3063 = vmatpush1.msra.mxu0 %v2985
    %3064 = vmatprep.subr.mxu0 0.0
    %3065 = vmatpush1.msra.mxu0 %v2986
    %3066 = vmatprep.subr.mxu0 0.0
    %3067 = vmatpush1.msra.mxu0 %v2987
    %3068 = vmatprep.subr.mxu0 0.0
    %3069 = vmatpush1.msra.mxu0 %v2988
    %3070 = vmatprep.subr.mxu0 0.0
    %3071 = vmatpush1.msra.mxu0 %v2989
    %3072 = vmatprep.subr.mxu0 0.0
    %3073 = vmatpush1.msra.mxu0 %v2990
    %3074 = vmatprep.subr.mxu0 0.0
    %3075 = vmatpush1.msra.mxu0 %v2991
    %3076 = vmatprep.subr.mxu0 0.0
    %3077 = vmatpush1.msra.mxu0 %v2992
    %3078 = vmatprep.subr.mxu0 0.0
    %3079 = vmatpush1.msra.mxu0 %v2993
    %3080 = vmatprep.subr.mxu0 0.0
    %3081 = vmatpush1.msra.mxu0 %v2994
    %3082 = vmatprep.subr.mxu0 0.0
    %3083 = vmatpush1.msra.mxu0 %v2995
    %3084 = vmatprep.subr.mxu0 0.0
    %3085 = vmatpush1.msra.mxu0 %v2996
    %3086 = vmatprep.subr.mxu0 0.0
    %3087 = vmatpush1.msra.mxu0 %v2997
    %3088 = vmatprep.subr.mxu0 0.0
    %3089 = vmatpush1.msra.mxu0 %v2998
    %3090 = vmatprep.subr.mxu0 0.0
    %3091 = vmatpush1.msra.mxu0 %v2999
    %3092 = vmatprep.subr.mxu0 0.0
    %3093 = vmatpush1.msra.mxu0 0.0
    %3094 = vmatprep.subr.mxu0 0.0
    %3095 = vmatpush1.msra.mxu0 0.0
    %3096 = vmatprep.subr.mxu0 0.0
    %3097 = vmatpush1.msra.mxu0 0.0
    %3098 = vmatprep.subr.mxu0 0.0
    %3099 = vmatpush1.msra.mxu0 0.0
    %3100 = vmatprep.subr.mxu0 0.0
    %3101 = vmatpush1.msra.mxu0 0.0
    %3102 = vmatprep.subr.mxu0 0.0
    %3103 = vmatpush1.msra.mxu0 0.0
    %3104 = vmatprep.subr.mxu0 0.0
    %3105 = vmatpush1.msra.mxu0 0.0
    %3106 = vmatprep.subr.mxu0 0.0
    %3107 = vmatpush1.msra.mxu0 0.0
    %3108 = vmatprep.subr.mxu0 0.0
    %3109 = vmatpush1.msra.mxu0 0.0
    %3110 = vmatprep.subr.mxu0 0.0
    %3111 = vmatpush1.msra.mxu0 0.0
    %3112 = vmatprep.subr.mxu0 0.0
    %3113 = vmatpush1.msra.mxu0 0.0
    %3114 = vmatprep.subr.mxu0 0.0
    %3115 = vmatpush1.msra.mxu0 0.0
    %3116 = vmatprep.subr.mxu0 0.0
    %3117 = vmatpush1.msra.mxu0 0.0
    %3118 = vmatprep.subr.mxu0 0.0
    %3119 = vmatpush1.msra.mxu0 0.0
    %3120 = vmatprep.mubr.f32.mxu0 %v3009
    %3121 = vmatmul.mubr.f32.gmra.mrb[0].mxu0 %v2949
    %v3122 = vpop.f32.mrb[0].mxu0
    %v3123 = vadd.f32 %v3006, %v3122
    %v3124 = vpop.f32.mrb[0].mxu0
    %3125 = vmatprep.mubr.f32.mxu0 %v3012
    %3126 = vmatmul.mubr.f32.gmra.mrb[0].mxu0 %v2951
    %v3127 = vpop.f32.mrb[0].mxu0
    %v3128 = vadd.f32 %v3006, %v3127
    %v3129 = vpop.f32.mrb[0].mxu0
    %3130 = vmatprep.mubr.f32.mxu0 %v3015
    %3131 = vmatmul.mubr.f32.gmra.mrb[0].mxu0 %v2953
    %v3132 = vpop.f32.mrb[0].mxu0
    %v3133 = vadd.f32 %v3006, %v3132
    %v3134 = vpop.f32.mrb[0].mxu0
    %3135 = vmatprep.mubr.f32.mxu0 %v3018
    %3136 = vmatmul.mubr.f32.gmra.mrb[0].mxu0 %v2955
    %v3137 = vpop.f32.mrb[0].mxu0
    %v3138 = vadd.f32 %v3006, %v3137
    %v3139 = vpop.f32.mrb[0].mxu0
    %3140 = vmatprep.mubr.f32.mxu0 %v3021
    %3141 = vmatmul.mubr.f32.gmra.mrb[0].mxu0 %v2957
    %v3142 = vpop.f32.mrb[0].mxu0
    %v3143 = vadd.f32 %v3006, %v3142
    %v3144 = vpop.f32.mrb[0].mxu0
    %3145 = vmatprep.mubr.f32.mxu0 %v3024
    %3146 = vmatmul.mubr.f32.gmra.mrb[0].mxu0 %v2959
    %v3147 = vpop.f32.mrb[0].mxu0
    %v3148 = vadd.f32 %v3006, %v3147
    %v3149 = vpop.f32.mrb[0].mxu0
    %3150 = vmatprep.mubr.f32.mxu0 %v3027
    %3151 = vmatmul.mubr.f32.gmra.mrb[0].mxu0 %v2961
    %v3152 = vpop.f32.mrb[0].mxu0
    %v3153 = vadd.f32 %v3006, %v3152
    %v3154 = vpop.f32.mrb[0].mxu0
    %3155 = vmatprep.mubr.f32.mxu0 %v3030
    %3156 = vmatmul.mubr.f32.gmra.mrb[0].mxu0 %v2963
    %v3157 = vpop.f32.mrb[0].mxu0
    %v3158 = vadd.f32 %v3006, %v3157
    %v3159 = vpop.f32.mrb[0].mxu0
    %3160 = vmatprep.mubr.f32.mxu0 %v3033
    %3161 = vmatmul.mubr.f32.gmra.mrb[0].mxu0 %v2965
    %v3162 = vpop.f32.mrb[0].mxu0
    %v3163 = vadd.f32 %v3006, %v3162
    %v3164 = vpop.f32.mrb[0].mxu0
    %3165 = vmatprep.mubr.f32.mxu0 %v3036
    %3166 = vmatmul.mubr.f32.gmra.mrb[0].mxu0 %v2967
    %v3167 = vpop.f32.mrb[0].mxu0
    %v3168 = vadd.f32 %v3006, %v3167
    %v3169 = vpop.f32.mrb[0].mxu0
    %3170 = vmatprep.mubr.f32.mxu0 %v3039
    %3171 = vmatmul.mubr.f32.gmra.mrb[0].mxu0 %v2969
    %v3172 = vpop.f32.mrb[0].mxu0
    %v3173 = vadd.f32 %v3006, %v3172
    %v3174 = vpop.f32.mrb[0].mxu0
    %3175 = vmatprep.mubr.f32.mxu0 %v3042
    %3176 = vmatmul.mubr.f32.gmra.mrb[0].mxu0 %v2971
    %v3177 = vpop.f32.mrb[0].mxu0
    %v3178 = vadd.f32 %v3006, %v3177
    %v3179 = vpop.f32.mrb[0].mxu0
    %3180 = vmatprep.mubr.f32.mxu0 %v3045
    %3181 = vmatmul.mubr.f32.gmra.mrb[0].mxu0 %v2973
    %v3182 = vpop.f32.mrb[0].mxu0
    %v3183 = vadd.f32 %v3006, %v3182
    %v3184 = vpop.f32.mrb[0].mxu0
    %3185 = vmatprep.mubr.f32.mxu0 %v3048
    %3186 = vmatmul.mubr.f32.gmra.mrb[0].mxu0 %v2975
    %v3187 = vpop.f32.mrb[0].mxu0
    %v3188 = vadd.f32 %v3006, %v3187
    %v3189 = vpop.f32.mrb[0].mxu0
    %3190 = vmatprep.mubr.f32.mxu0 %v3051
    %3191 = vmatmul.mubr.f32.gmra.mrb[0].mxu0 %v2977
    %v3192 = vpop.f32.mrb[0].mxu0
    %v3193 = vadd.f32 %v3006, %v3192
    %v3194 = vpop.f32.mrb[0].mxu0
    %3195 = vmatprep.mubr.f32.mxu0 %v3054
    %3196 = vmatmul.mubr.f32.gmra.mrb[0].mxu0 %v2979
    %v3197 = vpop.f32.mrb[0].mxu0
    %v3198 = vadd.f32 %v3006, %v3197
    %v3199 = vpop.f32.mrb[0].mxu0
    %3200 = vdwg.mxu0
    %v3201 = vmax.f32 %v3123, 0.0
    %v3202 = vmax.f32 %v3128, 0.0
    %v3203 = vmax.f32 %v3133, 0.0
    %v3204 = vmax.f32 %v3138, 0.0
    %v3205 = vmax.f32 %v3143, 0.0
    %v3206 = vmax.f32 %v3148, 0.0
    %v3207 = vmax.f32 %v3153, 0.0
    %v3208 = vmax.f32 %v3158, 0.0
    %v3209 = vmax.f32 %v3163, 0.0
    %v3210 = vmax.f32 %v3168, 0.0
    %v3211 = vmax.f32 %v3173, 0.0
    %v3212 = vmax.f32 %v3178, 0.0
    %v3213 = vmax.f32 %v3183, 0.0
    %v3214 = vmax.f32 %v3188, 0.0
    %v3215 = vmax.f32 %v3193, 0.0
    %v3216 = vmax.f32 %v3198, 0.0
    %v3217 = vmul.f32 %v3201, %v164
    %v3218 = vmul.f32 %v3202, %v164
    %v3219 = vmul.f32 %v3203, %v164
    %v3220 = vmul.f32 %v3204, %v164
    %v3221 = vmul.f32 %v3205, %v164
    %v3222 = vmul.f32 %v3206, %v164
    %v3223 = vmul.f32 %v3207, %v164
    %v3224 = vmul.f32 %v3208, %v164
    %v3225 = vmul.f32 %v3209, %v168
    %v3226 = vmul.f32 %v3210, %v168
    %v3227 = vmul.f32 %v3211, %v168
    %v3228 = vmul.f32 %v3212, %v168
    %v3229 = vmul.f32 %v3213, %v168
    %v3230 = vmul.f32 %v3214, %v168
    %v3231 = vmul.f32 %v3215, %v168
    %v3232 = vmul.f32 %v3216, %v168
    %3233 = vst.msk [vmem:[%s221 + $0x1] sm:$0xff] %vm27, %v3217
    %3234 = vst.msk [vmem:[%s221 + $0x11] sm:$0xff] %vm27, %v3218
    %3235 = vst.msk [vmem:[%s221 + $0x21] sm:$0xff] %vm27, %v3219
    %3236 = vst.msk [vmem:[%s221 + $0x31] sm:$0xff] %vm27, %v3220
    %3237 = vst.msk [vmem:[%s221 + $0x41] sm:$0xff] %vm27, %v3221
    %3238 = vst.msk [vmem:[%s221 + $0x51] sm:$0xff] %vm27, %v3222
    %3239 = vst.msk [vmem:[%s221 + $0x61] sm:$0xff] %vm27, %v3223
    %3240 = vst.msk [vmem:[%s221 + $0x71] sm:$0xff] %vm27, %v3224
    %3241 = vst.msk [vmem:[%s221 + $0xa1] sm:$0xff] %vm27, %v3225
    %3242 = vst.msk [vmem:[%s221 + $0xb1] sm:$0xff] %vm27, %v3226
    %3243 = vst.msk [vmem:[%s221 + $0xc1] sm:$0xff] %vm27, %v3227
    %3244 = vst.msk [vmem:[%s221 + $0xd1] sm:$0xff] %vm27, %v3228
    %3245 = vst.msk [vmem:[%s221 + $0xe1] sm:$0xff] %vm27, %v3229
    %3246 = vst.msk [vmem:[%s221 + $0xf1] sm:$0xff] %vm27, %v3230
    %3247 = vst.msk [vmem:[%s221 + $0x101] sm:$0xff] %vm27, %v3231
    %3248 = vst.msk [vmem:[%s221 + $0x111] sm:$0xff] %vm27, %v3232
    %v3249 = vld [vmem:[#allocation2] sm:$0xff]
    %v3250 = vld [vmem:[#allocation2 + $0x8] sm:$0x3]
    %v3251 = vld [vmem:[#allocation2 + $0x10] sm:$0xff]
    %v3252 = vld [vmem:[#allocation2 + $0x18] sm:$0x3]
    %v3253 = vld [vmem:[#allocation2 + $0x20] sm:$0xff]
    %v3254 = vld [vmem:[#allocation2 + $0x28] sm:$0x3]
    %v3255 = vld [vmem:[#allocation2 + $0x30] sm:$0xff]
    %v3256 = vld [vmem:[#allocation2 + $0x38] sm:$0x3]
    %v3257 = vld [vmem:[#allocation2 + $0x40] sm:$0xff]
    %v3258 = vld [vmem:[#allocation2 + $0x48] sm:$0x3]
    %v3259 = vld [vmem:[#allocation2 + $0x50] sm:$0xff]
    %v3260 = vld [vmem:[#allocation2 + $0x58] sm:$0x3]
    %v3261 = vld [vmem:[#allocation2 + $0x60] sm:$0xff]
    %v3262 = vld [vmem:[#allocation2 + $0x68] sm:$0x3]
    %v3263 = vld [vmem:[#allocation2 + $0x70] sm:$0xff]
    %v3264 = vld [vmem:[#allocation2 + $0x78] sm:$0x3]
    %v3265 = vld [vmem:[#allocation2 + $0x80] sm:$0xff]
    %v3266 = vld [vmem:[#allocation2 + $0x88] sm:$0x3]
    %v3267 = vld [vmem:[#allocation2 + $0x90] sm:$0xff]
    %v3268 = vld [vmem:[#allocation2 + $0x98] sm:$0x3]
    %v3269 = vld [vmem:[#allocation2 + $0xa0] sm:$0xff]
    %v3270 = vld [vmem:[#allocation2 + $0xa8] sm:$0x3]
    %v3271 = vld [vmem:[#allocation2 + $0xb0] sm:$0xff]
    %v3272 = vld [vmem:[#allocation2 + $0xb8] sm:$0x3]
    %v3273 = vld [vmem:[#allocation2 + $0xc0] sm:$0xff]
    %v3274 = vld [vmem:[#allocation2 + $0xc8] sm:$0x3]
    %v3275 = vld [vmem:[#allocation2 + $0xd0] sm:$0xff]
    %v3276 = vld [vmem:[#allocation2 + $0xd8] sm:$0x3]
    %v3277 = vld [vmem:[#allocation2 + $0xe0] sm:$0xff]
    %v3278 = vld [vmem:[#allocation2 + $0xe8] sm:$0x3]
    %v3279 = vld [vmem:[#allocation2 + $0xf0] sm:$0xff]
    %v3280 = vld [vmem:[#allocation2 + $0xf8] sm:$0x3]
    %v3281 = vld [vmem:[#allocation2 + $0x100] sm:$0xff]
    %v3282 = vld [vmem:[#allocation2 + $0x108] sm:$0x3]
    %v3283 = vld [vmem:[#allocation2 + $0x110] sm:$0xff]
    %v3284 = vld [vmem:[#allocation2 + $0x118] sm:$0x3]
    %v3285 = vld [vmem:[#allocation2 + $0x120] sm:$0xff]
    %v3286 = vld [vmem:[#allocation2 + $0x128] sm:$0x3]
    %v3287 = vld [vmem:[#allocation2 + $0x130] sm:$0xff]
    %v3288 = vld [vmem:[#allocation2 + $0x138] sm:$0x3]
    %3289 = vst.msk [vmem:[#allocation3] sm:$0xff] %vm27, %v3249
    %3290 = vst.msk [vmem:[#allocation3 + $0x10] sm:$0xff] %vm27, %v3251
    %3291 = vst.msk [vmem:[#allocation3 + $0x20] sm:$0xff] %vm27, %v3253
    %3292 = vst.msk [vmem:[#allocation3 + $0x30] sm:$0xff] %vm27, %v3255
    %3293 = vst.msk [vmem:[#allocation3 + $0x40] sm:$0xff] %vm27, %v3257
    %3294 = vst.msk [vmem:[#allocation3 + $0x50] sm:$0xff] %vm27, %v3259
    %3295 = vst.msk [vmem:[#allocation3 + $0x60] sm:$0xff] %vm27, %v3261
    %3296 = vst.msk [vmem:[#allocation3 + $0x70] sm:$0xff] %vm27, %v3263
    %3297 = vst.msk [vmem:[#allocation3 + $0x80] sm:$0xff] %vm27, %v3269
    %3298 = vst.msk [vmem:[#allocation3 + $0x90] sm:$0xff] %vm27, %v3271
    %3299 = vst.msk [vmem:[#allocation3 + $0xa0] sm:$0xff] %vm27, %v3273
    %3300 = vst.msk [vmem:[#allocation3 + $0xb0] sm:$0xff] %vm27, %v3275
    %3301 = vst.msk [vmem:[#allocation3 + $0xc0] sm:$0xff] %vm27, %v3277
    %3302 = vst.msk [vmem:[#allocation3 + $0xd0] sm:$0xff] %vm27, %v3279
    %3303 = vst.msk [vmem:[#allocation3 + $0xe0] sm:$0xff] %vm27, %v3281
    %3304 = vst.msk [vmem:[#allocation3 + $0xf0] sm:$0xff] %vm27, %v3283
    %v3337 = vrot.slane %v3249, 1
    %v3338 = vrot.slane %v3250, 1
    %v3339 = vsel %vm326, %v3337, %v3338
    %v3340 = vrot.slane %v3251, 1
    %v3341 = vrot.slane %v3252, 1
    %v3342 = vsel %vm326, %v3340, %v3341
    %v3343 = vrot.slane %v3253, 1
    %v3344 = vrot.slane %v3254, 1
    %v3345 = vsel %vm326, %v3343, %v3344
    %v3346 = vrot.slane %v3255, 1
    %v3347 = vrot.slane %v3256, 1
    %v3348 = vsel %vm326, %v3346, %v3347
    %v3349 = vrot.slane %v3257, 1
    %v3350 = vrot.slane %v3258, 1
    %v3351 = vsel %vm326, %v3349, %v3350
    %v3352 = vrot.slane %v3259, 1
    %v3353 = vrot.slane %v3260, 1
    %v3354 = vsel %vm326, %v3352, %v3353
    %v3355 = vrot.slane %v3261, 1
    %v3356 = vrot.slane %v3262, 1
    %v3357 = vsel %vm326, %v3355, %v3356
    %v3358 = vrot.slane %v3263, 1
    %v3359 = vrot.slane %v3264, 1
    %v3360 = vsel %vm326, %v3358, %v3359
    %v3361 = vrot.slane %v3269, 1
    %v3362 = vrot.slane %v3270, 1
    %v3363 = vsel %vm326, %v3361, %v3362
    %v3364 = vrot.slane %v3271, 1
    %v3365 = vrot.slane %v3272, 1
    %v3366 = vsel %vm326, %v3364, %v3365
    %v3367 = vrot.slane %v3273, 1
    %v3368 = vrot.slane %v3274, 1
    %v3369 = vsel %vm326, %v3367, %v3368
    %v3370 = vrot.slane %v3275, 1
    %v3371 = vrot.slane %v3276, 1
    %v3372 = vsel %vm326, %v3370, %v3371
    %v3373 = vrot.slane %v3277, 1
    %v3374 = vrot.slane %v3278, 1
    %v3375 = vsel %vm326, %v3373, %v3374
    %v3376 = vrot.slane %v3279, 1
    %v3377 = vrot.slane %v3280, 1
    %v3378 = vsel %vm326, %v3376, %v3377
    %v3379 = vrot.slane %v3281, 1
    %v3380 = vrot.slane %v3282, 1
    %v3381 = vsel %vm326, %v3379, %v3380
    %v3382 = vrot.slane %v3283, 1
    %v3383 = vrot.slane %v3284, 1
    %v3384 = vsel %vm326, %v3382, %v3383
    %3385 = vrot.lane.b32.xlu0 %v3339, 16
    %v3386 = vpop.permute.xlu0 %3385
    %3387 = vrot.lane.b32.xlu0 %v3342, 16
    %v3388 = vpop.permute.xlu0 %3387
    %3389 = vrot.lane.b32.xlu0 %v3345, 16
    %v3390 = vpop.permute.xlu0 %3389
    %3391 = vrot.lane.b32.xlu0 %v3348, 16
    %v3392 = vpop.permute.xlu0 %3391
    %3393 = vrot.lane.b32.xlu0 %v3351, 16
    %v3394 = vpop.permute.xlu0 %3393
    %3395 = vrot.lane.b32.xlu0 %v3354, 16
    %v3396 = vpop.permute.xlu0 %3395
    %3397 = vrot.lane.b32.xlu0 %v3357, 16
    %v3398 = vpop.permute.xlu0 %3397
    %3399 = vrot.lane.b32.xlu0 %v3360, 16
    %v3400 = vpop.permute.xlu0 %3399
    %3401 = vrot.lane.b32.xlu0 %v3363, 16
    %v3402 = vpop.permute.xlu0 %3401
    %3403 = vrot.lane.b32.xlu0 %v3366, 16
    %v3404 = vpop.permute.xlu0 %3403
    %3405 = vrot.lane.b32.xlu0 %v3369, 16
    %v3406 = vpop.permute.xlu0 %3405
    %3407 = vrot.lane.b32.xlu0 %v3372, 16
    %v3408 = vpop.permute.xlu0 %3407
    %3409 = vrot.lane.b32.xlu0 %v3375, 16
    %v3410 = vpop.permute.xlu0 %3409
    %3411 = vrot.lane.b32.xlu0 %v3378, 16
    %v3412 = vpop.permute.xlu0 %3411
    %3413 = vrot.lane.b32.xlu0 %v3381, 16
    %v3414 = vpop.permute.xlu0 %3413
    %3415 = vrot.lane.b32.xlu0 %v3384, 16
    %v3416 = vpop.permute.xlu0 %3415
    %3433 = vst.msk [vmem:[#allocation3] sm:$0xff] %vm423, %v3386
    %3434 = vst.msk [vmem:[#allocation3 + $0x10] sm:$0xff] %vm423, %v3388
    %3435 = vst.msk [vmem:[#allocation3 + $0x20] sm:$0xff] %vm423, %v3390
    %3436 = vst.msk [vmem:[#allocation3 + $0x30] sm:$0xff] %vm423, %v3392
    %3437 = vst.msk [vmem:[#allocation3 + $0x40] sm:$0xff] %vm423, %v3394
    %3438 = vst.msk [vmem:[#allocation3 + $0x50] sm:$0xff] %vm423, %v3396
    %3439 = vst.msk [vmem:[#allocation3 + $0x60] sm:$0xff] %vm423, %v3398
    %3440 = vst.msk [vmem:[#allocation3 + $0x70] sm:$0xff] %vm423, %v3400
    %3441 = vst.msk [vmem:[#allocation3 + $0x80] sm:$0xff] %vm423, %v3402
    %3442 = vst.msk [vmem:[#allocation3 + $0x90] sm:$0xff] %vm423, %v3404
    %3443 = vst.msk [vmem:[#allocation3 + $0xa0] sm:$0xff] %vm423, %v3406
    %3444 = vst.msk [vmem:[#allocation3 + $0xb0] sm:$0xff] %vm423, %v3408
    %3445 = vst.msk [vmem:[#allocation3 + $0xc0] sm:$0xff] %vm423, %v3410
    %3446 = vst.msk [vmem:[#allocation3 + $0xd0] sm:$0xff] %vm423, %v3412
    %3447 = vst.msk [vmem:[#allocation3 + $0xe0] sm:$0xff] %vm423, %v3414
    %3448 = vst.msk [vmem:[#allocation3 + $0xf0] sm:$0xff] %vm423, %v3416
    %v3449 = vrot.slane %v3249, 2
    %v3450 = vrot.slane %v3250, 2
    %v3451 = vsel %vm440, %v3449, %v3450
    %v3452 = vrot.slane %v3251, 2
    %v3453 = vrot.slane %v3252, 2
    %v3454 = vsel %vm440, %v3452, %v3453
    %v3455 = vrot.slane %v3253, 2
    %v3456 = vrot.slane %v3254, 2
    %v3457 = vsel %vm440, %v3455, %v3456
    %v3458 = vrot.slane %v3255, 2
    %v3459 = vrot.slane %v3256, 2
    %v3460 = vsel %vm440, %v3458, %v3459
    %v3461 = vrot.slane %v3257, 2
    %v3462 = vrot.slane %v3258, 2
    %v3463 = vsel %vm440, %v3461, %v3462
    %v3464 = vrot.slane %v3259, 2
    %v3465 = vrot.slane %v3260, 2
    %v3466 = vsel %vm440, %v3464, %v3465
    %v3467 = vrot.slane %v3261, 2
    %v3468 = vrot.slane %v3262, 2
    %v3469 = vsel %vm440, %v3467, %v3468
    %v3470 = vrot.slane %v3263, 2
    %v3471 = vrot.slane %v3264, 2
    %v3472 = vsel %vm440, %v3470, %v3471
    %v3473 = vrot.slane %v3269, 2
    %v3474 = vrot.slane %v3270, 2
    %v3475 = vsel %vm440, %v3473, %v3474
    %v3476 = vrot.slane %v3271, 2
    %v3477 = vrot.slane %v3272, 2
    %v3478 = vsel %vm440, %v3476, %v3477
    %v3479 = vrot.slane %v3273, 2
    %v3480 = vrot.slane %v3274, 2
    %v3481 = vsel %vm440, %v3479, %v3480
    %v3482 = vrot.slane %v3275, 2
    %v3483 = vrot.slane %v3276, 2
    %v3484 = vsel %vm440, %v3482, %v3483
    %v3485 = vrot.slane %v3277, 2
    %v3486 = vrot.slane %v3278, 2
    %v3487 = vsel %vm440, %v3485, %v3486
    %v3488 = vrot.slane %v3279, 2
    %v3489 = vrot.slane %v3280, 2
    %v3490 = vsel %vm440, %v3488, %v3489
    %v3491 = vrot.slane %v3281, 2
    %v3492 = vrot.slane %v3282, 2
    %v3493 = vsel %vm440, %v3491, %v3492
    %v3494 = vrot.slane %v3283, 2
    %v3495 = vrot.slane %v3284, 2
    %v3496 = vsel %vm440, %v3494, %v3495
    %3497 = vrot.lane.b32.xlu0 %v3451, 32
    %v3498 = vpop.permute.xlu0 %3497
    %3499 = vrot.lane.b32.xlu0 %v3454, 32
    %v3500 = vpop.permute.xlu0 %3499
    %3501 = vrot.lane.b32.xlu0 %v3457, 32
    %v3502 = vpop.permute.xlu0 %3501
    %3503 = vrot.lane.b32.xlu0 %v3460, 32
    %v3504 = vpop.permute.xlu0 %3503
    %3505 = vrot.lane.b32.xlu0 %v3463, 32
    %v3506 = vpop.permute.xlu0 %3505
    %3507 = vrot.lane.b32.xlu0 %v3466, 32
    %v3508 = vpop.permute.xlu0 %3507
    %3509 = vrot.lane.b32.xlu0 %v3469, 32
    %v3510 = vpop.permute.xlu0 %3509
    %3511 = vrot.lane.b32.xlu0 %v3472, 32
    %v3512 = vpop.permute.xlu0 %3511
    %3513 = vrot.lane.b32.xlu0 %v3475, 32
    %v3514 = vpop.permute.xlu0 %3513
    %3515 = vrot.lane.b32.xlu0 %v3478, 32
    %v3516 = vpop.permute.xlu0 %3515
    %3517 = vrot.lane.b32.xlu0 %v3481, 32
    %v3518 = vpop.permute.xlu0 %3517
    %3519 = vrot.lane.b32.xlu0 %v3484, 32
    %v3520 = vpop.permute.xlu0 %3519
    %3521 = vrot.lane.b32.xlu0 %v3487, 32
    %v3522 = vpop.permute.xlu0 %3521
    %3523 = vrot.lane.b32.xlu0 %v3490, 32
    %v3524 = vpop.permute.xlu0 %3523
    %3525 = vrot.lane.b32.xlu0 %v3493, 32
    %v3526 = vpop.permute.xlu0 %3525
    %3527 = vrot.lane.b32.xlu0 %v3496, 32
    %v3528 = vpop.permute.xlu0 %3527
    %3545 = vst.msk [vmem:[#allocation3] sm:$0xff] %vm537, %v3498
    %3546 = vst.msk [vmem:[#allocation3 + $0x10] sm:$0xff] %vm537, %v3500
    %3547 = vst.msk [vmem:[#allocation3 + $0x20] sm:$0xff] %vm537, %v3502
    %3548 = vst.msk [vmem:[#allocation3 + $0x30] sm:$0xff] %vm537, %v3504
    %3549 = vst.msk [vmem:[#allocation3 + $0x40] sm:$0xff] %vm537, %v3506
    %3550 = vst.msk [vmem:[#allocation3 + $0x50] sm:$0xff] %vm537, %v3508
    %3551 = vst.msk [vmem:[#allocation3 + $0x60] sm:$0xff] %vm537, %v3510
    %3552 = vst.msk [vmem:[#allocation3 + $0x70] sm:$0xff] %vm537, %v3512
    %3553 = vst.msk [vmem:[#allocation3 + $0x80] sm:$0xff] %vm537, %v3514
    %3554 = vst.msk [vmem:[#allocation3 + $0x90] sm:$0xff] %vm537, %v3516
    %3555 = vst.msk [vmem:[#allocation3 + $0xa0] sm:$0xff] %vm537, %v3518
    %3556 = vst.msk [vmem:[#allocation3 + $0xb0] sm:$0xff] %vm537, %v3520
    %3557 = vst.msk [vmem:[#allocation3 + $0xc0] sm:$0xff] %vm537, %v3522
    %3558 = vst.msk [vmem:[#allocation3 + $0xd0] sm:$0xff] %vm537, %v3524
    %3559 = vst.msk [vmem:[#allocation3 + $0xe0] sm:$0xff] %vm537, %v3526
    %3560 = vst.msk [vmem:[#allocation3 + $0xf0] sm:$0xff] %vm537, %v3528
    %3563 = vrot.lane.b32.xlu0 %v3251, 48
    %v3564 = vpop.permute.xlu0 %3563
    %3565 = vrot.lane.b32.xlu0 %v3253, 48
    %v3566 = vpop.permute.xlu0 %3565
    %3567 = vrot.lane.b32.xlu0 %v3255, 48
    %v3568 = vpop.permute.xlu0 %3567
    %3569 = vrot.lane.b32.xlu0 %v3257, 48
    %v3570 = vpop.permute.xlu0 %3569
    %3571 = vrot.lane.b32.xlu0 %v3259, 48
    %v3572 = vpop.permute.xlu0 %3571
    %3573 = vrot.lane.b32.xlu0 %v3261, 48
    %v3574 = vpop.permute.xlu0 %3573
    %3575 = vrot.lane.b32.xlu0 %v3263, 48
    %v3576 = vpop.permute.xlu0 %3575
    %3577 = vrot.lane.b32.xlu0 %v3265, 48
    %v3578 = vpop.permute.xlu0 %3577
    %3579 = vrot.lane.b32.xlu0 %v3271, 48
    %v3580 = vpop.permute.xlu0 %3579
    %3581 = vrot.lane.b32.xlu0 %v3273, 48
    %v3582 = vpop.permute.xlu0 %3581
    %3583 = vrot.lane.b32.xlu0 %v3275, 48
    %v3584 = vpop.permute.xlu0 %3583
    %3585 = vrot.lane.b32.xlu0 %v3277, 48
    %v3586 = vpop.permute.xlu0 %3585
    %3587 = vrot.lane.b32.xlu0 %v3279, 48
    %v3588 = vpop.permute.xlu0 %3587
    %3589 = vrot.lane.b32.xlu0 %v3281, 48
    %v3590 = vpop.permute.xlu0 %3589
    %3591 = vrot.lane.b32.xlu0 %v3283, 48
    %v3592 = vpop.permute.xlu0 %3591
    %3593 = vrot.lane.b32.xlu0 %v3285, 48
    %v3594 = vpop.permute.xlu0 %3593
    %3611 = vst.msk [vmem:[#allocation3] sm:$0xff] %vm604, %v3564
    %3612 = vst.msk [vmem:[#allocation3 + $0x10] sm:$0xff] %vm604, %v3566
    %3613 = vst.msk [vmem:[#allocation3 + $0x20] sm:$0xff] %vm604, %v3568
    %3614 = vst.msk [vmem:[#allocation3 + $0x30] sm:$0xff] %vm604, %v3570
    %3615 = vst.msk [vmem:[#allocation3 + $0x40] sm:$0xff] %vm604, %v3572
    %3616 = vst.msk [vmem:[#allocation3 + $0x50] sm:$0xff] %vm604, %v3574
    %3617 = vst.msk [vmem:[#allocation3 + $0x60] sm:$0xff] %vm604, %v3576
    %3618 = vst.msk [vmem:[#allocation3 + $0x70] sm:$0xff] %vm604, %v3578
    %3619 = vst.msk [vmem:[#allocation3 + $0x80] sm:$0xff] %vm604, %v3580
    %3620 = vst.msk [vmem:[#allocation3 + $0x90] sm:$0xff] %vm604, %v3582
    %3621 = vst.msk [vmem:[#allocation3 + $0xa0] sm:$0xff] %vm604, %v3584
    %3622 = vst.msk [vmem:[#allocation3 + $0xb0] sm:$0xff] %vm604, %v3586
    %3623 = vst.msk [vmem:[#allocation3 + $0xc0] sm:$0xff] %vm604, %v3588
    %3624 = vst.msk [vmem:[#allocation3 + $0xd0] sm:$0xff] %vm604, %v3590
    %3625 = vst.msk [vmem:[#allocation3 + $0xe0] sm:$0xff] %vm604, %v3592
    %3626 = vst.msk [vmem:[#allocation3 + $0xf0] sm:$0xff] %vm604, %v3594
    %v3629 = vrot.slane %v3265, 1
    %v3630 = vrot.slane %v3266, 1
    %v3631 = vsel %vm326, %v3629, %v3630
    %v3632 = vrot.slane %v3285, 1
    %v3633 = vrot.slane %v3286, 1
    %v3634 = vsel %vm326, %v3632, %v3633
    %3635 = vrot.lane.b32.xlu0 %v3342, 64
    %v3636 = vpop.permute.xlu0 %3635
    %3637 = vrot.lane.b32.xlu0 %v3345, 64
    %v3638 = vpop.permute.xlu0 %3637
    %3639 = vrot.lane.b32.xlu0 %v3348, 64
    %v3640 = vpop.permute.xlu0 %3639
    %3641 = vrot.lane.b32.xlu0 %v3351, 64
    %v3642 = vpop.permute.xlu0 %3641
    %3643 = vrot.lane.b32.xlu0 %v3354, 64
    %v3644 = vpop.permute.xlu0 %3643
    %3645 = vrot.lane.b32.xlu0 %v3357, 64
    %v3646 = vpop.permute.xlu0 %3645
    %3647 = vrot.lane.b32.xlu0 %v3360, 64
    %v3648 = vpop.permute.xlu0 %3647
    %3649 = vrot.lane.b32.xlu0 %v3631, 64
    %v3650 = vpop.permute.xlu0 %3649
    %3651 = vrot.lane.b32.xlu0 %v3366, 64
    %v3652 = vpop.permute.xlu0 %3651
    %3653 = vrot.lane.b32.xlu0 %v3369, 64
    %v3654 = vpop.permute.xlu0 %3653
    %3655 = vrot.lane.b32.xlu0 %v3372, 64
    %v3656 = vpop.permute.xlu0 %3655
    %3657 = vrot.lane.b32.xlu0 %v3375, 64
    %v3658 = vpop.permute.xlu0 %3657
    %3659 = vrot.lane.b32.xlu0 %v3378, 64
    %v3660 = vpop.permute.xlu0 %3659
    %3661 = vrot.lane.b32.xlu0 %v3381, 64
    %v3662 = vpop.permute.xlu0 %3661
    %3663 = vrot.lane.b32.xlu0 %v3384, 64
    %v3664 = vpop.permute.xlu0 %3663
    %3665 = vrot.lane.b32.xlu0 %v3634, 64
    %v3666 = vpop.permute.xlu0 %3665
    %3683 = vst.msk [vmem:[#allocation3] sm:$0xff] %vm677, %v3636
    %3684 = vst.msk [vmem:[#allocation3 + $0x10] sm:$0xff] %vm677, %v3638
    %3685 = vst.msk [vmem:[#allocation3 + $0x20] sm:$0xff] %vm677, %v3640
    %3686 = vst.msk [vmem:[#allocation3 + $0x30] sm:$0xff] %vm677, %v3642
    %3687 = vst.msk [vmem:[#allocation3 + $0x40] sm:$0xff] %vm677, %v3644
    %3688 = vst.msk [vmem:[#allocation3 + $0x50] sm:$0xff] %vm677, %v3646
    %3689 = vst.msk [vmem:[#allocation3 + $0x60] sm:$0xff] %vm677, %v3648
    %3690 = vst.msk [vmem:[#allocation3 + $0x70] sm:$0xff] %vm677, %v3650
    %3691 = vst.msk [vmem:[#allocation3 + $0x80] sm:$0xff] %vm677, %v3652
    %3692 = vst.msk [vmem:[#allocation3 + $0x90] sm:$0xff] %vm677, %v3654
    %3693 = vst.msk [vmem:[#allocation3 + $0xa0] sm:$0xff] %vm677, %v3656
    %3694 = vst.msk [vmem:[#allocation3 + $0xb0] sm:$0xff] %vm677, %v3658
    %3695 = vst.msk [vmem:[#allocation3 + $0xc0] sm:$0xff] %vm677, %v3660
    %3696 = vst.msk [vmem:[#allocation3 + $0xd0] sm:$0xff] %vm677, %v3662
    %3697 = vst.msk [vmem:[#allocation3 + $0xe0] sm:$0xff] %vm677, %v3664
    %3698 = vst.msk [vmem:[#allocation3 + $0xf0] sm:$0xff] %vm677, %v3666
    %v3699 = vrot.slane %v3265, 2
    %v3700 = vrot.slane %v3266, 2
    %v3701 = vsel %vm440, %v3699, %v3700
    %v3702 = vrot.slane %v3285, 2
    %v3703 = vrot.slane %v3286, 2
    %v3704 = vsel %vm440, %v3702, %v3703
    %3705 = vrot.lane.b32.xlu0 %v3454, 80
    %v3706 = vpop.permute.xlu0 %3705
    %3707 = vrot.lane.b32.xlu0 %v3457, 80
    %v3708 = vpop.permute.xlu0 %3707
    %3709 = vrot.lane.b32.xlu0 %v3460, 80
    %v3710 = vpop.permute.xlu0 %3709
    %3711 = vrot.lane.b32.xlu0 %v3463, 80
    %v3712 = vpop.permute.xlu0 %3711
    %3713 = vrot.lane.b32.xlu0 %v3466, 80
    %v3714 = vpop.permute.xlu0 %3713
    %3715 = vrot.lane.b32.xlu0 %v3469, 80
    %v3716 = vpop.permute.xlu0 %3715
    %3717 = vrot.lane.b32.xlu0 %v3472, 80
    %v3718 = vpop.permute.xlu0 %3717
    %3719 = vrot.lane.b32.xlu0 %v3701, 80
    %v3720 = vpop.permute.xlu0 %3719
    %3721 = vrot.lane.b32.xlu0 %v3478, 80
    %v3722 = vpop.permute.xlu0 %3721
    %3723 = vrot.lane.b32.xlu0 %v3481, 80
    %v3724 = vpop.permute.xlu0 %3723
    %3725 = vrot.lane.b32.xlu0 %v3484, 80
    %v3726 = vpop.permute.xlu0 %3725
    %3727 = vrot.lane.b32.xlu0 %v3487, 80
    %v3728 = vpop.permute.xlu0 %3727
    %3729 = vrot.lane.b32.xlu0 %v3490, 80
    %v3730 = vpop.permute.xlu0 %3729
    %3731 = vrot.lane.b32.xlu0 %v3493, 80
    %v3732 = vpop.permute.xlu0 %3731
    %3733 = vrot.lane.b32.xlu0 %v3496, 80
    %v3734 = vpop.permute.xlu0 %3733
    %3735 = vrot.lane.b32.xlu0 %v3704, 80
    %v3736 = vpop.permute.xlu0 %3735
    %3753 = vst.msk [vmem:[#allocation3] sm:$0xff] %vm748, %v3706
    %3754 = vst.msk [vmem:[#allocation3 + $0x10] sm:$0xff] %vm748, %v3708
    %3755 = vst.msk [vmem:[#allocation3 + $0x20] sm:$0xff] %vm748, %v3710
    %3756 = vst.msk [vmem:[#allocation3 + $0x30] sm:$0xff] %vm748, %v3712
    %3757 = vst.msk [vmem:[#allocation3 + $0x40] sm:$0xff] %vm748, %v3714
    %3758 = vst.msk [vmem:[#allocation3 + $0x50] sm:$0xff] %vm748, %v3716
    %3759 = vst.msk [vmem:[#allocation3 + $0x60] sm:$0xff] %vm748, %v3718
    %3760 = vst.msk [vmem:[#allocation3 + $0x70] sm:$0xff] %vm748, %v3720
    %3761 = vst.msk [vmem:[#allocation3 + $0x80] sm:$0xff] %vm748, %v3722
    %3762 = vst.msk [vmem:[#allocation3 + $0x90] sm:$0xff] %vm748, %v3724
    %3763 = vst.msk [vmem:[#allocation3 + $0xa0] sm:$0xff] %vm748, %v3726
    %3764 = vst.msk [vmem:[#allocation3 + $0xb0] sm:$0xff] %vm748, %v3728
    %3765 = vst.msk [vmem:[#allocation3 + $0xc0] sm:$0xff] %vm748, %v3730
    %3766 = vst.msk [vmem:[#allocation3 + $0xd0] sm:$0xff] %vm748, %v3732
    %3767 = vst.msk [vmem:[#allocation3 + $0xe0] sm:$0xff] %vm748, %v3734
    %3768 = vst.msk [vmem:[#allocation3 + $0xf0] sm:$0xff] %vm748, %v3736
    %3771 = vrot.lane.b32.xlu0 %v3253, 96
    %v3772 = vpop.permute.xlu0 %3771
    %3773 = vrot.lane.b32.xlu0 %v3255, 96
    %v3774 = vpop.permute.xlu0 %3773
    %3775 = vrot.lane.b32.xlu0 %v3257, 96
    %v3776 = vpop.permute.xlu0 %3775
    %3777 = vrot.lane.b32.xlu0 %v3259, 96
    %v3778 = vpop.permute.xlu0 %3777
    %3779 = vrot.lane.b32.xlu0 %v3261, 96
    %v3780 = vpop.permute.xlu0 %3779
    %3781 = vrot.lane.b32.xlu0 %v3263, 96
    %v3782 = vpop.permute.xlu0 %3781
    %3783 = vrot.lane.b32.xlu0 %v3265, 96
    %v3784 = vpop.permute.xlu0 %3783
    %3785 = vrot.lane.b32.xlu0 %v3267, 96
    %v3786 = vpop.permute.xlu0 %3785
    %3787 = vrot.lane.b32.xlu0 %v3273, 96
    %v3788 = vpop.permute.xlu0 %3787
    %3789 = vrot.lane.b32.xlu0 %v3275, 96
    %v3790 = vpop.permute.xlu0 %3789
    %3791 = vrot.lane.b32.xlu0 %v3277, 96
    %v3792 = vpop.permute.xlu0 %3791
    %3793 = vrot.lane.b32.xlu0 %v3279, 96
    %v3794 = vpop.permute.xlu0 %3793
    %3795 = vrot.lane.b32.xlu0 %v3281, 96
    %v3796 = vpop.permute.xlu0 %3795
    %3797 = vrot.lane.b32.xlu0 %v3283, 96
    %v3798 = vpop.permute.xlu0 %3797
    %3799 = vrot.lane.b32.xlu0 %v3285, 96
    %v3800 = vpop.permute.xlu0 %3799
    %3801 = vrot.lane.b32.xlu0 %v3287, 96
    %v3802 = vpop.permute.xlu0 %3801
    %3819 = vst.msk [vmem:[#allocation3] sm:$0xff] %vm815, %v3772
    %3820 = vst.msk [vmem:[#allocation3 + $0x10] sm:$0xff] %vm815, %v3774
    %3821 = vst.msk [vmem:[#allocation3 + $0x20] sm:$0xff] %vm815, %v3776
    %3822 = vst.msk [vmem:[#allocation3 + $0x30] sm:$0xff] %vm815, %v3778
    %3823 = vst.msk [vmem:[#allocation3 + $0x40] sm:$0xff] %vm815, %v3780
    %3824 = vst.msk [vmem:[#allocation3 + $0x50] sm:$0xff] %vm815, %v3782
    %3825 = vst.msk [vmem:[#allocation3 + $0x60] sm:$0xff] %vm815, %v3784
    %3826 = vst.msk [vmem:[#allocation3 + $0x70] sm:$0xff] %vm815, %v3786
    %3827 = vst.msk [vmem:[#allocation3 + $0x80] sm:$0xff] %vm815, %v3788
    %3828 = vst.msk [vmem:[#allocation3 + $0x90] sm:$0xff] %vm815, %v3790
    %3829 = vst.msk [vmem:[#allocation3 + $0xa0] sm:$0xff] %vm815, %v3792
    %3830 = vst.msk [vmem:[#allocation3 + $0xb0] sm:$0xff] %vm815, %v3794
    %3831 = vst.msk [vmem:[#allocation3 + $0xc0] sm:$0xff] %vm815, %v3796
    %3832 = vst.msk [vmem:[#allocation3 + $0xd0] sm:$0xff] %vm815, %v3798
    %3833 = vst.msk [vmem:[#allocation3 + $0xe0] sm:$0xff] %vm815, %v3800
    %3834 = vst.msk [vmem:[#allocation3 + $0xf0] sm:$0xff] %vm815, %v3802
    %v3837 = vrot.slane %v3267, 1
    %v3838 = vrot.slane %v3268, 1
    %v3839 = vsel %vm326, %v3837, %v3838
    %v3840 = vrot.slane %v3287, 1
    %v3841 = vrot.slane %v3288, 1
    %v3842 = vsel %vm326, %v3840, %v3841
    %3843 = vrot.lane.b32.xlu0 %v3345, 112
    %v3844 = vpop.permute.xlu0 %3843
    %3845 = vrot.lane.b32.xlu0 %v3348, 112
    %v3846 = vpop.permute.xlu0 %3845
    %3847 = vrot.lane.b32.xlu0 %v3351, 112
    %v3848 = vpop.permute.xlu0 %3847
    %3849 = vrot.lane.b32.xlu0 %v3354, 112
    %v3850 = vpop.permute.xlu0 %3849
    %3851 = vrot.lane.b32.xlu0 %v3357, 112
    %v3852 = vpop.permute.xlu0 %3851
    %3853 = vrot.lane.b32.xlu0 %v3360, 112
    %v3854 = vpop.permute.xlu0 %3853
    %3855 = vrot.lane.b32.xlu0 %v3631, 112
    %v3856 = vpop.permute.xlu0 %3855
    %3857 = vrot.lane.b32.xlu0 %v3839, 112
    %v3858 = vpop.permute.xlu0 %3857
    %3859 = vrot.lane.b32.xlu0 %v3369, 112
    %v3860 = vpop.permute.xlu0 %3859
    %3861 = vrot.lane.b32.xlu0 %v3372, 112
    %v3862 = vpop.permute.xlu0 %3861
    %3863 = vrot.lane.b32.xlu0 %v3375, 112
    %v3864 = vpop.permute.xlu0 %3863
    %3865 = vrot.lane.b32.xlu0 %v3378, 112
    %v3866 = vpop.permute.xlu0 %3865
    %3867 = vrot.lane.b32.xlu0 %v3381, 112
    %v3868 = vpop.permute.xlu0 %3867
    %3869 = vrot.lane.b32.xlu0 %v3384, 112
    %v3870 = vpop.permute.xlu0 %3869
    %3871 = vrot.lane.b32.xlu0 %v3634, 112
    %v3872 = vpop.permute.xlu0 %3871
    %3873 = vrot.lane.b32.xlu0 %v3842, 112
    %v3874 = vpop.permute.xlu0 %3873
    %3891 = vst.msk [vmem:[#allocation3] sm:$0xff] %vm888, %v3844
    %3892 = vst.msk [vmem:[#allocation3 + $0x10] sm:$0xff] %vm888, %v3846
    %3893 = vst.msk [vmem:[#allocation3 + $0x20] sm:$0xff] %vm888, %v3848
    %3894 = vst.msk [vmem:[#allocation3 + $0x30] sm:$0xff] %vm888, %v3850
    %3895 = vst.msk [vmem:[#allocation3 + $0x40] sm:$0xff] %vm888, %v3852
    %3896 = vst.msk [vmem:[#allocation3 + $0x50] sm:$0xff] %vm888, %v3854
    %3897 = vst.msk [vmem:[#allocation3 + $0x60] sm:$0xff] %vm888, %v3856
    %3898 = vst.msk [vmem:[#allocation3 + $0x70] sm:$0xff] %vm888, %v3858
    %3899 = vst.msk [vmem:[#allocation3 + $0x80] sm:$0xff] %vm888, %v3860
    %3900 = vst.msk [vmem:[#allocation3 + $0x90] sm:$0xff] %vm888, %v3862
    %3901 = vst.msk [vmem:[#allocation3 + $0xa0] sm:$0xff] %vm888, %v3864
    %3902 = vst.msk [vmem:[#allocation3 + $0xb0] sm:$0xff] %vm888, %v3866
    %3903 = vst.msk [vmem:[#allocation3 + $0xc0] sm:$0xff] %vm888, %v3868
    %3904 = vst.msk [vmem:[#allocation3 + $0xd0] sm:$0xff] %vm888, %v3870
    %3905 = vst.msk [vmem:[#allocation3 + $0xe0] sm:$0xff] %vm888, %v3872
    %3906 = vst.msk [vmem:[#allocation3 + $0xf0] sm:$0xff] %vm888, %v3874
    %v3907 = vrot.slane %v3267, 2
    %v3908 = vrot.slane %v3268, 2
    %v3909 = vsel %vm440, %v3907, %v3908
    %v3910 = vrot.slane %v3287, 2
    %v3911 = vrot.slane %v3288, 2
    %v3912 = vsel %vm440, %v3910, %v3911
    %3929 = vst.msk [vmem:[#allocation3 + $0x8] sm:$0xff] %vm27, %v3457
    %3930 = vst.msk [vmem:[#allocation3 + $0x18] sm:$0xff] %vm27, %v3460
    %3931 = vst.msk [vmem:[#allocation3 + $0x28] sm:$0xff] %vm27, %v3463
    %3932 = vst.msk [vmem:[#allocation3 + $0x38] sm:$0xff] %vm27, %v3466
    %3933 = vst.msk [vmem:[#allocation3 + $0x48] sm:$0xff] %vm27, %v3469
    %3934 = vst.msk [vmem:[#allocation3 + $0x58] sm:$0xff] %vm27, %v3472
    %3935 = vst.msk [vmem:[#allocation3 + $0x68] sm:$0xff] %vm27, %v3701
    %3936 = vst.msk [vmem:[#allocation3 + $0x78] sm:$0xff] %vm27, %v3909
    %3937 = vst.msk [vmem:[#allocation3 + $0x88] sm:$0xff] %vm27, %v3481
    %3938 = vst.msk [vmem:[#allocation3 + $0x98] sm:$0xff] %vm27, %v3484
    %3939 = vst.msk [vmem:[#allocation3 + $0xa8] sm:$0xff] %vm27, %v3487
    %3940 = vst.msk [vmem:[#allocation3 + $0xb8] sm:$0xff] %vm27, %v3490
    %3941 = vst.msk [vmem:[#allocation3 + $0xc8] sm:$0xff] %vm27, %v3493
    %3942 = vst.msk [vmem:[#allocation3 + $0xd8] sm:$0xff] %vm27, %v3496
    %3943 = vst.msk [vmem:[#allocation3 + $0xe8] sm:$0xff] %vm27, %v3704
    %3944 = vst.msk [vmem:[#allocation3 + $0xf8] sm:$0xff] %vm27, %v3912
    %v3945 = vld [vmem:[#allocation3] sm:$0xff]
    %v3946 = vld [vmem:[#allocation3 + $0x8] sm:$0xff]
    %v3947 = vld [vmem:[#allocation3 + $0x10] sm:$0xff]
    %v3948 = vld [vmem:[#allocation3 + $0x18] sm:$0xff]
    %v3949 = vld [vmem:[#allocation3 + $0x20] sm:$0xff]
    %v3950 = vld [vmem:[#allocation3 + $0x28] sm:$0xff]
    %v3951 = vld [vmem:[#allocation3 + $0x30] sm:$0xff]
    %v3952 = vld [vmem:[#allocation3 + $0x38] sm:$0xff]
    %v3953 = vld [vmem:[#allocation3 + $0x40] sm:$0xff]
    %v3954 = vld [vmem:[#allocation3 + $0x48] sm:$0xff]
    %v3955 = vld [vmem:[#allocation3 + $0x50] sm:$0xff]
    %v3956 = vld [vmem:[#allocation3 + $0x58] sm:$0xff]
    %v3957 = vld [vmem:[#allocation3 + $0x60] sm:$0xff]
    %v3958 = vld [vmem:[#allocation3 + $0x68] sm:$0xff]
    %v3959 = vld [vmem:[#allocation3 + $0x70] sm:$0xff]
    %v3960 = vld [vmem:[#allocation3 + $0x78] sm:$0xff]
    %v3961 = vld [vmem:[#allocation3 + $0x80] sm:$0xff]
    %v3962 = vld [vmem:[#allocation3 + $0x88] sm:$0xff]
    %v3963 = vld [vmem:[#allocation3 + $0x90] sm:$0xff]
    %v3964 = vld [vmem:[#allocation3 + $0x98] sm:$0xff]
    %v3965 = vld [vmem:[#allocation3 + $0xa0] sm:$0xff]
    %v3966 = vld [vmem:[#allocation3 + $0xa8] sm:$0xff]
    %v3967 = vld [vmem:[#allocation3 + $0xb0] sm:$0xff]
    %v3968 = vld [vmem:[#allocation3 + $0xb8] sm:$0xff]
    %v3969 = vld [vmem:[#allocation3 + $0xc0] sm:$0xff]
    %v3970 = vld [vmem:[#allocation3 + $0xc8] sm:$0xff]
    %v3971 = vld [vmem:[#allocation3 + $0xd0] sm:$0xff]
    %v3972 = vld [vmem:[#allocation3 + $0xd8] sm:$0xff]
    %v3973 = vld [vmem:[#allocation3 + $0xe0] sm:$0xff]
    %v3974 = vld [vmem:[#allocation3 + $0xe8] sm:$0xff]
    %v3975 = vld [vmem:[#allocation3 + $0xf0] sm:$0xff]
    %v3976 = vld [vmem:[#allocation3 + $0xf8] sm:$0xff]
    %s3977 = scalar_lea.vmem %s1, 432
    %v3978 = vld [vmem:[%s3977] sm:$0xff]
    %v3979 = vld [vmem:[%s3977 + $0x8] sm:$0xff]
    %v3980 = vld [vmem:[%s3977 + $0x10] sm:$0xff]
    %v3981 = vld [vmem:[%s3977 + $0x18] sm:$0xff]
    %v3982 = vld [vmem:[%s3977 + $0x20] sm:$0xff]
    %v3983 = vld [vmem:[%s3977 + $0x28] sm:$0xff]
    %v3984 = vld [vmem:[%s3977 + $0x30] sm:$0xff]
    %v3985 = vld [vmem:[%s3977 + $0x38] sm:$0xff]
    %v3986 = vld [vmem:[%s3977 + $0x40] sm:$0xff]
    %v3987 = vld [vmem:[%s3977 + $0x48] sm:$0xff]
    %v3988 = vld [vmem:[%s3977 + $0x50] sm:$0xff]
    %v3989 = vld [vmem:[%s3977 + $0x58] sm:$0xff]
    %v3990 = vld [vmem:[%s3977 + $0x60] sm:$0xff]
    %v3991 = vld [vmem:[%s3977 + $0x68] sm:$0xff]
    %v3992 = vld [vmem:[%s3977 + $0x70] sm:$0xff]
    %v3993 = vld [vmem:[%s3977 + $0x78] sm:$0xff]
    %v3994 = vld [vmem:[%s3977 + $0x80] sm:$0xff]
    %v3995 = vld [vmem:[%s3977 + $0x88] sm:$0xff]
    %s3996 = scalar_lea.vmem %s2, 3
    %v3997 = vld [vmem:[%s3996] sm:$0x1]
    %v3999 = vlaneseq
    %v4000 = vshrl.u32 %v3999, 7
    %v4001 = vsub.s32 0, %v4000
    %v4002 = vrot.slane %v3997, %v4001
    %v4005 = vsel %vm27, %v3946, 0
    %v4008 = vsel %vm27, %v3948, 0
    %v4011 = vsel %vm27, %v3950, 0
    %v4014 = vsel %vm27, %v3952, 0
    %v4017 = vsel %vm27, %v3954, 0
    %v4020 = vsel %vm27, %v3956, 0
    %v4023 = vsel %vm27, %v3958, 0
    %v4026 = vsel %vm27, %v3960, 0
    %v4029 = vsel %vm27, %v3962, 0
    %v4032 = vsel %vm27, %v3964, 0
    %v4035 = vsel %vm27, %v3966, 0
    %v4038 = vsel %vm27, %v3968, 0
    %v4041 = vsel %vm27, %v3970, 0
    %v4044 = vsel %vm27, %v3972, 0
    %v4047 = vsel %vm27, %v3974, 0
    %v4050 = vsel %vm27, %v3976, 0
    %4052 = vmatprep.subr.mxu0 0.0
    %4053 = vmatpush1.msra.mxu0 %v3978
    %4054 = vmatprep.subr.mxu0 0.0
    %4055 = vmatpush1.msra.mxu0 %v3979
    %4056 = vmatprep.subr.mxu0 0.0
    %4057 = vmatpush1.msra.mxu0 %v3980
    %4058 = vmatprep.subr.mxu0 0.0
    %4059 = vmatpush1.msra.mxu0 %v3981
    %4060 = vmatprep.subr.mxu0 0.0
    %4061 = vmatpush1.msra.mxu0 %v3982
    %4062 = vmatprep.subr.mxu0 0.0
    %4063 = vmatpush1.msra.mxu0 %v3983
    %4064 = vmatprep.subr.mxu0 0.0
    %4065 = vmatpush1.msra.mxu0 %v3984
    %4066 = vmatprep.subr.mxu0 0.0
    %4067 = vmatpush1.msra.mxu0 %v3985
    %4068 = vmatprep.subr.mxu0 0.0
    %4069 = vmatpush1.msra.mxu0 %v3986
    %4070 = vmatprep.subr.mxu0 0.0
    %4071 = vmatpush1.msra.mxu0 %v3987
    %4072 = vmatprep.subr.mxu0 0.0
    %4073 = vmatpush1.msra.mxu0 %v3988
    %4074 = vmatprep.subr.mxu0 0.0
    %4075 = vmatpush1.msra.mxu0 %v3989
    %4076 = vmatprep.subr.mxu0 0.0
    %4077 = vmatpush1.msra.mxu0 %v3990
    %4078 = vmatprep.subr.mxu0 0.0
    %4079 = vmatpush1.msra.mxu0 %v3991
    %4080 = vmatprep.subr.mxu0 0.0
    %4081 = vmatpush1.msra.mxu0 %v3992
    %4082 = vmatprep.subr.mxu0 0.0
    %4083 = vmatpush1.msra.mxu0 %v3993
    %4084 = vmatprep.subr.mxu0 0.0
    %4085 = vmatpush1.msra.mxu0 %v3994
    %4086 = vmatprep.subr.mxu0 0.0
    %4087 = vmatpush1.msra.mxu0 %v3995
    %4088 = vmatprep.subr.mxu0 0.0
    %4089 = vmatpush1.msra.mxu0 0.0
    %4090 = vmatprep.subr.mxu0 0.0
    %4091 = vmatpush1.msra.mxu0 0.0
    %4092 = vmatprep.subr.mxu0 0.0
    %4093 = vmatpush1.msra.mxu0 0.0
    %4094 = vmatprep.subr.mxu0 0.0
    %4095 = vmatpush1.msra.mxu0 0.0
    %4096 = vmatprep.subr.mxu0 0.0
    %4097 = vmatpush1.msra.mxu0 0.0
    %4098 = vmatprep.subr.mxu0 0.0
    %4099 = vmatpush1.msra.mxu0 0.0
    %4100 = vmatprep.subr.mxu0 0.0
    %4101 = vmatpush1.msra.mxu0 0.0
    %4102 = vmatprep.subr.mxu0 0.0
    %4103 = vmatpush1.msra.mxu0 0.0
    %4104 = vmatprep.subr.mxu0 0.0
    %4105 = vmatpush1.msra.mxu0 0.0
    %4106 = vmatprep.subr.mxu0 0.0
    %4107 = vmatpush1.msra.mxu0 0.0
    %4108 = vmatprep.subr.mxu0 0.0
    %4109 = vmatpush1.msra.mxu0 0.0
    %4110 = vmatprep.subr.mxu0 0.0
    %4111 = vmatpush1.msra.mxu0 0.0
    %4112 = vmatprep.subr.mxu0 0.0
    %4113 = vmatpush1.msra.mxu0 0.0
    %4114 = vmatprep.subr.mxu0 0.0
    %4115 = vmatpush1.msra.mxu0 0.0
    %4116 = vmatprep.mubr.f32.mxu0 %v4005
    %4117 = vmatmul.mubr.f32.gmra.mrb[0].mxu0 %v3945
    %v4118 = vpop.f32.mrb[0].mxu0
    %v4119 = vadd.f32 %v4002, %v4118
    %v4120 = vpop.f32.mrb[0].mxu0
    %4121 = vmatprep.mubr.f32.mxu0 %v4008
    %4122 = vmatmul.mubr.f32.gmra.mrb[0].mxu0 %v3947
    %v4123 = vpop.f32.mrb[0].mxu0
    %v4124 = vadd.f32 %v4002, %v4123
    %v4125 = vpop.f32.mrb[0].mxu0
    %4126 = vmatprep.mubr.f32.mxu0 %v4011
    %4127 = vmatmul.mubr.f32.gmra.mrb[0].mxu0 %v3949
    %v4128 = vpop.f32.mrb[0].mxu0
    %v4129 = vadd.f32 %v4002, %v4128
    %v4130 = vpop.f32.mrb[0].mxu0
    %4131 = vmatprep.mubr.f32.mxu0 %v4014
    %4132 = vmatmul.mubr.f32.gmra.mrb[0].mxu0 %v3951
    %v4133 = vpop.f32.mrb[0].mxu0
    %v4134 = vadd.f32 %v4002, %v4133
    %v4135 = vpop.f32.mrb[0].mxu0
    %4136 = vmatprep.mubr.f32.mxu0 %v4017
    %4137 = vmatmul.mubr.f32.gmra.mrb[0].mxu0 %v3953
    %v4138 = vpop.f32.mrb[0].mxu0
    %v4139 = vadd.f32 %v4002, %v4138
    %v4140 = vpop.f32.mrb[0].mxu0
    %4141 = vmatprep.mubr.f32.mxu0 %v4020
    %4142 = vmatmul.mubr.f32.gmra.mrb[0].mxu0 %v3955
    %v4143 = vpop.f32.mrb[0].mxu0
    %v4144 = vadd.f32 %v4002, %v4143
    %v4145 = vpop.f32.mrb[0].mxu0
    %4146 = vmatprep.mubr.f32.mxu0 %v4023
    %4147 = vmatmul.mubr.f32.gmra.mrb[0].mxu0 %v3957
    %v4148 = vpop.f32.mrb[0].mxu0
    %v4149 = vadd.f32 %v4002, %v4148
    %v4150 = vpop.f32.mrb[0].mxu0
    %4151 = vmatprep.mubr.f32.mxu0 %v4026
    %4152 = vmatmul.mubr.f32.gmra.mrb[0].mxu0 %v3959
    %v4153 = vpop.f32.mrb[0].mxu0
    %v4154 = vadd.f32 %v4002, %v4153
    %v4155 = vpop.f32.mrb[0].mxu0
    %4156 = vmatprep.mubr.f32.mxu0 %v4029
    %4157 = vmatmul.mubr.f32.gmra.mrb[0].mxu0 %v3961
    %v4158 = vpop.f32.mrb[0].mxu0
    %v4159 = vadd.f32 %v4002, %v4158
    %v4160 = vpop.f32.mrb[0].mxu0
    %4161 = vmatprep.mubr.f32.mxu0 %v4032
    %4162 = vmatmul.mubr.f32.gmra.mrb[0].mxu0 %v3963
    %v4163 = vpop.f32.mrb[0].mxu0
    %v4164 = vadd.f32 %v4002, %v4163
    %v4165 = vpop.f32.mrb[0].mxu0
    %4166 = vmatprep.mubr.f32.mxu0 %v4035
    %4167 = vmatmul.mubr.f32.gmra.mrb[0].mxu0 %v3965
    %v4168 = vpop.f32.mrb[0].mxu0
    %v4169 = vadd.f32 %v4002, %v4168
    %v4170 = vpop.f32.mrb[0].mxu0
    %4171 = vmatprep.mubr.f32.mxu0 %v4038
    %4172 = vmatmul.mubr.f32.gmra.mrb[0].mxu0 %v3967
    %v4173 = vpop.f32.mrb[0].mxu0
    %v4174 = vadd.f32 %v4002, %v4173
    %v4175 = vpop.f32.mrb[0].mxu0
    %4176 = vmatprep.mubr.f32.mxu0 %v4041
    %4177 = vmatmul.mubr.f32.gmra.mrb[0].mxu0 %v3969
    %v4178 = vpop.f32.mrb[0].mxu0
    %v4179 = vadd.f32 %v4002, %v4178
    %v4180 = vpop.f32.mrb[0].mxu0
    %4181 = vmatprep.mubr.f32.mxu0 %v4044
    %4182 = vmatmul.mubr.f32.gmra.mrb[0].mxu0 %v3971
    %v4183 = vpop.f32.mrb[0].mxu0
    %v4184 = vadd.f32 %v4002, %v4183
    %v4185 = vpop.f32.mrb[0].mxu0
    %4186 = vmatprep.mubr.f32.mxu0 %v4047
    %4187 = vmatmul.mubr.f32.gmra.mrb[0].mxu0 %v3973
    %v4188 = vpop.f32.mrb[0].mxu0
    %v4189 = vadd.f32 %v4002, %v4188
    %v4190 = vpop.f32.mrb[0].mxu0
    %4191 = vmatprep.mubr.f32.mxu0 %v4050
    %4192 = vmatmul.mubr.f32.gmra.mrb[0].mxu0 %v3975
    %v4193 = vpop.f32.mrb[0].mxu0
    %v4194 = vadd.f32 %v4002, %v4193
    %v4195 = vpop.f32.mrb[0].mxu0
    %4196 = vdwg.mxu0
    %v4197 = vadd.f32 %v4119, %v2221
    %v4198 = vadd.f32 %v4124, %v2222
    %v4199 = vadd.f32 %v4129, %v2223
    %v4200 = vadd.f32 %v4134, %v2224
    %v4201 = vadd.f32 %v4139, %v2225
    %v4202 = vadd.f32 %v4144, %v2226
    %v4203 = vadd.f32 %v4149, %v2227
    %v4204 = vadd.f32 %v4154, %v2228
    %v4205 = vadd.f32 %v4159, %v2229
    %v4206 = vadd.f32 %v4164, %v2230
    %v4207 = vadd.f32 %v4169, %v2231
    %v4208 = vadd.f32 %v4174, %v2232
    %v4209 = vadd.f32 %v4179, %v2233
    %v4210 = vadd.f32 %v4184, %v2234
    %v4211 = vadd.f32 %v4189, %v2235
    %v4212 = vadd.f32 %v4194, %v2236
    %v4213 = vmax.f32 %v4197, 0.0
    %v4214 = vmax.f32 %v4198, 0.0
    %v4215 = vmax.f32 %v4199, 0.0
    %v4216 = vmax.f32 %v4200, 0.0
    %v4217 = vmax.f32 %v4201, 0.0
    %v4218 = vmax.f32 %v4202, 0.0
    %v4219 = vmax.f32 %v4203, 0.0
    %v4220 = vmax.f32 %v4204, 0.0
    %v4221 = vmax.f32 %v4205, 0.0
    %v4222 = vmax.f32 %v4206, 0.0
    %v4223 = vmax.f32 %v4207, 0.0
    %v4224 = vmax.f32 %v4208, 0.0
    %v4225 = vmax.f32 %v4209, 0.0
    %v4226 = vmax.f32 %v4210, 0.0
    %v4227 = vmax.f32 %v4211, 0.0
    %v4228 = vmax.f32 %v4212, 0.0
    %v4229 = vmul.f32 %v4213, %v96
    %v4230 = vmul.f32 %v4214, %v96
    %v4231 = vmul.f32 %v4215, %v96
    %v4232 = vmul.f32 %v4216, %v96
    %v4233 = vmul.f32 %v4217, %v96
    %v4234 = vmul.f32 %v4218, %v96
    %v4235 = vmul.f32 %v4219, %v96
    %v4236 = vmul.f32 %v4220, %v96
    %v4237 = vmul.f32 %v4221, %v100
    %v4238 = vmul.f32 %v4222, %v100
    %v4239 = vmul.f32 %v4223, %v100
    %v4240 = vmul.f32 %v4224, %v100
    %v4241 = vmul.f32 %v4225, %v100
    %v4242 = vmul.f32 %v4226, %v100
    %v4243 = vmul.f32 %v4227, %v100
    %v4244 = vmul.f32 %v4228, %v100
    %4245 = vst.msk [vmem:[%s221 + $0x1] sm:$0xff] %vm27, %v4229
    %4246 = vst.msk [vmem:[%s221 + $0x11] sm:$0xff] %vm27, %v4230
    %4247 = vst.msk [vmem:[%s221 + $0x21] sm:$0xff] %vm27, %v4231
    %4248 = vst.msk [vmem:[%s221 + $0x31] sm:$0xff] %vm27, %v4232
    %4249 = vst.msk [vmem:[%s221 + $0x41] sm:$0xff] %vm27, %v4233
    %4250 = vst.msk [vmem:[%s221 + $0x51] sm:$0xff] %vm27, %v4234
    %4251 = vst.msk [vmem:[%s221 + $0x61] sm:$0xff] %vm27, %v4235
    %4252 = vst.msk [vmem:[%s221 + $0x71] sm:$0xff] %vm27, %v4236
    %4253 = vst.msk [vmem:[%s221 + $0xa1] sm:$0xff] %vm27, %v4237
    %4254 = vst.msk [vmem:[%s221 + $0xb1] sm:$0xff] %vm27, %v4238
    %4255 = vst.msk [vmem:[%s221 + $0xc1] sm:$0xff] %vm27, %v4239
    %4256 = vst.msk [vmem:[%s221 + $0xd1] sm:$0xff] %vm27, %v4240
    %4257 = vst.msk [vmem:[%s221 + $0xe1] sm:$0xff] %vm27, %v4241
    %4258 = vst.msk [vmem:[%s221 + $0xf1] sm:$0xff] %vm27, %v4242
    %4259 = vst.msk [vmem:[%s221 + $0x101] sm:$0xff] %vm27, %v4243
    %4260 = vst.msk [vmem:[%s221 + $0x111] sm:$0xff] %vm27, %v4244
    %v4261 = vld [vmem:[#allocation2] sm:$0xff]
    %v4262 = vld [vmem:[#allocation2 + $0x8] sm:$0x3]
    %v4263 = vld [vmem:[#allocation2 + $0x10] sm:$0xff]
    %v4264 = vld [vmem:[#allocation2 + $0x18] sm:$0x3]
    %v4265 = vld [vmem:[#allocation2 + $0x20] sm:$0xff]
    %v4266 = vld [vmem:[#allocation2 + $0x28] sm:$0x3]
    %v4267 = vld [vmem:[#allocation2 + $0x30] sm:$0xff]
    %v4268 = vld [vmem:[#allocation2 + $0x38] sm:$0x3]
    %v4269 = vld [vmem:[#allocation2 + $0x40] sm:$0xff]
    %v4270 = vld [vmem:[#allocation2 + $0x48] sm:$0x3]
    %v4271 = vld [vmem:[#allocation2 + $0x50] sm:$0xff]
    %v4272 = vld [vmem:[#allocation2 + $0x58] sm:$0x3]
    %v4273 = vld [vmem:[#allocation2 + $0x60] sm:$0xff]
    %v4274 = vld [vmem:[#allocation2 + $0x68] sm:$0x3]
    %v4275 = vld [vmem:[#allocation2 + $0x70] sm:$0xff]
    %v4276 = vld [vmem:[#allocation2 + $0x78] sm:$0x3]
    %v4277 = vld [vmem:[#allocation2 + $0x80] sm:$0xff]
    %v4278 = vld [vmem:[#allocation2 + $0x88] sm:$0x3]
    %v4279 = vld [vmem:[#allocation2 + $0x90] sm:$0xff]
    %v4280 = vld [vmem:[#allocation2 + $0x98] sm:$0x3]
    %v4281 = vld [vmem:[#allocation2 + $0xa0] sm:$0xff]
    %v4282 = vld [vmem:[#allocation2 + $0xa8] sm:$0x3]
    %v4283 = vld [vmem:[#allocation2 + $0xb0] sm:$0xff]
    %v4284 = vld [vmem:[#allocation2 + $0xb8] sm:$0x3]
    %v4285 = vld [vmem:[#allocation2 + $0xc0] sm:$0xff]
    %v4286 = vld [vmem:[#allocation2 + $0xc8] sm:$0x3]
    %v4287 = vld [vmem:[#allocation2 + $0xd0] sm:$0xff]
    %v4288 = vld [vmem:[#allocation2 + $0xd8] sm:$0x3]
    %v4289 = vld [vmem:[#allocation2 + $0xe0] sm:$0xff]
    %v4290 = vld [vmem:[#allocation2 + $0xe8] sm:$0x3]
    %v4291 = vld [vmem:[#allocation2 + $0xf0] sm:$0xff]
    %v4292 = vld [vmem:[#allocation2 + $0xf8] sm:$0x3]
    %v4293 = vld [vmem:[#allocation2 + $0x100] sm:$0xff]
    %v4294 = vld [vmem:[#allocation2 + $0x108] sm:$0x3]
    %v4295 = vld [vmem:[#allocation2 + $0x110] sm:$0xff]
    %v4296 = vld [vmem:[#allocation2 + $0x118] sm:$0x3]
    %v4297 = vld [vmem:[#allocation2 + $0x120] sm:$0xff]
    %v4298 = vld [vmem:[#allocation2 + $0x128] sm:$0x3]
    %v4299 = vld [vmem:[#allocation2 + $0x130] sm:$0xff]
    %v4300 = vld [vmem:[#allocation2 + $0x138] sm:$0x3]
    %4301 = vst.msk [vmem:[#allocation3] sm:$0xff] %vm27, %v4261
    %4302 = vst.msk [vmem:[#allocation3 + $0x10] sm:$0xff] %vm27, %v4263
    %4303 = vst.msk [vmem:[#allocation3 + $0x20] sm:$0xff] %vm27, %v4265
    %4304 = vst.msk [vmem:[#allocation3 + $0x30] sm:$0xff] %vm27, %v4267
    %4305 = vst.msk [vmem:[#allocation3 + $0x40] sm:$0xff] %vm27, %v4269
    %4306 = vst.msk [vmem:[#allocation3 + $0x50] sm:$0xff] %vm27, %v4271
    %4307 = vst.msk [vmem:[#allocation3 + $0x60] sm:$0xff] %vm27, %v4273
    %4308 = vst.msk [vmem:[#allocation3 + $0x70] sm:$0xff] %vm27, %v4275
    %4309 = vst.msk [vmem:[#allocation3 + $0x80] sm:$0xff] %vm27, %v4281
    %4310 = vst.msk [vmem:[#allocation3 + $0x90] sm:$0xff] %vm27, %v4283
    %4311 = vst.msk [vmem:[#allocation3 + $0xa0] sm:$0xff] %vm27, %v4285
    %4312 = vst.msk [vmem:[#allocation3 + $0xb0] sm:$0xff] %vm27, %v4287
    %4313 = vst.msk [vmem:[#allocation3 + $0xc0] sm:$0xff] %vm27, %v4289
    %4314 = vst.msk [vmem:[#allocation3 + $0xd0] sm:$0xff] %vm27, %v4291
    %4315 = vst.msk [vmem:[#allocation3 + $0xe0] sm:$0xff] %vm27, %v4293
    %4316 = vst.msk [vmem:[#allocation3 + $0xf0] sm:$0xff] %vm27, %v4295
    %v4349 = vrot.slane %v4261, 1
    %v4350 = vrot.slane %v4262, 1
    %v4351 = vsel %vm326, %v4349, %v4350
    %v4352 = vrot.slane %v4263, 1
    %v4353 = vrot.slane %v4264, 1
    %v4354 = vsel %vm326, %v4352, %v4353
    %v4355 = vrot.slane %v4265, 1
    %v4356 = vrot.slane %v4266, 1
    %v4357 = vsel %vm326, %v4355, %v4356
    %v4358 = vrot.slane %v4267, 1
    %v4359 = vrot.slane %v4268, 1
    %v4360 = vsel %vm326, %v4358, %v4359
    %v4361 = vrot.slane %v4269, 1
    %v4362 = vrot.slane %v4270, 1
    %v4363 = vsel %vm326, %v4361, %v4362
    %v4364 = vrot.slane %v4271, 1
    %v4365 = vrot.slane %v4272, 1
    %v4366 = vsel %vm326, %v4364, %v4365
    %v4367 = vrot.slane %v4273, 1
    %v4368 = vrot.slane %v4274, 1
    %v4369 = vsel %vm326, %v4367, %v4368
    %v4370 = vrot.slane %v4275, 1
    %v4371 = vrot.slane %v4276, 1
    %v4372 = vsel %vm326, %v4370, %v4371
    %v4373 = vrot.slane %v4281, 1
    %v4374 = vrot.slane %v4282, 1
    %v4375 = vsel %vm326, %v4373, %v4374
    %v4376 = vrot.slane %v4283, 1
    %v4377 = vrot.slane %v4284, 1
    %v4378 = vsel %vm326, %v4376, %v4377
    %v4379 = vrot.slane %v4285, 1
    %v4380 = vrot.slane %v4286, 1
    %v4381 = vsel %vm326, %v4379, %v4380
    %v4382 = vrot.slane %v4287, 1
    %v4383 = vrot.slane %v4288, 1
    %v4384 = vsel %vm326, %v4382, %v4383
    %v4385 = vrot.slane %v4289, 1
    %v4386 = vrot.slane %v4290, 1
    %v4387 = vsel %vm326, %v4385, %v4386
    %v4388 = vrot.slane %v4291, 1
    %v4389 = vrot.slane %v4292, 1
    %v4390 = vsel %vm326, %v4388, %v4389
    %v4391 = vrot.slane %v4293, 1
    %v4392 = vrot.slane %v4294, 1
    %v4393 = vsel %vm326, %v4391, %v4392
    %v4394 = vrot.slane %v4295, 1
    %v4395 = vrot.slane %v4296, 1
    %v4396 = vsel %vm326, %v4394, %v4395
    %4397 = vrot.lane.b32.xlu0 %v4351, 16
    %v4398 = vpop.permute.xlu0 %4397
    %4399 = vrot.lane.b32.xlu0 %v4354, 16
    %v4400 = vpop.permute.xlu0 %4399
    %4401 = vrot.lane.b32.xlu0 %v4357, 16
    %v4402 = vpop.permute.xlu0 %4401
    %4403 = vrot.lane.b32.xlu0 %v4360, 16
    %v4404 = vpop.permute.xlu0 %4403
    %4405 = vrot.lane.b32.xlu0 %v4363, 16
    %v4406 = vpop.permute.xlu0 %4405
    %4407 = vrot.lane.b32.xlu0 %v4366, 16
    %v4408 = vpop.permute.xlu0 %4407
    %4409 = vrot.lane.b32.xlu0 %v4369, 16
    %v4410 = vpop.permute.xlu0 %4409
    %4411 = vrot.lane.b32.xlu0 %v4372, 16
    %v4412 = vpop.permute.xlu0 %4411
    %4413 = vrot.lane.b32.xlu0 %v4375, 16
    %v4414 = vpop.permute.xlu0 %4413
    %4415 = vrot.lane.b32.xlu0 %v4378, 16
    %v4416 = vpop.permute.xlu0 %4415
    %4417 = vrot.lane.b32.xlu0 %v4381, 16
    %v4418 = vpop.permute.xlu0 %4417
    %4419 = vrot.lane.b32.xlu0 %v4384, 16
    %v4420 = vpop.permute.xlu0 %4419
    %4421 = vrot.lane.b32.xlu0 %v4387, 16
    %v4422 = vpop.permute.xlu0 %4421
    %4423 = vrot.lane.b32.xlu0 %v4390, 16
    %v4424 = vpop.permute.xlu0 %4423
    %4425 = vrot.lane.b32.xlu0 %v4393, 16
    %v4426 = vpop.permute.xlu0 %4425
    %4427 = vrot.lane.b32.xlu0 %v4396, 16
    %v4428 = vpop.permute.xlu0 %4427
    %4445 = vst.msk [vmem:[#allocation3] sm:$0xff] %vm423, %v4398
    %4446 = vst.msk [vmem:[#allocation3 + $0x10] sm:$0xff] %vm423, %v4400
    %4447 = vst.msk [vmem:[#allocation3 + $0x20] sm:$0xff] %vm423, %v4402
    %4448 = vst.msk [vmem:[#allocation3 + $0x30] sm:$0xff] %vm423, %v4404
    %4449 = vst.msk [vmem:[#allocation3 + $0x40] sm:$0xff] %vm423, %v4406
    %4450 = vst.msk [vmem:[#allocation3 + $0x50] sm:$0xff] %vm423, %v4408
    %4451 = vst.msk [vmem:[#allocation3 + $0x60] sm:$0xff] %vm423, %v4410
    %4452 = vst.msk [vmem:[#allocation3 + $0x70] sm:$0xff] %vm423, %v4412
    %4453 = vst.msk [vmem:[#allocation3 + $0x80] sm:$0xff] %vm423, %v4414
    %4454 = vst.msk [vmem:[#allocation3 + $0x90] sm:$0xff] %vm423, %v4416
    %4455 = vst.msk [vmem:[#allocation3 + $0xa0] sm:$0xff] %vm423, %v4418
    %4456 = vst.msk [vmem:[#allocation3 + $0xb0] sm:$0xff] %vm423, %v4420
    %4457 = vst.msk [vmem:[#allocation3 + $0xc0] sm:$0xff] %vm423, %v4422
    %4458 = vst.msk [vmem:[#allocation3 + $0xd0] sm:$0xff] %vm423, %v4424
    %4459 = vst.msk [vmem:[#allocation3 + $0xe0] sm:$0xff] %vm423, %v4426
    %4460 = vst.msk [vmem:[#allocation3 + $0xf0] sm:$0xff] %vm423, %v4428
    %v4461 = vrot.slane %v4261, 2
    %v4462 = vrot.slane %v4262, 2
    %v4463 = vsel %vm440, %v4461, %v4462
    %v4464 = vrot.slane %v4263, 2
    %v4465 = vrot.slane %v4264, 2
    %v4466 = vsel %vm440, %v4464, %v4465
    %v4467 = vrot.slane %v4265, 2
    %v4468 = vrot.slane %v4266, 2
    %v4469 = vsel %vm440, %v4467, %v4468
    %v4470 = vrot.slane %v4267, 2
    %v4471 = vrot.slane %v4268, 2
    %v4472 = vsel %vm440, %v4470, %v4471
    %v4473 = vrot.slane %v4269, 2
    %v4474 = vrot.slane %v4270, 2
    %v4475 = vsel %vm440, %v4473, %v4474
    %v4476 = vrot.slane %v4271, 2
    %v4477 = vrot.slane %v4272, 2
    %v4478 = vsel %vm440, %v4476, %v4477
    %v4479 = vrot.slane %v4273, 2
    %v4480 = vrot.slane %v4274, 2
    %v4481 = vsel %vm440, %v4479, %v4480
    %v4482 = vrot.slane %v4275, 2
    %v4483 = vrot.slane %v4276, 2
    %v4484 = vsel %vm440, %v4482, %v4483
    %v4485 = vrot.slane %v4281, 2
    %v4486 = vrot.slane %v4282, 2
    %v4487 = vsel %vm440, %v4485, %v4486
    %v4488 = vrot.slane %v4283, 2
    %v4489 = vrot.slane %v4284, 2
    %v4490 = vsel %vm440, %v4488, %v4489
    %v4491 = vrot.slane %v4285, 2
    %v4492 = vrot.slane %v4286, 2
    %v4493 = vsel %vm440, %v4491, %v4492
    %v4494 = vrot.slane %v4287, 2
    %v4495 = vrot.slane %v4288, 2
    %v4496 = vsel %vm440, %v4494, %v4495
    %v4497 = vrot.slane %v4289, 2
    %v4498 = vrot.slane %v4290, 2
    %v4499 = vsel %vm440, %v4497, %v4498
    %v4500 = vrot.slane %v4291, 2
    %v4501 = vrot.slane %v4292, 2
    %v4502 = vsel %vm440, %v4500, %v4501
    %v4503 = vrot.slane %v4293, 2
    %v4504 = vrot.slane %v4294, 2
    %v4505 = vsel %vm440, %v4503, %v4504
    %v4506 = vrot.slane %v4295, 2
    %v4507 = vrot.slane %v4296, 2
    %v4508 = vsel %vm440, %v4506, %v4507
    %4509 = vrot.lane.b32.xlu0 %v4463, 32
    %v4510 = vpop.permute.xlu0 %4509
    %4511 = vrot.lane.b32.xlu0 %v4466, 32
    %v4512 = vpop.permute.xlu0 %4511
    %4513 = vrot.lane.b32.xlu0 %v4469, 32
    %v4514 = vpop.permute.xlu0 %4513
    %4515 = vrot.lane.b32.xlu0 %v4472, 32
    %v4516 = vpop.permute.xlu0 %4515
    %4517 = vrot.lane.b32.xlu0 %v4475, 32
    %v4518 = vpop.permute.xlu0 %4517
    %4519 = vrot.lane.b32.xlu0 %v4478, 32
    %v4520 = vpop.permute.xlu0 %4519
    %4521 = vrot.lane.b32.xlu0 %v4481, 32
    %v4522 = vpop.permute.xlu0 %4521
    %4523 = vrot.lane.b32.xlu0 %v4484, 32
    %v4524 = vpop.permute.xlu0 %4523
    %4525 = vrot.lane.b32.xlu0 %v4487, 32
    %v4526 = vpop.permute.xlu0 %4525
    %4527 = vrot.lane.b32.xlu0 %v4490, 32
    %v4528 = vpop.permute.xlu0 %4527
    %4529 = vrot.lane.b32.xlu0 %v4493, 32
    %v4530 = vpop.permute.xlu0 %4529
    %4531 = vrot.lane.b32.xlu0 %v4496, 32
    %v4532 = vpop.permute.xlu0 %4531
    %4533 = vrot.lane.b32.xlu0 %v4499, 32
    %v4534 = vpop.permute.xlu0 %4533
    %4535 = vrot.lane.b32.xlu0 %v4502, 32
    %v4536 = vpop.permute.xlu0 %4535
    %4537 = vrot.lane.b32.xlu0 %v4505, 32
    %v4538 = vpop.permute.xlu0 %4537
    %4539 = vrot.lane.b32.xlu0 %v4508, 32
    %v4540 = vpop.permute.xlu0 %4539
    %4557 = vst.msk [vmem:[#allocation3] sm:$0xff] %vm537, %v4510
    %4558 = vst.msk [vmem:[#allocation3 + $0x10] sm:$0xff] %vm537, %v4512
    %4559 = vst.msk [vmem:[#allocation3 + $0x20] sm:$0xff] %vm537, %v4514
    %4560 = vst.msk [vmem:[#allocation3 + $0x30] sm:$0xff] %vm537, %v4516
    %4561 = vst.msk [vmem:[#allocation3 + $0x40] sm:$0xff] %vm537, %v4518
    %4562 = vst.msk [vmem:[#allocation3 + $0x50] sm:$0xff] %vm537, %v4520
    %4563 = vst.msk [vmem:[#allocation3 + $0x60] sm:$0xff] %vm537, %v4522
    %4564 = vst.msk [vmem:[#allocation3 + $0x70] sm:$0xff] %vm537, %v4524
    %4565 = vst.msk [vmem:[#allocation3 + $0x80] sm:$0xff] %vm537, %v4526
    %4566 = vst.msk [vmem:[#allocation3 + $0x90] sm:$0xff] %vm537, %v4528
    %4567 = vst.msk [vmem:[#allocation3 + $0xa0] sm:$0xff] %vm537, %v4530
    %4568 = vst.msk [vmem:[#allocation3 + $0xb0] sm:$0xff] %vm537, %v4532
    %4569 = vst.msk [vmem:[#allocation3 + $0xc0] sm:$0xff] %vm537, %v4534
    %4570 = vst.msk [vmem:[#allocation3 + $0xd0] sm:$0xff] %vm537, %v4536
    %4571 = vst.msk [vmem:[#allocation3 + $0xe0] sm:$0xff] %vm537, %v4538
    %4572 = vst.msk [vmem:[#allocation3 + $0xf0] sm:$0xff] %vm537, %v4540
    %4575 = vrot.lane.b32.xlu0 %v4263, 48
    %v4576 = vpop.permute.xlu0 %4575
    %4577 = vrot.lane.b32.xlu0 %v4265, 48
    %v4578 = vpop.permute.xlu0 %4577
    %4579 = vrot.lane.b32.xlu0 %v4267, 48
    %v4580 = vpop.permute.xlu0 %4579
    %4581 = vrot.lane.b32.xlu0 %v4269, 48
    %v4582 = vpop.permute.xlu0 %4581
    %4583 = vrot.lane.b32.xlu0 %v4271, 48
    %v4584 = vpop.permute.xlu0 %4583
    %4585 = vrot.lane.b32.xlu0 %v4273, 48
    %v4586 = vpop.permute.xlu0 %4585
    %4587 = vrot.lane.b32.xlu0 %v4275, 48
    %v4588 = vpop.permute.xlu0 %4587
    %4589 = vrot.lane.b32.xlu0 %v4277, 48
    %v4590 = vpop.permute.xlu0 %4589
    %4591 = vrot.lane.b32.xlu0 %v4283, 48
    %v4592 = vpop.permute.xlu0 %4591
    %4593 = vrot.lane.b32.xlu0 %v4285, 48
    %v4594 = vpop.permute.xlu0 %4593
    %4595 = vrot.lane.b32.xlu0 %v4287, 48
    %v4596 = vpop.permute.xlu0 %4595
    %4597 = vrot.lane.b32.xlu0 %v4289, 48
    %v4598 = vpop.permute.xlu0 %4597
    %4599 = vrot.lane.b32.xlu0 %v4291, 48
    %v4600 = vpop.permute.xlu0 %4599
    %4601 = vrot.lane.b32.xlu0 %v4293, 48
    %v4602 = vpop.permute.xlu0 %4601
    %4603 = vrot.lane.b32.xlu0 %v4295, 48
    %v4604 = vpop.permute.xlu0 %4603
    %4605 = vrot.lane.b32.xlu0 %v4297, 48
    %v4606 = vpop.permute.xlu0 %4605
    %4623 = vst.msk [vmem:[#allocation3] sm:$0xff] %vm604, %v4576
    %4624 = vst.msk [vmem:[#allocation3 + $0x10] sm:$0xff] %vm604, %v4578
    %4625 = vst.msk [vmem:[#allocation3 + $0x20] sm:$0xff] %vm604, %v4580
    %4626 = vst.msk [vmem:[#allocation3 + $0x30] sm:$0xff] %vm604, %v4582
    %4627 = vst.msk [vmem:[#allocation3 + $0x40] sm:$0xff] %vm604, %v4584
    %4628 = vst.msk [vmem:[#allocation3 + $0x50] sm:$0xff] %vm604, %v4586
    %4629 = vst.msk [vmem:[#allocation3 + $0x60] sm:$0xff] %vm604, %v4588
    %4630 = vst.msk [vmem:[#allocation3 + $0x70] sm:$0xff] %vm604, %v4590
    %4631 = vst.msk [vmem:[#allocation3 + $0x80] sm:$0xff] %vm604, %v4592
    %4632 = vst.msk [vmem:[#allocation3 + $0x90] sm:$0xff] %vm604, %v4594
    %4633 = vst.msk [vmem:[#allocation3 + $0xa0] sm:$0xff] %vm604, %v4596
    %4634 = vst.msk [vmem:[#allocation3 + $0xb0] sm:$0xff] %vm604, %v4598
    %4635 = vst.msk [vmem:[#allocation3 + $0xc0] sm:$0xff] %vm604, %v4600
    %4636 = vst.msk [vmem:[#allocation3 + $0xd0] sm:$0xff] %vm604, %v4602
    %4637 = vst.msk [vmem:[#allocation3 + $0xe0] sm:$0xff] %vm604, %v4604
    %4638 = vst.msk [vmem:[#allocation3 + $0xf0] sm:$0xff] %vm604, %v4606
    %v4641 = vrot.slane %v4277, 1
    %v4642 = vrot.slane %v4278, 1
    %v4643 = vsel %vm326, %v4641, %v4642
    %v4644 = vrot.slane %v4297, 1
    %v4645 = vrot.slane %v4298, 1
    %v4646 = vsel %vm326, %v4644, %v4645
    %4647 = vrot.lane.b32.xlu0 %v4354, 64
    %v4648 = vpop.permute.xlu0 %4647
    %4649 = vrot.lane.b32.xlu0 %v4357, 64
    %v4650 = vpop.permute.xlu0 %4649
    %4651 = vrot.lane.b32.xlu0 %v4360, 64
    %v4652 = vpop.permute.xlu0 %4651
    %4653 = vrot.lane.b32.xlu0 %v4363, 64
    %v4654 = vpop.permute.xlu0 %4653
    %4655 = vrot.lane.b32.xlu0 %v4366, 64
    %v4656 = vpop.permute.xlu0 %4655
    %4657 = vrot.lane.b32.xlu0 %v4369, 64
    %v4658 = vpop.permute.xlu0 %4657
    %4659 = vrot.lane.b32.xlu0 %v4372, 64
    %v4660 = vpop.permute.xlu0 %4659
    %4661 = vrot.lane.b32.xlu0 %v4643, 64
    %v4662 = vpop.permute.xlu0 %4661
    %4663 = vrot.lane.b32.xlu0 %v4378, 64
    %v4664 = vpop.permute.xlu0 %4663
    %4665 = vrot.lane.b32.xlu0 %v4381, 64
    %v4666 = vpop.permute.xlu0 %4665
    %4667 = vrot.lane.b32.xlu0 %v4384, 64
    %v4668 = vpop.permute.xlu0 %4667
    %4669 = vrot.lane.b32.xlu0 %v4387, 64
    %v4670 = vpop.permute.xlu0 %4669
    %4671 = vrot.lane.b32.xlu0 %v4390, 64
    %v4672 = vpop.permute.xlu0 %4671
    %4673 = vrot.lane.b32.xlu0 %v4393, 64
    %v4674 = vpop.permute.xlu0 %4673
    %4675 = vrot.lane.b32.xlu0 %v4396, 64
    %v4676 = vpop.permute.xlu0 %4675
    %4677 = vrot.lane.b32.xlu0 %v4646, 64
    %v4678 = vpop.permute.xlu0 %4677
    %4695 = vst.msk [vmem:[#allocation3] sm:$0xff] %vm677, %v4648
    %4696 = vst.msk [vmem:[#allocation3 + $0x10] sm:$0xff] %vm677, %v4650
    %4697 = vst.msk [vmem:[#allocation3 + $0x20] sm:$0xff] %vm677, %v4652
    %4698 = vst.msk [vmem:[#allocation3 + $0x30] sm:$0xff] %vm677, %v4654
    %4699 = vst.msk [vmem:[#allocation3 + $0x40] sm:$0xff] %vm677, %v4656
    %4700 = vst.msk [vmem:[#allocation3 + $0x50] sm:$0xff] %vm677, %v4658
    %4701 = vst.msk [vmem:[#allocation3 + $0x60] sm:$0xff] %vm677, %v4660
    %4702 = vst.msk [vmem:[#allocation3 + $0x70] sm:$0xff] %vm677, %v4662
    %4703 = vst.msk [vmem:[#allocation3 + $0x80] sm:$0xff] %vm677, %v4664
    %4704 = vst.msk [vmem:[#allocation3 + $0x90] sm:$0xff] %vm677, %v4666
    %4705 = vst.msk [vmem:[#allocation3 + $0xa0] sm:$0xff] %vm677, %v4668
    %4706 = vst.msk [vmem:[#allocation3 + $0xb0] sm:$0xff] %vm677, %v4670
    %4707 = vst.msk [vmem:[#allocation3 + $0xc0] sm:$0xff] %vm677, %v4672
    %4708 = vst.msk [vmem:[#allocation3 + $0xd0] sm:$0xff] %vm677, %v4674
    %4709 = vst.msk [vmem:[#allocation3 + $0xe0] sm:$0xff] %vm677, %v4676
    %4710 = vst.msk [vmem:[#allocation3 + $0xf0] sm:$0xff] %vm677, %v4678
    %v4711 = vrot.slane %v4277, 2
    %v4712 = vrot.slane %v4278, 2
    %v4713 = vsel %vm440, %v4711, %v4712
    %v4714 = vrot.slane %v4297, 2
    %v4715 = vrot.slane %v4298, 2
    %v4716 = vsel %vm440, %v4714, %v4715
    %4717 = vrot.lane.b32.xlu0 %v4466, 80
    %v4718 = vpop.permute.xlu0 %4717
    %4719 = vrot.lane.b32.xlu0 %v4469, 80
    %v4720 = vpop.permute.xlu0 %4719
    %4721 = vrot.lane.b32.xlu0 %v4472, 80
    %v4722 = vpop.permute.xlu0 %4721
    %4723 = vrot.lane.b32.xlu0 %v4475, 80
    %v4724 = vpop.permute.xlu0 %4723
    %4725 = vrot.lane.b32.xlu0 %v4478, 80
    %v4726 = vpop.permute.xlu0 %4725
    %4727 = vrot.lane.b32.xlu0 %v4481, 80
    %v4728 = vpop.permute.xlu0 %4727
    %4729 = vrot.lane.b32.xlu0 %v4484, 80
    %v4730 = vpop.permute.xlu0 %4729
    %4731 = vrot.lane.b32.xlu0 %v4713, 80
    %v4732 = vpop.permute.xlu0 %4731
    %4733 = vrot.lane.b32.xlu0 %v4490, 80
    %v4734 = vpop.permute.xlu0 %4733
    %4735 = vrot.lane.b32.xlu0 %v4493, 80
    %v4736 = vpop.permute.xlu0 %4735
    %4737 = vrot.lane.b32.xlu0 %v4496, 80
    %v4738 = vpop.permute.xlu0 %4737
    %4739 = vrot.lane.b32.xlu0 %v4499, 80
    %v4740 = vpop.permute.xlu0 %4739
    %4741 = vrot.lane.b32.xlu0 %v4502, 80
    %v4742 = vpop.permute.xlu0 %4741
    %4743 = vrot.lane.b32.xlu0 %v4505, 80
    %v4744 = vpop.permute.xlu0 %4743
    %4745 = vrot.lane.b32.xlu0 %v4508, 80
    %v4746 = vpop.permute.xlu0 %4745
    %4747 = vrot.lane.b32.xlu0 %v4716, 80
    %v4748 = vpop.permute.xlu0 %4747
    %4765 = vst.msk [vmem:[#allocation3] sm:$0xff] %vm748, %v4718
    %4766 = vst.msk [vmem:[#allocation3 + $0x10] sm:$0xff] %vm748, %v4720
    %4767 = vst.msk [vmem:[#allocation3 + $0x20] sm:$0xff] %vm748, %v4722
    %4768 = vst.msk [vmem:[#allocation3 + $0x30] sm:$0xff] %vm748, %v4724
    %4769 = vst.msk [vmem:[#allocation3 + $0x40] sm:$0xff] %vm748, %v4726
    %4770 = vst.msk [vmem:[#allocation3 + $0x50] sm:$0xff] %vm748, %v4728
    %4771 = vst.msk [vmem:[#allocation3 + $0x60] sm:$0xff] %vm748, %v4730
    %4772 = vst.msk [vmem:[#allocation3 + $0x70] sm:$0xff] %vm748, %v4732
    %4773 = vst.msk [vmem:[#allocation3 + $0x80] sm:$0xff] %vm748, %v4734
    %4774 = vst.msk [vmem:[#allocation3 + $0x90] sm:$0xff] %vm748, %v4736
    %4775 = vst.msk [vmem:[#allocation3 + $0xa0] sm:$0xff] %vm748, %v4738
    %4776 = vst.msk [vmem:[#allocation3 + $0xb0] sm:$0xff] %vm748, %v4740
    %4777 = vst.msk [vmem:[#allocation3 + $0xc0] sm:$0xff] %vm748, %v4742
    %4778 = vst.msk [vmem:[#allocation3 + $0xd0] sm:$0xff] %vm748, %v4744
    %4779 = vst.msk [vmem:[#allocation3 + $0xe0] sm:$0xff] %vm748, %v4746
    %4780 = vst.msk [vmem:[#allocation3 + $0xf0] sm:$0xff] %vm748, %v4748
    %4783 = vrot.lane.b32.xlu0 %v4265, 96
    %v4784 = vpop.permute.xlu0 %4783
    %4785 = vrot.lane.b32.xlu0 %v4267, 96
    %v4786 = vpop.permute.xlu0 %4785
    %4787 = vrot.lane.b32.xlu0 %v4269, 96
    %v4788 = vpop.permute.xlu0 %4787
    %4789 = vrot.lane.b32.xlu0 %v4271, 96
    %v4790 = vpop.permute.xlu0 %4789
    %4791 = vrot.lane.b32.xlu0 %v4273, 96
    %v4792 = vpop.permute.xlu0 %4791
    %4793 = vrot.lane.b32.xlu0 %v4275, 96
    %v4794 = vpop.permute.xlu0 %4793
    %4795 = vrot.lane.b32.xlu0 %v4277, 96
    %v4796 = vpop.permute.xlu0 %4795
    %4797 = vrot.lane.b32.xlu0 %v4279, 96
    %v4798 = vpop.permute.xlu0 %4797
    %4799 = vrot.lane.b32.xlu0 %v4285, 96
    %v4800 = vpop.permute.xlu0 %4799
    %4801 = vrot.lane.b32.xlu0 %v4287, 96
    %v4802 = vpop.permute.xlu0 %4801
    %4803 = vrot.lane.b32.xlu0 %v4289, 96
    %v4804 = vpop.permute.xlu0 %4803
    %4805 = vrot.lane.b32.xlu0 %v4291, 96
    %v4806 = vpop.permute.xlu0 %4805
    %4807 = vrot.lane.b32.xlu0 %v4293, 96
    %v4808 = vpop.permute.xlu0 %4807
    %4809 = vrot.lane.b32.xlu0 %v4295, 96
    %v4810 = vpop.permute.xlu0 %4809
    %4811 = vrot.lane.b32.xlu0 %v4297, 96
    %v4812 = vpop.permute.xlu0 %4811
    %4813 = vrot.lane.b32.xlu0 %v4299, 96
    %v4814 = vpop.permute.xlu0 %4813
    %4831 = vst.msk [vmem:[#allocation3] sm:$0xff] %vm815, %v4784
    %4832 = vst.msk [vmem:[#allocation3 + $0x10] sm:$0xff] %vm815, %v4786
    %4833 = vst.msk [vmem:[#allocation3 + $0x20] sm:$0xff] %vm815, %v4788
    %4834 = vst.msk [vmem:[#allocation3 + $0x30] sm:$0xff] %vm815, %v4790
    %4835 = vst.msk [vmem:[#allocation3 + $0x40] sm:$0xff] %vm815, %v4792
    %4836 = vst.msk [vmem:[#allocation3 + $0x50] sm:$0xff] %vm815, %v4794
    %4837 = vst.msk [vmem:[#allocation3 + $0x60] sm:$0xff] %vm815, %v4796
    %4838 = vst.msk [vmem:[#allocation3 + $0x70] sm:$0xff] %vm815, %v4798
    %4839 = vst.msk [vmem:[#allocation3 + $0x80] sm:$0xff] %vm815, %v4800
    %4840 = vst.msk [vmem:[#allocation3 + $0x90] sm:$0xff] %vm815, %v4802
    %4841 = vst.msk [vmem:[#allocation3 + $0xa0] sm:$0xff] %vm815, %v4804
    %4842 = vst.msk [vmem:[#allocation3 + $0xb0] sm:$0xff] %vm815, %v4806
    %4843 = vst.msk [vmem:[#allocation3 + $0xc0] sm:$0xff] %vm815, %v4808
    %4844 = vst.msk [vmem:[#allocation3 + $0xd0] sm:$0xff] %vm815, %v4810
    %4845 = vst.msk [vmem:[#allocation3 + $0xe0] sm:$0xff] %vm815, %v4812
    %4846 = vst.msk [vmem:[#allocation3 + $0xf0] sm:$0xff] %vm815, %v4814
    %v4849 = vrot.slane %v4279, 1
    %v4850 = vrot.slane %v4280, 1
    %v4851 = vsel %vm326, %v4849, %v4850
    %v4852 = vrot.slane %v4299, 1
    %v4853 = vrot.slane %v4300, 1
    %v4854 = vsel %vm326, %v4852, %v4853
    %4855 = vrot.lane.b32.xlu0 %v4357, 112
    %v4856 = vpop.permute.xlu0 %4855
    %4857 = vrot.lane.b32.xlu0 %v4360, 112
    %v4858 = vpop.permute.xlu0 %4857
    %4859 = vrot.lane.b32.xlu0 %v4363, 112
    %v4860 = vpop.permute.xlu0 %4859
    %4861 = vrot.lane.b32.xlu0 %v4366, 112
    %v4862 = vpop.permute.xlu0 %4861
    %4863 = vrot.lane.b32.xlu0 %v4369, 112
    %v4864 = vpop.permute.xlu0 %4863
    %4865 = vrot.lane.b32.xlu0 %v4372, 112
    %v4866 = vpop.permute.xlu0 %4865
    %4867 = vrot.lane.b32.xlu0 %v4643, 112
    %v4868 = vpop.permute.xlu0 %4867
    %4869 = vrot.lane.b32.xlu0 %v4851, 112
    %v4870 = vpop.permute.xlu0 %4869
    %4871 = vrot.lane.b32.xlu0 %v4381, 112
    %v4872 = vpop.permute.xlu0 %4871
    %4873 = vrot.lane.b32.xlu0 %v4384, 112
    %v4874 = vpop.permute.xlu0 %4873
    %4875 = vrot.lane.b32.xlu0 %v4387, 112
    %v4876 = vpop.permute.xlu0 %4875
    %4877 = vrot.lane.b32.xlu0 %v4390, 112
    %v4878 = vpop.permute.xlu0 %4877
    %4879 = vrot.lane.b32.xlu0 %v4393, 112
    %v4880 = vpop.permute.xlu0 %4879
    %4881 = vrot.lane.b32.xlu0 %v4396, 112
    %v4882 = vpop.permute.xlu0 %4881
    %4883 = vrot.lane.b32.xlu0 %v4646, 112
    %v4884 = vpop.permute.xlu0 %4883
    %4885 = vrot.lane.b32.xlu0 %v4854, 112
    %v4886 = vpop.permute.xlu0 %4885
    %4903 = vst.msk [vmem:[#allocation3] sm:$0xff] %vm888, %v4856
    %4904 = vst.msk [vmem:[#allocation3 + $0x10] sm:$0xff] %vm888, %v4858
    %4905 = vst.msk [vmem:[#allocation3 + $0x20] sm:$0xff] %vm888, %v4860
    %4906 = vst.msk [vmem:[#allocation3 + $0x30] sm:$0xff] %vm888, %v4862
    %4907 = vst.msk [vmem:[#allocation3 + $0x40] sm:$0xff] %vm888, %v4864
    %4908 = vst.msk [vmem:[#allocation3 + $0x50] sm:$0xff] %vm888, %v4866
    %4909 = vst.msk [vmem:[#allocation3 + $0x60] sm:$0xff] %vm888, %v4868
    %4910 = vst.msk [vmem:[#allocation3 + $0x70] sm:$0xff] %vm888, %v4870
    %4911 = vst.msk [vmem:[#allocation3 + $0x80] sm:$0xff] %vm888, %v4872
    %4912 = vst.msk [vmem:[#allocation3 + $0x90] sm:$0xff] %vm888, %v4874
    %4913 = vst.msk [vmem:[#allocation3 + $0xa0] sm:$0xff] %vm888, %v4876
    %4914 = vst.msk [vmem:[#allocation3 + $0xb0] sm:$0xff] %vm888, %v4878
    %4915 = vst.msk [vmem:[#allocation3 + $0xc0] sm:$0xff] %vm888, %v4880
    %4916 = vst.msk [vmem:[#allocation3 + $0xd0] sm:$0xff] %vm888, %v4882
    %4917 = vst.msk [vmem:[#allocation3 + $0xe0] sm:$0xff] %vm888, %v4884
    %4918 = vst.msk [vmem:[#allocation3 + $0xf0] sm:$0xff] %vm888, %v4886
    %v4919 = vrot.slane %v4279, 2
    %v4920 = vrot.slane %v4280, 2
    %v4921 = vsel %vm440, %v4919, %v4920
    %v4922 = vrot.slane %v4299, 2
    %v4923 = vrot.slane %v4300, 2
    %v4924 = vsel %vm440, %v4922, %v4923
    %4941 = vst.msk [vmem:[#allocation3 + $0x8] sm:$0xff] %vm27, %v4469
    %4942 = vst.msk [vmem:[#allocation3 + $0x18] sm:$0xff] %vm27, %v4472
    %4943 = vst.msk [vmem:[#allocation3 + $0x28] sm:$0xff] %vm27, %v4475
    %4944 = vst.msk [vmem:[#allocation3 + $0x38] sm:$0xff] %vm27, %v4478
    %4945 = vst.msk [vmem:[#allocation3 + $0x48] sm:$0xff] %vm27, %v4481
    %4946 = vst.msk [vmem:[#allocation3 + $0x58] sm:$0xff] %vm27, %v4484
    %4947 = vst.msk [vmem:[#allocation3 + $0x68] sm:$0xff] %vm27, %v4713
    %4948 = vst.msk [vmem:[#allocation3 + $0x78] sm:$0xff] %vm27, %v4921
    %4949 = vst.msk [vmem:[#allocation3 + $0x88] sm:$0xff] %vm27, %v4493
    %4950 = vst.msk [vmem:[#allocation3 + $0x98] sm:$0xff] %vm27, %v4496
    %4951 = vst.msk [vmem:[#allocation3 + $0xa8] sm:$0xff] %vm27, %v4499
    %4952 = vst.msk [vmem:[#allocation3 + $0xb8] sm:$0xff] %vm27, %v4502
    %4953 = vst.msk [vmem:[#allocation3 + $0xc8] sm:$0xff] %vm27, %v4505
    %4954 = vst.msk [vmem:[#allocation3 + $0xd8] sm:$0xff] %vm27, %v4508
    %4955 = vst.msk [vmem:[#allocation3 + $0xe8] sm:$0xff] %vm27, %v4716
    %4956 = vst.msk [vmem:[#allocation3 + $0xf8] sm:$0xff] %vm27, %v4924
    %v4957 = vld [vmem:[#allocation3] sm:$0xff]
    %v4958 = vld [vmem:[#allocation3 + $0x8] sm:$0xff]
    %v4959 = vld [vmem:[#allocation3 + $0x10] sm:$0xff]
    %v4960 = vld [vmem:[#allocation3 + $0x18] sm:$0xff]
    %v4961 = vld [vmem:[#allocation3 + $0x20] sm:$0xff]
    %v4962 = vld [vmem:[#allocation3 + $0x28] sm:$0xff]
    %v4963 = vld [vmem:[#allocation3 + $0x30] sm:$0xff]
    %v4964 = vld [vmem:[#allocation3 + $0x38] sm:$0xff]
    %v4965 = vld [vmem:[#allocation3 + $0x40] sm:$0xff]
    %v4966 = vld [vmem:[#allocation3 + $0x48] sm:$0xff]
    %v4967 = vld [vmem:[#allocation3 + $0x50] sm:$0xff]
    %v4968 = vld [vmem:[#allocation3 + $0x58] sm:$0xff]
    %v4969 = vld [vmem:[#allocation3 + $0x60] sm:$0xff]
    %v4970 = vld [vmem:[#allocation3 + $0x68] sm:$0xff]
    %v4971 = vld [vmem:[#allocation3 + $0x70] sm:$0xff]
    %v4972 = vld [vmem:[#allocation3 + $0x78] sm:$0xff]
    %v4973 = vld [vmem:[#allocation3 + $0x80] sm:$0xff]
    %v4974 = vld [vmem:[#allocation3 + $0x88] sm:$0xff]
    %v4975 = vld [vmem:[#allocation3 + $0x90] sm:$0xff]
    %v4976 = vld [vmem:[#allocation3 + $0x98] sm:$0xff]
    %v4977 = vld [vmem:[#allocation3 + $0xa0] sm:$0xff]
    %v4978 = vld [vmem:[#allocation3 + $0xa8] sm:$0xff]
    %v4979 = vld [vmem:[#allocation3 + $0xb0] sm:$0xff]
    %v4980 = vld [vmem:[#allocation3 + $0xb8] sm:$0xff]
    %v4981 = vld [vmem:[#allocation3 + $0xc0] sm:$0xff]
    %v4982 = vld [vmem:[#allocation3 + $0xc8] sm:$0xff]
    %v4983 = vld [vmem:[#allocation3 + $0xd0] sm:$0xff]
    %v4984 = vld [vmem:[#allocation3 + $0xd8] sm:$0xff]
    %v4985 = vld [vmem:[#allocation3 + $0xe0] sm:$0xff]
    %v4986 = vld [vmem:[#allocation3 + $0xe8] sm:$0xff]
    %v4987 = vld [vmem:[#allocation3 + $0xf0] sm:$0xff]
    %v4988 = vld [vmem:[#allocation3 + $0xf8] sm:$0xff]
    %s4989 = scalar_lea.vmem %s1, 576
    %v4990 = vld [vmem:[%s4989] sm:$0xff]
    %v4991 = vld [vmem:[%s4989 + $0x8] sm:$0xff]
    %v4992 = vld [vmem:[%s4989 + $0x10] sm:$0xff]
    %v4993 = vld [vmem:[%s4989 + $0x18] sm:$0xff]
    %v4994 = vld [vmem:[%s4989 + $0x20] sm:$0xff]
    %v4995 = vld [vmem:[%s4989 + $0x28] sm:$0xff]
    %v4996 = vld [vmem:[%s4989 + $0x30] sm:$0xff]
    %v4997 = vld [vmem:[%s4989 + $0x38] sm:$0xff]
    %v4998 = vld [vmem:[%s4989 + $0x40] sm:$0xff]
    %v4999 = vld [vmem:[%s4989 + $0x48] sm:$0xff]
    %v5000 = vld [vmem:[%s4989 + $0x50] sm:$0xff]
    %v5001 = vld [vmem:[%s4989 + $0x58] sm:$0xff]
    %v5002 = vld [vmem:[%s4989 + $0x60] sm:$0xff]
    %v5003 = vld [vmem:[%s4989 + $0x68] sm:$0xff]
    %v5004 = vld [vmem:[%s4989 + $0x70] sm:$0xff]
    %v5005 = vld [vmem:[%s4989 + $0x78] sm:$0xff]
    %v5006 = vld [vmem:[%s4989 + $0x80] sm:$0xff]
    %v5007 = vld [vmem:[%s4989 + $0x88] sm:$0xff]
    %s5008 = scalar_lea.vmem %s2, 4
    %v5009 = vld [vmem:[%s5008] sm:$0x1]
    %v5011 = vlaneseq
    %v5012 = vshrl.u32 %v5011, 7
    %v5013 = vsub.s32 0, %v5012
    %v5014 = vrot.slane %v5009, %v5013
    %v5017 = vsel %vm27, %v4958, 0
    %v5020 = vsel %vm27, %v4960, 0
    %v5023 = vsel %vm27, %v4962, 0
    %v5026 = vsel %vm27, %v4964, 0
    %v5029 = vsel %vm27, %v4966, 0
    %v5032 = vsel %vm27, %v4968, 0
    %v5035 = vsel %vm27, %v4970, 0
    %v5038 = vsel %vm27, %v4972, 0
    %v5041 = vsel %vm27, %v4974, 0
    %v5044 = vsel %vm27, %v4976, 0
    %v5047 = vsel %vm27, %v4978, 0
    %v5050 = vsel %vm27, %v4980, 0
    %v5053 = vsel %vm27, %v4982, 0
    %v5056 = vsel %vm27, %v4984, 0
    %v5059 = vsel %vm27, %v4986, 0
    %v5062 = vsel %vm27, %v4988, 0
    %5064 = vmatprep.subr.mxu0 0.0
    %5065 = vmatpush1.msra.mxu0 %v4990
    %5066 = vmatprep.subr.mxu0 0.0
    %5067 = vmatpush1.msra.mxu0 %v4991
    %5068 = vmatprep.subr.mxu0 0.0
    %5069 = vmatpush1.msra.mxu0 %v4992
    %5070 = vmatprep.subr.mxu0 0.0
    %5071 = vmatpush1.msra.mxu0 %v4993
    %5072 = vmatprep.subr.mxu0 0.0
    %5073 = vmatpush1.msra.mxu0 %v4994
    %5074 = vmatprep.subr.mxu0 0.0
    %5075 = vmatpush1.msra.mxu0 %v4995
    %5076 = vmatprep.subr.mxu0 0.0
    %5077 = vmatpush1.msra.mxu0 %v4996
    %5078 = vmatprep.subr.mxu0 0.0
    %5079 = vmatpush1.msra.mxu0 %v4997
    %5080 = vmatprep.subr.mxu0 0.0
    %5081 = vmatpush1.msra.mxu0 %v4998
    %5082 = vmatprep.subr.mxu0 0.0
    %5083 = vmatpush1.msra.mxu0 %v4999
    %5084 = vmatprep.subr.mxu0 0.0
    %5085 = vmatpush1.msra.mxu0 %v5000
    %5086 = vmatprep.subr.mxu0 0.0
    %5087 = vmatpush1.msra.mxu0 %v5001
    %5088 = vmatprep.subr.mxu0 0.0
    %5089 = vmatpush1.msra.mxu0 %v5002
    %5090 = vmatprep.subr.mxu0 0.0
    %5091 = vmatpush1.msra.mxu0 %v5003
    %5092 = vmatprep.subr.mxu0 0.0
    %5093 = vmatpush1.msra.mxu0 %v5004
    %5094 = vmatprep.subr.mxu0 0.0
    %5095 = vmatpush1.msra.mxu0 %v5005
    %5096 = vmatprep.subr.mxu0 0.0
    %5097 = vmatpush1.msra.mxu0 %v5006
    %5098 = vmatprep.subr.mxu0 0.0
    %5099 = vmatpush1.msra.mxu0 %v5007
    %5100 = vmatprep.subr.mxu0 0.0
    %5101 = vmatpush1.msra.mxu0 0.0
    %5102 = vmatprep.subr.mxu0 0.0
    %5103 = vmatpush1.msra.mxu0 0.0
    %5104 = vmatprep.subr.mxu0 0.0
    %5105 = vmatpush1.msra.mxu0 0.0
    %5106 = vmatprep.subr.mxu0 0.0
    %5107 = vmatpush1.msra.mxu0 0.0
    %5108 = vmatprep.subr.mxu0 0.0
    %5109 = vmatpush1.msra.mxu0 0.0
    %5110 = vmatprep.subr.mxu0 0.0
    %5111 = vmatpush1.msra.mxu0 0.0
    %5112 = vmatprep.subr.mxu0 0.0
    %5113 = vmatpush1.msra.mxu0 0.0
    %5114 = vmatprep.subr.mxu0 0.0
    %5115 = vmatpush1.msra.mxu0 0.0
    %5116 = vmatprep.subr.mxu0 0.0
    %5117 = vmatpush1.msra.mxu0 0.0
    %5118 = vmatprep.subr.mxu0 0.0
    %5119 = vmatpush1.msra.mxu0 0.0
    %5120 = vmatprep.subr.mxu0 0.0
    %5121 = vmatpush1.msra.mxu0 0.0
    %5122 = vmatprep.subr.mxu0 0.0
    %5123 = vmatpush1.msra.mxu0 0.0
    %5124 = vmatprep.subr.mxu0 0.0
    %5125 = vmatpush1.msra.mxu0 0.0
    %5126 = vmatprep.subr.mxu0 0.0
    %5127 = vmatpush1.msra.mxu0 0.0
    %5128 = vmatprep.mubr.f32.mxu0 %v5017
    %5129 = vmatmul.mubr.f32.gmra.mrb[0].mxu0 %v4957
    %v5130 = vpop.f32.mrb[0].mxu0
    %v5131 = vadd.f32 %v5014, %v5130
    %v5132 = vpop.f32.mrb[0].mxu0
    %5133 = vmatprep.mubr.f32.mxu0 %v5020
    %5134 = vmatmul.mubr.f32.gmra.mrb[0].mxu0 %v4959
    %v5135 = vpop.f32.mrb[0].mxu0
    %v5136 = vadd.f32 %v5014, %v5135
    %v5137 = vpop.f32.mrb[0].mxu0
    %5138 = vmatprep.mubr.f32.mxu0 %v5023
    %5139 = vmatmul.mubr.f32.gmra.mrb[0].mxu0 %v4961
    %v5140 = vpop.f32.mrb[0].mxu0
    %v5141 = vadd.f32 %v5014, %v5140
    %v5142 = vpop.f32.mrb[0].mxu0
    %5143 = vmatprep.mubr.f32.mxu0 %v5026
    %5144 = vmatmul.mubr.f32.gmra.mrb[0].mxu0 %v4963
    %v5145 = vpop.f32.mrb[0].mxu0
    %v5146 = vadd.f32 %v5014, %v5145
    %v5147 = vpop.f32.mrb[0].mxu0
    %5148 = vmatprep.mubr.f32.mxu0 %v5029
    %5149 = vmatmul.mubr.f32.gmra.mrb[0].mxu0 %v4965
    %v5150 = vpop.f32.mrb[0].mxu0
    %v5151 = vadd.f32 %v5014, %v5150
    %v5152 = vpop.f32.mrb[0].mxu0
    %5153 = vmatprep.mubr.f32.mxu0 %v5032
    %5154 = vmatmul.mubr.f32.gmra.mrb[0].mxu0 %v4967
    %v5155 = vpop.f32.mrb[0].mxu0
    %v5156 = vadd.f32 %v5014, %v5155
    %v5157 = vpop.f32.mrb[0].mxu0
    %5158 = vmatprep.mubr.f32.mxu0 %v5035
    %5159 = vmatmul.mubr.f32.gmra.mrb[0].mxu0 %v4969
    %v5160 = vpop.f32.mrb[0].mxu0
    %v5161 = vadd.f32 %v5014, %v5160
    %v5162 = vpop.f32.mrb[0].mxu0
    %5163 = vmatprep.mubr.f32.mxu0 %v5038
    %5164 = vmatmul.mubr.f32.gmra.mrb[0].mxu0 %v4971
    %v5165 = vpop.f32.mrb[0].mxu0
    %v5166 = vadd.f32 %v5014, %v5165
    %v5167 = vpop.f32.mrb[0].mxu0
    %5168 = vmatprep.mubr.f32.mxu0 %v5041
    %5169 = vmatmul.mubr.f32.gmra.mrb[0].mxu0 %v4973
    %v5170 = vpop.f32.mrb[0].mxu0
    %v5171 = vadd.f32 %v5014, %v5170
    %v5172 = vpop.f32.mrb[0].mxu0
    %5173 = vmatprep.mubr.f32.mxu0 %v5044
    %5174 = vmatmul.mubr.f32.gmra.mrb[0].mxu0 %v4975
    %v5175 = vpop.f32.mrb[0].mxu0
    %v5176 = vadd.f32 %v5014, %v5175
    %v5177 = vpop.f32.mrb[0].mxu0
    %5178 = vmatprep.mubr.f32.mxu0 %v5047
    %5179 = vmatmul.mubr.f32.gmra.mrb[0].mxu0 %v4977
    %v5180 = vpop.f32.mrb[0].mxu0
    %v5181 = vadd.f32 %v5014, %v5180
    %v5182 = vpop.f32.mrb[0].mxu0
    %5183 = vmatprep.mubr.f32.mxu0 %v5050
    %5184 = vmatmul.mubr.f32.gmra.mrb[0].mxu0 %v4979
    %v5185 = vpop.f32.mrb[0].mxu0
    %v5186 = vadd.f32 %v5014, %v5185
    %v5187 = vpop.f32.mrb[0].mxu0
    %5188 = vmatprep.mubr.f32.mxu0 %v5053
    %5189 = vmatmul.mubr.f32.gmra.mrb[0].mxu0 %v4981
    %v5190 = vpop.f32.mrb[0].mxu0
    %v5191 = vadd.f32 %v5014, %v5190
    %v5192 = vpop.f32.mrb[0].mxu0
    %5193 = vmatprep.mubr.f32.mxu0 %v5056
    %5194 = vmatmul.mubr.f32.gmra.mrb[0].mxu0 %v4983
    %v5195 = vpop.f32.mrb[0].mxu0
    %v5196 = vadd.f32 %v5014, %v5195
    %v5197 = vpop.f32.mrb[0].mxu0
    %5198 = vmatprep.mubr.f32.mxu0 %v5059
    %5199 = vmatmul.mubr.f32.gmra.mrb[0].mxu0 %v4985
    %v5200 = vpop.f32.mrb[0].mxu0
    %v5201 = vadd.f32 %v5014, %v5200
    %v5202 = vpop.f32.mrb[0].mxu0
    %5203 = vmatprep.mubr.f32.mxu0 %v5062
    %5204 = vmatmul.mubr.f32.gmra.mrb[0].mxu0 %v4987
    %v5205 = vpop.f32.mrb[0].mxu0
    %v5206 = vadd.f32 %v5014, %v5205
    %v5207 = vpop.f32.mrb[0].mxu0
    %5208 = vdwg.mxu0
    %v5209 = vmax.f32 %v5131, 0.0
    %v5210 = vmax.f32 %v5136, 0.0
    %v5211 = vmax.f32 %v5141, 0.0
    %v5212 = vmax.f32 %v5146, 0.0
    %v5213 = vmax.f32 %v5151, 0.0
    %v5214 = vmax.f32 %v5156, 0.0
    %v5215 = vmax.f32 %v5161, 0.0
    %v5216 = vmax.f32 %v5166, 0.0
    %v5217 = vmax.f32 %v5171, 0.0
    %v5218 = vmax.f32 %v5176, 0.0
    %v5219 = vmax.f32 %v5181, 0.0
    %v5220 = vmax.f32 %v5186, 0.0
    %v5221 = vmax.f32 %v5191, 0.0
    %v5222 = vmax.f32 %v5196, 0.0
    %v5223 = vmax.f32 %v5201, 0.0
    %v5224 = vmax.f32 %v5206, 0.0
    %v5225 = vmul.f32 %v5209, %v198
    %v5226 = vmul.f32 %v5210, %v198
    %v5227 = vmul.f32 %v5211, %v198
    %v5228 = vmul.f32 %v5212, %v198
    %v5229 = vmul.f32 %v5213, %v198
    %v5230 = vmul.f32 %v5214, %v198
    %v5231 = vmul.f32 %v5215, %v198
    %v5232 = vmul.f32 %v5216, %v198
    %v5233 = vmul.f32 %v5217, %v202
    %v5234 = vmul.f32 %v5218, %v202
    %v5235 = vmul.f32 %v5219, %v202
    %v5236 = vmul.f32 %v5220, %v202
    %v5237 = vmul.f32 %v5221, %v202
    %v5238 = vmul.f32 %v5222, %v202
    %v5239 = vmul.f32 %v5223, %v202
    %v5240 = vmul.f32 %v5224, %v202
    %5241 = vst.msk [vmem:[%s221 + $0x1] sm:$0xff] %vm27, %v5225
    %5242 = vst.msk [vmem:[%s221 + $0x11] sm:$0xff] %vm27, %v5226
    %5243 = vst.msk [vmem:[%s221 + $0x21] sm:$0xff] %vm27, %v5227
    %5244 = vst.msk [vmem:[%s221 + $0x31] sm:$0xff] %vm27, %v5228
    %5245 = vst.msk [vmem:[%s221 + $0x41] sm:$0xff] %vm27, %v5229
    %5246 = vst.msk [vmem:[%s221 + $0x51] sm:$0xff] %vm27, %v5230
    %5247 = vst.msk [vmem:[%s221 + $0x61] sm:$0xff] %vm27, %v5231
    %5248 = vst.msk [vmem:[%s221 + $0x71] sm:$0xff] %vm27, %v5232
    %5249 = vst.msk [vmem:[%s221 + $0xa1] sm:$0xff] %vm27, %v5233
    %5250 = vst.msk [vmem:[%s221 + $0xb1] sm:$0xff] %vm27, %v5234
    %5251 = vst.msk [vmem:[%s221 + $0xc1] sm:$0xff] %vm27, %v5235
    %5252 = vst.msk [vmem:[%s221 + $0xd1] sm:$0xff] %vm27, %v5236
    %5253 = vst.msk [vmem:[%s221 + $0xe1] sm:$0xff] %vm27, %v5237
    %5254 = vst.msk [vmem:[%s221 + $0xf1] sm:$0xff] %vm27, %v5238
    %5255 = vst.msk [vmem:[%s221 + $0x101] sm:$0xff] %vm27, %v5239
    %5256 = vst.msk [vmem:[%s221 + $0x111] sm:$0xff] %vm27, %v5240
    %v5257 = vld [vmem:[#allocation2] sm:$0xff]
    %v5258 = vld [vmem:[#allocation2 + $0x8] sm:$0x3]
    %v5259 = vld [vmem:[#allocation2 + $0x10] sm:$0xff]
    %v5260 = vld [vmem:[#allocation2 + $0x18] sm:$0x3]
    %v5261 = vld [vmem:[#allocation2 + $0x20] sm:$0xff]
    %v5262 = vld [vmem:[#allocation2 + $0x28] sm:$0x3]
    %v5263 = vld [vmem:[#allocation2 + $0x30] sm:$0xff]
    %v5264 = vld [vmem:[#allocation2 + $0x38] sm:$0x3]
    %v5265 = vld [vmem:[#allocation2 + $0x40] sm:$0xff]
    %v5266 = vld [vmem:[#allocation2 + $0x48] sm:$0x3]
    %v5267 = vld [vmem:[#allocation2 + $0x50] sm:$0xff]
    %v5268 = vld [vmem:[#allocation2 + $0x58] sm:$0x3]
    %v5269 = vld [vmem:[#allocation2 + $0x60] sm:$0xff]
    %v5270 = vld [vmem:[#allocation2 + $0x68] sm:$0x3]
    %v5271 = vld [vmem:[#allocation2 + $0x70] sm:$0xff]
    %v5272 = vld [vmem:[#allocation2 + $0x78] sm:$0x3]
    %v5273 = vld [vmem:[#allocation2 + $0x80] sm:$0xff]
    %v5274 = vld [vmem:[#allocation2 + $0x88] sm:$0x3]
    %v5275 = vld [vmem:[#allocation2 + $0x90] sm:$0xff]
    %v5276 = vld [vmem:[#allocation2 + $0x98] sm:$0x3]
    %v5277 = vld [vmem:[#allocation2 + $0xa0] sm:$0xff]
    %v5278 = vld [vmem:[#allocation2 + $0xa8] sm:$0x3]
    %v5279 = vld [vmem:[#allocation2 + $0xb0] sm:$0xff]
    %v5280 = vld [vmem:[#allocation2 + $0xb8] sm:$0x3]
    %v5281 = vld [vmem:[#allocation2 + $0xc0] sm:$0xff]
    %v5282 = vld [vmem:[#allocation2 + $0xc8] sm:$0x3]
    %v5283 = vld [vmem:[#allocation2 + $0xd0] sm:$0xff]
    %v5284 = vld [vmem:[#allocation2 + $0xd8] sm:$0x3]
    %v5285 = vld [vmem:[#allocation2 + $0xe0] sm:$0xff]
    %v5286 = vld [vmem:[#allocation2 + $0xe8] sm:$0x3]
    %v5287 = vld [vmem:[#allocation2 + $0xf0] sm:$0xff]
    %v5288 = vld [vmem:[#allocation2 + $0xf8] sm:$0x3]
    %v5289 = vld [vmem:[#allocation2 + $0x100] sm:$0xff]
    %v5290 = vld [vmem:[#allocation2 + $0x108] sm:$0x3]
    %v5291 = vld [vmem:[#allocation2 + $0x110] sm:$0xff]
    %v5292 = vld [vmem:[#allocation2 + $0x118] sm:$0x3]
    %v5293 = vld [vmem:[#allocation2 + $0x120] sm:$0xff]
    %v5294 = vld [vmem:[#allocation2 + $0x128] sm:$0x3]
    %v5295 = vld [vmem:[#allocation2 + $0x130] sm:$0xff]
    %v5296 = vld [vmem:[#allocation2 + $0x138] sm:$0x3]
    %5297 = vst.msk [vmem:[#allocation3] sm:$0xff] %vm27, %v5257
    %5298 = vst.msk [vmem:[#allocation3 + $0x10] sm:$0xff] %vm27, %v5259
    %5299 = vst.msk [vmem:[#allocation3 + $0x20] sm:$0xff] %vm27, %v5261
    %5300 = vst.msk [vmem:[#allocation3 + $0x30] sm:$0xff] %vm27, %v5263
    %5301 = vst.msk [vmem:[#allocation3 + $0x40] sm:$0xff] %vm27, %v5265
    %5302 = vst.msk [vmem:[#allocation3 + $0x50] sm:$0xff] %vm27, %v5267
    %5303 = vst.msk [vmem:[#allocation3 + $0x60] sm:$0xff] %vm27, %v5269
    %5304 = vst.msk [vmem:[#allocation3 + $0x70] sm:$0xff] %vm27, %v5271
    %5305 = vst.msk [vmem:[#allocation3 + $0x80] sm:$0xff] %vm27, %v5277
    %5306 = vst.msk [vmem:[#allocation3 + $0x90] sm:$0xff] %vm27, %v5279
    %5307 = vst.msk [vmem:[#allocation3 + $0xa0] sm:$0xff] %vm27, %v5281
    %5308 = vst.msk [vmem:[#allocation3 + $0xb0] sm:$0xff] %vm27, %v5283
    %5309 = vst.msk [vmem:[#allocation3 + $0xc0] sm:$0xff] %vm27, %v5285
    %5310 = vst.msk [vmem:[#allocation3 + $0xd0] sm:$0xff] %vm27, %v5287
    %5311 = vst.msk [vmem:[#allocation3 + $0xe0] sm:$0xff] %vm27, %v5289
    %5312 = vst.msk [vmem:[#allocation3 + $0xf0] sm:$0xff] %vm27, %v5291
    %v5345 = vrot.slane %v5257, 1
    %v5346 = vrot.slane %v5258, 1
    %v5347 = vsel %vm326, %v5345, %v5346
    %v5348 = vrot.slane %v5259, 1
    %v5349 = vrot.slane %v5260, 1
    %v5350 = vsel %vm326, %v5348, %v5349
    %v5351 = vrot.slane %v5261, 1
    %v5352 = vrot.slane %v5262, 1
    %v5353 = vsel %vm326, %v5351, %v5352
    %v5354 = vrot.slane %v5263, 1
    %v5355 = vrot.slane %v5264, 1
    %v5356 = vsel %vm326, %v5354, %v5355
    %v5357 = vrot.slane %v5265, 1
    %v5358 = vrot.slane %v5266, 1
    %v5359 = vsel %vm326, %v5357, %v5358
    %v5360 = vrot.slane %v5267, 1
    %v5361 = vrot.slane %v5268, 1
    %v5362 = vsel %vm326, %v5360, %v5361
    %v5363 = vrot.slane %v5269, 1
    %v5364 = vrot.slane %v5270, 1
    %v5365 = vsel %vm326, %v5363, %v5364
    %v5366 = vrot.slane %v5271, 1
    %v5367 = vrot.slane %v5272, 1
    %v5368 = vsel %vm326, %v5366, %v5367
    %v5369 = vrot.slane %v5277, 1
    %v5370 = vrot.slane %v5278, 1
    %v5371 = vsel %vm326, %v5369, %v5370
    %v5372 = vrot.slane %v5279, 1
    %v5373 = vrot.slane %v5280, 1
    %v5374 = vsel %vm326, %v5372, %v5373
    %v5375 = vrot.slane %v5281, 1
    %v5376 = vrot.slane %v5282, 1
    %v5377 = vsel %vm326, %v5375, %v5376
    %v5378 = vrot.slane %v5283, 1
    %v5379 = vrot.slane %v5284, 1
    %v5380 = vsel %vm326, %v5378, %v5379
    %v5381 = vrot.slane %v5285, 1
    %v5382 = vrot.slane %v5286, 1
    %v5383 = vsel %vm326, %v5381, %v5382
    %v5384 = vrot.slane %v5287, 1
    %v5385 = vrot.slane %v5288, 1
    %v5386 = vsel %vm326, %v5384, %v5385
    %v5387 = vrot.slane %v5289, 1
    %v5388 = vrot.slane %v5290, 1
    %v5389 = vsel %vm326, %v5387, %v5388
    %v5390 = vrot.slane %v5291, 1
    %v5391 = vrot.slane %v5292, 1
    %v5392 = vsel %vm326, %v5390, %v5391
    %5393 = vrot.lane.b32.xlu0 %v5347, 16
    %v5394 = vpop.permute.xlu0 %5393
    %5395 = vrot.lane.b32.xlu0 %v5350, 16
    %v5396 = vpop.permute.xlu0 %5395
    %5397 = vrot.lane.b32.xlu0 %v5353, 16
    %v5398 = vpop.permute.xlu0 %5397
    %5399 = vrot.lane.b32.xlu0 %v5356, 16
    %v5400 = vpop.permute.xlu0 %5399
    %5401 = vrot.lane.b32.xlu0 %v5359, 16
    %v5402 = vpop.permute.xlu0 %5401
    %5403 = vrot.lane.b32.xlu0 %v5362, 16
    %v5404 = vpop.permute.xlu0 %5403
    %5405 = vrot.lane.b32.xlu0 %v5365, 16
    %v5406 = vpop.permute.xlu0 %5405
    %5407 = vrot.lane.b32.xlu0 %v5368, 16
    %v5408 = vpop.permute.xlu0 %5407
    %5409 = vrot.lane.b32.xlu0 %v5371, 16
    %v5410 = vpop.permute.xlu0 %5409
    %5411 = vrot.lane.b32.xlu0 %v5374, 16
    %v5412 = vpop.permute.xlu0 %5411
    %5413 = vrot.lane.b32.xlu0 %v5377, 16
    %v5414 = vpop.permute.xlu0 %5413
    %5415 = vrot.lane.b32.xlu0 %v5380, 16
    %v5416 = vpop.permute.xlu0 %5415
    %5417 = vrot.lane.b32.xlu0 %v5383, 16
    %v5418 = vpop.permute.xlu0 %5417
    %5419 = vrot.lane.b32.xlu0 %v5386, 16
    %v5420 = vpop.permute.xlu0 %5419
    %5421 = vrot.lane.b32.xlu0 %v5389, 16
    %v5422 = vpop.permute.xlu0 %5421
    %5423 = vrot.lane.b32.xlu0 %v5392, 16
    %v5424 = vpop.permute.xlu0 %5423
    %5441 = vst.msk [vmem:[#allocation3] sm:$0xff] %vm423, %v5394
    %5442 = vst.msk [vmem:[#allocation3 + $0x10] sm:$0xff] %vm423, %v5396
    %5443 = vst.msk [vmem:[#allocation3 + $0x20] sm:$0xff] %vm423, %v5398
    %5444 = vst.msk [vmem:[#allocation3 + $0x30] sm:$0xff] %vm423, %v5400
    %5445 = vst.msk [vmem:[#allocation3 + $0x40] sm:$0xff] %vm423, %v5402
    %5446 = vst.msk [vmem:[#allocation3 + $0x50] sm:$0xff] %vm423, %v5404
    %5447 = vst.msk [vmem:[#allocation3 + $0x60] sm:$0xff] %vm423, %v5406
    %5448 = vst.msk [vmem:[#allocation3 + $0x70] sm:$0xff] %vm423, %v5408
    %5449 = vst.msk [vmem:[#allocation3 + $0x80] sm:$0xff] %vm423, %v5410
    %5450 = vst.msk [vmem:[#allocation3 + $0x90] sm:$0xff] %vm423, %v5412
    %5451 = vst.msk [vmem:[#allocation3 + $0xa0] sm:$0xff] %vm423, %v5414
    %5452 = vst.msk [vmem:[#allocation3 + $0xb0] sm:$0xff] %vm423, %v5416
    %5453 = vst.msk [vmem:[#allocation3 + $0xc0] sm:$0xff] %vm423, %v5418
    %5454 = vst.msk [vmem:[#allocation3 + $0xd0] sm:$0xff] %vm423, %v5420
    %5455 = vst.msk [vmem:[#allocation3 + $0xe0] sm:$0xff] %vm423, %v5422
    %5456 = vst.msk [vmem:[#allocation3 + $0xf0] sm:$0xff] %vm423, %v5424
    %v5457 = vrot.slane %v5257, 2
    %v5458 = vrot.slane %v5258, 2
    %v5459 = vsel %vm440, %v5457, %v5458
    %v5460 = vrot.slane %v5259, 2
    %v5461 = vrot.slane %v5260, 2
    %v5462 = vsel %vm440, %v5460, %v5461
    %v5463 = vrot.slane %v5261, 2
    %v5464 = vrot.slane %v5262, 2
    %v5465 = vsel %vm440, %v5463, %v5464
    %v5466 = vrot.slane %v5263, 2
    %v5467 = vrot.slane %v5264, 2
    %v5468 = vsel %vm440, %v5466, %v5467
    %v5469 = vrot.slane %v5265, 2
    %v5470 = vrot.slane %v5266, 2
    %v5471 = vsel %vm440, %v5469, %v5470
    %v5472 = vrot.slane %v5267, 2
    %v5473 = vrot.slane %v5268, 2
    %v5474 = vsel %vm440, %v5472, %v5473
    %v5475 = vrot.slane %v5269, 2
    %v5476 = vrot.slane %v5270, 2
    %v5477 = vsel %vm440, %v5475, %v5476
    %v5478 = vrot.slane %v5271, 2
    %v5479 = vrot.slane %v5272, 2
    %v5480 = vsel %vm440, %v5478, %v5479
    %v5481 = vrot.slane %v5277, 2
    %v5482 = vrot.slane %v5278, 2
    %v5483 = vsel %vm440, %v5481, %v5482
    %v5484 = vrot.slane %v5279, 2
    %v5485 = vrot.slane %v5280, 2
    %v5486 = vsel %vm440, %v5484, %v5485
    %v5487 = vrot.slane %v5281, 2
    %v5488 = vrot.slane %v5282, 2
    %v5489 = vsel %vm440, %v5487, %v5488
    %v5490 = vrot.slane %v5283, 2
    %v5491 = vrot.slane %v5284, 2
    %v5492 = vsel %vm440, %v5490, %v5491
    %v5493 = vrot.slane %v5285, 2
    %v5494 = vrot.slane %v5286, 2
    %v5495 = vsel %vm440, %v5493, %v5494
    %v5496 = vrot.slane %v5287, 2
    %v5497 = vrot.slane %v5288, 2
    %v5498 = vsel %vm440, %v5496, %v5497
    %v5499 = vrot.slane %v5289, 2
    %v5500 = vrot.slane %v5290, 2
    %v5501 = vsel %vm440, %v5499, %v5500
    %v5502 = vrot.slane %v5291, 2
    %v5503 = vrot.slane %v5292, 2
    %v5504 = vsel %vm440, %v5502, %v5503
    %5505 = vrot.lane.b32.xlu0 %v5459, 32
    %v5506 = vpop.permute.xlu0 %5505
    %5507 = vrot.lane.b32.xlu0 %v5462, 32
    %v5508 = vpop.permute.xlu0 %5507
    %5509 = vrot.lane.b32.xlu0 %v5465, 32
    %v5510 = vpop.permute.xlu0 %5509
    %5511 = vrot.lane.b32.xlu0 %v5468, 32
    %v5512 = vpop.permute.xlu0 %5511
    %5513 = vrot.lane.b32.xlu0 %v5471, 32
    %v5514 = vpop.permute.xlu0 %5513
    %5515 = vrot.lane.b32.xlu0 %v5474, 32
    %v5516 = vpop.permute.xlu0 %5515
    %5517 = vrot.lane.b32.xlu0 %v5477, 32
    %v5518 = vpop.permute.xlu0 %5517
    %5519 = vrot.lane.b32.xlu0 %v5480, 32
    %v5520 = vpop.permute.xlu0 %5519
    %5521 = vrot.lane.b32.xlu0 %v5483, 32
    %v5522 = vpop.permute.xlu0 %5521
    %5523 = vrot.lane.b32.xlu0 %v5486, 32
    %v5524 = vpop.permute.xlu0 %5523
    %5525 = vrot.lane.b32.xlu0 %v5489, 32
    %v5526 = vpop.permute.xlu0 %5525
    %5527 = vrot.lane.b32.xlu0 %v5492, 32
    %v5528 = vpop.permute.xlu0 %5527
    %5529 = vrot.lane.b32.xlu0 %v5495, 32
    %v5530 = vpop.permute.xlu0 %5529
    %5531 = vrot.lane.b32.xlu0 %v5498, 32
    %v5532 = vpop.permute.xlu0 %5531
    %5533 = vrot.lane.b32.xlu0 %v5501, 32
    %v5534 = vpop.permute.xlu0 %5533
    %5535 = vrot.lane.b32.xlu0 %v5504, 32
    %v5536 = vpop.permute.xlu0 %5535
    %5553 = vst.msk [vmem:[#allocation3] sm:$0xff] %vm537, %v5506
    %5554 = vst.msk [vmem:[#allocation3 + $0x10] sm:$0xff] %vm537, %v5508
    %5555 = vst.msk [vmem:[#allocation3 + $0x20] sm:$0xff] %vm537, %v5510
    %5556 = vst.msk [vmem:[#allocation3 + $0x30] sm:$0xff] %vm537, %v5512
    %5557 = vst.msk [vmem:[#allocation3 + $0x40] sm:$0xff] %vm537, %v5514
    %5558 = vst.msk [vmem:[#allocation3 + $0x50] sm:$0xff] %vm537, %v5516
    %5559 = vst.msk [vmem:[#allocation3 + $0x60] sm:$0xff] %vm537, %v5518
    %5560 = vst.msk [vmem:[#allocation3 + $0x70] sm:$0xff] %vm537, %v5520
    %5561 = vst.msk [vmem:[#allocation3 + $0x80] sm:$0xff] %vm537, %v5522
    %5562 = vst.msk [vmem:[#allocation3 + $0x90] sm:$0xff] %vm537, %v5524
    %5563 = vst.msk [vmem:[#allocation3 + $0xa0] sm:$0xff] %vm537, %v5526
    %5564 = vst.msk [vmem:[#allocation3 + $0xb0] sm:$0xff] %vm537, %v5528
    %5565 = vst.msk [vmem:[#allocation3 + $0xc0] sm:$0xff] %vm537, %v5530
    %5566 = vst.msk [vmem:[#allocation3 + $0xd0] sm:$0xff] %vm537, %v5532
    %5567 = vst.msk [vmem:[#allocation3 + $0xe0] sm:$0xff] %vm537, %v5534
    %5568 = vst.msk [vmem:[#allocation3 + $0xf0] sm:$0xff] %vm537, %v5536
    %5571 = vrot.lane.b32.xlu0 %v5259, 48
    %v5572 = vpop.permute.xlu0 %5571
    %5573 = vrot.lane.b32.xlu0 %v5261, 48
    %v5574 = vpop.permute.xlu0 %5573
    %5575 = vrot.lane.b32.xlu0 %v5263, 48
    %v5576 = vpop.permute.xlu0 %5575
    %5577 = vrot.lane.b32.xlu0 %v5265, 48
    %v5578 = vpop.permute.xlu0 %5577
    %5579 = vrot.lane.b32.xlu0 %v5267, 48
    %v5580 = vpop.permute.xlu0 %5579
    %5581 = vrot.lane.b32.xlu0 %v5269, 48
    %v5582 = vpop.permute.xlu0 %5581
    %5583 = vrot.lane.b32.xlu0 %v5271, 48
    %v5584 = vpop.permute.xlu0 %5583
    %5585 = vrot.lane.b32.xlu0 %v5273, 48
    %v5586 = vpop.permute.xlu0 %5585
    %5587 = vrot.lane.b32.xlu0 %v5279, 48
    %v5588 = vpop.permute.xlu0 %5587
    %5589 = vrot.lane.b32.xlu0 %v5281, 48
    %v5590 = vpop.permute.xlu0 %5589
    %5591 = vrot.lane.b32.xlu0 %v5283, 48
    %v5592 = vpop.permute.xlu0 %5591
    %5593 = vrot.lane.b32.xlu0 %v5285, 48
    %v5594 = vpop.permute.xlu0 %5593
    %5595 = vrot.lane.b32.xlu0 %v5287, 48
    %v5596 = vpop.permute.xlu0 %5595
    %5597 = vrot.lane.b32.xlu0 %v5289, 48
    %v5598 = vpop.permute.xlu0 %5597
    %5599 = vrot.lane.b32.xlu0 %v5291, 48
    %v5600 = vpop.permute.xlu0 %5599
    %5601 = vrot.lane.b32.xlu0 %v5293, 48
    %v5602 = vpop.permute.xlu0 %5601
    %5619 = vst.msk [vmem:[#allocation3] sm:$0xff] %vm604, %v5572
    %5620 = vst.msk [vmem:[#allocation3 + $0x10] sm:$0xff] %vm604, %v5574
    %5621 = vst.msk [vmem:[#allocation3 + $0x20] sm:$0xff] %vm604, %v5576
    %5622 = vst.msk [vmem:[#allocation3 + $0x30] sm:$0xff] %vm604, %v5578
    %5623 = vst.msk [vmem:[#allocation3 + $0x40] sm:$0xff] %vm604, %v5580
    %5624 = vst.msk [vmem:[#allocation3 + $0x50] sm:$0xff] %vm604, %v5582
    %5625 = vst.msk [vmem:[#allocation3 + $0x60] sm:$0xff] %vm604, %v5584
    %5626 = vst.msk [vmem:[#allocation3 + $0x70] sm:$0xff] %vm604, %v5586
    %5627 = vst.msk [vmem:[#allocation3 + $0x80] sm:$0xff] %vm604, %v5588
    %5628 = vst.msk [vmem:[#allocation3 + $0x90] sm:$0xff] %vm604, %v5590
    %5629 = vst.msk [vmem:[#allocation3 + $0xa0] sm:$0xff] %vm604, %v5592
    %5630 = vst.msk [vmem:[#allocation3 + $0xb0] sm:$0xff] %vm604, %v5594
    %5631 = vst.msk [vmem:[#allocation3 + $0xc0] sm:$0xff] %vm604, %v5596
    %5632 = vst.msk [vmem:[#allocation3 + $0xd0] sm:$0xff] %vm604, %v5598
    %5633 = vst.msk [vmem:[#allocation3 + $0xe0] sm:$0xff] %vm604, %v5600
    %5634 = vst.msk [vmem:[#allocation3 + $0xf0] sm:$0xff] %vm604, %v5602
    %v5637 = vrot.slane %v5273, 1
    %v5638 = vrot.slane %v5274, 1
    %v5639 = vsel %vm326, %v5637, %v5638
    %v5640 = vrot.slane %v5293, 1
    %v5641 = vrot.slane %v5294, 1
    %v5642 = vsel %vm326, %v5640, %v5641
    %5643 = vrot.lane.b32.xlu0 %v5350, 64
    %v5644 = vpop.permute.xlu0 %5643
    %5645 = vrot.lane.b32.xlu0 %v5353, 64
    %v5646 = vpop.permute.xlu0 %5645
    %5647 = vrot.lane.b32.xlu0 %v5356, 64
    %v5648 = vpop.permute.xlu0 %5647
    %5649 = vrot.lane.b32.xlu0 %v5359, 64
    %v5650 = vpop.permute.xlu0 %5649
    %5651 = vrot.lane.b32.xlu0 %v5362, 64
    %v5652 = vpop.permute.xlu0 %5651
    %5653 = vrot.lane.b32.xlu0 %v5365, 64
    %v5654 = vpop.permute.xlu0 %5653
    %5655 = vrot.lane.b32.xlu0 %v5368, 64
    %v5656 = vpop.permute.xlu0 %5655
    %5657 = vrot.lane.b32.xlu0 %v5639, 64
    %v5658 = vpop.permute.xlu0 %5657
    %5659 = vrot.lane.b32.xlu0 %v5374, 64
    %v5660 = vpop.permute.xlu0 %5659
    %5661 = vrot.lane.b32.xlu0 %v5377, 64
    %v5662 = vpop.permute.xlu0 %5661
    %5663 = vrot.lane.b32.xlu0 %v5380, 64
    %v5664 = vpop.permute.xlu0 %5663
    %5665 = vrot.lane.b32.xlu0 %v5383, 64
    %v5666 = vpop.permute.xlu0 %5665
    %5667 = vrot.lane.b32.xlu0 %v5386, 64
    %v5668 = vpop.permute.xlu0 %5667
    %5669 = vrot.lane.b32.xlu0 %v5389, 64
    %v5670 = vpop.permute.xlu0 %5669
    %5671 = vrot.lane.b32.xlu0 %v5392, 64
    %v5672 = vpop.permute.xlu0 %5671
    %5673 = vrot.lane.b32.xlu0 %v5642, 64
    %v5674 = vpop.permute.xlu0 %5673
    %5691 = vst.msk [vmem:[#allocation3] sm:$0xff] %vm677, %v5644
    %5692 = vst.msk [vmem:[#allocation3 + $0x10] sm:$0xff] %vm677, %v5646
    %5693 = vst.msk [vmem:[#allocation3 + $0x20] sm:$0xff] %vm677, %v5648
    %5694 = vst.msk [vmem:[#allocation3 + $0x30] sm:$0xff] %vm677, %v5650
    %5695 = vst.msk [vmem:[#allocation3 + $0x40] sm:$0xff] %vm677, %v5652
    %5696 = vst.msk [vmem:[#allocation3 + $0x50] sm:$0xff] %vm677, %v5654
    %5697 = vst.msk [vmem:[#allocation3 + $0x60] sm:$0xff] %vm677, %v5656
    %5698 = vst.msk [vmem:[#allocation3 + $0x70] sm:$0xff] %vm677, %v5658
    %5699 = vst.msk [vmem:[#allocation3 + $0x80] sm:$0xff] %vm677, %v5660
    %5700 = vst.msk [vmem:[#allocation3 + $0x90] sm:$0xff] %vm677, %v5662
    %5701 = vst.msk [vmem:[#allocation3 + $0xa0] sm:$0xff] %vm677, %v5664
    %5702 = vst.msk [vmem:[#allocation3 + $0xb0] sm:$0xff] %vm677, %v5666
    %5703 = vst.msk [vmem:[#allocation3 + $0xc0] sm:$0xff] %vm677, %v5668
    %5704 = vst.msk [vmem:[#allocation3 + $0xd0] sm:$0xff] %vm677, %v5670
    %5705 = vst.msk [vmem:[#allocation3 + $0xe0] sm:$0xff] %vm677, %v5672
    %5706 = vst.msk [vmem:[#allocation3 + $0xf0] sm:$0xff] %vm677, %v5674
    %v5707 = vrot.slane %v5273, 2
    %v5708 = vrot.slane %v5274, 2
    %v5709 = vsel %vm440, %v5707, %v5708
    %v5710 = vrot.slane %v5293, 2
    %v5711 = vrot.slane %v5294, 2
    %v5712 = vsel %vm440, %v5710, %v5711
    %5713 = vrot.lane.b32.xlu0 %v5462, 80
    %v5714 = vpop.permute.xlu0 %5713
    %5715 = vrot.lane.b32.xlu0 %v5465, 80
    %v5716 = vpop.permute.xlu0 %5715
    %5717 = vrot.lane.b32.xlu0 %v5468, 80
    %v5718 = vpop.permute.xlu0 %5717
    %5719 = vrot.lane.b32.xlu0 %v5471, 80
    %v5720 = vpop.permute.xlu0 %5719
    %5721 = vrot.lane.b32.xlu0 %v5474, 80
    %v5722 = vpop.permute.xlu0 %5721
    %5723 = vrot.lane.b32.xlu0 %v5477, 80
    %v5724 = vpop.permute.xlu0 %5723
    %5725 = vrot.lane.b32.xlu0 %v5480, 80
    %v5726 = vpop.permute.xlu0 %5725
    %5727 = vrot.lane.b32.xlu0 %v5709, 80
    %v5728 = vpop.permute.xlu0 %5727
    %5729 = vrot.lane.b32.xlu0 %v5486, 80
    %v5730 = vpop.permute.xlu0 %5729
    %5731 = vrot.lane.b32.xlu0 %v5489, 80
    %v5732 = vpop.permute.xlu0 %5731
    %5733 = vrot.lane.b32.xlu0 %v5492, 80
    %v5734 = vpop.permute.xlu0 %5733
    %5735 = vrot.lane.b32.xlu0 %v5495, 80
    %v5736 = vpop.permute.xlu0 %5735
    %5737 = vrot.lane.b32.xlu0 %v5498, 80
    %v5738 = vpop.permute.xlu0 %5737
    %5739 = vrot.lane.b32.xlu0 %v5501, 80
    %v5740 = vpop.permute.xlu0 %5739
    %5741 = vrot.lane.b32.xlu0 %v5504, 80
    %v5742 = vpop.permute.xlu0 %5741
    %5743 = vrot.lane.b32.xlu0 %v5712, 80
    %v5744 = vpop.permute.xlu0 %5743
    %5761 = vst.msk [vmem:[#allocation3] sm:$0xff] %vm748, %v5714
    %5762 = vst.msk [vmem:[#allocation3 + $0x10] sm:$0xff] %vm748, %v5716
    %5763 = vst.msk [vmem:[#allocation3 + $0x20] sm:$0xff] %vm748, %v5718
    %5764 = vst.msk [vmem:[#allocation3 + $0x30] sm:$0xff] %vm748, %v5720
    %5765 = vst.msk [vmem:[#allocation3 + $0x40] sm:$0xff] %vm748, %v5722
    %5766 = vst.msk [vmem:[#allocation3 + $0x50] sm:$0xff] %vm748, %v5724
    %5767 = vst.msk [vmem:[#allocation3 + $0x60] sm:$0xff] %vm748, %v5726
    %5768 = vst.msk [vmem:[#allocation3 + $0x70] sm:$0xff] %vm748, %v5728
    %5769 = vst.msk [vmem:[#allocation3 + $0x80] sm:$0xff] %vm748, %v5730
    %5770 = vst.msk [vmem:[#allocation3 + $0x90] sm:$0xff] %vm748, %v5732
    %5771 = vst.msk [vmem:[#allocation3 + $0xa0] sm:$0xff] %vm748, %v5734
    %5772 = vst.msk [vmem:[#allocation3 + $0xb0] sm:$0xff] %vm748, %v5736
    %5773 = vst.msk [vmem:[#allocation3 + $0xc0] sm:$0xff] %vm748, %v5738
    %5774 = vst.msk [vmem:[#allocation3 + $0xd0] sm:$0xff] %vm748, %v5740
    %5775 = vst.msk [vmem:[#allocation3 + $0xe0] sm:$0xff] %vm748, %v5742
    %5776 = vst.msk [vmem:[#allocation3 + $0xf0] sm:$0xff] %vm748, %v5744
    %5779 = vrot.lane.b32.xlu0 %v5261, 96
    %v5780 = vpop.permute.xlu0 %5779
    %5781 = vrot.lane.b32.xlu0 %v5263, 96
    %v5782 = vpop.permute.xlu0 %5781
    %5783 = vrot.lane.b32.xlu0 %v5265, 96
    %v5784 = vpop.permute.xlu0 %5783
    %5785 = vrot.lane.b32.xlu0 %v5267, 96
    %v5786 = vpop.permute.xlu0 %5785
    %5787 = vrot.lane.b32.xlu0 %v5269, 96
    %v5788 = vpop.permute.xlu0 %5787
    %5789 = vrot.lane.b32.xlu0 %v5271, 96
    %v5790 = vpop.permute.xlu0 %5789
    %5791 = vrot.lane.b32.xlu0 %v5273, 96
    %v5792 = vpop.permute.xlu0 %5791
    %5793 = vrot.lane.b32.xlu0 %v5275, 96
    %v5794 = vpop.permute.xlu0 %5793
    %5795 = vrot.lane.b32.xlu0 %v5281, 96
    %v5796 = vpop.permute.xlu0 %5795
    %5797 = vrot.lane.b32.xlu0 %v5283, 96
    %v5798 = vpop.permute.xlu0 %5797
    %5799 = vrot.lane.b32.xlu0 %v5285, 96
    %v5800 = vpop.permute.xlu0 %5799
    %5801 = vrot.lane.b32.xlu0 %v5287, 96
    %v5802 = vpop.permute.xlu0 %5801
    %5803 = vrot.lane.b32.xlu0 %v5289, 96
    %v5804 = vpop.permute.xlu0 %5803
    %5805 = vrot.lane.b32.xlu0 %v5291, 96
    %v5806 = vpop.permute.xlu0 %5805
    %5807 = vrot.lane.b32.xlu0 %v5293, 96
    %v5808 = vpop.permute.xlu0 %5807
    %5809 = vrot.lane.b32.xlu0 %v5295, 96
    %v5810 = vpop.permute.xlu0 %5809
    %5827 = vst.msk [vmem:[#allocation3] sm:$0xff] %vm815, %v5780
    %5828 = vst.msk [vmem:[#allocation3 + $0x10] sm:$0xff] %vm815, %v5782
    %5829 = vst.msk [vmem:[#allocation3 + $0x20] sm:$0xff] %vm815, %v5784
    %5830 = vst.msk [vmem:[#allocation3 + $0x30] sm:$0xff] %vm815, %v5786
    %5831 = vst.msk [vmem:[#allocation3 + $0x40] sm:$0xff] %vm815, %v5788
    %5832 = vst.msk [vmem:[#allocation3 + $0x50] sm:$0xff] %vm815, %v5790
    %5833 = vst.msk [vmem:[#allocation3 + $0x60] sm:$0xff] %vm815, %v5792
    %5834 = vst.msk [vmem:[#allocation3 + $0x70] sm:$0xff] %vm815, %v5794
    %5835 = vst.msk [vmem:[#allocation3 + $0x80] sm:$0xff] %vm815, %v5796
    %5836 = vst.msk [vmem:[#allocation3 + $0x90] sm:$0xff] %vm815, %v5798
    %5837 = vst.msk [vmem:[#allocation3 + $0xa0] sm:$0xff] %vm815, %v5800
    %5838 = vst.msk [vmem:[#allocation3 + $0xb0] sm:$0xff] %vm815, %v5802
    %5839 = vst.msk [vmem:[#allocation3 + $0xc0] sm:$0xff] %vm815, %v5804
    %5840 = vst.msk [vmem:[#allocation3 + $0xd0] sm:$0xff] %vm815, %v5806
    %5841 = vst.msk [vmem:[#allocation3 + $0xe0] sm:$0xff] %vm815, %v5808
    %5842 = vst.msk [vmem:[#allocation3 + $0xf0] sm:$0xff] %vm815, %v5810
    %v5845 = vrot.slane %v5275, 1
    %v5846 = vrot.slane %v5276, 1
    %v5847 = vsel %vm326, %v5845, %v5846
    %v5848 = vrot.slane %v5295, 1
    %v5849 = vrot.slane %v5296, 1
    %v5850 = vsel %vm326, %v5848, %v5849
    %5851 = vrot.lane.b32.xlu0 %v5353, 112
    %v5852 = vpop.permute.xlu0 %5851
    %5853 = vrot.lane.b32.xlu0 %v5356, 112
    %v5854 = vpop.permute.xlu0 %5853
    %5855 = vrot.lane.b32.xlu0 %v5359, 112
    %v5856 = vpop.permute.xlu0 %5855
    %5857 = vrot.lane.b32.xlu0 %v5362, 112
    %v5858 = vpop.permute.xlu0 %5857
    %5859 = vrot.lane.b32.xlu0 %v5365, 112
    %v5860 = vpop.permute.xlu0 %5859
    %5861 = vrot.lane.b32.xlu0 %v5368, 112
    %v5862 = vpop.permute.xlu0 %5861
    %5863 = vrot.lane.b32.xlu0 %v5639, 112
    %v5864 = vpop.permute.xlu0 %5863
    %5865 = vrot.lane.b32.xlu0 %v5847, 112
    %v5866 = vpop.permute.xlu0 %5865
    %5867 = vrot.lane.b32.xlu0 %v5377, 112
    %v5868 = vpop.permute.xlu0 %5867
    %5869 = vrot.lane.b32.xlu0 %v5380, 112
    %v5870 = vpop.permute.xlu0 %5869
    %5871 = vrot.lane.b32.xlu0 %v5383, 112
    %v5872 = vpop.permute.xlu0 %5871
    %5873 = vrot.lane.b32.xlu0 %v5386, 112
    %v5874 = vpop.permute.xlu0 %5873
    %5875 = vrot.lane.b32.xlu0 %v5389, 112
    %v5876 = vpop.permute.xlu0 %5875
    %5877 = vrot.lane.b32.xlu0 %v5392, 112
    %v5878 = vpop.permute.xlu0 %5877
    %5879 = vrot.lane.b32.xlu0 %v5642, 112
    %v5880 = vpop.permute.xlu0 %5879
    %5881 = vrot.lane.b32.xlu0 %v5850, 112
    %v5882 = vpop.permute.xlu0 %5881
    %5899 = vst.msk [vmem:[#allocation3] sm:$0xff] %vm888, %v5852
    %5900 = vst.msk [vmem:[#allocation3 + $0x10] sm:$0xff] %vm888, %v5854
    %5901 = vst.msk [vmem:[#allocation3 + $0x20] sm:$0xff] %vm888, %v5856
    %5902 = vst.msk [vmem:[#allocation3 + $0x30] sm:$0xff] %vm888, %v5858
    %5903 = vst.msk [vmem:[#allocation3 + $0x40] sm:$0xff] %vm888, %v5860
    %5904 = vst.msk [vmem:[#allocation3 + $0x50] sm:$0xff] %vm888, %v5862
    %5905 = vst.msk [vmem:[#allocation3 + $0x60] sm:$0xff] %vm888, %v5864
    %5906 = vst.msk [vmem:[#allocation3 + $0x70] sm:$0xff] %vm888, %v5866
    %5907 = vst.msk [vmem:[#allocation3 + $0x80] sm:$0xff] %vm888, %v5868
    %5908 = vst.msk [vmem:[#allocation3 + $0x90] sm:$0xff] %vm888, %v5870
    %5909 = vst.msk [vmem:[#allocation3 + $0xa0] sm:$0xff] %vm888, %v5872
    %5910 = vst.msk [vmem:[#allocation3 + $0xb0] sm:$0xff] %vm888, %v5874
    %5911 = vst.msk [vmem:[#allocation3 + $0xc0] sm:$0xff] %vm888, %v5876
    %5912 = vst.msk [vmem:[#allocation3 + $0xd0] sm:$0xff] %vm888, %v5878
    %5913 = vst.msk [vmem:[#allocation3 + $0xe0] sm:$0xff] %vm888, %v5880
    %5914 = vst.msk [vmem:[#allocation3 + $0xf0] sm:$0xff] %vm888, %v5882
    %v5915 = vrot.slane %v5275, 2
    %v5916 = vrot.slane %v5276, 2
    %v5917 = vsel %vm440, %v5915, %v5916
    %v5918 = vrot.slane %v5295, 2
    %v5919 = vrot.slane %v5296, 2
    %v5920 = vsel %vm440, %v5918, %v5919
    %5937 = vst.msk [vmem:[#allocation3 + $0x8] sm:$0xff] %vm27, %v5465
    %5938 = vst.msk [vmem:[#allocation3 + $0x18] sm:$0xff] %vm27, %v5468
    %5939 = vst.msk [vmem:[#allocation3 + $0x28] sm:$0xff] %vm27, %v5471
    %5940 = vst.msk [vmem:[#allocation3 + $0x38] sm:$0xff] %vm27, %v5474
    %5941 = vst.msk [vmem:[#allocation3 + $0x48] sm:$0xff] %vm27, %v5477
    %5942 = vst.msk [vmem:[#allocation3 + $0x58] sm:$0xff] %vm27, %v5480
    %5943 = vst.msk [vmem:[#allocation3 + $0x68] sm:$0xff] %vm27, %v5709
    %5944 = vst.msk [vmem:[#allocation3 + $0x78] sm:$0xff] %vm27, %v5917
    %5945 = vst.msk [vmem:[#allocation3 + $0x88] sm:$0xff] %vm27, %v5489
    %5946 = vst.msk [vmem:[#allocation3 + $0x98] sm:$0xff] %vm27, %v5492
    %5947 = vst.msk [vmem:[#allocation3 + $0xa8] sm:$0xff] %vm27, %v5495
    %5948 = vst.msk [vmem:[#allocation3 + $0xb8] sm:$0xff] %vm27, %v5498
    %5949 = vst.msk [vmem:[#allocation3 + $0xc8] sm:$0xff] %vm27, %v5501
    %5950 = vst.msk [vmem:[#allocation3 + $0xd8] sm:$0xff] %vm27, %v5504
    %5951 = vst.msk [vmem:[#allocation3 + $0xe8] sm:$0xff] %vm27, %v5712
    %5952 = vst.msk [vmem:[#allocation3 + $0xf8] sm:$0xff] %vm27, %v5920
    %v5953 = vld [vmem:[#allocation3] sm:$0xff]
    %v5954 = vld [vmem:[#allocation3 + $0x8] sm:$0xff]
    %v5955 = vld [vmem:[#allocation3 + $0x10] sm:$0xff]
    %v5956 = vld [vmem:[#allocation3 + $0x18] sm:$0xff]
    %v5957 = vld [vmem:[#allocation3 + $0x20] sm:$0xff]
    %v5958 = vld [vmem:[#allocation3 + $0x28] sm:$0xff]
    %v5959 = vld [vmem:[#allocation3 + $0x30] sm:$0xff]
    %v5960 = vld [vmem:[#allocation3 + $0x38] sm:$0xff]
    %v5961 = vld [vmem:[#allocation3 + $0x40] sm:$0xff]
    %v5962 = vld [vmem:[#allocation3 + $0x48] sm:$0xff]
    %v5963 = vld [vmem:[#allocation3 + $0x50] sm:$0xff]
    %v5964 = vld [vmem:[#allocation3 + $0x58] sm:$0xff]
    %v5965 = vld [vmem:[#allocation3 + $0x60] sm:$0xff]
    %v5966 = vld [vmem:[#allocation3 + $0x68] sm:$0xff]
    %v5967 = vld [vmem:[#allocation3 + $0x70] sm:$0xff]
    %v5968 = vld [vmem:[#allocation3 + $0x78] sm:$0xff]
    %v5969 = vld [vmem:[#allocation3 + $0x80] sm:$0xff]
    %v5970 = vld [vmem:[#allocation3 + $0x88] sm:$0xff]
    %v5971 = vld [vmem:[#allocation3 + $0x90] sm:$0xff]
    %v5972 = vld [vmem:[#allocation3 + $0x98] sm:$0xff]
    %v5973 = vld [vmem:[#allocation3 + $0xa0] sm:$0xff]
    %v5974 = vld [vmem:[#allocation3 + $0xa8] sm:$0xff]
    %v5975 = vld [vmem:[#allocation3 + $0xb0] sm:$0xff]
    %v5976 = vld [vmem:[#allocation3 + $0xb8] sm:$0xff]
    %v5977 = vld [vmem:[#allocation3 + $0xc0] sm:$0xff]
    %v5978 = vld [vmem:[#allocation3 + $0xc8] sm:$0xff]
    %v5979 = vld [vmem:[#allocation3 + $0xd0] sm:$0xff]
    %v5980 = vld [vmem:[#allocation3 + $0xd8] sm:$0xff]
    %v5981 = vld [vmem:[#allocation3 + $0xe0] sm:$0xff]
    %v5982 = vld [vmem:[#allocation3 + $0xe8] sm:$0xff]
    %v5983 = vld [vmem:[#allocation3 + $0xf0] sm:$0xff]
    %v5984 = vld [vmem:[#allocation3 + $0xf8] sm:$0xff]
    %s5985 = scalar_lea.vmem %s1, 720
    %v5986 = vld [vmem:[%s5985] sm:$0xff]
    %v5987 = vld [vmem:[%s5985 + $0x8] sm:$0xff]
    %v5988 = vld [vmem:[%s5985 + $0x10] sm:$0xff]
    %v5989 = vld [vmem:[%s5985 + $0x18] sm:$0xff]
    %v5990 = vld [vmem:[%s5985 + $0x20] sm:$0xff]
    %v5991 = vld [vmem:[%s5985 + $0x28] sm:$0xff]
    %v5992 = vld [vmem:[%s5985 + $0x30] sm:$0xff]
    %v5993 = vld [vmem:[%s5985 + $0x38] sm:$0xff]
    %v5994 = vld [vmem:[%s5985 + $0x40] sm:$0xff]
    %v5995 = vld [vmem:[%s5985 + $0x48] sm:$0xff]
    %v5996 = vld [vmem:[%s5985 + $0x50] sm:$0xff]
    %v5997 = vld [vmem:[%s5985 + $0x58] sm:$0xff]
    %v5998 = vld [vmem:[%s5985 + $0x60] sm:$0xff]
    %v5999 = vld [vmem:[%s5985 + $0x68] sm:$0xff]
    %v6000 = vld [vmem:[%s5985 + $0x70] sm:$0xff]
    %v6001 = vld [vmem:[%s5985 + $0x78] sm:$0xff]
    %v6002 = vld [vmem:[%s5985 + $0x80] sm:$0xff]
    %v6003 = vld [vmem:[%s5985 + $0x88] sm:$0xff]
    %s6004 = scalar_lea.vmem %s2, 5
    %v6005 = vld [vmem:[%s6004] sm:$0x1]
    %v6007 = vlaneseq
    %v6008 = vshrl.u32 %v6007, 7
    %v6009 = vsub.s32 0, %v6008
    %v6010 = vrot.slane %v6005, %v6009
    %v6013 = vsel %vm27, %v5954, 0
    %v6016 = vsel %vm27, %v5956, 0
    %v6019 = vsel %vm27, %v5958, 0
    %v6022 = vsel %vm27, %v5960, 0
    %v6025 = vsel %vm27, %v5962, 0
    %v6028 = vsel %vm27, %v5964, 0
    %v6031 = vsel %vm27, %v5966, 0
    %v6034 = vsel %vm27, %v5968, 0
    %v6037 = vsel %vm27, %v5970, 0
    %v6040 = vsel %vm27, %v5972, 0
    %v6043 = vsel %vm27, %v5974, 0
    %v6046 = vsel %vm27, %v5976, 0
    %v6049 = vsel %vm27, %v5978, 0
    %v6052 = vsel %vm27, %v5980, 0
    %v6055 = vsel %vm27, %v5982, 0
    %v6058 = vsel %vm27, %v5984, 0
    %6060 = vmatprep.subr.mxu0 0.0
    %6061 = vmatpush1.msra.mxu0 %v5986
    %6062 = vmatprep.subr.mxu0 0.0
    %6063 = vmatpush1.msra.mxu0 %v5987
    %6064 = vmatprep.subr.mxu0 0.0
    %6065 = vmatpush1.msra.mxu0 %v5988
    %6066 = vmatprep.subr.mxu0 0.0
    %6067 = vmatpush1.msra.mxu0 %v5989
    %6068 = vmatprep.subr.mxu0 0.0
    %6069 = vmatpush1.msra.mxu0 %v5990
    %6070 = vmatprep.subr.mxu0 0.0
    %6071 = vmatpush1.msra.mxu0 %v5991
    %6072 = vmatprep.subr.mxu0 0.0
    %6073 = vmatpush1.msra.mxu0 %v5992
    %6074 = vmatprep.subr.mxu0 0.0
    %6075 = vmatpush1.msra.mxu0 %v5993
    %6076 = vmatprep.subr.mxu0 0.0
    %6077 = vmatpush1.msra.mxu0 %v5994
    %6078 = vmatprep.subr.mxu0 0.0
    %6079 = vmatpush1.msra.mxu0 %v5995
    %6080 = vmatprep.subr.mxu0 0.0
    %6081 = vmatpush1.msra.mxu0 %v5996
    %6082 = vmatprep.subr.mxu0 0.0
    %6083 = vmatpush1.msra.mxu0 %v5997
    %6084 = vmatprep.subr.mxu0 0.0
    %6085 = vmatpush1.msra.mxu0 %v5998
    %6086 = vmatprep.subr.mxu0 0.0
    %6087 = vmatpush1.msra.mxu0 %v5999
    %6088 = vmatprep.subr.mxu0 0.0
    %6089 = vmatpush1.msra.mxu0 %v6000
    %6090 = vmatprep.subr.mxu0 0.0
    %6091 = vmatpush1.msra.mxu0 %v6001
    %6092 = vmatprep.subr.mxu0 0.0
    %6093 = vmatpush1.msra.mxu0 %v6002
    %6094 = vmatprep.subr.mxu0 0.0
    %6095 = vmatpush1.msra.mxu0 %v6003
    %6096 = vmatprep.subr.mxu0 0.0
    %6097 = vmatpush1.msra.mxu0 0.0
    %6098 = vmatprep.subr.mxu0 0.0
    %6099 = vmatpush1.msra.mxu0 0.0
    %6100 = vmatprep.subr.mxu0 0.0
    %6101 = vmatpush1.msra.mxu0 0.0
    %6102 = vmatprep.subr.mxu0 0.0
    %6103 = vmatpush1.msra.mxu0 0.0
    %6104 = vmatprep.subr.mxu0 0.0
    %6105 = vmatpush1.msra.mxu0 0.0
    %6106 = vmatprep.subr.mxu0 0.0
    %6107 = vmatpush1.msra.mxu0 0.0
    %6108 = vmatprep.subr.mxu0 0.0
    %6109 = vmatpush1.msra.mxu0 0.0
    %6110 = vmatprep.subr.mxu0 0.0
    %6111 = vmatpush1.msra.mxu0 0.0
    %6112 = vmatprep.subr.mxu0 0.0
    %6113 = vmatpush1.msra.mxu0 0.0
    %6114 = vmatprep.subr.mxu0 0.0
    %6115 = vmatpush1.msra.mxu0 0.0
    %6116 = vmatprep.subr.mxu0 0.0
    %6117 = vmatpush1.msra.mxu0 0.0
    %6118 = vmatprep.subr.mxu0 0.0
    %6119 = vmatpush1.msra.mxu0 0.0
    %6120 = vmatprep.subr.mxu0 0.0
    %6121 = vmatpush1.msra.mxu0 0.0
    %6122 = vmatprep.subr.mxu0 0.0
    %6123 = vmatpush1.msra.mxu0 0.0
    %6124 = vmatprep.mubr.f32.mxu0 %v6013
    %6125 = vmatmul.mubr.f32.gmra.mrb[0].mxu0 %v5953
    %v6126 = vpop.f32.mrb[0].mxu0
    %v6127 = vadd.f32 %v6010, %v6126
    %v6128 = vpop.f32.mrb[0].mxu0
    %6129 = vmatprep.mubr.f32.mxu0 %v6016
    %6130 = vmatmul.mubr.f32.gmra.mrb[0].mxu0 %v5955
    %v6131 = vpop.f32.mrb[0].mxu0
    %v6132 = vadd.f32 %v6010, %v6131
    %v6133 = vpop.f32.mrb[0].mxu0
    %6134 = vmatprep.mubr.f32.mxu0 %v6019
    %6135 = vmatmul.mubr.f32.gmra.mrb[0].mxu0 %v5957
    %v6136 = vpop.f32.mrb[0].mxu0
    %v6137 = vadd.f32 %v6010, %v6136
    %v6138 = vpop.f32.mrb[0].mxu0
    %6139 = vmatprep.mubr.f32.mxu0 %v6022
    %6140 = vmatmul.mubr.f32.gmra.mrb[0].mxu0 %v5959
    %v6141 = vpop.f32.mrb[0].mxu0
    %v6142 = vadd.f32 %v6010, %v6141
    %v6143 = vpop.f32.mrb[0].mxu0
    %6144 = vmatprep.mubr.f32.mxu0 %v6025
    %6145 = vmatmul.mubr.f32.gmra.mrb[0].mxu0 %v5961
    %v6146 = vpop.f32.mrb[0].mxu0
    %v6147 = vadd.f32 %v6010, %v6146
    %v6148 = vpop.f32.mrb[0].mxu0
    %6149 = vmatprep.mubr.f32.mxu0 %v6028
    %6150 = vmatmul.mubr.f32.gmra.mrb[0].mxu0 %v5963
    %v6151 = vpop.f32.mrb[0].mxu0
    %v6152 = vadd.f32 %v6010, %v6151
    %v6153 = vpop.f32.mrb[0].mxu0
    %6154 = vmatprep.mubr.f32.mxu0 %v6031
    %6155 = vmatmul.mubr.f32.gmra.mrb[0].mxu0 %v5965
    %v6156 = vpop.f32.mrb[0].mxu0
    %v6157 = vadd.f32 %v6010, %v6156
    %v6158 = vpop.f32.mrb[0].mxu0
    %6159 = vmatprep.mubr.f32.mxu0 %v6034
    %6160 = vmatmul.mubr.f32.gmra.mrb[0].mxu0 %v5967
    %v6161 = vpop.f32.mrb[0].mxu0
    %v6162 = vadd.f32 %v6010, %v6161
    %v6163 = vpop.f32.mrb[0].mxu0
    %6164 = vmatprep.mubr.f32.mxu0 %v6037
    %6165 = vmatmul.mubr.f32.gmra.mrb[0].mxu0 %v5969
    %v6166 = vpop.f32.mrb[0].mxu0
    %v6167 = vadd.f32 %v6010, %v6166
    %v6168 = vpop.f32.mrb[0].mxu0
    %6169 = vmatprep.mubr.f32.mxu0 %v6040
    %6170 = vmatmul.mubr.f32.gmra.mrb[0].mxu0 %v5971
    %v6171 = vpop.f32.mrb[0].mxu0
    %v6172 = vadd.f32 %v6010, %v6171
    %v6173 = vpop.f32.mrb[0].mxu0
    %6174 = vmatprep.mubr.f32.mxu0 %v6043
    %6175 = vmatmul.mubr.f32.gmra.mrb[0].mxu0 %v5973
    %v6176 = vpop.f32.mrb[0].mxu0
    %v6177 = vadd.f32 %v6010, %v6176
    %v6178 = vpop.f32.mrb[0].mxu0
    %6179 = vmatprep.mubr.f32.mxu0 %v6046
    %6180 = vmatmul.mubr.f32.gmra.mrb[0].mxu0 %v5975
    %v6181 = vpop.f32.mrb[0].mxu0
    %v6182 = vadd.f32 %v6010, %v6181
    %v6183 = vpop.f32.mrb[0].mxu0
    %6184 = vmatprep.mubr.f32.mxu0 %v6049
    %6185 = vmatmul.mubr.f32.gmra.mrb[0].mxu0 %v5977
    %v6186 = vpop.f32.mrb[0].mxu0
    %v6187 = vadd.f32 %v6010, %v6186
    %v6188 = vpop.f32.mrb[0].mxu0
    %6189 = vmatprep.mubr.f32.mxu0 %v6052
    %6190 = vmatmul.mubr.f32.gmra.mrb[0].mxu0 %v5979
    %v6191 = vpop.f32.mrb[0].mxu0
    %v6192 = vadd.f32 %v6010, %v6191
    %v6193 = vpop.f32.mrb[0].mxu0
    %6194 = vmatprep.mubr.f32.mxu0 %v6055
    %6195 = vmatmul.mubr.f32.gmra.mrb[0].mxu0 %v5981
    %v6196 = vpop.f32.mrb[0].mxu0
    %v6197 = vadd.f32 %v6010, %v6196
    %v6198 = vpop.f32.mrb[0].mxu0
    %6199 = vmatprep.mubr.f32.mxu0 %v6058
    %6200 = vmatmul.mubr.f32.gmra.mrb[0].mxu0 %v5983
    %v6201 = vpop.f32.mrb[0].mxu0
    %v6202 = vadd.f32 %v6010, %v6201
    %v6203 = vpop.f32.mrb[0].mxu0
    %6204 = vdwg.mxu0
    %v6205 = vadd.f32 %v6127, %v4229
    %v6206 = vadd.f32 %v6132, %v4230
    %v6207 = vadd.f32 %v6137, %v4231
    %v6208 = vadd.f32 %v6142, %v4232
    %v6209 = vadd.f32 %v6147, %v4233
    %v6210 = vadd.f32 %v6152, %v4234
    %v6211 = vadd.f32 %v6157, %v4235
    %v6212 = vadd.f32 %v6162, %v4236
    %v6213 = vadd.f32 %v6167, %v4237
    %v6214 = vadd.f32 %v6172, %v4238
    %v6215 = vadd.f32 %v6177, %v4239
    %v6216 = vadd.f32 %v6182, %v4240
    %v6217 = vadd.f32 %v6187, %v4241
    %v6218 = vadd.f32 %v6192, %v4242
    %v6219 = vadd.f32 %v6197, %v4243
    %v6220 = vadd.f32 %v6202, %v4244
    %v6221 = vmax.f32 %v6205, 0.0
    %v6222 = vmax.f32 %v6206, 0.0
    %v6223 = vmax.f32 %v6207, 0.0
    %v6224 = vmax.f32 %v6208, 0.0
    %v6225 = vmax.f32 %v6209, 0.0
    %v6226 = vmax.f32 %v6210, 0.0
    %v6227 = vmax.f32 %v6211, 0.0
    %v6228 = vmax.f32 %v6212, 0.0
    %v6229 = vmax.f32 %v6213, 0.0
    %v6230 = vmax.f32 %v6214, 0.0
    %v6231 = vmax.f32 %v6215, 0.0
    %v6232 = vmax.f32 %v6216, 0.0
    %v6233 = vmax.f32 %v6217, 0.0
    %v6234 = vmax.f32 %v6218, 0.0
    %v6235 = vmax.f32 %v6219, 0.0
    %v6236 = vmax.f32 %v6220, 0.0
    %v6237 = vmul.f32 %v6221, %v96
    %v6238 = vmul.f32 %v6222, %v96
    %v6239 = vmul.f32 %v6223, %v96
    %v6240 = vmul.f32 %v6224, %v96
    %v6241 = vmul.f32 %v6225, %v96
    %v6242 = vmul.f32 %v6226, %v96
    %v6243 = vmul.f32 %v6227, %v96
    %v6244 = vmul.f32 %v6228, %v96
    %v6245 = vmul.f32 %v6229, %v100
    %v6246 = vmul.f32 %v6230, %v100
    %v6247 = vmul.f32 %v6231, %v100
    %v6248 = vmul.f32 %v6232, %v100
    %v6249 = vmul.f32 %v6233, %v100
    %v6250 = vmul.f32 %v6234, %v100
    %v6251 = vmul.f32 %v6235, %v100
    %v6252 = vmul.f32 %v6236, %v100
    %6253 = vst.msk [vmem:[#allocation4] sm:$0xff] %vm27, %v6237
    %6254 = vst.msk [vmem:[#allocation4 + $0x8] sm:$0xff] %vm27, %v6238
    %6255 = vst.msk [vmem:[#allocation4 + $0x10] sm:$0xff] %vm27, %v6239
    %6256 = vst.msk [vmem:[#allocation4 + $0x18] sm:$0xff] %vm27, %v6240
    %6257 = vst.msk [vmem:[#allocation4 + $0x20] sm:$0xff] %vm27, %v6241
    %6258 = vst.msk [vmem:[#allocation4 + $0x28] sm:$0xff] %vm27, %v6242
    %6259 = vst.msk [vmem:[#allocation4 + $0x30] sm:$0xff] %vm27, %v6243
    %6260 = vst.msk [vmem:[#allocation4 + $0x38] sm:$0xff] %vm27, %v6244
    %6261 = vst.msk [vmem:[#allocation4 + $0x40] sm:$0xff] %vm27, %v6245
    %6262 = vst.msk [vmem:[#allocation4 + $0x48] sm:$0xff] %vm27, %v6246
    %6263 = vst.msk [vmem:[#allocation4 + $0x50] sm:$0xff] %vm27, %v6247
    %6264 = vst.msk [vmem:[#allocation4 + $0x58] sm:$0xff] %vm27, %v6248
    %6265 = vst.msk [vmem:[#allocation4 + $0x60] sm:$0xff] %vm27, %v6249
    %6266 = vst.msk [vmem:[#allocation4 + $0x68] sm:$0xff] %vm27, %v6250
    %6267 = vst.msk [vmem:[#allocation4 + $0x70] sm:$0xff] %vm27, %v6251
    %6268 = vst.msk [vmem:[#allocation4 + $0x78] sm:$0xff] %vm27, %v6252
    // Predicated region
    $region30: #{l0layer_forward.1} parent=1 // pred_check
      _
    $region31: #{l0layer_forward.1} parent=1 // pred_check_branch
      %6270 = sbr.rel (0) target = $region33
    $region32: #{l0layer_forward.1} parent=1 // pred_region
      %s6272 = ssub.s32 2048, 2048
      %6273 = vsyncadd [#allocation5], %s6272
      %s6274 = sshll.u32 [#allocation4], 4
      %s6275 = int_to_ptr.vmem [resolvable:$true] %s6274
      %6280 = dma.vmem_to_hbm [thread:$0]  %s6275, 2048, %s7, [#allocation5], 128, 128, 8
    $region33: #{l0layer_forward.1} parent=1 // pred_fallthru
      _
    // Predicated region
    $region34: #{l0layer_forward.1} parent=1 // pred_check
      _
    $region35: #{l0layer_forward.1} parent=1 // pred_check_branch
      %6282 = sbr.rel (0) target = $region37
    $region36: #{l0layer_forward.1} parent=1 // pred_region
      %6283 = dma.done [#allocation5], 2048
    $region37: #{l0layer_forward.1} parent=1 // pred_fallthru
      _
    %6284 = vsyncpa [#allocation5], 1

</llo_original>
